<compile_context>
chip_gen: v7x
topology: tpu7x:2x2x1
jax: 0.10.0
libtpu: 0.0.40
codegen_flags: <defaults>
</compile_context>

<pallas_src>
import functools

import jax
import jax.numpy as jnp
from jax.experimental import pallas as pl
from jax.experimental.pallas import tpu as pltpu

OCP = 128                 # lane-dense padded output-channel width for every matmul
NUM_CLASSES = 10
CONV_BLOCK_IMAGES = 8     # images per conv grid step (VMEM-safe on v5e's 16 MiB)
FC_BLOCK_ROWS = 256       # batch rows per step of the fused conv3+fc kernel


def _round_up(a, b):
    return -(-a // b) * b


# ---------------------------------------------------------------------------
# Pallas kernels
# ---------------------------------------------------------------------------
def _conv_pool_kernel(p00_ref, p01_ref, p10_ref, p11_ref, w_ref, b_ref, o_ref):
    """Fused conv (as matmul) + 2x2/stride-2 max pool + bias + ReLU.

    Each p*_ref holds the im2col patches of ONE pooling-window offset
    (dy, dx) for a block of images, shape (BI*PO, K) bf16; row i*PO + p is
    pooled output position p of image i.  Pooling is a running max over the
    four offset matmuls (bias+ReLU commute with the max), so only one
    (BI*PO, 128) f32 intermediate is ever live.
    """
    w = w_ref[...]
    y = jnp.dot(p00_ref[...], w, preferred_element_type=jnp.float32)
    y = jnp.maximum(y, jnp.dot(p01_ref[...], w, preferred_element_type=jnp.float32))
    y = jnp.maximum(y, jnp.dot(p10_ref[...], w, preferred_element_type=jnp.float32))
    y = jnp.maximum(y, jnp.dot(p11_ref[...], w, preferred_element_type=jnp.float32))
    o_ref[...] = jnp.maximum(y + b_ref[...], 0.0).astype(o_ref.dtype)


def _conv3_fc_kernel(p_ref, cw_ref, cb_ref, w1_ref, b1_ref, w2_ref, b2_ref,
                     w3_ref, b3_ref, o_ref, *, num_classes):
    """conv3+ReLU -> fc1+ReLU -> fc2+ReLU -> fc3 -> log_softmax, fused.

    p_ref: (9, BM, 144) bf16 conv3 patches, spatial-position major.  fc1 is
    applied as 9 accumulated (128,128) K-chunk dots (one per conv3 spatial
    position), so the conv3 activation never round-trips to HBM.
    """
    bm = p_ref.shape[1]
    cw, cb = cw_ref[...], cb_ref[...]
    acc = jnp.zeros((bm, OCP), jnp.float32)
    for s in range(9):                                   # static unroll (9 positions)
        h3 = jnp.dot(p_ref[s], cw, preferred_element_type=jnp.float32)
        h3 = jnp.maximum(h3 + cb, 0.0)                   # conv3 + ReLU at position s
        acc += jnp.dot(h3.astype(jnp.bfloat16), w1_ref[s],
                       preferred_element_type=jnp.float32)
    h = jnp.maximum(acc + b1_ref[...], 0.0)              # fc1 + ReLU
    h = jnp.dot(h.astype(jnp.bfloat16), w2_ref[...],
                preferred_element_type=jnp.float32)
    h = jnp.maximum(h + b2_ref[...], 0.0)                # fc2 + ReLU
    logits = jnp.dot(h.astype(jnp.bfloat16), w3_ref[...],
                     preferred_element_type=jnp.float32) + b3_ref[...]
    # Mask the zero-padded class columns before the softmax reduction
    # (safe: this epilogue stays f32).
    col = jax.lax.broadcasted_iota(jnp.int32, logits.shape, 1)
    logits = jnp.where(col < num_classes, logits, -1e30)
    m = jnp.max(logits, axis=-1, keepdims=True)
    sh = logits - m
    lse = jnp.log(jnp.sum(jnp.exp(sh), axis=-1, keepdims=True))
    o_ref[...] = sh - lse


# ---------------------------------------------------------------------------
# pallas_call wrappers
# ---------------------------------------------------------------------------
def conv_pool(p_offsets, w, b, pooled_positions, block_images):
    """p_offsets: 4 arrays (N*PO, K) bf16 -> (N*PO, OCP) bf16, BI images/step."""
    rows, k = p_offsets[0].shape
    n_img = rows // pooled_positions
    assert n_img % block_images == 0
    br = block_images * pooled_positions
    p_spec = pl.BlockSpec((br, k), lambda i: (i, 0))
    cost = pl.CostEstimate(
        flops=2 * 4 * rows * k * OCP, transcendentals=0,
        bytes_accessed=(4 * rows * k + rows * OCP + k * OCP) * 2 + OCP * 4)
    return pl.pallas_call(
        _conv_pool_kernel,
        out_shape=jax.ShapeDtypeStruct((rows, OCP), jnp.bfloat16),
        grid=(n_img // block_images,),
        in_specs=[p_spec, p_spec, p_spec, p_spec,
                  pl.BlockSpec((k, OCP), lambda i: (0, 0)),
                  pl.BlockSpec((1, OCP), lambda i: (0, 0))],
        out_specs=pl.BlockSpec((br, OCP), lambda i: (i, 0)),
        compiler_params=pltpu.CompilerParams(dimension_semantics=("parallel",)),
        cost_estimate=cost,
    )(*p_offsets, w, b)


def conv3_fc_stack(p3, fp, num_classes, block_rows):
    """Fused conv3+fc1+fc2+fc3+log_softmax.  p3: (9, M, 144) bf16 -> (M, OCP) f32."""
    _, m_rows, k = p3.shape
    assert m_rows % block_rows == 0
    weight_bytes = (k * OCP + 9 * OCP * OCP + 2 * OCP * OCP) * 2 + 4 * OCP * 4
    cost = pl.CostEstimate(
        flops=2 * m_rows * (9 * k * OCP + 9 * OCP * OCP + 2 * OCP * OCP),
        transcendentals=m_rows * OCP,
        bytes_accessed=9 * m_rows * k * 2 + m_rows * OCP * 4 + weight_bytes)
    full = lambda i: (0, 0)
    return pl.pallas_call(
        functools.partial(_conv3_fc_kernel, num_classes=num_classes),
        out_shape=jax.ShapeDtypeStruct((m_rows, OCP), jnp.float32),
        grid=(m_rows // block_rows,),
        in_specs=[
            pl.BlockSpec((9, block_rows, k), lambda i: (0, i, 0)),
            pl.BlockSpec((k, OCP), full),                # conv3 weight
            pl.BlockSpec((1, OCP), full),                # conv3 bias
            pl.BlockSpec((9, OCP, OCP), lambda i: (0, 0, 0)),   # fc1 (9 K-chunks)
            pl.BlockSpec((1, OCP), full),
            pl.BlockSpec((OCP, OCP), full),              # fc2
            pl.BlockSpec((1, OCP), full),
            pl.BlockSpec((OCP, OCP), full),              # fc3
            pl.BlockSpec((1, OCP), full),
        ],
        out_specs=pl.BlockSpec((block_rows, OCP), lambda i: (i, 0)),
        compiler_params=pltpu.CompilerParams(dimension_semantics=("parallel",)),
        cost_estimate=cost,
    )(p3, fp["conv3_w"], fp["conv3_b"], fp["fc1_w"], fp["fc1_b"],
      fp["fc2_w"], fp["fc2_b"], fp["fc3_w"], fp["fc3_b"])


# ---------------------------------------------------------------------------
# Plain-JAX glue: per-pool-offset patch extraction, layout prep, param init
# ---------------------------------------------------------------------------
def _pool_offset_patches(x_nhwc, ksize):
    """Four stride-2 im2col extractions, one per 2x2 pooling-window offset.

    Returns 4 arrays of shape (N*PO, C*ksize*ksize), feature index ordered
    channel-major (c, kh, kw) to match torch's weight.reshape(OC, C*KH*KW).
    """
    outs = []
    for dy in (0, 1):
        for dx in (0, 1):
            p = jax.lax.conv_general_dilated_patches(
                x_nhwc[:, dy:, dx:, :], (ksize, ksize), (2, 2), "VALID",
                dimension_numbers=("NHWC", "HWIO", "NHWC"))
            n, ph, pw, kk = p.shape
            outs.append(p.reshape(n * ph * pw, kk))
    return outs


def cnn_cifar_forward(x, fp, num_classes=NUM_CLASSES):
    """x: (N, 3, 32, 32) float32 NCHW (PyTorch convention)."""
    n = x.shape[0]
    n1 = _round_up(n, CONV_BLOCK_IMAGES)
    xh = jnp.transpose(x, (0, 2, 3, 1)).astype(jnp.bfloat16)    # NHWC, once
    if n1 != n:
        xh = jnp.pad(xh, ((0, n1 - n), (0, 0), (0, 0), (0, 0)))

    # conv1 (3->6, 5x5) + ReLU + 2x2 pool: 4 x (n1*196, 75) -> (n1*196, 128)
    a1 = conv_pool(_pool_offset_patches(xh, 5), fp["conv1_w"], fp["conv1_b"],
                   14 * 14, CONV_BLOCK_IMAGES)
    x2 = a1.reshape(n1, 14, 14, OCP)[..., :6]

    # conv2 (6->16, 5x5) + ReLU + 2x2 pool: 4 x (n1*25, 150) -> (n1*25, 128)
    a2 = conv_pool(_pool_offset_patches(x2, 5), fp["conv2_w"], fp["conv2_b"],
                   5 * 5, CONV_BLOCK_IMAGES)
    x3 = a2.reshape(n1, 5, 5, OCP)[..., :16]

    # conv3 (16->32, 3x3) + ReLU + fc1/fc2/fc3 + log_softmax, one fused kernel.
    p3 = jax.lax.conv_general_dilated_patches(
        x3, (3, 3), (1, 1), "VALID",
        dimension_numbers=("NHWC", "HWIO", "NHWC"))              # (n1, 3, 3, 144)
    p3 = jnp.transpose(p3.reshape(n1, 9, 144), (1, 0, 2))        # spatial-major
    bm = FC_BLOCK_ROWS if n1 >= FC_BLOCK_ROWS else n1
    n2 = _round_up(n1, bm)
    if n2 != n1:
        p3 = jnp.pad(p3, ((0, 0), (0, n2 - n1), (0, 0)))
    out = conv3_fc_stack(p3, fp, num_classes, bm)                # (n2, 128) f32
    return out[:n, :num_classes]


def init_params(key, num_classes=NUM_CLASSES):
    """PyTorch-layout, PyTorch-default-init parameters."""
    def uinit(k, shape, fan_in):
        bound = 1.0 / jnp.sqrt(jnp.float32(fan_in))
        return jax.random.uniform(k, shape, jnp.float32, -bound, bound)

    ks = jax.random.split(key, 12)
    return {
        "conv1_w": uinit(ks[0], (6, 3, 5, 5), 3 * 5 * 5),
        "conv1_b": uinit(ks[1], (6,), 3 * 5 * 5),
        "conv2_w": uinit(ks[2], (16, 6, 5, 5), 6 * 5 * 5),
        "conv2_b": uinit(ks[3], (16,), 6 * 5 * 5),
        "conv3_w": uinit(ks[4], (32, 16, 3, 3), 16 * 3 * 3),
        "conv3_b": uinit(ks[5], (32,), 16 * 3 * 3),
        "fc1_w": uinit(ks[6], (120, 32 * 3 * 3), 32 * 3 * 3),
        "fc1_b": uinit(ks[7], (120,), 32 * 3 * 3),
        "fc2_w": uinit(ks[8], (84, 120), 120),
        "fc2_b": uinit(ks[9], (84,), 120),
        "fc3_w": uinit(ks[10], (num_classes, 84), 84),
        "fc3_b": uinit(ks[11], (num_classes,), 84),
    }


def prepare_params(p, num_classes=NUM_CLASSES):
    """One-time conversion to kernel layouts: K-major, OC zero-padded to 128
    (lane-dense), bf16 MXU operands, f32 biases.  fc1 is stored as 9 K-chunk
    slabs in (h, w, c) order to accept the NHWC conv3 spatial-major feed."""
    del num_classes  # class count is handled by in-kernel masking

    def pad2(a, rows, cols):
        return jnp.zeros((rows, cols), a.dtype).at[:a.shape[0], :a.shape[1]].set(a)

    def conv_w(w):
        wm = w.reshape(w.shape[0], -1).T                 # (C*KH*KW, OC) channel-major
        return pad2(wm, wm.shape[0], OCP).astype(jnp.bfloat16)

    def bias(b):
        return pad2(b.reshape(1, -1), 1, OCP).astype(jnp.float32)

    w1 = p["fc1_w"].reshape(120, 32, 3, 3).transpose(2, 3, 1, 0)   # (h, w, c, u)
    w1 = w1.reshape(9, 32, 120)                                    # s = h*3 + w
    w1p = jnp.zeros((9, OCP, OCP), jnp.float32).at[:, :32, :120].set(w1)

    return {
        "conv1_w": conv_w(p["conv1_w"]), "conv1_b": bias(p["conv1_b"]),
        "conv2_w": conv_w(p["conv2_w"]), "conv2_b": bias(p["conv2_b"]),
        "conv3_w": conv_w(p["conv3_w"]), "conv3_b": bias(p["conv3_b"]),
        "fc1_w": w1p.astype(jnp.bfloat16), "fc1_b": bias(p["fc1_b"]),
        "fc2_w": pad2(p["fc2_w"].T, OCP, OCP).astype(jnp.bfloat16),
        "fc2_b": bias(p["fc2_b"]),
        "fc3_w": pad2(p["fc3_w"].T, OCP, OCP).astype(jnp.bfloat16),
        "fc3_b": bias(p["fc3_b"]),
    }


def _reference_forward(x, p):
    """Pure-JAX f32 reference matching the PyTorch module (for parity check)."""
    def conv(h, w, b):
        y = jax.lax.conv_general_dilated(
            h, w, (1, 1), "VALID", dimension_numbers=("NCHW", "OIHW", "NCHW"))
        return y + b.reshape(1, -1, 1, 1)

    def pool(h):
        return jax.lax.reduce_window(h, -jnp.inf, jax.lax.max,
                                     (1, 1, 2, 2), (1, 1, 2, 2), "VALID")

    h = pool(jax.nn.relu(conv(x, p["conv1_w"], p["conv1_b"])))
    h = pool(jax.nn.relu(conv(h, p["conv2_w"], p["conv2_b"])))
    h = jax.nn.relu(conv(h, p["conv3_w"], p["conv3_b"])).reshape(x.shape[0], -1)
    h = jax.nn.relu(h @ p["fc1_w"].T + p["fc1_b"])
    h = jax.nn.relu(h @ p["fc2_w"].T + p["fc2_b"])
    logits = h @ p["fc3_w"].T + p["fc3_b"]
    return jax.nn.log_softmax(logits, axis=-1)


if __name__ == "__main__":
    key = jax.random.PRNGKey(0)
    k_params, k_x = jax.random.split(key)
    raw_params = init_params(k_params, NUM_CLASSES)
    params = prepare_params(raw_params)
    # Spatial size 32 is required by the 32*3*3 flatten in the reference model.
    x = jax.random.normal(k_x, (2, 3, 32, 32), dtype=jnp.float32)

    out = jax.jit(cnn_cifar_forward)(x, params)
    out = jax.block_until_ready(out)

    assert out.shape == (2, NUM_CLASSES)
    assert bool(jnp.all(jnp.isfinite(out)))
    # log_softmax rows should (approximately) logsumexp to 0.
    assert bool(jnp.all(jnp.abs(jax.scipy.special.logsumexp(out, axis=1)) < 1e-3))
    # Numerical parity with a pure-JAX f32 reference (bf16-MXU tolerance).
    ref = _reference_forward(x, raw_params)
    assert bool(jnp.max(jnp.abs(out - ref)) < 1e-1)
    print("KERNEL_OK")
</pallas_src>

<mosaic_0001>
module attributes {stable_mosaic.version = 11 : i64} {
  func.func @_conv_pool_kernel(%arg0: i32, %arg1: memref<1568x75xbf16, #tpu.memory_space<vmem>>, %arg2: memref<1568x75xbf16, #tpu.memory_space<vmem>>, %arg3: memref<1568x75xbf16, #tpu.memory_space<vmem>>, %arg4: memref<1568x75xbf16, #tpu.memory_space<vmem>>, %arg5: memref<75x128xbf16, #tpu.memory_space<vmem>>, %arg6: memref<1x128xf32, #tpu.memory_space<vmem>>, %arg7: memref<1568x128xbf16, #tpu.memory_space<vmem>>) attributes {dimension_semantics = [#tpu.dimension_semantics<parallel>], iteration_bounds = array<i64: 1>, scalar_prefetch = 0 : i64, scratch_operands = 0 : i64, tpu.core_type = #tpu.core_type<tc>, window_params = [{transform_indices = @transform_0, window_bounds = array<i64: 1568, 75>}, {transform_indices = @transform_1, window_bounds = array<i64: 1568, 75>}, {transform_indices = @transform_2, window_bounds = array<i64: 1568, 75>}, {transform_indices = @transform_3, window_bounds = array<i64: 1568, 75>}, {pipeline_mode = #tpu.pipeline_mode<synchronous>, transform_indices = @transform_4, window_bounds = array<i64: 75, 128>}, {pipeline_mode = #tpu.pipeline_mode<synchronous>, transform_indices = @transform_5, window_bounds = array<i64: 1, 128>}, {transform_indices = @transform_6, window_bounds = array<i64: 1568, 128>}]} {
    %c0 = arith.constant 0 : index
    %c0_0 = arith.constant 0 : index
    %0 = vector.load %arg5[%c0, %c0_0] : memref<75x128xbf16, #tpu.memory_space<vmem>>, vector<75x128xbf16>
    %c0_1 = arith.constant 0 : index
    %c0_2 = arith.constant 0 : index
    %1 = vector.load %arg1[%c0_1, %c0_2] : memref<1568x75xbf16, #tpu.memory_space<vmem>>, vector<1568x75xbf16>
    %cst = arith.constant dense<0.000000e+00> : vector<1568x128xf32>
    %2 = tpu.matmul %1, %0, %cst {dimension_numbers = #tpu.dot_dimension_numbers<[1], [0], [0], [1], [0, 0, 1, 1], [], []>} : vector<1568x75xbf16>, vector<75x128xbf16>, vector<1568x128xf32> -> vector<1568x128xf32>
    %c0_3 = arith.constant 0 : index
    %c0_4 = arith.constant 0 : index
    %3 = vector.load %arg2[%c0_3, %c0_4] : memref<1568x75xbf16, #tpu.memory_space<vmem>>, vector<1568x75xbf16>
    %cst_5 = arith.constant dense<0.000000e+00> : vector<1568x128xf32>
    %4 = tpu.matmul %3, %0, %cst_5 {dimension_numbers = #tpu.dot_dimension_numbers<[1], [0], [0], [1], [0, 0, 1, 1], [], []>} : vector<1568x75xbf16>, vector<75x128xbf16>, vector<1568x128xf32> -> vector<1568x128xf32>
    %5 = arith.maximumf %2, %4 : vector<1568x128xf32>
    %c0_6 = arith.constant 0 : index
    %c0_7 = arith.constant 0 : index
    %6 = vector.load %arg3[%c0_6, %c0_7] : memref<1568x75xbf16, #tpu.memory_space<vmem>>, vector<1568x75xbf16>
    %cst_8 = arith.constant dense<0.000000e+00> : vector<1568x128xf32>
    %7 = tpu.matmul %6, %0, %cst_8 {dimension_numbers = #tpu.dot_dimension_numbers<[1], [0], [0], [1], [0, 0, 1, 1], [], []>} : vector<1568x75xbf16>, vector<75x128xbf16>, vector<1568x128xf32> -> vector<1568x128xf32>
    %8 = arith.maximumf %5, %7 : vector<1568x128xf32>
    %c0_9 = arith.constant 0 : index
    %c0_10 = arith.constant 0 : index
    %9 = vector.load %arg4[%c0_9, %c0_10] : memref<1568x75xbf16, #tpu.memory_space<vmem>>, vector<1568x75xbf16>
    %cst_11 = arith.constant dense<0.000000e+00> : vector<1568x128xf32>
    %10 = tpu.matmul %9, %0, %cst_11 {dimension_numbers = #tpu.dot_dimension_numbers<[1], [0], [0], [1], [0, 0, 1, 1], [], []>} : vector<1568x75xbf16>, vector<75x128xbf16>, vector<1568x128xf32> -> vector<1568x128xf32>
    %11 = arith.maximumf %8, %10 : vector<1568x128xf32>
    %c0_12 = arith.constant 0 : index
    %c0_13 = arith.constant 0 : index
    %12 = vector.load %arg6[%c0_12, %c0_13] : memref<1x128xf32, #tpu.memory_space<vmem>>, vector<1x128xf32>
    %13 = vector.broadcast %12 : vector<1x128xf32> to vector<1568x128xf32>
    %14 = arith.addf %11, %13 : vector<1568x128xf32>
    %cst_14 = arith.constant 0.000000e+00 : f32
    %15 = vector.broadcast %cst_14 : f32 to vector<1568x128xf32>
    %16 = arith.maximumf %14, %15 : vector<1568x128xf32>
    %17 = arith.truncf %16 : vector<1568x128xf32> to vector<1568x128xbf16>
    %c0_15 = arith.constant 0 : index
    %c0_16 = arith.constant 0 : index
    %18 = vector.load %arg7[%c0_15, %c0_16] : memref<1568x128xbf16, #tpu.memory_space<vmem>>, vector<1568x128xbf16>
    tpu.vector_store %arg7[%c0_15, %c0_16], %17 {strides = array<i32>} : memref<1568x128xbf16, #tpu.memory_space<vmem>>, vector<1568x128xbf16>,
    return
  }
  func.func @transform_0(%arg0: i32) -> (i32, i32) {
    %c0_i32 = arith.constant 0 : i32
    %c0_i32_0 = arith.constant 0 : i32
    return %arg0, %c0_i32 : i32, i32
  }
  func.func @transform_1(%arg0: i32) -> (i32, i32) {
    %c0_i32 = arith.constant 0 : i32
    %c0_i32_0 = arith.constant 0 : i32
    return %arg0, %c0_i32 : i32, i32
  }
  func.func @transform_2(%arg0: i32) -> (i32, i32) {
    %c0_i32 = arith.constant 0 : i32
    %c0_i32_0 = arith.constant 0 : i32
    return %arg0, %c0_i32 : i32, i32
  }
  func.func @transform_3(%arg0: i32) -> (i32, i32) {
    %c0_i32 = arith.constant 0 : i32
    %c0_i32_0 = arith.constant 0 : i32
    return %arg0, %c0_i32 : i32, i32
  }
  func.func @transform_4(%arg0: i32) -> (i32, i32) {
    %c0_i32 = arith.constant 0 : i32
    %c0_i32_0 = arith.constant 0 : i32
    %c0_i32_1 = arith.constant 0 : i32
    return %c0_i32, %c0_i32_0 : i32, i32
  }
  func.func @transform_5(%arg0: i32) -> (i32, i32) {
    %c0_i32 = arith.constant 0 : i32
    %c0_i32_0 = arith.constant 0 : i32
    %c0_i32_1 = arith.constant 0 : i32
    return %c0_i32, %c0_i32_0 : i32, i32
  }
  func.func @transform_6(%arg0: i32) -> (i32, i32) {
    %c0_i32 = arith.constant 0 : i32
    %c0_i32_0 = arith.constant 0 : i32
    return %arg0, %c0_i32 : i32, i32
  }
}

module attributes {stable_mosaic.version = 11 : i64} {
  func.func @_conv_pool_kernel(%arg0: i32, %arg1: memref<200x150xbf16, #tpu.memory_space<vmem>>, %arg2: memref<200x150xbf16, #tpu.memory_space<vmem>>, %arg3: memref<200x150xbf16, #tpu.memory_space<vmem>>, %arg4: memref<200x150xbf16, #tpu.memory_space<vmem>>, %arg5: memref<150x128xbf16, #tpu.memory_space<vmem>>, %arg6: memref<1x128xf32, #tpu.memory_space<vmem>>, %arg7: memref<200x128xbf16, #tpu.memory_space<vmem>>) attributes {dimension_semantics = [#tpu.dimension_semantics<parallel>], iteration_bounds = array<i64: 1>, scalar_prefetch = 0 : i64, scratch_operands = 0 : i64, tpu.core_type = #tpu.core_type<tc>, window_params = [{transform_indices = @transform_0, window_bounds = array<i64: 200, 150>}, {transform_indices = @transform_1, window_bounds = array<i64: 200, 150>}, {transform_indices = @transform_2, window_bounds = array<i64: 200, 150>}, {transform_indices = @transform_3, window_bounds = array<i64: 200, 150>}, {pipeline_mode = #tpu.pipeline_mode<synchronous>, transform_indices = @transform_4, window_bounds = array<i64: 150, 128>}, {pipeline_mode = #tpu.pipeline_mode<synchronous>, transform_indices = @transform_5, window_bounds = array<i64: 1, 128>}, {transform_indices = @transform_6, window_bounds = array<i64: 200, 128>}]} {
    %c0 = arith.constant 0 : index
    %c0_0 = arith.constant 0 : index
    %0 = vector.load %arg5[%c0, %c0_0] : memref<150x128xbf16, #tpu.memory_space<vmem>>, vector<150x128xbf16>
    %c0_1 = arith.constant 0 : index
    %c0_2 = arith.constant 0 : index
    %1 = vector.load %arg1[%c0_1, %c0_2] : memref<200x150xbf16, #tpu.memory_space<vmem>>, vector<200x150xbf16>
    %cst = arith.constant dense<0.000000e+00> : vector<200x128xf32>
    %2 = tpu.matmul %1, %0, %cst {dimension_numbers = #tpu.dot_dimension_numbers<[1], [0], [0], [1], [0, 0, 1, 1], [], []>} : vector<200x150xbf16>, vector<150x128xbf16>, vector<200x128xf32> -> vector<200x128xf32>
    %c0_3 = arith.constant 0 : index
    %c0_4 = arith.constant 0 : index
    %3 = vector.load %arg2[%c0_3, %c0_4] : memref<200x150xbf16, #tpu.memory_space<vmem>>, vector<200x150xbf16>
    %cst_5 = arith.constant dense<0.000000e+00> : vector<200x128xf32>
    %4 = tpu.matmul %3, %0, %cst_5 {dimension_numbers = #tpu.dot_dimension_numbers<[1], [0], [0], [1], [0, 0, 1, 1], [], []>} : vector<200x150xbf16>, vector<150x128xbf16>, vector<200x128xf32> -> vector<200x128xf32>
    %5 = arith.maximumf %2, %4 : vector<200x128xf32>
    %c0_6 = arith.constant 0 : index
    %c0_7 = arith.constant 0 : index
    %6 = vector.load %arg3[%c0_6, %c0_7] : memref<200x150xbf16, #tpu.memory_space<vmem>>, vector<200x150xbf16>
    %cst_8 = arith.constant dense<0.000000e+00> : vector<200x128xf32>
    %7 = tpu.matmul %6, %0, %cst_8 {dimension_numbers = #tpu.dot_dimension_numbers<[1], [0], [0], [1], [0, 0, 1, 1], [], []>} : vector<200x150xbf16>, vector<150x128xbf16>, vector<200x128xf32> -> vector<200x128xf32>
    %8 = arith.maximumf %5, %7 : vector<200x128xf32>
    %c0_9 = arith.constant 0 : index
    %c0_10 = arith.constant 0 : index
    %9 = vector.load %arg4[%c0_9, %c0_10] : memref<200x150xbf16, #tpu.memory_space<vmem>>, vector<200x150xbf16>
    %cst_11 = arith.constant dense<0.000000e+00> : vector<200x128xf32>
    %10 = tpu.matmul %9, %0, %cst_11 {dimension_numbers = #tpu.dot_dimension_numbers<[1], [0], [0], [1], [0, 0, 1, 1], [], []>} : vector<200x150xbf16>, vector<150x128xbf16>, vector<200x128xf32> -> vector<200x128xf32>
    %11 = arith.maximumf %8, %10 : vector<200x128xf32>
    %c0_12 = arith.constant 0 : index
    %c0_13 = arith.constant 0 : index
    %12 = vector.load %arg6[%c0_12, %c0_13] : memref<1x128xf32, #tpu.memory_space<vmem>>, vector<1x128xf32>
    %13 = vector.broadcast %12 : vector<1x128xf32> to vector<200x128xf32>
    %14 = arith.addf %11, %13 : vector<200x128xf32>
    %cst_14 = arith.constant 0.000000e+00 : f32
    %15 = vector.broadcast %cst_14 : f32 to vector<200x128xf32>
    %16 = arith.maximumf %14, %15 : vector<200x128xf32>
    %17 = arith.truncf %16 : vector<200x128xf32> to vector<200x128xbf16>
    %c0_15 = arith.constant 0 : index
    %c0_16 = arith.constant 0 : index
    %18 = vector.load %arg7[%c0_15, %c0_16] : memref<200x128xbf16, #tpu.memory_space<vmem>>, vector<200x128xbf16>
    tpu.vector_store %arg7[%c0_15, %c0_16], %17 {strides = array<i32>} : memref<200x128xbf16, #tpu.memory_space<vmem>>, vector<200x128xbf16>,
    return
  }
  func.func @transform_0(%arg0: i32) -> (i32, i32) {
    %c0_i32 = arith.constant 0 : i32
    %c0_i32_0 = arith.constant 0 : i32
    return %arg0, %c0_i32 : i32, i32
  }
  func.func @transform_1(%arg0: i32) -> (i32, i32) {
    %c0_i32 = arith.constant 0 : i32
    %c0_i32_0 = arith.constant 0 : i32
    return %arg0, %c0_i32 : i32, i32
  }
  func.func @transform_2(%arg0: i32) -> (i32, i32) {
    %c0_i32 = arith.constant 0 : i32
    %c0_i32_0 = arith.constant 0 : i32
    return %arg0, %c0_i32 : i32, i32
  }
  func.func @transform_3(%arg0: i32) -> (i32, i32) {
    %c0_i32 = arith.constant 0 : i32
    %c0_i32_0 = arith.constant 0 : i32
    return %arg0, %c0_i32 : i32, i32
  }
  func.func @transform_4(%arg0: i32) -> (i32, i32) {
    %c0_i32 = arith.constant 0 : i32
    %c0_i32_0 = arith.constant 0 : i32
    %c0_i32_1 = arith.constant 0 : i32
    return %c0_i32, %c0_i32_0 : i32, i32
  }
  func.func @transform_5(%arg0: i32) -> (i32, i32) {
    %c0_i32 = arith.constant 0 : i32
    %c0_i32_0 = arith.constant 0 : i32
    %c0_i32_1 = arith.constant 0 : i32
    return %c0_i32, %c0_i32_0 : i32, i32
  }
  func.func @transform_6(%arg0: i32) -> (i32, i32) {
    %c0_i32 = arith.constant 0 : i32
    %c0_i32_0 = arith.constant 0 : i32
    return %arg0, %c0_i32 : i32, i32
  }
}

module attributes {stable_mosaic.version = 11 : i64} {
  func.func @_conv3_fc_kernel(%arg0: i32, %arg1: memref<9x8x144xbf16, #tpu.memory_space<vmem>>, %arg2: memref<144x128xbf16, #tpu.memory_space<vmem>>, %arg3: memref<1x128xf32, #tpu.memory_space<vmem>>, %arg4: memref<9x128x128xbf16, #tpu.memory_space<vmem>>, %arg5: memref<1x128xf32, #tpu.memory_space<vmem>>, %arg6: memref<128x128xbf16, #tpu.memory_space<vmem>>, %arg7: memref<1x128xf32, #tpu.memory_space<vmem>>, %arg8: memref<128x128xbf16, #tpu.memory_space<vmem>>, %arg9: memref<1x128xf32, #tpu.memory_space<vmem>>, %arg10: memref<8x128xf32, #tpu.memory_space<vmem>>) attributes {dimension_semantics = [#tpu.dimension_semantics<parallel>], iteration_bounds = array<i64: 1>, scalar_prefetch = 0 : i64, scratch_operands = 0 : i64, tpu.core_type = #tpu.core_type<tc>, window_params = [{transform_indices = @transform_0, window_bounds = array<i64: 9, 8, 144>}, {pipeline_mode = #tpu.pipeline_mode<synchronous>, transform_indices = @transform_1, window_bounds = array<i64: 144, 128>}, {pipeline_mode = #tpu.pipeline_mode<synchronous>, transform_indices = @transform_2, window_bounds = array<i64: 1, 128>}, {pipeline_mode = #tpu.pipeline_mode<synchronous>, transform_indices = @transform_3, window_bounds = array<i64: 9, 128, 128>}, {pipeline_mode = #tpu.pipeline_mode<synchronous>, transform_indices = @transform_4, window_bounds = array<i64: 1, 128>}, {pipeline_mode = #tpu.pipeline_mode<synchronous>, transform_indices = @transform_5, window_bounds = array<i64: 128, 128>}, {pipeline_mode = #tpu.pipeline_mode<synchronous>, transform_indices = @transform_6, window_bounds = array<i64: 1, 128>}, {pipeline_mode = #tpu.pipeline_mode<synchronous>, transform_indices = @transform_7, window_bounds = array<i64: 128, 128>}, {pipeline_mode = #tpu.pipeline_mode<synchronous>, transform_indices = @transform_8, window_bounds = array<i64: 1, 128>}, {transform_indices = @transform_9, window_bounds = array<i64: 8, 128>}]} {
    %c0 = arith.constant 0 : index
    %c0_0 = arith.constant 0 : index
    %0 = vector.load %arg2[%c0, %c0_0] : memref<144x128xbf16, #tpu.memory_space<vmem>>, vector<144x128xbf16>
    %c0_1 = arith.constant 0 : index
    %c0_2 = arith.constant 0 : index
    %1 = vector.load %arg3[%c0_1, %c0_2] : memref<1x128xf32, #tpu.memory_space<vmem>>, vector<1x128xf32>
    %cst = arith.constant 0.000000e+00 : f32
    %2 = vector.broadcast %cst : f32 to vector<8x128xf32>
    %c0_3 = arith.constant 0 : index
    %c0_4 = arith.constant 0 : index
    %c0_5 = arith.constant 0 : index
    %3 = vector.load %arg1[%c0_3, %c0_4, %c0_5] : memref<9x8x144xbf16, #tpu.memory_space<vmem>>, vector<1x8x144xbf16>
    %4 = vector.shape_cast %3 : vector<1x8x144xbf16> to vector<8x144xbf16>
    %cst_6 = arith.constant dense<0.000000e+00> : vector<8x128xf32>
    %5 = tpu.matmul %4, %0, %cst_6 {dimension_numbers = #tpu.dot_dimension_numbers<[1], [0], [0], [1], [0, 0, 1, 1], [], []>} : vector<8x144xbf16>, vector<144x128xbf16>, vector<8x128xf32> -> vector<8x128xf32>
    %6 = vector.broadcast %1 : vector<1x128xf32> to vector<8x128xf32>
    %7 = arith.addf %5, %6 : vector<8x128xf32>
    %cst_7 = arith.constant 0.000000e+00 : f32
    %8 = vector.broadcast %cst_7 : f32 to vector<8x128xf32>
    %9 = arith.maximumf %7, %8 : vector<8x128xf32>
    %10 = arith.truncf %9 : vector<8x128xf32> to vector<8x128xbf16>
    %c0_8 = arith.constant 0 : index
    %c0_9 = arith.constant 0 : index
    %c0_10 = arith.constant 0 : index
    %11 = vector.load %arg4[%c0_8, %c0_9, %c0_10] : memref<9x128x128xbf16, #tpu.memory_space<vmem>>, vector<1x128x128xbf16>
    %12 = vector.shape_cast %11 : vector<1x128x128xbf16> to vector<128x128xbf16>
    %cst_11 = arith.constant dense<0.000000e+00> : vector<8x128xf32>
    %13 = tpu.matmul %10, %12, %cst_11 {dimension_numbers = #tpu.dot_dimension_numbers<[1], [0], [0], [1], [0, 0, 1, 1], [], []>} : vector<8x128xbf16>, vector<128x128xbf16>, vector<8x128xf32> -> vector<8x128xf32>
    %14 = arith.addf %2, %13 : vector<8x128xf32>
    %c1 = arith.constant 1 : index
    %c0_12 = arith.constant 0 : index
    %c0_13 = arith.constant 0 : index
    %15 = vector.load %arg1[%c1, %c0_12, %c0_13] : memref<9x8x144xbf16, #tpu.memory_space<vmem>>, vector<1x8x144xbf16>
    %16 = vector.shape_cast %15 : vector<1x8x144xbf16> to vector<8x144xbf16>
    %cst_14 = arith.constant dense<0.000000e+00> : vector<8x128xf32>
    %17 = tpu.matmul %16, %0, %cst_14 {dimension_numbers = #tpu.dot_dimension_numbers<[1], [0], [0], [1], [0, 0, 1, 1], [], []>} : vector<8x144xbf16>, vector<144x128xbf16>, vector<8x128xf32> -> vector<8x128xf32>
    %18 = vector.broadcast %1 : vector<1x128xf32> to vector<8x128xf32>
    %19 = arith.addf %17, %18 : vector<8x128xf32>
    %cst_15 = arith.constant 0.000000e+00 : f32
    %20 = vector.broadcast %cst_15 : f32 to vector<8x128xf32>
    %21 = arith.maximumf %19, %20 : vector<8x128xf32>
    %22 = arith.truncf %21 : vector<8x128xf32> to vector<8x128xbf16>
    %c1_16 = arith.constant 1 : index
    %c0_17 = arith.constant 0 : index
    %c0_18 = arith.constant 0 : index
    %23 = vector.load %arg4[%c1_16, %c0_17, %c0_18] : memref<9x128x128xbf16, #tpu.memory_space<vmem>>, vector<1x128x128xbf16>
    %24 = vector.shape_cast %23 : vector<1x128x128xbf16> to vector<128x128xbf16>
    %cst_19 = arith.constant dense<0.000000e+00> : vector<8x128xf32>
    %25 = tpu.matmul %22, %24, %cst_19 {dimension_numbers = #tpu.dot_dimension_numbers<[1], [0], [0], [1], [0, 0, 1, 1], [], []>} : vector<8x128xbf16>, vector<128x128xbf16>, vector<8x128xf32> -> vector<8x128xf32>
    %26 = arith.addf %14, %25 : vector<8x128xf32>
    %c2 = arith.constant 2 : index
    %c0_20 = arith.constant 0 : index
    %c0_21 = arith.constant 0 : index
    %27 = vector.load %arg1[%c2, %c0_20, %c0_21] : memref<9x8x144xbf16, #tpu.memory_space<vmem>>, vector<1x8x144xbf16>
    %28 = vector.shape_cast %27 : vector<1x8x144xbf16> to vector<8x144xbf16>
    %cst_22 = arith.constant dense<0.000000e+00> : vector<8x128xf32>
    %29 = tpu.matmul %28, %0, %cst_22 {dimension_numbers = #tpu.dot_dimension_numbers<[1], [0], [0], [1], [0, 0, 1, 1], [], []>} : vector<8x144xbf16>, vector<144x128xbf16>, vector<8x128xf32> -> vector<8x128xf32>
    %30 = vector.broadcast %1 : vector<1x128xf32> to vector<8x128xf32>
    %31 = arith.addf %29, %30 : vector<8x128xf32>
    %cst_23 = arith.constant 0.000000e+00 : f32
    %32 = vector.broadcast %cst_23 : f32 to vector<8x128xf32>
    %33 = arith.maximumf %31, %32 : vector<8x128xf32>
    %34 = arith.truncf %33 : vector<8x128xf32> to vector<8x128xbf16>
    %c2_24 = arith.constant 2 : index
    %c0_25 = arith.constant 0 : index
    %c0_26 = arith.constant 0 : index
    %35 = vector.load %arg4[%c2_24, %c0_25, %c0_26] : memref<9x128x128xbf16, #tpu.memory_space<vmem>>, vector<1x128x128xbf16>
    %36 = vector.shape_cast %35 : vector<1x128x128xbf16> to vector<128x128xbf16>
    %cst_27 = arith.constant dense<0.000000e+00> : vector<8x128xf32>
    %37 = tpu.matmul %34, %36, %cst_27 {dimension_numbers = #tpu.dot_dimension_numbers<[1], [0], [0], [1], [0, 0, 1, 1], [], []>} : vector<8x128xbf16>, vector<128x128xbf16>, vector<8x128xf32> -> vector<8x128xf32>
    %38 = arith.addf %26, %37 : vector<8x128xf32>
    %c3 = arith.constant 3 : index
    %c0_28 = arith.constant 0 : index
    %c0_29 = arith.constant 0 : index
    %39 = vector.load %arg1[%c3, %c0_28, %c0_29] : memref<9x8x144xbf16, #tpu.memory_space<vmem>>, vector<1x8x144xbf16>
    %40 = vector.shape_cast %39 : vector<1x8x144xbf16> to vector<8x144xbf16>
    %cst_30 = arith.constant dense<0.000000e+00> : vector<8x128xf32>
    %41 = tpu.matmul %40, %0, %cst_30 {dimension_numbers = #tpu.dot_dimension_numbers<[1], [0], [0], [1], [0, 0, 1, 1], [], []>} : vector<8x144xbf16>, vector<144x128xbf16>, vector<8x128xf32> -> vector<8x128xf32>
    %42 = vector.broadcast %1 : vector<1x128xf32> to vector<8x128xf32>
    %43 = arith.addf %41, %42 : vector<8x128xf32>
    %cst_31 = arith.constant 0.000000e+00 : f32
    %44 = vector.broadcast %cst_31 : f32 to vector<8x128xf32>
    %45 = arith.maximumf %43, %44 : vector<8x128xf32>
    %46 = arith.truncf %45 : vector<8x128xf32> to vector<8x128xbf16>
    %c3_32 = arith.constant 3 : index
    %c0_33 = arith.constant 0 : index
    %c0_34 = arith.constant 0 : index
    %47 = vector.load %arg4[%c3_32, %c0_33, %c0_34] : memref<9x128x128xbf16, #tpu.memory_space<vmem>>, vector<1x128x128xbf16>
    %48 = vector.shape_cast %47 : vector<1x128x128xbf16> to vector<128x128xbf16>
    %cst_35 = arith.constant dense<0.000000e+00> : vector<8x128xf32>
    %49 = tpu.matmul %46, %48, %cst_35 {dimension_numbers = #tpu.dot_dimension_numbers<[1], [0], [0], [1], [0, 0, 1, 1], [], []>} : vector<8x128xbf16>, vector<128x128xbf16>, vector<8x128xf32> -> vector<8x128xf32>
    %50 = arith.addf %38, %49 : vector<8x128xf32>
    %c4 = arith.constant 4 : index
    %c0_36 = arith.constant 0 : index
    %c0_37 = arith.constant 0 : index
    %51 = vector.load %arg1[%c4, %c0_36, %c0_37] : memref<9x8x144xbf16, #tpu.memory_space<vmem>>, vector<1x8x144xbf16>
    %52 = vector.shape_cast %51 : vector<1x8x144xbf16> to vector<8x144xbf16>
    %cst_38 = arith.constant dense<0.000000e+00> : vector<8x128xf32>
    %53 = tpu.matmul %52, %0, %cst_38 {dimension_numbers = #tpu.dot_dimension_numbers<[1], [0], [0], [1], [0, 0, 1, 1], [], []>} : vector<8x144xbf16>, vector<144x128xbf16>, vector<8x128xf32> -> vector<8x128xf32>
    %54 = vector.broadcast %1 : vector<1x128xf32> to vector<8x128xf32>
    %55 = arith.addf %53, %54 : vector<8x128xf32>
    %cst_39 = arith.constant 0.000000e+00 : f32
    %56 = vector.broadcast %cst_39 : f32 to vector<8x128xf32>
    %57 = arith.maximumf %55, %56 : vector<8x128xf32>
    %58 = arith.truncf %57 : vector<8x128xf32> to vector<8x128xbf16>
    %c4_40 = arith.constant 4 : index
    %c0_41 = arith.constant 0 : index
    %c0_42 = arith.constant 0 : index
    %59 = vector.load %arg4[%c4_40, %c0_41, %c0_42] : memref<9x128x128xbf16, #tpu.memory_space<vmem>>, vector<1x128x128xbf16>
    %60 = vector.shape_cast %59 : vector<1x128x128xbf16> to vector<128x128xbf16>
    %cst_43 = arith.constant dense<0.000000e+00> : vector<8x128xf32>
    %61 = tpu.matmul %58, %60, %cst_43 {dimension_numbers = #tpu.dot_dimension_numbers<[1], [0], [0], [1], [0, 0, 1, 1], [], []>} : vector<8x128xbf16>, vector<128x128xbf16>, vector<8x128xf32> -> vector<8x128xf32>
    %62 = arith.addf %50, %61 : vector<8x128xf32>
    %c5 = arith.constant 5 : index
    %c0_44 = arith.constant 0 : index
    %c0_45 = arith.constant 0 : index
    %63 = vector.load %arg1[%c5, %c0_44, %c0_45] : memref<9x8x144xbf16, #tpu.memory_space<vmem>>, vector<1x8x144xbf16>
    %64 = vector.shape_cast %63 : vector<1x8x144xbf16> to vector<8x144xbf16>
    %cst_46 = arith.constant dense<0.000000e+00> : vector<8x128xf32>
    %65 = tpu.matmul %64, %0, %cst_46 {dimension_numbers = #tpu.dot_dimension_numbers<[1], [0], [0], [1], [0, 0, 1, 1], [], []>} : vector<8x144xbf16>, vector<144x128xbf16>, vector<8x128xf32> -> vector<8x128xf32>
    %66 = vector.broadcast %1 : vector<1x128xf32> to vector<8x128xf32>
    %67 = arith.addf %65, %66 : vector<8x128xf32>
    %cst_47 = arith.constant 0.000000e+00 : f32
    %68 = vector.broadcast %cst_47 : f32 to vector<8x128xf32>
    %69 = arith.maximumf %67, %68 : vector<8x128xf32>
    %70 = arith.truncf %69 : vector<8x128xf32> to vector<8x128xbf16>
    %c5_48 = arith.constant 5 : index
    %c0_49 = arith.constant 0 : index
    %c0_50 = arith.constant 0 : index
    %71 = vector.load %arg4[%c5_48, %c0_49, %c0_50] : memref<9x128x128xbf16, #tpu.memory_space<vmem>>, vector<1x128x128xbf16>
    %72 = vector.shape_cast %71 : vector<1x128x128xbf16> to vector<128x128xbf16>
    %cst_51 = arith.constant dense<0.000000e+00> : vector<8x128xf32>
    %73 = tpu.matmul %70, %72, %cst_51 {dimension_numbers = #tpu.dot_dimension_numbers<[1], [0], [0], [1], [0, 0, 1, 1], [], []>} : vector<8x128xbf16>, vector<128x128xbf16>, vector<8x128xf32> -> vector<8x128xf32>
    %74 = arith.addf %62, %73 : vector<8x128xf32>
    %c6 = arith.constant 6 : index
    %c0_52 = arith.constant 0 : index
    %c0_53 = arith.constant 0 : index
    %75 = vector.load %arg1[%c6, %c0_52, %c0_53] : memref<9x8x144xbf16, #tpu.memory_space<vmem>>, vector<1x8x144xbf16>
    %76 = vector.shape_cast %75 : vector<1x8x144xbf16> to vector<8x144xbf16>
    %cst_54 = arith.constant dense<0.000000e+00> : vector<8x128xf32>
    %77 = tpu.matmul %76, %0, %cst_54 {dimension_numbers = #tpu.dot_dimension_numbers<[1], [0], [0], [1], [0, 0, 1, 1], [], []>} : vector<8x144xbf16>, vector<144x128xbf16>, vector<8x128xf32> -> vector<8x128xf32>
    %78 = vector.broadcast %1 : vector<1x128xf32> to vector<8x128xf32>
    %79 = arith.addf %77, %78 : vector<8x128xf32>
    %cst_55 = arith.constant 0.000000e+00 : f32
    %80 = vector.broadcast %cst_55 : f32 to vector<8x128xf32>
    %81 = arith.maximumf %79, %80 : vector<8x128xf32>
    %82 = arith.truncf %81 : vector<8x128xf32> to vector<8x128xbf16>
    %c6_56 = arith.constant 6 : index
    %c0_57 = arith.constant 0 : index
    %c0_58 = arith.constant 0 : index
    %83 = vector.load %arg4[%c6_56, %c0_57, %c0_58] : memref<9x128x128xbf16, #tpu.memory_space<vmem>>, vector<1x128x128xbf16>
    %84 = vector.shape_cast %83 : vector<1x128x128xbf16> to vector<128x128xbf16>
    %cst_59 = arith.constant dense<0.000000e+00> : vector<8x128xf32>
    %85 = tpu.matmul %82, %84, %cst_59 {dimension_numbers = #tpu.dot_dimension_numbers<[1], [0], [0], [1], [0, 0, 1, 1], [], []>} : vector<8x128xbf16>, vector<128x128xbf16>, vector<8x128xf32> -> vector<8x128xf32>
    %86 = arith.addf %74, %85 : vector<8x128xf32>
    %c7 = arith.constant 7 : index
    %c0_60 = arith.constant 0 : index
    %c0_61 = arith.constant 0 : index
    %87 = vector.load %arg1[%c7, %c0_60, %c0_61] : memref<9x8x144xbf16, #tpu.memory_space<vmem>>, vector<1x8x144xbf16>
    %88 = vector.shape_cast %87 : vector<1x8x144xbf16> to vector<8x144xbf16>
    %cst_62 = arith.constant dense<0.000000e+00> : vector<8x128xf32>
    %89 = tpu.matmul %88, %0, %cst_62 {dimension_numbers = #tpu.dot_dimension_numbers<[1], [0], [0], [1], [0, 0, 1, 1], [], []>} : vector<8x144xbf16>, vector<144x128xbf16>, vector<8x128xf32> -> vector<8x128xf32>
    %90 = vector.broadcast %1 : vector<1x128xf32> to vector<8x128xf32>
    %91 = arith.addf %89, %90 : vector<8x128xf32>
    %cst_63 = arith.constant 0.000000e+00 : f32
    %92 = vector.broadcast %cst_63 : f32 to vector<8x128xf32>
    %93 = arith.maximumf %91, %92 : vector<8x128xf32>
    %94 = arith.truncf %93 : vector<8x128xf32> to vector<8x128xbf16>
    %c7_64 = arith.constant 7 : index
    %c0_65 = arith.constant 0 : index
    %c0_66 = arith.constant 0 : index
    %95 = vector.load %arg4[%c7_64, %c0_65, %c0_66] : memref<9x128x128xbf16, #tpu.memory_space<vmem>>, vector<1x128x128xbf16>
    %96 = vector.shape_cast %95 : vector<1x128x128xbf16> to vector<128x128xbf16>
    %cst_67 = arith.constant dense<0.000000e+00> : vector<8x128xf32>
    %97 = tpu.matmul %94, %96, %cst_67 {dimension_numbers = #tpu.dot_dimension_numbers<[1], [0], [0], [1], [0, 0, 1, 1], [], []>} : vector<8x128xbf16>, vector<128x128xbf16>, vector<8x128xf32> -> vector<8x128xf32>
    %98 = arith.addf %86, %97 : vector<8x128xf32>
    %c8 = arith.constant 8 : index
    %c0_68 = arith.constant 0 : index
    %c0_69 = arith.constant 0 : index
    %99 = vector.load %arg1[%c8, %c0_68, %c0_69] : memref<9x8x144xbf16, #tpu.memory_space<vmem>>, vector<1x8x144xbf16>
    %100 = vector.shape_cast %99 : vector<1x8x144xbf16> to vector<8x144xbf16>
    %cst_70 = arith.constant dense<0.000000e+00> : vector<8x128xf32>
    %101 = tpu.matmul %100, %0, %cst_70 {dimension_numbers = #tpu.dot_dimension_numbers<[1], [0], [0], [1], [0, 0, 1, 1], [], []>} : vector<8x144xbf16>, vector<144x128xbf16>, vector<8x128xf32> -> vector<8x128xf32>
    %102 = vector.broadcast %1 : vector<1x128xf32> to vector<8x128xf32>
    %103 = arith.addf %101, %102 : vector<8x128xf32>
    %cst_71 = arith.constant 0.000000e+00 : f32
    %104 = vector.broadcast %cst_71 : f32 to vector<8x128xf32>
    %105 = arith.maximumf %103, %104 : vector<8x128xf32>
    %106 = arith.truncf %105 : vector<8x128xf32> to vector<8x128xbf16>
    %c8_72 = arith.constant 8 : index
    %c0_73 = arith.constant 0 : index
    %c0_74 = arith.constant 0 : index
    %107 = vector.load %arg4[%c8_72, %c0_73, %c0_74] : memref<9x128x128xbf16, #tpu.memory_space<vmem>>, vector<1x128x128xbf16>
    %108 = vector.shape_cast %107 : vector<1x128x128xbf16> to vector<128x128xbf16>
    %cst_75 = arith.constant dense<0.000000e+00> : vector<8x128xf32>
    %109 = tpu.matmul %106, %108, %cst_75 {dimension_numbers = #tpu.dot_dimension_numbers<[1], [0], [0], [1], [0, 0, 1, 1], [], []>} : vector<8x128xbf16>, vector<128x128xbf16>, vector<8x128xf32> -> vector<8x128xf32>
    %110 = arith.addf %98, %109 : vector<8x128xf32>
    %c0_76 = arith.constant 0 : index
    %c0_77 = arith.constant 0 : index
    %111 = vector.load %arg5[%c0_76, %c0_77] : memref<1x128xf32, #tpu.memory_space<vmem>>, vector<1x128xf32>
    %112 = vector.broadcast %111 : vector<1x128xf32> to vector<8x128xf32>
    %113 = arith.addf %110, %112 : vector<8x128xf32>
    %cst_78 = arith.constant 0.000000e+00 : f32
    %114 = vector.broadcast %cst_78 : f32 to vector<8x128xf32>
    %115 = arith.maximumf %113, %114 : vector<8x128xf32>
    %116 = arith.truncf %115 : vector<8x128xf32> to vector<8x128xbf16>
    %c0_79 = arith.constant 0 : index
    %c0_80 = arith.constant 0 : index
    %117 = vector.load %arg6[%c0_79, %c0_80] : memref<128x128xbf16, #tpu.memory_space<vmem>>, vector<128x128xbf16>
    %cst_81 = arith.constant dense<0.000000e+00> : vector<8x128xf32>
    %118 = tpu.matmul %116, %117, %cst_81 {dimension_numbers = #tpu.dot_dimension_numbers<[1], [0], [0], [1], [0, 0, 1, 1], [], []>} : vector<8x128xbf16>, vector<128x128xbf16>, vector<8x128xf32> -> vector<8x128xf32>
    %c0_82 = arith.constant 0 : index
    %c0_83 = arith.constant 0 : index
    %119 = vector.load %arg7[%c0_82, %c0_83] : memref<1x128xf32, #tpu.memory_space<vmem>>, vector<1x128xf32>
    %120 = vector.broadcast %119 : vector<1x128xf32> to vector<8x128xf32>
    %121 = arith.addf %118, %120 : vector<8x128xf32>
    %cst_84 = arith.constant 0.000000e+00 : f32
    %122 = vector.broadcast %cst_84 : f32 to vector<8x128xf32>
    %123 = arith.maximumf %121, %122 : vector<8x128xf32>
    %124 = arith.truncf %123 : vector<8x128xf32> to vector<8x128xbf16>
    %c0_85 = arith.constant 0 : index
    %c0_86 = arith.constant 0 : index
    %125 = vector.load %arg8[%c0_85, %c0_86] : memref<128x128xbf16, #tpu.memory_space<vmem>>, vector<128x128xbf16>
    %cst_87 = arith.constant dense<0.000000e+00> : vector<8x128xf32>
    %126 = tpu.matmul %124, %125, %cst_87 {dimension_numbers = #tpu.dot_dimension_numbers<[1], [0], [0], [1], [0, 0, 1, 1], [], []>} : vector<8x128xbf16>, vector<128x128xbf16>, vector<8x128xf32> -> vector<8x128xf32>
    %c0_88 = arith.constant 0 : index
    %c0_89 = arith.constant 0 : index
    %127 = vector.load %arg9[%c0_88, %c0_89] : memref<1x128xf32, #tpu.memory_space<vmem>>, vector<1x128xf32>
    %128 = vector.broadcast %127 : vector<1x128xf32> to vector<8x128xf32>
    %129 = arith.addf %126, %128 : vector<8x128xf32>
    %130 = tpu.iota {dimensions = array<i32: 1>} : vector<8x128xi32>
    %c10_i32 = arith.constant 10 : i32
    %131 = vector.broadcast %c10_i32 : i32 to vector<8x128xi32>
    %132 = arith.cmpi slt, %130, %131 : vector<8x128xi32>
    %cst_90 = arith.constant -1.000000e+30 : f32
    %133 = vector.broadcast %cst_90 : f32 to vector<8x128xf32>
    %134 = arith.select %132, %129, %133 : vector<8x128xi1>, vector<8x128xf32>
    %cst_91 = arith.constant dense<0xFF800000> : vector<8xf32>
    %135 = vector.multi_reduction <maximumf>, %134, %cst_91 [1] : vector<8x128xf32> to vector<8xf32>
    %136 = vector.shape_cast %135 : vector<8xf32> to vector<8x1xf32>
    %137 = vector.broadcast %136 : vector<8x1xf32> to vector<8x128xf32>
    %138 = arith.subf %134, %137 : vector<8x128xf32>
    %139 = math.exp %138 : vector<8x128xf32>
    %cst_92 = arith.constant dense<0.000000e+00> : vector<8xf32>
    %140 = vector.multi_reduction <add>, %139, %cst_92 [1] : vector<8x128xf32> to vector<8xf32>
    %141 = vector.shape_cast %140 : vector<8xf32> to vector<8x1xf32>
    %142 = math.log %141 : vector<8x1xf32>
    %143 = vector.broadcast %142 : vector<8x1xf32> to vector<8x128xf32>
    %144 = arith.subf %138, %143 : vector<8x128xf32>
    %c0_93 = arith.constant 0 : index
    %c0_94 = arith.constant 0 : index
    %145 = vector.load %arg10[%c0_93, %c0_94] : memref<8x128xf32, #tpu.memory_space<vmem>>, vector<8x128xf32>
    tpu.vector_store %arg10[%c0_93, %c0_94], %144 {strides = array<i32>} : memref<8x128xf32, #tpu.memory_space<vmem>>, vector<8x128xf32>,
    return
  }
  func.func @transform_0(%arg0: i32) -> (i32, i32, i32) {
    %c0_i32 = arith.constant 0 : i32
    %c0_i32_0 = arith.constant 0 : i32
    %c0_i32_1 = arith.constant 0 : i32
    return %c0_i32, %arg0, %c0_i32_0 : i32, i32, i32
  }
  func.func @transform_1(%arg0: i32) -> (i32, i32) {
    %c0_i32 = arith.constant 0 : i32
    %c0_i32_0 = arith.constant 0 : i32
    %c0_i32_1 = arith.constant 0 : i32
    return %c0_i32, %c0_i32_0 : i32, i32
  }
  func.func @transform_2(%arg0: i32) -> (i32, i32) {
    %c0_i32 = arith.constant 0 : i32
    %c0_i32_0 = arith.constant 0 : i32
    %c0_i32_1 = arith.constant 0 : i32
    return %c0_i32, %c0_i32_0 : i32, i32
  }
  func.func @transform_3(%arg0: i32) -> (i32, i32, i32) {
    %c0_i32 = arith.constant 0 : i32
    %c0_i32_0 = arith.constant 0 : i32
    %c0_i32_1 = arith.constant 0 : i32
    %c0_i32_2 = arith.constant 0 : i32
    return %c0_i32, %c0_i32_0, %c0_i32_1 : i32, i32, i32
  }
  func.func @transform_4(%arg0: i32) -> (i32, i32) {
    %c0_i32 = arith.constant 0 : i32
    %c0_i32_0 = arith.constant 0 : i32
    %c0_i32_1 = arith.constant 0 : i32
    return %c0_i32, %c0_i32_0 : i32, i32
  }
  func.func @transform_5(%arg0: i32) -> (i32, i32) {
    %c0_i32 = arith.constant 0 : i32
    %c0_i32_0 = arith.constant 0 : i32
    %c0_i32_1 = arith.constant 0 : i32
    return %c0_i32, %c0_i32_0 : i32, i32
  }
  func.func @transform_6(%arg0: i32) -> (i32, i32) {
    %c0_i32 = arith.constant 0 : i32
    %c0_i32_0 = arith.constant 0 : i32
    %c0_i32_1 = arith.constant 0 : i32
    return %c0_i32, %c0_i32_0 : i32, i32
  }
  func.func @transform_7(%arg0: i32) -> (i32, i32) {
    %c0_i32 = arith.constant 0 : i32
    %c0_i32_0 = arith.constant 0 : i32
    %c0_i32_1 = arith.constant 0 : i32
    return %c0_i32, %c0_i32_0 : i32, i32
  }
  func.func @transform_8(%arg0: i32) -> (i32, i32) {
    %c0_i32 = arith.constant 0 : i32
    %c0_i32_0 = arith.constant 0 : i32
    %c0_i32_1 = arith.constant 0 : i32
    return %c0_i32, %c0_i32_0 : i32, i32
  }
  func.func @transform_9(%arg0: i32) -> (i32, i32) {
    %c0_i32 = arith.constant 0 : i32
    %c0_i32_0 = arith.constant 0 : i32
    return %arg0, %c0_i32 : i32, i32
  }
}

</mosaic_0001>

<llo_original>
// kernel: cnn_cifar_forward.3
$region0: #{cnn_cifar_forward.3}
  #allocation0 [shape = 'u32[]', space=smem, size = 0x4, offset = 0x4, fixed_abs, tag = 'smem constant byte address 0x4 - core index']
  #allocation1 [shape = 'u32[144,128]{1,0:T(1,128)}', space=vmem, size = 0x12000, scoped, tag = 'internal scratch']
  %s0 = inlined_call_operand.vmem [shape: bf16[1568,75], index: 0, kind: input, shape index: {}]
  %s1 = inlined_call_operand.vmem [shape: bf16[1568,75], index: 1, kind: input, shape index: {}]
  %s2 = inlined_call_operand.vmem [shape: bf16[1568,75], index: 2, kind: input, shape index: {}]
  %s3 = inlined_call_operand.vmem [shape: bf16[1568,75], index: 3, kind: input, shape index: {}]
  %s4 = inlined_call_operand.vmem [shape: bf16[75,128], index: 4, kind: input, shape index: {}]
  %s5 = inlined_call_operand.vmem [shape: f32[1,128], index: 5, kind: input, shape index: {}]
  %s6 = inlined_call_operand.vmem [shape: bf16[1568,128], index: 6, kind: output, shape index: {}]
  %s7 = sld [smem:[#allocation0]]
  $region34: #{cnn_cifar_forward.3} parent=0
    _
  %s9 = ssub.s32 1, %s7
  %s10 = scalar_select 0, %s9, %s7
  // Predicated region
  $region2: #{cnn_cifar_forward.3} parent=0 // pred_check
    _
  $region3: #{cnn_cifar_forward.3} parent=0 // pred_check_branch
    %12 = sbr.rel (0) target = $region5
  $region4: #{cnn_cifar_forward.3} parent=0 // pred_region
    _
  $region5: #{cnn_cifar_forward.3} parent=0 // pred_fallthru
    _
  // Predicated region
  $region6: #{cnn_cifar_forward.3} parent=0 // pred_check
    _
  $region7: #{cnn_cifar_forward.3} parent=0 // pred_check_branch
    %14 = sbr.rel (0) target = $region9
  $region8: #{cnn_cifar_forward.3} parent=0 // pred_region
    _
  $region9: #{cnn_cifar_forward.3} parent=0 // pred_fallthru
    _
  // Predicated region
  $region10: #{cnn_cifar_forward.3} parent=0 // pred_check
    _
  $region11: #{cnn_cifar_forward.3} parent=0 // pred_check_branch
    %16 = sbr.rel (0) target = $region13
  $region12: #{cnn_cifar_forward.3} parent=0 // pred_region
    _
  $region13: #{cnn_cifar_forward.3} parent=0 // pred_fallthru
    _
  // Predicated region
  $region14: #{cnn_cifar_forward.3} parent=0 // pred_check
    _
  $region15: #{cnn_cifar_forward.3} parent=0 // pred_check_branch
    %18 = sbr.rel (0) target = $region17
  $region16: #{cnn_cifar_forward.3} parent=0 // pred_region
    _
  $region17: #{cnn_cifar_forward.3} parent=0 // pred_fallthru
    _
  // Predicated region
  $region18: #{cnn_cifar_forward.3} parent=0 // pred_check
    _
  $region19: #{cnn_cifar_forward.3} parent=0 // pred_check_branch
    %20 = sbr.rel (0) target = $region21
  $region20: #{cnn_cifar_forward.3} parent=0 // pred_region
    _
  $region21: #{cnn_cifar_forward.3} parent=0 // pred_fallthru
    _
  // Predicated region
  $region22: #{cnn_cifar_forward.3} parent=0 // pred_check
    _
  $region23: #{cnn_cifar_forward.3} parent=0 // pred_check_branch
    %22 = sbr.rel (0) target = $region25
  $region24: #{cnn_cifar_forward.3} parent=0 // pred_region
    _
  $region25: #{cnn_cifar_forward.3} parent=0 // pred_fallthru
    _
  %v24 = vld [vmem:[%s4] sm:$0xf]
  %v25 = vld [vmem:[%s4 + $0x4] sm:$0xf]
  %v26 = vld [vmem:[%s4 + $0x8] sm:$0xf]
  %v27 = vld [vmem:[%s4 + $0xc] sm:$0xf]
  %v28 = vld [vmem:[%s4 + $0x10] sm:$0xf]
  %v29 = vld [vmem:[%s4 + $0x14] sm:$0xf]
  %v30 = vld [vmem:[%s4 + $0x18] sm:$0xf]
  %v31 = vld [vmem:[%s4 + $0x1c] sm:$0xf]
  %v32 = vld [vmem:[%s4 + $0x20] sm:$0xf]
  %v33 = vld [vmem:[%s4 + $0x24] sm:$0x3]
  %v34 = vld [vmem:[%s0] sm:$0xf]
  %v35 = vld [vmem:[%s0 + $0x4] sm:$0xf]
  %v36 = vld [vmem:[%s0 + $0x8] sm:$0xf]
  %v37 = vld [vmem:[%s0 + $0xc] sm:$0xf]
  %v38 = vld [vmem:[%s0 + $0x10] sm:$0xf]
  %v39 = vld [vmem:[%s0 + $0x14] sm:$0xf]
  %v40 = vld [vmem:[%s0 + $0x18] sm:$0xf]
  %v41 = vld [vmem:[%s0 + $0x1c] sm:$0xf]
  %v42 = vld [vmem:[%s0 + $0x20] sm:$0xf]
  %v43 = vld [vmem:[%s0 + $0x24] sm:$0xf]
  %v44 = vld [vmem:[%s0 + $0x28] sm:$0xf]
  %v45 = vld [vmem:[%s0 + $0x2c] sm:$0xf]
  %v46 = vld [vmem:[%s0 + $0x30] sm:$0xf]
  %v47 = vld [vmem:[%s0 + $0x34] sm:$0xf]
  %v48 = vld [vmem:[%s0 + $0x38] sm:$0xf]
  %v49 = vld [vmem:[%s0 + $0x3c] sm:$0xf]
  %v50 = vld [vmem:[%s0 + $0x40] sm:$0xf]
  %v51 = vld [vmem:[%s0 + $0x44] sm:$0xf]
  %v52 = vld [vmem:[%s0 + $0x48] sm:$0xf]
  %v53 = vld [vmem:[%s0 + $0x4c] sm:$0xf]
  %v54 = vld [vmem:[%s0 + $0x50] sm:$0xf]
  %v55 = vld [vmem:[%s0 + $0x54] sm:$0xf]
  %v56 = vld [vmem:[%s0 + $0x58] sm:$0xf]
  %v57 = vld [vmem:[%s0 + $0x5c] sm:$0xf]
  %v58 = vld [vmem:[%s0 + $0x60] sm:$0xf]
  %v59 = vld [vmem:[%s0 + $0x64] sm:$0xf]
  %v60 = vld [vmem:[%s0 + $0x68] sm:$0xf]
  %v61 = vld [vmem:[%s0 + $0x6c] sm:$0xf]
  %v62 = vld [vmem:[%s0 + $0x70] sm:$0xf]
  %v63 = vld [vmem:[%s0 + $0x74] sm:$0xf]
  %v64 = vld [vmem:[%s0 + $0x78] sm:$0xf]
  %v65 = vld [vmem:[%s0 + $0x7c] sm:$0xf]
  %v66 = vld [vmem:[%s0 + $0x80] sm:$0xf]
  %v67 = vld [vmem:[%s0 + $0x84] sm:$0xf]
  %v68 = vld [vmem:[%s0 + $0x88] sm:$0xf]
  %v69 = vld [vmem:[%s0 + $0x8c] sm:$0xf]
  %v70 = vld [vmem:[%s0 + $0x90] sm:$0xf]
  %v71 = vld [vmem:[%s0 + $0x94] sm:$0xf]
  %v72 = vld [vmem:[%s0 + $0x98] sm:$0xf]
  %v73 = vld [vmem:[%s0 + $0x9c] sm:$0xf]
  %v74 = vld [vmem:[%s0 + $0xa0] sm:$0xf]
  %v75 = vld [vmem:[%s0 + $0xa4] sm:$0xf]
  %v76 = vld [vmem:[%s0 + $0xa8] sm:$0xf]
  %v77 = vld [vmem:[%s0 + $0xac] sm:$0xf]
  %v78 = vld [vmem:[%s0 + $0xb0] sm:$0xf]
  %v79 = vld [vmem:[%s0 + $0xb4] sm:$0xf]
  %v80 = vld [vmem:[%s0 + $0xb8] sm:$0xf]
  %v81 = vld [vmem:[%s0 + $0xbc] sm:$0xf]
  %v82 = vld [vmem:[%s0 + $0xc0] sm:$0xf]
  %v83 = vld [vmem:[%s0 + $0xc4] sm:$0xf]
  %v84 = vld [vmem:[%s0 + $0xc8] sm:$0xf]
  %v85 = vld [vmem:[%s0 + $0xcc] sm:$0xf]
  %v86 = vld [vmem:[%s0 + $0xd0] sm:$0xf]
  %v87 = vld [vmem:[%s0 + $0xd4] sm:$0xf]
  %v88 = vld [vmem:[%s0 + $0xd8] sm:$0xf]
  %v89 = vld [vmem:[%s0 + $0xdc] sm:$0xf]
  %v90 = vld [vmem:[%s0 + $0xe0] sm:$0xf]
  %v91 = vld [vmem:[%s0 + $0xe4] sm:$0xf]
  %v92 = vld [vmem:[%s0 + $0xe8] sm:$0xf]
  %v93 = vld [vmem:[%s0 + $0xec] sm:$0xf]
  %v94 = vld [vmem:[%s0 + $0xf0] sm:$0xf]
  %v95 = vld [vmem:[%s0 + $0xf4] sm:$0xf]
  %v96 = vld [vmem:[%s0 + $0xf8] sm:$0xf]
  %v97 = vld [vmem:[%s0 + $0xfc] sm:$0xf]
  %v98 = vld [vmem:[%s0 + $0x100] sm:$0xf]
  %v99 = vld [vmem:[%s0 + $0x104] sm:$0xf]
  %v100 = vld [vmem:[%s0 + $0x108] sm:$0xf]
  %v101 = vld [vmem:[%s0 + $0x10c] sm:$0xf]
  %v102 = vld [vmem:[%s0 + $0x110] sm:$0xf]
  %v103 = vld [vmem:[%s0 + $0x114] sm:$0xf]
  %v104 = vld [vmem:[%s0 + $0x118] sm:$0xf]
  %v105 = vld [vmem:[%s0 + $0x11c] sm:$0xf]
  %v106 = vld [vmem:[%s0 + $0x120] sm:$0xf]
  %v107 = vld [vmem:[%s0 + $0x124] sm:$0xf]
  %v108 = vld [vmem:[%s0 + $0x128] sm:$0xf]
  %v109 = vld [vmem:[%s0 + $0x12c] sm:$0xf]
  %v110 = vld [vmem:[%s0 + $0x130] sm:$0xf]
  %v111 = vld [vmem:[%s0 + $0x134] sm:$0xf]
  %v112 = vld [vmem:[%s0 + $0x138] sm:$0xf]
  %v113 = vld [vmem:[%s0 + $0x13c] sm:$0xf]
  %v114 = vld [vmem:[%s0 + $0x140] sm:$0xf]
  %v115 = vld [vmem:[%s0 + $0x144] sm:$0xf]
  %v116 = vld [vmem:[%s0 + $0x148] sm:$0xf]
  %v117 = vld [vmem:[%s0 + $0x14c] sm:$0xf]
  %v118 = vld [vmem:[%s0 + $0x150] sm:$0xf]
  %v119 = vld [vmem:[%s0 + $0x154] sm:$0xf]
  %v120 = vld [vmem:[%s0 + $0x158] sm:$0xf]
  %v121 = vld [vmem:[%s0 + $0x15c] sm:$0xf]
  %v122 = vld [vmem:[%s0 + $0x160] sm:$0xf]
  %v123 = vld [vmem:[%s0 + $0x164] sm:$0xf]
  %v124 = vld [vmem:[%s0 + $0x168] sm:$0xf]
  %v125 = vld [vmem:[%s0 + $0x16c] sm:$0xf]
  %v126 = vld [vmem:[%s0 + $0x170] sm:$0xf]
  %v127 = vld [vmem:[%s0 + $0x174] sm:$0xf]
  %v128 = vld [vmem:[%s0 + $0x178] sm:$0xf]
  %v129 = vld [vmem:[%s0 + $0x17c] sm:$0xf]
  %v130 = vld [vmem:[%s0 + $0x180] sm:$0xf]
  %v131 = vld [vmem:[%s0 + $0x184] sm:$0xf]
  %v132 = vld [vmem:[%s0 + $0x188] sm:$0xf]
  %v133 = vld [vmem:[%s0 + $0x18c] sm:$0xf]
  %v134 = vld [vmem:[%s0 + $0x190] sm:$0xf]
  %v135 = vld [vmem:[%s0 + $0x194] sm:$0xf]
  %v136 = vld [vmem:[%s0 + $0x198] sm:$0xf]
  %v137 = vld [vmem:[%s0 + $0x19c] sm:$0xf]
  %v138 = vld [vmem:[%s0 + $0x1a0] sm:$0xf]
  %v139 = vld [vmem:[%s0 + $0x1a4] sm:$0xf]
  %v140 = vld [vmem:[%s0 + $0x1a8] sm:$0xf]
  %v141 = vld [vmem:[%s0 + $0x1ac] sm:$0xf]
  %v142 = vld [vmem:[%s0 + $0x1b0] sm:$0xf]
  %v143 = vld [vmem:[%s0 + $0x1b4] sm:$0xf]
  %v144 = vld [vmem:[%s0 + $0x1b8] sm:$0xf]
  %v145 = vld [vmem:[%s0 + $0x1bc] sm:$0xf]
  %v146 = vld [vmem:[%s0 + $0x1c0] sm:$0xf]
  %v147 = vld [vmem:[%s0 + $0x1c4] sm:$0xf]
  %v148 = vld [vmem:[%s0 + $0x1c8] sm:$0xf]
  %v149 = vld [vmem:[%s0 + $0x1cc] sm:$0xf]
  %v150 = vld [vmem:[%s0 + $0x1d0] sm:$0xf]
  %v151 = vld [vmem:[%s0 + $0x1d4] sm:$0xf]
  %v152 = vld [vmem:[%s0 + $0x1d8] sm:$0xf]
  %v153 = vld [vmem:[%s0 + $0x1dc] sm:$0xf]
  %v154 = vld [vmem:[%s0 + $0x1e0] sm:$0xf]
  %v155 = vld [vmem:[%s0 + $0x1e4] sm:$0xf]
  %v156 = vld [vmem:[%s0 + $0x1e8] sm:$0xf]
  %v157 = vld [vmem:[%s0 + $0x1ec] sm:$0xf]
  %v158 = vld [vmem:[%s0 + $0x1f0] sm:$0xf]
  %v159 = vld [vmem:[%s0 + $0x1f4] sm:$0xf]
  %v160 = vld [vmem:[%s0 + $0x1f8] sm:$0xf]
  %v161 = vld [vmem:[%s0 + $0x1fc] sm:$0xf]
  %v162 = vld [vmem:[%s0 + $0x200] sm:$0xf]
  %v163 = vld [vmem:[%s0 + $0x204] sm:$0xf]
  %v164 = vld [vmem:[%s0 + $0x208] sm:$0xf]
  %v165 = vld [vmem:[%s0 + $0x20c] sm:$0xf]
  %v166 = vld [vmem:[%s0 + $0x210] sm:$0xf]
  %v167 = vld [vmem:[%s0 + $0x214] sm:$0xf]
  %v168 = vld [vmem:[%s0 + $0x218] sm:$0xf]
  %v169 = vld [vmem:[%s0 + $0x21c] sm:$0xf]
  %v170 = vld [vmem:[%s0 + $0x220] sm:$0xf]
  %v171 = vld [vmem:[%s0 + $0x224] sm:$0xf]
  %v172 = vld [vmem:[%s0 + $0x228] sm:$0xf]
  %v173 = vld [vmem:[%s0 + $0x22c] sm:$0xf]
  %v174 = vld [vmem:[%s0 + $0x230] sm:$0xf]
  %v175 = vld [vmem:[%s0 + $0x234] sm:$0xf]
  %v176 = vld [vmem:[%s0 + $0x238] sm:$0xf]
  %v177 = vld [vmem:[%s0 + $0x23c] sm:$0xf]
  %v178 = vld [vmem:[%s0 + $0x240] sm:$0xf]
  %v179 = vld [vmem:[%s0 + $0x244] sm:$0xf]
  %v180 = vld [vmem:[%s0 + $0x248] sm:$0xf]
  %v181 = vld [vmem:[%s0 + $0x24c] sm:$0xf]
  %v182 = vld [vmem:[%s0 + $0x250] sm:$0xf]
  %v183 = vld [vmem:[%s0 + $0x254] sm:$0xf]
  %v184 = vld [vmem:[%s0 + $0x258] sm:$0xf]
  %v185 = vld [vmem:[%s0 + $0x25c] sm:$0xf]
  %v186 = vld [vmem:[%s0 + $0x260] sm:$0xf]
  %v187 = vld [vmem:[%s0 + $0x264] sm:$0xf]
  %v188 = vld [vmem:[%s0 + $0x268] sm:$0xf]
  %v189 = vld [vmem:[%s0 + $0x26c] sm:$0xf]
  %v190 = vld [vmem:[%s0 + $0x270] sm:$0xf]
  %v191 = vld [vmem:[%s0 + $0x274] sm:$0xf]
  %v192 = vld [vmem:[%s0 + $0x278] sm:$0xf]
  %v193 = vld [vmem:[%s0 + $0x27c] sm:$0xf]
  %v194 = vld [vmem:[%s0 + $0x280] sm:$0xf]
  %v195 = vld [vmem:[%s0 + $0x284] sm:$0xf]
  %v196 = vld [vmem:[%s0 + $0x288] sm:$0xf]
  %v197 = vld [vmem:[%s0 + $0x28c] sm:$0xf]
  %v198 = vld [vmem:[%s0 + $0x290] sm:$0xf]
  %v199 = vld [vmem:[%s0 + $0x294] sm:$0xf]
  %v200 = vld [vmem:[%s0 + $0x298] sm:$0xf]
  %v201 = vld [vmem:[%s0 + $0x29c] sm:$0xf]
  %v202 = vld [vmem:[%s0 + $0x2a0] sm:$0xf]
  %v203 = vld [vmem:[%s0 + $0x2a4] sm:$0xf]
  %v204 = vld [vmem:[%s0 + $0x2a8] sm:$0xf]
  %v205 = vld [vmem:[%s0 + $0x2ac] sm:$0xf]
  %v206 = vld [vmem:[%s0 + $0x2b0] sm:$0xf]
  %v207 = vld [vmem:[%s0 + $0x2b4] sm:$0xf]
  %v208 = vld [vmem:[%s0 + $0x2b8] sm:$0xf]
  %v209 = vld [vmem:[%s0 + $0x2bc] sm:$0xf]
  %v210 = vld [vmem:[%s0 + $0x2c0] sm:$0xf]
  %v211 = vld [vmem:[%s0 + $0x2c4] sm:$0xf]
  %v212 = vld [vmem:[%s0 + $0x2c8] sm:$0xf]
  %v213 = vld [vmem:[%s0 + $0x2cc] sm:$0xf]
  %v214 = vld [vmem:[%s0 + $0x2d0] sm:$0xf]
  %v215 = vld [vmem:[%s0 + $0x2d4] sm:$0xf]
  %v216 = vld [vmem:[%s0 + $0x2d8] sm:$0xf]
  %v217 = vld [vmem:[%s0 + $0x2dc] sm:$0xf]
  %v218 = vld [vmem:[%s0 + $0x2e0] sm:$0xf]
  %v219 = vld [vmem:[%s0 + $0x2e4] sm:$0xf]
  %v220 = vld [vmem:[%s0 + $0x2e8] sm:$0xf]
  %v221 = vld [vmem:[%s0 + $0x2ec] sm:$0xf]
  %v222 = vld [vmem:[%s0 + $0x2f0] sm:$0xf]
  %v223 = vld [vmem:[%s0 + $0x2f4] sm:$0xf]
  %v224 = vld [vmem:[%s0 + $0x2f8] sm:$0xf]
  %v225 = vld [vmem:[%s0 + $0x2fc] sm:$0xf]
  %v226 = vld [vmem:[%s0 + $0x300] sm:$0xf]
  %v227 = vld [vmem:[%s0 + $0x304] sm:$0xf]
  %v228 = vld [vmem:[%s0 + $0x308] sm:$0xf]
  %v229 = vld [vmem:[%s0 + $0x30c] sm:$0xf]
  %v426 = vunpack.c.l.b16 %v34
  %v427 = vunpack.c.l.b16 %v35
  %v428 = vunpack.c.l.b16 %v36
  %v429 = vunpack.c.l.b16 %v37
  %v430 = vunpack.c.l.b16 %v38
  %v431 = vunpack.c.l.b16 %v39
  %v432 = vunpack.c.l.b16 %v40
  %v433 = vunpack.c.l.b16 %v41
  %v434 = vunpack.c.l.b16 %v42
  %v435 = vunpack.c.l.b16 %v43
  %v436 = vunpack.c.l.b16 %v44
  %v437 = vunpack.c.l.b16 %v45
  %v438 = vunpack.c.l.b16 %v46
  %v439 = vunpack.c.l.b16 %v47
  %v440 = vunpack.c.l.b16 %v48
  %v441 = vunpack.c.l.b16 %v49
  %v442 = vunpack.c.l.b16 %v50
  %v443 = vunpack.c.l.b16 %v51
  %v444 = vunpack.c.l.b16 %v52
  %v445 = vunpack.c.l.b16 %v53
  %v446 = vunpack.c.l.b16 %v54
  %v447 = vunpack.c.l.b16 %v55
  %v448 = vunpack.c.l.b16 %v56
  %v449 = vunpack.c.l.b16 %v57
  %v450 = vunpack.c.l.b16 %v58
  %v451 = vunpack.c.l.b16 %v59
  %v452 = vunpack.c.l.b16 %v60
  %v453 = vunpack.c.l.b16 %v61
  %v454 = vunpack.c.l.b16 %v62
  %v455 = vunpack.c.l.b16 %v63
  %v456 = vunpack.c.l.b16 %v64
  %v457 = vunpack.c.l.b16 %v65
  %v458 = vunpack.c.l.b16 %v66
  %v459 = vunpack.c.l.b16 %v67
  %v460 = vunpack.c.l.b16 %v68
  %v461 = vunpack.c.l.b16 %v69
  %v462 = vunpack.c.l.b16 %v70
  %v463 = vunpack.c.l.b16 %v71
  %v464 = vunpack.c.l.b16 %v72
  %v465 = vunpack.c.l.b16 %v73
  %v466 = vunpack.c.l.b16 %v74
  %v467 = vunpack.c.l.b16 %v75
  %v468 = vunpack.c.l.b16 %v76
  %v469 = vunpack.c.l.b16 %v77
  %v470 = vunpack.c.l.b16 %v78
  %v471 = vunpack.c.l.b16 %v79
  %v472 = vunpack.c.l.b16 %v80
  %v473 = vunpack.c.l.b16 %v81
  %v474 = vunpack.c.l.b16 %v82
  %v475 = vunpack.c.l.b16 %v83
  %v476 = vunpack.c.l.b16 %v84
  %v477 = vunpack.c.l.b16 %v85
  %v478 = vunpack.c.l.b16 %v86
  %v479 = vunpack.c.l.b16 %v87
  %v480 = vunpack.c.l.b16 %v88
  %v481 = vunpack.c.l.b16 %v89
  %v482 = vunpack.c.l.b16 %v90
  %v483 = vunpack.c.l.b16 %v91
  %v484 = vunpack.c.l.b16 %v92
  %v485 = vunpack.c.l.b16 %v93
  %v486 = vunpack.c.l.b16 %v94
  %v487 = vunpack.c.l.b16 %v95
  %v488 = vunpack.c.l.b16 %v96
  %v489 = vunpack.c.l.b16 %v97
  %v490 = vunpack.c.l.b16 %v98
  %v491 = vunpack.c.l.b16 %v99
  %v492 = vunpack.c.l.b16 %v100
  %v493 = vunpack.c.l.b16 %v101
  %v494 = vunpack.c.l.b16 %v102
  %v495 = vunpack.c.l.b16 %v103
  %v496 = vunpack.c.l.b16 %v104
  %v497 = vunpack.c.l.b16 %v105
  %v498 = vunpack.c.l.b16 %v106
  %v499 = vunpack.c.l.b16 %v107
  %v500 = vunpack.c.l.b16 %v108
  %v501 = vunpack.c.l.b16 %v109
  %v502 = vunpack.c.l.b16 %v110
  %v503 = vunpack.c.l.b16 %v111
  %v504 = vunpack.c.l.b16 %v112
  %v505 = vunpack.c.l.b16 %v113
  %v506 = vunpack.c.l.b16 %v114
  %v507 = vunpack.c.l.b16 %v115
  %v508 = vunpack.c.l.b16 %v116
  %v509 = vunpack.c.l.b16 %v117
  %v510 = vunpack.c.l.b16 %v118
  %v511 = vunpack.c.l.b16 %v119
  %v512 = vunpack.c.l.b16 %v120
  %v513 = vunpack.c.l.b16 %v121
  %v514 = vunpack.c.l.b16 %v122
  %v515 = vunpack.c.l.b16 %v123
  %v516 = vunpack.c.l.b16 %v124
  %v517 = vunpack.c.l.b16 %v125
  %v518 = vunpack.c.l.b16 %v126
  %v519 = vunpack.c.l.b16 %v127
  %v520 = vunpack.c.l.b16 %v128
  %v521 = vunpack.c.l.b16 %v129
  %v522 = vunpack.c.l.b16 %v130
  %v523 = vunpack.c.l.b16 %v131
  %v524 = vunpack.c.l.b16 %v132
  %v525 = vunpack.c.l.b16 %v133
  %v526 = vunpack.c.l.b16 %v134
  %v527 = vunpack.c.l.b16 %v135
  %v528 = vunpack.c.l.b16 %v136
  %v529 = vunpack.c.l.b16 %v137
  %v530 = vunpack.c.l.b16 %v138
  %v531 = vunpack.c.l.b16 %v139
  %v532 = vunpack.c.l.b16 %v140
  %v533 = vunpack.c.l.b16 %v141
  %v534 = vunpack.c.l.b16 %v142
  %v535 = vunpack.c.l.b16 %v143
  %v536 = vunpack.c.l.b16 %v144
  %v537 = vunpack.c.l.b16 %v145
  %v538 = vunpack.c.l.b16 %v146
  %v539 = vunpack.c.l.b16 %v147
  %v540 = vunpack.c.l.b16 %v148
  %v541 = vunpack.c.l.b16 %v149
  %v542 = vunpack.c.l.b16 %v150
  %v543 = vunpack.c.l.b16 %v151
  %v544 = vunpack.c.l.b16 %v152
  %v545 = vunpack.c.l.b16 %v153
  %v546 = vunpack.c.l.b16 %v154
  %v547 = vunpack.c.l.b16 %v155
  %v548 = vunpack.c.l.b16 %v156
  %v549 = vunpack.c.l.b16 %v157
  %v550 = vunpack.c.l.b16 %v158
  %v551 = vunpack.c.l.b16 %v159
  %v552 = vunpack.c.l.b16 %v160
  %v553 = vunpack.c.l.b16 %v161
  %v554 = vunpack.c.l.b16 %v162
  %v555 = vunpack.c.l.b16 %v163
  %v556 = vunpack.c.l.b16 %v164
  %v557 = vunpack.c.l.b16 %v165
  %v558 = vunpack.c.l.b16 %v166
  %v559 = vunpack.c.l.b16 %v167
  %v560 = vunpack.c.l.b16 %v168
  %v561 = vunpack.c.l.b16 %v169
  %v562 = vunpack.c.l.b16 %v170
  %v563 = vunpack.c.l.b16 %v171
  %v564 = vunpack.c.l.b16 %v172
  %v565 = vunpack.c.l.b16 %v173
  %v566 = vunpack.c.l.b16 %v174
  %v567 = vunpack.c.l.b16 %v175
  %v568 = vunpack.c.l.b16 %v176
  %v569 = vunpack.c.l.b16 %v177
  %v570 = vunpack.c.l.b16 %v178
  %v571 = vunpack.c.l.b16 %v179
  %v572 = vunpack.c.l.b16 %v180
  %v573 = vunpack.c.l.b16 %v181
  %v574 = vunpack.c.l.b16 %v182
  %v575 = vunpack.c.l.b16 %v183
  %v576 = vunpack.c.l.b16 %v184
  %v577 = vunpack.c.l.b16 %v185
  %v578 = vunpack.c.l.b16 %v186
  %v579 = vunpack.c.l.b16 %v187
  %v580 = vunpack.c.l.b16 %v188
  %v581 = vunpack.c.l.b16 %v189
  %v582 = vunpack.c.l.b16 %v190
  %v583 = vunpack.c.l.b16 %v191
  %v584 = vunpack.c.l.b16 %v192
  %v585 = vunpack.c.l.b16 %v193
  %v586 = vunpack.c.l.b16 %v194
  %v587 = vunpack.c.l.b16 %v195
  %v588 = vunpack.c.l.b16 %v196
  %v589 = vunpack.c.l.b16 %v197
  %v590 = vunpack.c.l.b16 %v198
  %v591 = vunpack.c.l.b16 %v199
  %v592 = vunpack.c.l.b16 %v200
  %v593 = vunpack.c.l.b16 %v201
  %v594 = vunpack.c.l.b16 %v202
  %v595 = vunpack.c.l.b16 %v203
  %v596 = vunpack.c.l.b16 %v204
  %v597 = vunpack.c.l.b16 %v205
  %v598 = vunpack.c.l.b16 %v206
  %v599 = vunpack.c.l.b16 %v207
  %v600 = vunpack.c.l.b16 %v208
  %v601 = vunpack.c.l.b16 %v209
  %v602 = vunpack.c.l.b16 %v210
  %v603 = vunpack.c.l.b16 %v211
  %v604 = vunpack.c.l.b16 %v212
  %v605 = vunpack.c.l.b16 %v213
  %v606 = vunpack.c.l.b16 %v214
  %v607 = vunpack.c.l.b16 %v215
  %v608 = vunpack.c.l.b16 %v216
  %v609 = vunpack.c.l.b16 %v217
  %v610 = vunpack.c.l.b16 %v218
  %v611 = vunpack.c.l.b16 %v219
  %v612 = vunpack.c.l.b16 %v220
  %v613 = vunpack.c.l.b16 %v221
  %v614 = vunpack.c.l.b16 %v222
  %v615 = vunpack.c.l.b16 %v223
  %v616 = vunpack.c.l.b16 %v224
  %v617 = vunpack.c.l.b16 %v225
  %v618 = vunpack.c.l.b16 %v226
  %v619 = vunpack.c.l.b16 %v227
  %v620 = vunpack.c.l.b16 %v228
  %v621 = vunpack.c.l.b16 %v229
  %v622 = vpack.c.b16 %v427, %v426
  %v623 = vpack.c.b16 %v429, %v428
  %v624 = vpack.c.b16 %v431, %v430
  %v625 = vpack.c.b16 %v433, %v432
  %v626 = vpack.c.b16 %v435, %v434
  %v627 = vpack.c.b16 %v437, %v436
  %v628 = vpack.c.b16 %v439, %v438
  %v629 = vpack.c.b16 %v441, %v440
  %v630 = vpack.c.b16 %v443, %v442
  %v631 = vpack.c.b16 %v445, %v444
  %v632 = vpack.c.b16 %v447, %v446
  %v633 = vpack.c.b16 %v449, %v448
  %v634 = vpack.c.b16 %v451, %v450
  %v635 = vpack.c.b16 %v453, %v452
  %v636 = vpack.c.b16 %v455, %v454
  %v637 = vpack.c.b16 %v457, %v456
  %v638 = vpack.c.b16 %v459, %v458
  %v639 = vpack.c.b16 %v461, %v460
  %v640 = vpack.c.b16 %v463, %v462
  %v641 = vpack.c.b16 %v465, %v464
  %v642 = vpack.c.b16 %v467, %v466
  %v643 = vpack.c.b16 %v469, %v468
  %v644 = vpack.c.b16 %v471, %v470
  %v645 = vpack.c.b16 %v473, %v472
  %v646 = vpack.c.b16 %v475, %v474
  %v647 = vpack.c.b16 %v477, %v476
  %v648 = vpack.c.b16 %v479, %v478
  %v649 = vpack.c.b16 %v481, %v480
  %v650 = vpack.c.b16 %v483, %v482
  %v651 = vpack.c.b16 %v485, %v484
  %v652 = vpack.c.b16 %v487, %v486
  %v653 = vpack.c.b16 %v489, %v488
  %v654 = vpack.c.b16 %v491, %v490
  %v655 = vpack.c.b16 %v493, %v492
  %v656 = vpack.c.b16 %v495, %v494
  %v657 = vpack.c.b16 %v497, %v496
  %v658 = vpack.c.b16 %v499, %v498
  %v659 = vpack.c.b16 %v501, %v500
  %v660 = vpack.c.b16 %v503, %v502
  %v661 = vpack.c.b16 %v505, %v504
  %v662 = vpack.c.b16 %v507, %v506
  %v663 = vpack.c.b16 %v509, %v508
  %v664 = vpack.c.b16 %v511, %v510
  %v665 = vpack.c.b16 %v513, %v512
  %v666 = vpack.c.b16 %v515, %v514
  %v667 = vpack.c.b16 %v517, %v516
  %v668 = vpack.c.b16 %v519, %v518
  %v669 = vpack.c.b16 %v521, %v520
  %v670 = vpack.c.b16 %v523, %v522
  %v671 = vpack.c.b16 %v525, %v524
  %v672 = vpack.c.b16 %v527, %v526
  %v673 = vpack.c.b16 %v529, %v528
  %v674 = vpack.c.b16 %v531, %v530
  %v675 = vpack.c.b16 %v533, %v532
  %v676 = vpack.c.b16 %v535, %v534
  %v677 = vpack.c.b16 %v537, %v536
  %v678 = vpack.c.b16 %v539, %v538
  %v679 = vpack.c.b16 %v541, %v540
  %v680 = vpack.c.b16 %v543, %v542
  %v681 = vpack.c.b16 %v545, %v544
  %v682 = vpack.c.b16 %v547, %v546
  %v683 = vpack.c.b16 %v549, %v548
  %v684 = vpack.c.b16 %v551, %v550
  %v685 = vpack.c.b16 %v553, %v552
  %v686 = vpack.c.b16 %v555, %v554
  %v687 = vpack.c.b16 %v557, %v556
  %v688 = vpack.c.b16 %v559, %v558
  %v689 = vpack.c.b16 %v561, %v560
  %v690 = vpack.c.b16 %v563, %v562
  %v691 = vpack.c.b16 %v565, %v564
  %v692 = vpack.c.b16 %v567, %v566
  %v693 = vpack.c.b16 %v569, %v568
  %v694 = vpack.c.b16 %v571, %v570
  %v695 = vpack.c.b16 %v573, %v572
  %v696 = vpack.c.b16 %v575, %v574
  %v697 = vpack.c.b16 %v577, %v576
  %v698 = vpack.c.b16 %v579, %v578
  %v699 = vpack.c.b16 %v581, %v580
  %v700 = vpack.c.b16 %v583, %v582
  %v701 = vpack.c.b16 %v585, %v584
  %v702 = vpack.c.b16 %v587, %v586
  %v703 = vpack.c.b16 %v589, %v588
  %v704 = vpack.c.b16 %v591, %v590
  %v705 = vpack.c.b16 %v593, %v592
  %v706 = vpack.c.b16 %v595, %v594
  %v707 = vpack.c.b16 %v597, %v596
  %v708 = vpack.c.b16 %v599, %v598
  %v709 = vpack.c.b16 %v601, %v600
  %v710 = vpack.c.b16 %v603, %v602
  %v711 = vpack.c.b16 %v605, %v604
  %v712 = vpack.c.b16 %v607, %v606
  %v713 = vpack.c.b16 %v609, %v608
  %v714 = vpack.c.b16 %v611, %v610
  %v715 = vpack.c.b16 %v613, %v612
  %v716 = vpack.c.b16 %v615, %v614
  %v717 = vpack.c.b16 %v617, %v616
  %v718 = vpack.c.b16 %v619, %v618
  %v719 = vpack.c.b16 %v621, %v620
  %v730 = vunpack.c.l.b16 %v24
  %v731 = vunpack.c.l.b16 %v25
  %v732 = vunpack.c.l.b16 %v26
  %v733 = vunpack.c.l.b16 %v27
  %v734 = vunpack.c.l.b16 %v28
  %v735 = vunpack.c.l.b16 %v29
  %v736 = vunpack.c.l.b16 %v30
  %v737 = vunpack.c.l.b16 %v31
  %v738 = vunpack.c.l.b16 %v32
  %v739 = vunpack.c.l.b16 %v33
  %v740 = vpack.c.b16 %v731, %v730
  %v741 = vpack.c.b16 %v733, %v732
  %v742 = vpack.c.b16 %v735, %v734
  %v743 = vpack.c.b16 %v737, %v736
  %v744 = vpack.c.b16 %v739, %v738
  %vm749 = vcmask 613376
  %v751 = vsel %vm749, %v622, 0
  %v754 = vsel %vm749, %v623, 0
  %v757 = vsel %vm749, %v624, 0
  %v760 = vsel %vm749, %v625, 0
  %v763 = vsel %vm749, %v626, 0
  %v766 = vsel %vm749, %v627, 0
  %v769 = vsel %vm749, %v628, 0
  %v772 = vsel %vm749, %v629, 0
  %v775 = vsel %vm749, %v630, 0
  %v778 = vsel %vm749, %v631, 0
  %v781 = vsel %vm749, %v632, 0
  %v784 = vsel %vm749, %v633, 0
  %v787 = vsel %vm749, %v634, 0
  %v790 = vsel %vm749, %v635, 0
  %v793 = vsel %vm749, %v636, 0
  %v796 = vsel %vm749, %v637, 0
  %v799 = vsel %vm749, %v638, 0
  %v802 = vsel %vm749, %v639, 0
  %v805 = vsel %vm749, %v640, 0
  %v808 = vsel %vm749, %v641, 0
  %v811 = vsel %vm749, %v642, 0
  %v814 = vsel %vm749, %v643, 0
  %v817 = vsel %vm749, %v644, 0
  %v820 = vsel %vm749, %v645, 0
  %v823 = vsel %vm749, %v646, 0
  %v826 = vsel %vm749, %v647, 0
  %v829 = vsel %vm749, %v648, 0
  %v832 = vsel %vm749, %v649, 0
  %v835 = vsel %vm749, %v650, 0
  %v838 = vsel %vm749, %v651, 0
  %v841 = vsel %vm749, %v652, 0
  %v844 = vsel %vm749, %v653, 0
  %v847 = vsel %vm749, %v654, 0
  %v850 = vsel %vm749, %v655, 0
  %v853 = vsel %vm749, %v656, 0
  %v856 = vsel %vm749, %v657, 0
  %v859 = vsel %vm749, %v658, 0
  %v862 = vsel %vm749, %v659, 0
  %v865 = vsel %vm749, %v660, 0
  %v868 = vsel %vm749, %v661, 0
  %v871 = vsel %vm749, %v662, 0
  %v874 = vsel %vm749, %v663, 0
  %v877 = vsel %vm749, %v664, 0
  %v880 = vsel %vm749, %v665, 0
  %v883 = vsel %vm749, %v666, 0
  %v886 = vsel %vm749, %v667, 0
  %v889 = vsel %vm749, %v668, 0
  %v892 = vsel %vm749, %v669, 0
  %v895 = vsel %vm749, %v670, 0
  %v898 = vsel %vm749, %v671, 0
  %v901 = vsel %vm749, %v672, 0
  %v904 = vsel %vm749, %v673, 0
  %v907 = vsel %vm749, %v674, 0
  %v910 = vsel %vm749, %v675, 0
  %v913 = vsel %vm749, %v676, 0
  %v916 = vsel %vm749, %v677, 0
  %v919 = vsel %vm749, %v678, 0
  %v922 = vsel %vm749, %v679, 0
  %v925 = vsel %vm749, %v680, 0
  %v928 = vsel %vm749, %v681, 0
  %v931 = vsel %vm749, %v682, 0
  %v934 = vsel %vm749, %v683, 0
  %v937 = vsel %vm749, %v684, 0
  %v940 = vsel %vm749, %v685, 0
  %v943 = vsel %vm749, %v686, 0
  %v946 = vsel %vm749, %v687, 0
  %v949 = vsel %vm749, %v688, 0
  %v952 = vsel %vm749, %v689, 0
  %v955 = vsel %vm749, %v690, 0
  %v958 = vsel %vm749, %v691, 0
  %v961 = vsel %vm749, %v692, 0
  %v964 = vsel %vm749, %v693, 0
  %v967 = vsel %vm749, %v694, 0
  %v970 = vsel %vm749, %v695, 0
  %v973 = vsel %vm749, %v696, 0
  %v976 = vsel %vm749, %v697, 0
  %v979 = vsel %vm749, %v698, 0
  %v982 = vsel %vm749, %v699, 0
  %v985 = vsel %vm749, %v700, 0
  %v988 = vsel %vm749, %v701, 0
  %v991 = vsel %vm749, %v702, 0
  %v994 = vsel %vm749, %v703, 0
  %v997 = vsel %vm749, %v704, 0
  %v1000 = vsel %vm749, %v705, 0
  %v1003 = vsel %vm749, %v706, 0
  %v1006 = vsel %vm749, %v707, 0
  %v1009 = vsel %vm749, %v708, 0
  %v1012 = vsel %vm749, %v709, 0
  %v1015 = vsel %vm749, %v710, 0
  %v1018 = vsel %vm749, %v711, 0
  %v1021 = vsel %vm749, %v712, 0
  %v1024 = vsel %vm749, %v713, 0
  %v1027 = vsel %vm749, %v714, 0
  %v1030 = vsel %vm749, %v715, 0
  %v1033 = vsel %vm749, %v716, 0
  %v1036 = vsel %vm749, %v717, 0
  %v1039 = vsel %vm749, %v718, 0
  %v1042 = vsel %vm749, %v719, 0
  %vm1044 = vcmask 1044480
  %vm1045 = vcmask 1045504
  %v1046 = vsel %vm1044, 4294967295, 65535
  %v1047 = vsel %vm1045, %v1046, 0
  %v1049 = vand.u32 %v744, %v1047
  %1051 = vmatprep.subr.bf16.mxu0 0
  %1052 = vmatpush1.bf16.msra.mxu0 %v740
  %1053 = vmatprep.subr.bf16.mxu0 0
  %1054 = vmatpush1.bf16.msra.mxu0 %v741
  %1055 = vmatprep.subr.bf16.mxu0 0
  %1056 = vmatpush1.bf16.msra.mxu0 %v742
  %1057 = vmatprep.subr.bf16.mxu0 0
  %1058 = vmatpush1.bf16.msra.mxu0 %v743
  %1059 = vmatprep.subr.bf16.mxu0 0
  %1060 = vmatpush1.bf16.msra.mxu0 %v1049
  %1061 = vmatprep.subr.bf16.mxu0 0
  %1062 = vmatpush1.bf16.msra.mxu0 0
  %1063 = vmatprep.subr.bf16.mxu0 0
  %1064 = vmatpush1.bf16.msra.mxu0 0
  %1065 = vmatprep.subr.bf16.mxu0 0
  %1066 = vmatpush1.bf16.msra.mxu0 0
  %1067 = vmatprep.subr.bf16.mxu0 0
  %1068 = vmatpush1.bf16.msra.mxu0 0
  %1069 = vmatprep.subr.bf16.mxu0 0
  %1070 = vmatpush1.bf16.msra.mxu0 0
  %1071 = vmatprep.subr.bf16.mxu0 0
  %1072 = vmatpush1.bf16.msra.mxu0 0
  %1073 = vmatprep.subr.bf16.mxu0 0
  %1074 = vmatpush1.bf16.msra.mxu0 0
  %1075 = vmatprep.subr.bf16.mxu0 0
  %1076 = vmatpush1.bf16.msra.mxu0 0
  %1077 = vmatprep.subr.bf16.mxu0 0
  %1078 = vmatpush1.bf16.msra.mxu0 0
  %1079 = vmatprep.subr.bf16.mxu0 0
  %1080 = vmatpush1.bf16.msra.mxu0 0
  %1081 = vmatprep.subr.bf16.mxu0 0
  %1082 = vmatpush1.bf16.msra.mxu0 0
  %1083 = vmatprep.mubr.bf16.mxu0 0
  %1084 = vmatmul.mubr.bf16.gmra.mrb[0].mxu0 %v751
  %v1085 = vpop.f32.mrb[0].mxu0
  %v1086 = vadd.f32 0.0, %v1085
  %v1087 = vpop.f32.mrb[0].mxu0
  %v1088 = vpop.f32.mrb[0].mxu0
  %v1089 = vadd.f32 0.0, %v1088
  %v1090 = vpop.f32.mrb[0].mxu0
  %1091 = vmatprep.mubr.bf16.mxu0 0
  %1092 = vmatmul.mubr.bf16.gmra.mrb[0].mxu0 %v754
  %v1093 = vpop.f32.mrb[0].mxu0
  %v1094 = vadd.f32 0.0, %v1093
  %v1095 = vpop.f32.mrb[0].mxu0
  %v1096 = vpop.f32.mrb[0].mxu0
  %v1097 = vadd.f32 0.0, %v1096
  %v1098 = vpop.f32.mrb[0].mxu0
  %1099 = vmatprep.mubr.bf16.mxu0 0
  %1100 = vmatmul.mubr.bf16.gmra.mrb[0].mxu0 %v757
  %v1101 = vpop.f32.mrb[0].mxu0
  %v1102 = vadd.f32 0.0, %v1101
  %v1103 = vpop.f32.mrb[0].mxu0
  %v1104 = vpop.f32.mrb[0].mxu0
  %v1105 = vadd.f32 0.0, %v1104
  %v1106 = vpop.f32.mrb[0].mxu0
  %1107 = vmatprep.mubr.bf16.mxu0 0
  %1108 = vmatmul.mubr.bf16.gmra.mrb[0].mxu0 %v760
  %v1109 = vpop.f32.mrb[0].mxu0
  %v1110 = vadd.f32 0.0, %v1109
  %v1111 = vpop.f32.mrb[0].mxu0
  %v1112 = vpop.f32.mrb[0].mxu0
  %v1113 = vadd.f32 0.0, %v1112
  %v1114 = vpop.f32.mrb[0].mxu0
  %1115 = vmatprep.mubr.bf16.mxu0 0
  %1116 = vmatmul.mubr.bf16.gmra.mrb[0].mxu0 %v763
  %v1117 = vpop.f32.mrb[0].mxu0
  %v1118 = vadd.f32 0.0, %v1117
  %v1119 = vpop.f32.mrb[0].mxu0
  %v1120 = vpop.f32.mrb[0].mxu0
  %v1121 = vadd.f32 0.0, %v1120
  %v1122 = vpop.f32.mrb[0].mxu0
  %1123 = vmatprep.mubr.bf16.mxu0 0
  %1124 = vmatmul.mubr.bf16.gmra.mrb[0].mxu0 %v766
  %v1125 = vpop.f32.mrb[0].mxu0
  %v1126 = vadd.f32 0.0, %v1125
  %v1127 = vpop.f32.mrb[0].mxu0
  %v1128 = vpop.f32.mrb[0].mxu0
  %v1129 = vadd.f32 0.0, %v1128
  %v1130 = vpop.f32.mrb[0].mxu0
  %1131 = vmatprep.mubr.bf16.mxu0 0
  %1132 = vmatmul.mubr.bf16.gmra.mrb[0].mxu0 %v769
  %v1133 = vpop.f32.mrb[0].mxu0
  %v1134 = vadd.f32 0.0, %v1133
  %v1135 = vpop.f32.mrb[0].mxu0
  %v1136 = vpop.f32.mrb[0].mxu0
  %v1137 = vadd.f32 0.0, %v1136
  %v1138 = vpop.f32.mrb[0].mxu0
  %1139 = vmatprep.mubr.bf16.mxu0 0
  %1140 = vmatmul.mubr.bf16.gmra.mrb[0].mxu0 %v772
  %v1141 = vpop.f32.mrb[0].mxu0
  %v1142 = vadd.f32 0.0, %v1141
  %v1143 = vpop.f32.mrb[0].mxu0
  %v1144 = vpop.f32.mrb[0].mxu0
  %v1145 = vadd.f32 0.0, %v1144
  %v1146 = vpop.f32.mrb[0].mxu0
  %1147 = vmatprep.mubr.bf16.mxu0 0
  %1148 = vmatmul.mubr.bf16.gmra.mrb[0].mxu0 %v775
  %v1149 = vpop.f32.mrb[0].mxu0
  %v1150 = vadd.f32 0.0, %v1149
  %v1151 = vpop.f32.mrb[0].mxu0
  %v1152 = vpop.f32.mrb[0].mxu0
  %v1153 = vadd.f32 0.0, %v1152
  %v1154 = vpop.f32.mrb[0].mxu0
  %1155 = vmatprep.mubr.bf16.mxu0 0
  %1156 = vmatmul.mubr.bf16.gmra.mrb[0].mxu0 %v778
  %v1157 = vpop.f32.mrb[0].mxu0
  %v1158 = vadd.f32 0.0, %v1157
  %v1159 = vpop.f32.mrb[0].mxu0
  %v1160 = vpop.f32.mrb[0].mxu0
  %v1161 = vadd.f32 0.0, %v1160
  %v1162 = vpop.f32.mrb[0].mxu0
  %1163 = vmatprep.mubr.bf16.mxu0 0
  %1164 = vmatmul.mubr.bf16.gmra.mrb[0].mxu0 %v781
  %v1165 = vpop.f32.mrb[0].mxu0
  %v1166 = vadd.f32 0.0, %v1165
  %v1167 = vpop.f32.mrb[0].mxu0
  %v1168 = vpop.f32.mrb[0].mxu0
  %v1169 = vadd.f32 0.0, %v1168
  %v1170 = vpop.f32.mrb[0].mxu0
  %1171 = vmatprep.mubr.bf16.mxu0 0
  %1172 = vmatmul.mubr.bf16.gmra.mrb[0].mxu0 %v784
  %v1173 = vpop.f32.mrb[0].mxu0
  %v1174 = vadd.f32 0.0, %v1173
  %v1175 = vpop.f32.mrb[0].mxu0
  %v1176 = vpop.f32.mrb[0].mxu0
  %v1177 = vadd.f32 0.0, %v1176
  %v1178 = vpop.f32.mrb[0].mxu0
  %1179 = vmatprep.mubr.bf16.mxu0 0
  %1180 = vmatmul.mubr.bf16.gmra.mrb[0].mxu0 %v787
  %v1181 = vpop.f32.mrb[0].mxu0
  %v1182 = vadd.f32 0.0, %v1181
  %v1183 = vpop.f32.mrb[0].mxu0
  %v1184 = vpop.f32.mrb[0].mxu0
  %v1185 = vadd.f32 0.0, %v1184
  %v1186 = vpop.f32.mrb[0].mxu0
  %1187 = vmatprep.mubr.bf16.mxu0 0
  %1188 = vmatmul.mubr.bf16.gmra.mrb[0].mxu0 %v790
  %v1189 = vpop.f32.mrb[0].mxu0
  %v1190 = vadd.f32 0.0, %v1189
  %v1191 = vpop.f32.mrb[0].mxu0
  %v1192 = vpop.f32.mrb[0].mxu0
  %v1193 = vadd.f32 0.0, %v1192
  %v1194 = vpop.f32.mrb[0].mxu0
  %1195 = vmatprep.mubr.bf16.mxu0 0
  %1196 = vmatmul.mubr.bf16.gmra.mrb[0].mxu0 %v793
  %v1197 = vpop.f32.mrb[0].mxu0
  %v1198 = vadd.f32 0.0, %v1197
  %v1199 = vpop.f32.mrb[0].mxu0
  %v1200 = vpop.f32.mrb[0].mxu0
  %v1201 = vadd.f32 0.0, %v1200
  %v1202 = vpop.f32.mrb[0].mxu0
  %1203 = vmatprep.mubr.bf16.mxu0 0
  %1204 = vmatmul.mubr.bf16.gmra.mrb[0].mxu0 %v796
  %v1205 = vpop.f32.mrb[0].mxu0
  %v1206 = vadd.f32 0.0, %v1205
  %v1207 = vpop.f32.mrb[0].mxu0
  %v1208 = vpop.f32.mrb[0].mxu0
  %v1209 = vadd.f32 0.0, %v1208
  %v1210 = vpop.f32.mrb[0].mxu0
  %1211 = vmatprep.mubr.bf16.mxu0 0
  %1212 = vmatmul.mubr.bf16.gmra.mrb[0].mxu0 %v799
  %v1213 = vpop.f32.mrb[0].mxu0
  %v1214 = vadd.f32 0.0, %v1213
  %v1215 = vpop.f32.mrb[0].mxu0
  %v1216 = vpop.f32.mrb[0].mxu0
  %v1217 = vadd.f32 0.0, %v1216
  %v1218 = vpop.f32.mrb[0].mxu0
  %1219 = vmatprep.mubr.bf16.mxu0 0
  %1220 = vmatmul.mubr.bf16.gmra.mrb[0].mxu0 %v802
  %v1221 = vpop.f32.mrb[0].mxu0
  %v1222 = vadd.f32 0.0, %v1221
  %v1223 = vpop.f32.mrb[0].mxu0
  %v1224 = vpop.f32.mrb[0].mxu0
  %v1225 = vadd.f32 0.0, %v1224
  %v1226 = vpop.f32.mrb[0].mxu0
  %1227 = vmatprep.mubr.bf16.mxu0 0
  %1228 = vmatmul.mubr.bf16.gmra.mrb[0].mxu0 %v805
  %v1229 = vpop.f32.mrb[0].mxu0
  %v1230 = vadd.f32 0.0, %v1229
  %v1231 = vpop.f32.mrb[0].mxu0
  %v1232 = vpop.f32.mrb[0].mxu0
  %v1233 = vadd.f32 0.0, %v1232
  %v1234 = vpop.f32.mrb[0].mxu0
  %1235 = vmatprep.mubr.bf16.mxu0 0
  %1236 = vmatmul.mubr.bf16.gmra.mrb[0].mxu0 %v808
  %v1237 = vpop.f32.mrb[0].mxu0
  %v1238 = vadd.f32 0.0, %v1237
  %v1239 = vpop.f32.mrb[0].mxu0
  %v1240 = vpop.f32.mrb[0].mxu0
  %v1241 = vadd.f32 0.0, %v1240
  %v1242 = vpop.f32.mrb[0].mxu0
  %1243 = vmatprep.mubr.bf16.mxu0 0
  %1244 = vmatmul.mubr.bf16.gmra.mrb[0].mxu0 %v811
  %v1245 = vpop.f32.mrb[0].mxu0
  %v1246 = vadd.f32 0.0, %v1245
  %v1247 = vpop.f32.mrb[0].mxu0
  %v1248 = vpop.f32.mrb[0].mxu0
  %v1249 = vadd.f32 0.0, %v1248
  %v1250 = vpop.f32.mrb[0].mxu0
  %1251 = vmatprep.mubr.bf16.mxu0 0
  %1252 = vmatmul.mubr.bf16.gmra.mrb[0].mxu0 %v814
  %v1253 = vpop.f32.mrb[0].mxu0
  %v1254 = vadd.f32 0.0, %v1253
  %v1255 = vpop.f32.mrb[0].mxu0
  %v1256 = vpop.f32.mrb[0].mxu0
  %v1257 = vadd.f32 0.0, %v1256
  %v1258 = vpop.f32.mrb[0].mxu0
  %1259 = vmatprep.mubr.bf16.mxu0 0
  %1260 = vmatmul.mubr.bf16.gmra.mrb[0].mxu0 %v817
  %v1261 = vpop.f32.mrb[0].mxu0
  %v1262 = vadd.f32 0.0, %v1261
  %v1263 = vpop.f32.mrb[0].mxu0
  %v1264 = vpop.f32.mrb[0].mxu0
  %v1265 = vadd.f32 0.0, %v1264
  %v1266 = vpop.f32.mrb[0].mxu0
  %1267 = vmatprep.mubr.bf16.mxu0 0
  %1268 = vmatmul.mubr.bf16.gmra.mrb[0].mxu0 %v820
  %v1269 = vpop.f32.mrb[0].mxu0
  %v1270 = vadd.f32 0.0, %v1269
  %v1271 = vpop.f32.mrb[0].mxu0
  %v1272 = vpop.f32.mrb[0].mxu0
  %v1273 = vadd.f32 0.0, %v1272
  %v1274 = vpop.f32.mrb[0].mxu0
  %1275 = vmatprep.mubr.bf16.mxu0 0
  %1276 = vmatmul.mubr.bf16.gmra.mrb[0].mxu0 %v823
  %v1277 = vpop.f32.mrb[0].mxu0
  %v1278 = vadd.f32 0.0, %v1277
  %v1279 = vpop.f32.mrb[0].mxu0
  %v1280 = vpop.f32.mrb[0].mxu0
  %v1281 = vadd.f32 0.0, %v1280
  %v1282 = vpop.f32.mrb[0].mxu0
  %1283 = vmatprep.mubr.bf16.mxu0 0
  %1284 = vmatmul.mubr.bf16.gmra.mrb[0].mxu0 %v826
  %v1285 = vpop.f32.mrb[0].mxu0
  %v1286 = vadd.f32 0.0, %v1285
  %v1287 = vpop.f32.mrb[0].mxu0
  %v1288 = vpop.f32.mrb[0].mxu0
  %v1289 = vadd.f32 0.0, %v1288
  %v1290 = vpop.f32.mrb[0].mxu0
  %1291 = vmatprep.mubr.bf16.mxu0 0
  %1292 = vmatmul.mubr.bf16.gmra.mrb[0].mxu0 %v829
  %v1293 = vpop.f32.mrb[0].mxu0
  %v1294 = vadd.f32 0.0, %v1293
  %v1295 = vpop.f32.mrb[0].mxu0
  %v1296 = vpop.f32.mrb[0].mxu0
  %v1297 = vadd.f32 0.0, %v1296
  %v1298 = vpop.f32.mrb[0].mxu0
  %1299 = vmatprep.mubr.bf16.mxu0 0
  %1300 = vmatmul.mubr.bf16.gmra.mrb[0].mxu0 %v832
  %v1301 = vpop.f32.mrb[0].mxu0
  %v1302 = vadd.f32 0.0, %v1301
  %v1303 = vpop.f32.mrb[0].mxu0
  %v1304 = vpop.f32.mrb[0].mxu0
  %v1305 = vadd.f32 0.0, %v1304
  %v1306 = vpop.f32.mrb[0].mxu0
  %1307 = vmatprep.mubr.bf16.mxu0 0
  %1308 = vmatmul.mubr.bf16.gmra.mrb[0].mxu0 %v835
  %v1309 = vpop.f32.mrb[0].mxu0
  %v1310 = vadd.f32 0.0, %v1309
  %v1311 = vpop.f32.mrb[0].mxu0
  %v1312 = vpop.f32.mrb[0].mxu0
  %v1313 = vadd.f32 0.0, %v1312
  %v1314 = vpop.f32.mrb[0].mxu0
  %1315 = vmatprep.mubr.bf16.mxu0 0
  %1316 = vmatmul.mubr.bf16.gmra.mrb[0].mxu0 %v838
  %v1317 = vpop.f32.mrb[0].mxu0
  %v1318 = vadd.f32 0.0, %v1317
  %v1319 = vpop.f32.mrb[0].mxu0
  %v1320 = vpop.f32.mrb[0].mxu0
  %v1321 = vadd.f32 0.0, %v1320
  %v1322 = vpop.f32.mrb[0].mxu0
  %1323 = vmatprep.mubr.bf16.mxu0 0
  %1324 = vmatmul.mubr.bf16.gmra.mrb[0].mxu0 %v841
  %v1325 = vpop.f32.mrb[0].mxu0
  %v1326 = vadd.f32 0.0, %v1325
  %v1327 = vpop.f32.mrb[0].mxu0
  %v1328 = vpop.f32.mrb[0].mxu0
  %v1329 = vadd.f32 0.0, %v1328
  %v1330 = vpop.f32.mrb[0].mxu0
  %1331 = vmatprep.mubr.bf16.mxu0 0
  %1332 = vmatmul.mubr.bf16.gmra.mrb[0].mxu0 %v844
  %v1333 = vpop.f32.mrb[0].mxu0
  %v1334 = vadd.f32 0.0, %v1333
  %v1335 = vpop.f32.mrb[0].mxu0
  %v1336 = vpop.f32.mrb[0].mxu0
  %v1337 = vadd.f32 0.0, %v1336
  %v1338 = vpop.f32.mrb[0].mxu0
  %1339 = vmatprep.mubr.bf16.mxu0 0
  %1340 = vmatmul.mubr.bf16.gmra.mrb[0].mxu0 %v847
  %v1341 = vpop.f32.mrb[0].mxu0
  %v1342 = vadd.f32 0.0, %v1341
  %v1343 = vpop.f32.mrb[0].mxu0
  %v1344 = vpop.f32.mrb[0].mxu0
  %v1345 = vadd.f32 0.0, %v1344
  %v1346 = vpop.f32.mrb[0].mxu0
  %1347 = vmatprep.mubr.bf16.mxu0 0
  %1348 = vmatmul.mubr.bf16.gmra.mrb[0].mxu0 %v850
  %v1349 = vpop.f32.mrb[0].mxu0
  %v1350 = vadd.f32 0.0, %v1349
  %v1351 = vpop.f32.mrb[0].mxu0
  %v1352 = vpop.f32.mrb[0].mxu0
  %v1353 = vadd.f32 0.0, %v1352
  %v1354 = vpop.f32.mrb[0].mxu0
  %1355 = vmatprep.mubr.bf16.mxu0 0
  %1356 = vmatmul.mubr.bf16.gmra.mrb[0].mxu0 %v853
  %v1357 = vpop.f32.mrb[0].mxu0
  %v1358 = vadd.f32 0.0, %v1357
  %v1359 = vpop.f32.mrb[0].mxu0
  %v1360 = vpop.f32.mrb[0].mxu0
  %v1361 = vadd.f32 0.0, %v1360
  %v1362 = vpop.f32.mrb[0].mxu0
  %1363 = vmatprep.mubr.bf16.mxu0 0
  %1364 = vmatmul.mubr.bf16.gmra.mrb[0].mxu0 %v856
  %v1365 = vpop.f32.mrb[0].mxu0
  %v1366 = vadd.f32 0.0, %v1365
  %v1367 = vpop.f32.mrb[0].mxu0
  %v1368 = vpop.f32.mrb[0].mxu0
  %v1369 = vadd.f32 0.0, %v1368
  %v1370 = vpop.f32.mrb[0].mxu0
  %1371 = vmatprep.mubr.bf16.mxu0 0
  %1372 = vmatmul.mubr.bf16.gmra.mrb[0].mxu0 %v859
  %v1373 = vpop.f32.mrb[0].mxu0
  %v1374 = vadd.f32 0.0, %v1373
  %v1375 = vpop.f32.mrb[0].mxu0
  %v1376 = vpop.f32.mrb[0].mxu0
  %v1377 = vadd.f32 0.0, %v1376
  %v1378 = vpop.f32.mrb[0].mxu0
  %1379 = vmatprep.mubr.bf16.mxu0 0
  %1380 = vmatmul.mubr.bf16.gmra.mrb[0].mxu0 %v862
  %v1381 = vpop.f32.mrb[0].mxu0
  %v1382 = vadd.f32 0.0, %v1381
  %v1383 = vpop.f32.mrb[0].mxu0
  %v1384 = vpop.f32.mrb[0].mxu0
  %v1385 = vadd.f32 0.0, %v1384
  %v1386 = vpop.f32.mrb[0].mxu0
  %1387 = vmatprep.mubr.bf16.mxu0 0
  %1388 = vmatmul.mubr.bf16.gmra.mrb[0].mxu0 %v865
  %v1389 = vpop.f32.mrb[0].mxu0
  %v1390 = vadd.f32 0.0, %v1389
  %v1391 = vpop.f32.mrb[0].mxu0
  %v1392 = vpop.f32.mrb[0].mxu0
  %v1393 = vadd.f32 0.0, %v1392
  %v1394 = vpop.f32.mrb[0].mxu0
  %1395 = vmatprep.mubr.bf16.mxu0 0
  %1396 = vmatmul.mubr.bf16.gmra.mrb[0].mxu0 %v868
  %v1397 = vpop.f32.mrb[0].mxu0
  %v1398 = vadd.f32 0.0, %v1397
  %v1399 = vpop.f32.mrb[0].mxu0
  %v1400 = vpop.f32.mrb[0].mxu0
  %v1401 = vadd.f32 0.0, %v1400
  %v1402 = vpop.f32.mrb[0].mxu0
  %1403 = vmatprep.mubr.bf16.mxu0 0
  %1404 = vmatmul.mubr.bf16.gmra.mrb[0].mxu0 %v871
  %v1405 = vpop.f32.mrb[0].mxu0
  %v1406 = vadd.f32 0.0, %v1405
  %v1407 = vpop.f32.mrb[0].mxu0
  %v1408 = vpop.f32.mrb[0].mxu0
  %v1409 = vadd.f32 0.0, %v1408
  %v1410 = vpop.f32.mrb[0].mxu0
  %1411 = vmatprep.mubr.bf16.mxu0 0
  %1412 = vmatmul.mubr.bf16.gmra.mrb[0].mxu0 %v874
  %v1413 = vpop.f32.mrb[0].mxu0
  %v1414 = vadd.f32 0.0, %v1413
  %v1415 = vpop.f32.mrb[0].mxu0
  %v1416 = vpop.f32.mrb[0].mxu0
  %v1417 = vadd.f32 0.0, %v1416
  %v1418 = vpop.f32.mrb[0].mxu0
  %1419 = vmatprep.mubr.bf16.mxu0 0
  %1420 = vmatmul.mubr.bf16.gmra.mrb[0].mxu0 %v877
  %v1421 = vpop.f32.mrb[0].mxu0
  %v1422 = vadd.f32 0.0, %v1421
  %v1423 = vpop.f32.mrb[0].mxu0
  %v1424 = vpop.f32.mrb[0].mxu0
  %v1425 = vadd.f32 0.0, %v1424
  %v1426 = vpop.f32.mrb[0].mxu0
  %1427 = vmatprep.mubr.bf16.mxu0 0
  %1428 = vmatmul.mubr.bf16.gmra.mrb[0].mxu0 %v880
  %v1429 = vpop.f32.mrb[0].mxu0
  %v1430 = vadd.f32 0.0, %v1429
  %v1431 = vpop.f32.mrb[0].mxu0
  %v1432 = vpop.f32.mrb[0].mxu0
  %v1433 = vadd.f32 0.0, %v1432
  %v1434 = vpop.f32.mrb[0].mxu0
  %1435 = vmatprep.mubr.bf16.mxu0 0
  %1436 = vmatmul.mubr.bf16.gmra.mrb[0].mxu0 %v883
  %v1437 = vpop.f32.mrb[0].mxu0
  %v1438 = vadd.f32 0.0, %v1437
  %v1439 = vpop.f32.mrb[0].mxu0
  %v1440 = vpop.f32.mrb[0].mxu0
  %v1441 = vadd.f32 0.0, %v1440
  %v1442 = vpop.f32.mrb[0].mxu0
  %1443 = vmatprep.mubr.bf16.mxu0 0
  %1444 = vmatmul.mubr.bf16.gmra.mrb[0].mxu0 %v886
  %v1445 = vpop.f32.mrb[0].mxu0
  %v1446 = vadd.f32 0.0, %v1445
  %v1447 = vpop.f32.mrb[0].mxu0
  %v1448 = vpop.f32.mrb[0].mxu0
  %v1449 = vadd.f32 0.0, %v1448
  %v1450 = vpop.f32.mrb[0].mxu0
  %1451 = vmatprep.mubr.bf16.mxu0 0
  %1452 = vmatmul.mubr.bf16.gmra.mrb[0].mxu0 %v889
  %v1453 = vpop.f32.mrb[0].mxu0
  %v1454 = vadd.f32 0.0, %v1453
  %v1455 = vpop.f32.mrb[0].mxu0
  %v1456 = vpop.f32.mrb[0].mxu0
  %v1457 = vadd.f32 0.0, %v1456
  %v1458 = vpop.f32.mrb[0].mxu0
  %1459 = vmatprep.mubr.bf16.mxu0 0
  %1460 = vmatmul.mubr.bf16.gmra.mrb[0].mxu0 %v892
  %v1461 = vpop.f32.mrb[0].mxu0
  %v1462 = vadd.f32 0.0, %v1461
  %v1463 = vpop.f32.mrb[0].mxu0
  %v1464 = vpop.f32.mrb[0].mxu0
  %v1465 = vadd.f32 0.0, %v1464
  %v1466 = vpop.f32.mrb[0].mxu0
  %1467 = vmatprep.mubr.bf16.mxu0 0
  %1468 = vmatmul.mubr.bf16.gmra.mrb[0].mxu0 %v895
  %v1469 = vpop.f32.mrb[0].mxu0
  %v1470 = vadd.f32 0.0, %v1469
  %v1471 = vpop.f32.mrb[0].mxu0
  %v1472 = vpop.f32.mrb[0].mxu0
  %v1473 = vadd.f32 0.0, %v1472
  %v1474 = vpop.f32.mrb[0].mxu0
  %1475 = vmatprep.mubr.bf16.mxu0 0
  %1476 = vmatmul.mubr.bf16.gmra.mrb[0].mxu0 %v898
  %v1477 = vpop.f32.mrb[0].mxu0
  %v1478 = vadd.f32 0.0, %v1477
  %v1479 = vpop.f32.mrb[0].mxu0
  %v1480 = vpop.f32.mrb[0].mxu0
  %v1481 = vadd.f32 0.0, %v1480
  %v1482 = vpop.f32.mrb[0].mxu0
  %1483 = vmatprep.mubr.bf16.mxu0 0
  %1484 = vmatmul.mubr.bf16.gmra.mrb[0].mxu0 %v901
  %v1485 = vpop.f32.mrb[0].mxu0
  %v1486 = vadd.f32 0.0, %v1485
  %v1487 = vpop.f32.mrb[0].mxu0
  %v1488 = vpop.f32.mrb[0].mxu0
  %v1489 = vadd.f32 0.0, %v1488
  %v1490 = vpop.f32.mrb[0].mxu0
  %1491 = vmatprep.mubr.bf16.mxu0 0
  %1492 = vmatmul.mubr.bf16.gmra.mrb[0].mxu0 %v904
  %v1493 = vpop.f32.mrb[0].mxu0
  %v1494 = vadd.f32 0.0, %v1493
  %v1495 = vpop.f32.mrb[0].mxu0
  %v1496 = vpop.f32.mrb[0].mxu0
  %v1497 = vadd.f32 0.0, %v1496
  %v1498 = vpop.f32.mrb[0].mxu0
  %1499 = vmatprep.mubr.bf16.mxu0 0
  %1500 = vmatmul.mubr.bf16.gmra.mrb[0].mxu0 %v907
  %v1501 = vpop.f32.mrb[0].mxu0
  %v1502 = vadd.f32 0.0, %v1501
  %v1503 = vpop.f32.mrb[0].mxu0
  %v1504 = vpop.f32.mrb[0].mxu0
  %v1505 = vadd.f32 0.0, %v1504
  %v1506 = vpop.f32.mrb[0].mxu0
  %1507 = vmatprep.mubr.bf16.mxu0 0
  %1508 = vmatmul.mubr.bf16.gmra.mrb[0].mxu0 %v910
  %v1509 = vpop.f32.mrb[0].mxu0
  %v1510 = vadd.f32 0.0, %v1509
  %v1511 = vpop.f32.mrb[0].mxu0
  %v1512 = vpop.f32.mrb[0].mxu0
  %v1513 = vadd.f32 0.0, %v1512
  %v1514 = vpop.f32.mrb[0].mxu0
  %1515 = vmatprep.mubr.bf16.mxu0 0
  %1516 = vmatmul.mubr.bf16.gmra.mrb[0].mxu0 %v913
  %v1517 = vpop.f32.mrb[0].mxu0
  %v1518 = vadd.f32 0.0, %v1517
  %v1519 = vpop.f32.mrb[0].mxu0
  %v1520 = vpop.f32.mrb[0].mxu0
  %v1521 = vadd.f32 0.0, %v1520
  %v1522 = vpop.f32.mrb[0].mxu0
  %1523 = vmatprep.mubr.bf16.mxu0 0
  %1524 = vmatmul.mubr.bf16.gmra.mrb[0].mxu0 %v916
  %v1525 = vpop.f32.mrb[0].mxu0
  %v1526 = vadd.f32 0.0, %v1525
  %v1527 = vpop.f32.mrb[0].mxu0
  %v1528 = vpop.f32.mrb[0].mxu0
  %v1529 = vadd.f32 0.0, %v1528
  %v1530 = vpop.f32.mrb[0].mxu0
  %1531 = vmatprep.mubr.bf16.mxu0 0
  %1532 = vmatmul.mubr.bf16.gmra.mrb[0].mxu0 %v919
  %v1533 = vpop.f32.mrb[0].mxu0
  %v1534 = vadd.f32 0.0, %v1533
  %v1535 = vpop.f32.mrb[0].mxu0
  %v1536 = vpop.f32.mrb[0].mxu0
  %v1537 = vadd.f32 0.0, %v1536
  %v1538 = vpop.f32.mrb[0].mxu0
  %1539 = vmatprep.mubr.bf16.mxu0 0
  %1540 = vmatmul.mubr.bf16.gmra.mrb[0].mxu0 %v922
  %v1541 = vpop.f32.mrb[0].mxu0
  %v1542 = vadd.f32 0.0, %v1541
  %v1543 = vpop.f32.mrb[0].mxu0
  %v1544 = vpop.f32.mrb[0].mxu0
  %v1545 = vadd.f32 0.0, %v1544
  %v1546 = vpop.f32.mrb[0].mxu0
  %1547 = vmatprep.mubr.bf16.mxu0 0
  %1548 = vmatmul.mubr.bf16.gmra.mrb[0].mxu0 %v925
  %v1549 = vpop.f32.mrb[0].mxu0
  %v1550 = vadd.f32 0.0, %v1549
  %v1551 = vpop.f32.mrb[0].mxu0
  %v1552 = vpop.f32.mrb[0].mxu0
  %v1553 = vadd.f32 0.0, %v1552
  %v1554 = vpop.f32.mrb[0].mxu0
  %1555 = vmatprep.mubr.bf16.mxu0 0
  %1556 = vmatmul.mubr.bf16.gmra.mrb[0].mxu0 %v928
  %v1557 = vpop.f32.mrb[0].mxu0
  %v1558 = vadd.f32 0.0, %v1557
  %v1559 = vpop.f32.mrb[0].mxu0
  %v1560 = vpop.f32.mrb[0].mxu0
  %v1561 = vadd.f32 0.0, %v1560
  %v1562 = vpop.f32.mrb[0].mxu0
  %1563 = vmatprep.mubr.bf16.mxu0 0
  %1564 = vmatmul.mubr.bf16.gmra.mrb[0].mxu0 %v931
  %v1565 = vpop.f32.mrb[0].mxu0
  %v1566 = vadd.f32 0.0, %v1565
  %v1567 = vpop.f32.mrb[0].mxu0
  %v1568 = vpop.f32.mrb[0].mxu0
  %v1569 = vadd.f32 0.0, %v1568
  %v1570 = vpop.f32.mrb[0].mxu0
  %1571 = vmatprep.mubr.bf16.mxu0 0
  %1572 = vmatmul.mubr.bf16.gmra.mrb[0].mxu0 %v934
  %v1573 = vpop.f32.mrb[0].mxu0
  %v1574 = vadd.f32 0.0, %v1573
  %v1575 = vpop.f32.mrb[0].mxu0
  %v1576 = vpop.f32.mrb[0].mxu0
  %v1577 = vadd.f32 0.0, %v1576
  %v1578 = vpop.f32.mrb[0].mxu0
  %1579 = vmatprep.mubr.bf16.mxu0 0
  %1580 = vmatmul.mubr.bf16.gmra.mrb[0].mxu0 %v937
  %v1581 = vpop.f32.mrb[0].mxu0
  %v1582 = vadd.f32 0.0, %v1581
  %v1583 = vpop.f32.mrb[0].mxu0
  %v1584 = vpop.f32.mrb[0].mxu0
  %v1585 = vadd.f32 0.0, %v1584
  %v1586 = vpop.f32.mrb[0].mxu0
  %1587 = vmatprep.mubr.bf16.mxu0 0
  %1588 = vmatmul.mubr.bf16.gmra.mrb[0].mxu0 %v940
  %v1589 = vpop.f32.mrb[0].mxu0
  %v1590 = vadd.f32 0.0, %v1589
  %v1591 = vpop.f32.mrb[0].mxu0
  %v1592 = vpop.f32.mrb[0].mxu0
  %v1593 = vadd.f32 0.0, %v1592
  %v1594 = vpop.f32.mrb[0].mxu0
  %1595 = vmatprep.mubr.bf16.mxu0 0
  %1596 = vmatmul.mubr.bf16.gmra.mrb[0].mxu0 %v943
  %v1597 = vpop.f32.mrb[0].mxu0
  %v1598 = vadd.f32 0.0, %v1597
  %v1599 = vpop.f32.mrb[0].mxu0
  %v1600 = vpop.f32.mrb[0].mxu0
  %v1601 = vadd.f32 0.0, %v1600
  %v1602 = vpop.f32.mrb[0].mxu0
  %1603 = vmatprep.mubr.bf16.mxu0 0
  %1604 = vmatmul.mubr.bf16.gmra.mrb[0].mxu0 %v946
  %v1605 = vpop.f32.mrb[0].mxu0
  %v1606 = vadd.f32 0.0, %v1605
  %v1607 = vpop.f32.mrb[0].mxu0
  %v1608 = vpop.f32.mrb[0].mxu0
  %v1609 = vadd.f32 0.0, %v1608
  %v1610 = vpop.f32.mrb[0].mxu0
  %1611 = vmatprep.mubr.bf16.mxu0 0
  %1612 = vmatmul.mubr.bf16.gmra.mrb[0].mxu0 %v949
  %v1613 = vpop.f32.mrb[0].mxu0
  %v1614 = vadd.f32 0.0, %v1613
  %v1615 = vpop.f32.mrb[0].mxu0
  %v1616 = vpop.f32.mrb[0].mxu0
  %v1617 = vadd.f32 0.0, %v1616
  %v1618 = vpop.f32.mrb[0].mxu0
  %1619 = vmatprep.mubr.bf16.mxu0 0
  %1620 = vmatmul.mubr.bf16.gmra.mrb[0].mxu0 %v952
  %v1621 = vpop.f32.mrb[0].mxu0
  %v1622 = vadd.f32 0.0, %v1621
  %v1623 = vpop.f32.mrb[0].mxu0
  %v1624 = vpop.f32.mrb[0].mxu0
  %v1625 = vadd.f32 0.0, %v1624
  %v1626 = vpop.f32.mrb[0].mxu0
  %1627 = vmatprep.mubr.bf16.mxu0 0
  %1628 = vmatmul.mubr.bf16.gmra.mrb[0].mxu0 %v955
  %v1629 = vpop.f32.mrb[0].mxu0
  %v1630 = vadd.f32 0.0, %v1629
  %v1631 = vpop.f32.mrb[0].mxu0
  %v1632 = vpop.f32.mrb[0].mxu0
  %v1633 = vadd.f32 0.0, %v1632
  %v1634 = vpop.f32.mrb[0].mxu0
  %1635 = vmatprep.mubr.bf16.mxu0 0
  %1636 = vmatmul.mubr.bf16.gmra.mrb[0].mxu0 %v958
  %v1637 = vpop.f32.mrb[0].mxu0
  %v1638 = vadd.f32 0.0, %v1637
  %v1639 = vpop.f32.mrb[0].mxu0
  %v1640 = vpop.f32.mrb[0].mxu0
  %v1641 = vadd.f32 0.0, %v1640
  %v1642 = vpop.f32.mrb[0].mxu0
  %1643 = vmatprep.mubr.bf16.mxu0 0
  %1644 = vmatmul.mubr.bf16.gmra.mrb[0].mxu0 %v961
  %v1645 = vpop.f32.mrb[0].mxu0
  %v1646 = vadd.f32 0.0, %v1645
  %v1647 = vpop.f32.mrb[0].mxu0
  %v1648 = vpop.f32.mrb[0].mxu0
  %v1649 = vadd.f32 0.0, %v1648
  %v1650 = vpop.f32.mrb[0].mxu0
  %1651 = vmatprep.mubr.bf16.mxu0 0
  %1652 = vmatmul.mubr.bf16.gmra.mrb[0].mxu0 %v964
  %v1653 = vpop.f32.mrb[0].mxu0
  %v1654 = vadd.f32 0.0, %v1653
  %v1655 = vpop.f32.mrb[0].mxu0
  %v1656 = vpop.f32.mrb[0].mxu0
  %v1657 = vadd.f32 0.0, %v1656
  %v1658 = vpop.f32.mrb[0].mxu0
  %1659 = vmatprep.mubr.bf16.mxu0 0
  %1660 = vmatmul.mubr.bf16.gmra.mrb[0].mxu0 %v967
  %v1661 = vpop.f32.mrb[0].mxu0
  %v1662 = vadd.f32 0.0, %v1661
  %v1663 = vpop.f32.mrb[0].mxu0
  %v1664 = vpop.f32.mrb[0].mxu0
  %v1665 = vadd.f32 0.0, %v1664
  %v1666 = vpop.f32.mrb[0].mxu0
  %1667 = vmatprep.mubr.bf16.mxu0 0
  %1668 = vmatmul.mubr.bf16.gmra.mrb[0].mxu0 %v970
  %v1669 = vpop.f32.mrb[0].mxu0
  %v1670 = vadd.f32 0.0, %v1669
  %v1671 = vpop.f32.mrb[0].mxu0
  %v1672 = vpop.f32.mrb[0].mxu0
  %v1673 = vadd.f32 0.0, %v1672
  %v1674 = vpop.f32.mrb[0].mxu0
  %1675 = vmatprep.mubr.bf16.mxu0 0
  %1676 = vmatmul.mubr.bf16.gmra.mrb[0].mxu0 %v973
  %v1677 = vpop.f32.mrb[0].mxu0
  %v1678 = vadd.f32 0.0, %v1677
  %v1679 = vpop.f32.mrb[0].mxu0
  %v1680 = vpop.f32.mrb[0].mxu0
  %v1681 = vadd.f32 0.0, %v1680
  %v1682 = vpop.f32.mrb[0].mxu0
  %1683 = vmatprep.mubr.bf16.mxu0 0
  %1684 = vmatmul.mubr.bf16.gmra.mrb[0].mxu0 %v976
  %v1685 = vpop.f32.mrb[0].mxu0
  %v1686 = vadd.f32 0.0, %v1685
  %v1687 = vpop.f32.mrb[0].mxu0
  %v1688 = vpop.f32.mrb[0].mxu0
  %v1689 = vadd.f32 0.0, %v1688
  %v1690 = vpop.f32.mrb[0].mxu0
  %1691 = vmatprep.mubr.bf16.mxu0 0
  %1692 = vmatmul.mubr.bf16.gmra.mrb[0].mxu0 %v979
  %v1693 = vpop.f32.mrb[0].mxu0
  %v1694 = vadd.f32 0.0, %v1693
  %v1695 = vpop.f32.mrb[0].mxu0
  %v1696 = vpop.f32.mrb[0].mxu0
  %v1697 = vadd.f32 0.0, %v1696
  %v1698 = vpop.f32.mrb[0].mxu0
  %1699 = vmatprep.mubr.bf16.mxu0 0
  %1700 = vmatmul.mubr.bf16.gmra.mrb[0].mxu0 %v982
  %v1701 = vpop.f32.mrb[0].mxu0
  %v1702 = vadd.f32 0.0, %v1701
  %v1703 = vpop.f32.mrb[0].mxu0
  %v1704 = vpop.f32.mrb[0].mxu0
  %v1705 = vadd.f32 0.0, %v1704
  %v1706 = vpop.f32.mrb[0].mxu0
  %1707 = vmatprep.mubr.bf16.mxu0 0
  %1708 = vmatmul.mubr.bf16.gmra.mrb[0].mxu0 %v985
  %v1709 = vpop.f32.mrb[0].mxu0
  %v1710 = vadd.f32 0.0, %v1709
  %v1711 = vpop.f32.mrb[0].mxu0
  %v1712 = vpop.f32.mrb[0].mxu0
  %v1713 = vadd.f32 0.0, %v1712
  %v1714 = vpop.f32.mrb[0].mxu0
  %1715 = vmatprep.mubr.bf16.mxu0 0
  %1716 = vmatmul.mubr.bf16.gmra.mrb[0].mxu0 %v988
  %v1717 = vpop.f32.mrb[0].mxu0
  %v1718 = vadd.f32 0.0, %v1717
  %v1719 = vpop.f32.mrb[0].mxu0
  %v1720 = vpop.f32.mrb[0].mxu0
  %v1721 = vadd.f32 0.0, %v1720
  %v1722 = vpop.f32.mrb[0].mxu0
  %1723 = vmatprep.mubr.bf16.mxu0 0
  %1724 = vmatmul.mubr.bf16.gmra.mrb[0].mxu0 %v991
  %v1725 = vpop.f32.mrb[0].mxu0
  %v1726 = vadd.f32 0.0, %v1725
  %v1727 = vpop.f32.mrb[0].mxu0
  %v1728 = vpop.f32.mrb[0].mxu0
  %v1729 = vadd.f32 0.0, %v1728
  %v1730 = vpop.f32.mrb[0].mxu0
  %1731 = vmatprep.mubr.bf16.mxu0 0
  %1732 = vmatmul.mubr.bf16.gmra.mrb[0].mxu0 %v994
  %v1733 = vpop.f32.mrb[0].mxu0
  %v1734 = vadd.f32 0.0, %v1733
  %v1735 = vpop.f32.mrb[0].mxu0
  %v1736 = vpop.f32.mrb[0].mxu0
  %v1737 = vadd.f32 0.0, %v1736
  %v1738 = vpop.f32.mrb[0].mxu0
  %1739 = vmatprep.mubr.bf16.mxu0 0
  %1740 = vmatmul.mubr.bf16.gmra.mrb[0].mxu0 %v997
  %v1741 = vpop.f32.mrb[0].mxu0
  %v1742 = vadd.f32 0.0, %v1741
  %v1743 = vpop.f32.mrb[0].mxu0
  %v1744 = vpop.f32.mrb[0].mxu0
  %v1745 = vadd.f32 0.0, %v1744
  %v1746 = vpop.f32.mrb[0].mxu0
  %1747 = vmatprep.mubr.bf16.mxu0 0
  %1748 = vmatmul.mubr.bf16.gmra.mrb[0].mxu0 %v1000
  %v1749 = vpop.f32.mrb[0].mxu0
  %v1750 = vadd.f32 0.0, %v1749
  %v1751 = vpop.f32.mrb[0].mxu0
  %v1752 = vpop.f32.mrb[0].mxu0
  %v1753 = vadd.f32 0.0, %v1752
  %v1754 = vpop.f32.mrb[0].mxu0
  %1755 = vmatprep.mubr.bf16.mxu0 0
  %1756 = vmatmul.mubr.bf16.gmra.mrb[0].mxu0 %v1003
  %v1757 = vpop.f32.mrb[0].mxu0
  %v1758 = vadd.f32 0.0, %v1757
  %v1759 = vpop.f32.mrb[0].mxu0
  %v1760 = vpop.f32.mrb[0].mxu0
  %v1761 = vadd.f32 0.0, %v1760
  %v1762 = vpop.f32.mrb[0].mxu0
  %1763 = vmatprep.mubr.bf16.mxu0 0
  %1764 = vmatmul.mubr.bf16.gmra.mrb[0].mxu0 %v1006
  %v1765 = vpop.f32.mrb[0].mxu0
  %v1766 = vadd.f32 0.0, %v1765
  %v1767 = vpop.f32.mrb[0].mxu0
  %v1768 = vpop.f32.mrb[0].mxu0
  %v1769 = vadd.f32 0.0, %v1768
  %v1770 = vpop.f32.mrb[0].mxu0
  %1771 = vmatprep.mubr.bf16.mxu0 0
  %1772 = vmatmul.mubr.bf16.gmra.mrb[0].mxu0 %v1009
  %v1773 = vpop.f32.mrb[0].mxu0
  %v1774 = vadd.f32 0.0, %v1773
  %v1775 = vpop.f32.mrb[0].mxu0
  %v1776 = vpop.f32.mrb[0].mxu0
  %v1777 = vadd.f32 0.0, %v1776
  %v1778 = vpop.f32.mrb[0].mxu0
  %1779 = vmatprep.mubr.bf16.mxu0 0
  %1780 = vmatmul.mubr.bf16.gmra.mrb[0].mxu0 %v1012
  %v1781 = vpop.f32.mrb[0].mxu0
  %v1782 = vadd.f32 0.0, %v1781
  %v1783 = vpop.f32.mrb[0].mxu0
  %v1784 = vpop.f32.mrb[0].mxu0
  %v1785 = vadd.f32 0.0, %v1784
  %v1786 = vpop.f32.mrb[0].mxu0
  %1787 = vmatprep.mubr.bf16.mxu0 0
  %1788 = vmatmul.mubr.bf16.gmra.mrb[0].mxu0 %v1015
  %v1789 = vpop.f32.mrb[0].mxu0
  %v1790 = vadd.f32 0.0, %v1789
  %v1791 = vpop.f32.mrb[0].mxu0
  %v1792 = vpop.f32.mrb[0].mxu0
  %v1793 = vadd.f32 0.0, %v1792
  %v1794 = vpop.f32.mrb[0].mxu0
  %1795 = vmatprep.mubr.bf16.mxu0 0
  %1796 = vmatmul.mubr.bf16.gmra.mrb[0].mxu0 %v1018
  %v1797 = vpop.f32.mrb[0].mxu0
  %v1798 = vadd.f32 0.0, %v1797
  %v1799 = vpop.f32.mrb[0].mxu0
  %v1800 = vpop.f32.mrb[0].mxu0
  %v1801 = vadd.f32 0.0, %v1800
  %v1802 = vpop.f32.mrb[0].mxu0
  %1803 = vmatprep.mubr.bf16.mxu0 0
  %1804 = vmatmul.mubr.bf16.gmra.mrb[0].mxu0 %v1021
  %v1805 = vpop.f32.mrb[0].mxu0
  %v1806 = vadd.f32 0.0, %v1805
  %v1807 = vpop.f32.mrb[0].mxu0
  %v1808 = vpop.f32.mrb[0].mxu0
  %v1809 = vadd.f32 0.0, %v1808
  %v1810 = vpop.f32.mrb[0].mxu0
  %1811 = vmatprep.mubr.bf16.mxu0 0
  %1812 = vmatmul.mubr.bf16.gmra.mrb[0].mxu0 %v1024
  %v1813 = vpop.f32.mrb[0].mxu0
  %v1814 = vadd.f32 0.0, %v1813
  %v1815 = vpop.f32.mrb[0].mxu0
  %v1816 = vpop.f32.mrb[0].mxu0
  %v1817 = vadd.f32 0.0, %v1816
  %v1818 = vpop.f32.mrb[0].mxu0
  %1819 = vmatprep.mubr.bf16.mxu0 0
  %1820 = vmatmul.mubr.bf16.gmra.mrb[0].mxu0 %v1027
  %v1821 = vpop.f32.mrb[0].mxu0
  %v1822 = vadd.f32 0.0, %v1821
  %v1823 = vpop.f32.mrb[0].mxu0
  %v1824 = vpop.f32.mrb[0].mxu0
  %v1825 = vadd.f32 0.0, %v1824
  %v1826 = vpop.f32.mrb[0].mxu0
  %1827 = vmatprep.mubr.bf16.mxu0 0
  %1828 = vmatmul.mubr.bf16.gmra.mrb[0].mxu0 %v1030
  %v1829 = vpop.f32.mrb[0].mxu0
  %v1830 = vadd.f32 0.0, %v1829
  %v1831 = vpop.f32.mrb[0].mxu0
  %v1832 = vpop.f32.mrb[0].mxu0
  %v1833 = vadd.f32 0.0, %v1832
  %v1834 = vpop.f32.mrb[0].mxu0
  %1835 = vmatprep.mubr.bf16.mxu0 0
  %1836 = vmatmul.mubr.bf16.gmra.mrb[0].mxu0 %v1033
  %v1837 = vpop.f32.mrb[0].mxu0
  %v1838 = vadd.f32 0.0, %v1837
  %v1839 = vpop.f32.mrb[0].mxu0
  %v1840 = vpop.f32.mrb[0].mxu0
  %v1841 = vadd.f32 0.0, %v1840
  %v1842 = vpop.f32.mrb[0].mxu0
  %1843 = vmatprep.mubr.bf16.mxu0 0
  %1844 = vmatmul.mubr.bf16.gmra.mrb[0].mxu0 %v1036
  %v1845 = vpop.f32.mrb[0].mxu0
  %v1846 = vadd.f32 0.0, %v1845
  %v1847 = vpop.f32.mrb[0].mxu0
  %v1848 = vpop.f32.mrb[0].mxu0
  %v1849 = vadd.f32 0.0, %v1848
  %v1850 = vpop.f32.mrb[0].mxu0
  %1851 = vmatprep.mubr.bf16.mxu0 0
  %1852 = vmatmul.mubr.bf16.gmra.mrb[0].mxu0 %v1039
  %v1853 = vpop.f32.mrb[0].mxu0
  %v1854 = vadd.f32 0.0, %v1853
  %v1855 = vpop.f32.mrb[0].mxu0
  %v1856 = vpop.f32.mrb[0].mxu0
  %v1857 = vadd.f32 0.0, %v1856
  %v1858 = vpop.f32.mrb[0].mxu0
  %1859 = vmatprep.mubr.bf16.mxu0 0
  %1860 = vmatmul.mubr.bf16.gmra.mrb[0].mxu0 %v1042
  %v1861 = vpop.f32.mrb[0].mxu0
  %v1862 = vadd.f32 0.0, %v1861
  %v1863 = vpop.f32.mrb[0].mxu0
  %v1864 = vpop.f32.mrb[0].mxu0
  %v1865 = vadd.f32 0.0, %v1864
  %v1866 = vpop.f32.mrb[0].mxu0
  %1867 = vdwg.mxu0
  %v1868 = vld [vmem:[%s1] sm:$0xf]
  %v1869 = vld [vmem:[%s1 + $0x4] sm:$0xf]
  %v1870 = vld [vmem:[%s1 + $0x8] sm:$0xf]
  %v1871 = vld [vmem:[%s1 + $0xc] sm:$0xf]
  %v1872 = vld [vmem:[%s1 + $0x10] sm:$0xf]
  %v1873 = vld [vmem:[%s1 + $0x14] sm:$0xf]
  %v1874 = vld [vmem:[%s1 + $0x18] sm:$0xf]
  %v1875 = vld [vmem:[%s1 + $0x1c] sm:$0xf]
  %v1876 = vld [vmem:[%s1 + $0x20] sm:$0xf]
  %v1877 = vld [vmem:[%s1 + $0x24] sm:$0xf]
  %v1878 = vld [vmem:[%s1 + $0x28] sm:$0xf]
  %v1879 = vld [vmem:[%s1 + $0x2c] sm:$0xf]
  %v1880 = vld [vmem:[%s1 + $0x30] sm:$0xf]
  %v1881 = vld [vmem:[%s1 + $0x34] sm:$0xf]
  %v1882 = vld [vmem:[%s1 + $0x38] sm:$0xf]
  %v1883 = vld [vmem:[%s1 + $0x3c] sm:$0xf]
  %v1884 = vld [vmem:[%s1 + $0x40] sm:$0xf]
  %v1885 = vld [vmem:[%s1 + $0x44] sm:$0xf]
  %v1886 = vld [vmem:[%s1 + $0x48] sm:$0xf]
  %v1887 = vld [vmem:[%s1 + $0x4c] sm:$0xf]
  %v1888 = vld [vmem:[%s1 + $0x50] sm:$0xf]
  %v1889 = vld [vmem:[%s1 + $0x54] sm:$0xf]
  %v1890 = vld [vmem:[%s1 + $0x58] sm:$0xf]
  %v1891 = vld [vmem:[%s1 + $0x5c] sm:$0xf]
  %v1892 = vld [vmem:[%s1 + $0x60] sm:$0xf]
  %v1893 = vld [vmem:[%s1 + $0x64] sm:$0xf]
  %v1894 = vld [vmem:[%s1 + $0x68] sm:$0xf]
  %v1895 = vld [vmem:[%s1 + $0x6c] sm:$0xf]
  %v1896 = vld [vmem:[%s1 + $0x70] sm:$0xf]
  %v1897 = vld [vmem:[%s1 + $0x74] sm:$0xf]
  %v1898 = vld [vmem:[%s1 + $0x78] sm:$0xf]
  %v1899 = vld [vmem:[%s1 + $0x7c] sm:$0xf]
  %v1900 = vld [vmem:[%s1 + $0x80] sm:$0xf]
  %v1901 = vld [vmem:[%s1 + $0x84] sm:$0xf]
  %v1902 = vld [vmem:[%s1 + $0x88] sm:$0xf]
  %v1903 = vld [vmem:[%s1 + $0x8c] sm:$0xf]
  %v1904 = vld [vmem:[%s1 + $0x90] sm:$0xf]
  %v1905 = vld [vmem:[%s1 + $0x94] sm:$0xf]
  %v1906 = vld [vmem:[%s1 + $0x98] sm:$0xf]
  %v1907 = vld [vmem:[%s1 + $0x9c] sm:$0xf]
  %v1908 = vld [vmem:[%s1 + $0xa0] sm:$0xf]
  %v1909 = vld [vmem:[%s1 + $0xa4] sm:$0xf]
  %v1910 = vld [vmem:[%s1 + $0xa8] sm:$0xf]
  %v1911 = vld [vmem:[%s1 + $0xac] sm:$0xf]
  %v1912 = vld [vmem:[%s1 + $0xb0] sm:$0xf]
  %v1913 = vld [vmem:[%s1 + $0xb4] sm:$0xf]
  %v1914 = vld [vmem:[%s1 + $0xb8] sm:$0xf]
  %v1915 = vld [vmem:[%s1 + $0xbc] sm:$0xf]
  %v1916 = vld [vmem:[%s1 + $0xc0] sm:$0xf]
  %v1917 = vld [vmem:[%s1 + $0xc4] sm:$0xf]
  %v1918 = vld [vmem:[%s1 + $0xc8] sm:$0xf]
  %v1919 = vld [vmem:[%s1 + $0xcc] sm:$0xf]
  %v1920 = vld [vmem:[%s1 + $0xd0] sm:$0xf]
  %v1921 = vld [vmem:[%s1 + $0xd4] sm:$0xf]
  %v1922 = vld [vmem:[%s1 + $0xd8] sm:$0xf]
  %v1923 = vld [vmem:[%s1 + $0xdc] sm:$0xf]
  %v1924 = vld [vmem:[%s1 + $0xe0] sm:$0xf]
  %v1925 = vld [vmem:[%s1 + $0xe4] sm:$0xf]
  %v1926 = vld [vmem:[%s1 + $0xe8] sm:$0xf]
  %v1927 = vld [vmem:[%s1 + $0xec] sm:$0xf]
  %v1928 = vld [vmem:[%s1 + $0xf0] sm:$0xf]
  %v1929 = vld [vmem:[%s1 + $0xf4] sm:$0xf]
  %v1930 = vld [vmem:[%s1 + $0xf8] sm:$0xf]
  %v1931 = vld [vmem:[%s1 + $0xfc] sm:$0xf]
  %v1932 = vld [vmem:[%s1 + $0x100] sm:$0xf]
  %v1933 = vld [vmem:[%s1 + $0x104] sm:$0xf]
  %v1934 = vld [vmem:[%s1 + $0x108] sm:$0xf]
  %v1935 = vld [vmem:[%s1 + $0x10c] sm:$0xf]
  %v1936 = vld [vmem:[%s1 + $0x110] sm:$0xf]
  %v1937 = vld [vmem:[%s1 + $0x114] sm:$0xf]
  %v1938 = vld [vmem:[%s1 + $0x118] sm:$0xf]
  %v1939 = vld [vmem:[%s1 + $0x11c] sm:$0xf]
  %v1940 = vld [vmem:[%s1 + $0x120] sm:$0xf]
  %v1941 = vld [vmem:[%s1 + $0x124] sm:$0xf]
  %v1942 = vld [vmem:[%s1 + $0x128] sm:$0xf]
  %v1943 = vld [vmem:[%s1 + $0x12c] sm:$0xf]
  %v1944 = vld [vmem:[%s1 + $0x130] sm:$0xf]
  %v1945 = vld [vmem:[%s1 + $0x134] sm:$0xf]
  %v1946 = vld [vmem:[%s1 + $0x138] sm:$0xf]
  %v1947 = vld [vmem:[%s1 + $0x13c] sm:$0xf]
  %v1948 = vld [vmem:[%s1 + $0x140] sm:$0xf]
  %v1949 = vld [vmem:[%s1 + $0x144] sm:$0xf]
  %v1950 = vld [vmem:[%s1 + $0x148] sm:$0xf]
  %v1951 = vld [vmem:[%s1 + $0x14c] sm:$0xf]
  %v1952 = vld [vmem:[%s1 + $0x150] sm:$0xf]
  %v1953 = vld [vmem:[%s1 + $0x154] sm:$0xf]
  %v1954 = vld [vmem:[%s1 + $0x158] sm:$0xf]
  %v1955 = vld [vmem:[%s1 + $0x15c] sm:$0xf]
  %v1956 = vld [vmem:[%s1 + $0x160] sm:$0xf]
  %v1957 = vld [vmem:[%s1 + $0x164] sm:$0xf]
  %v1958 = vld [vmem:[%s1 + $0x168] sm:$0xf]
  %v1959 = vld [vmem:[%s1 + $0x16c] sm:$0xf]
  %v1960 = vld [vmem:[%s1 + $0x170] sm:$0xf]
  %v1961 = vld [vmem:[%s1 + $0x174] sm:$0xf]
  %v1962 = vld [vmem:[%s1 + $0x178] sm:$0xf]
  %v1963 = vld [vmem:[%s1 + $0x17c] sm:$0xf]
  %v1964 = vld [vmem:[%s1 + $0x180] sm:$0xf]
  %v1965 = vld [vmem:[%s1 + $0x184] sm:$0xf]
  %v1966 = vld [vmem:[%s1 + $0x188] sm:$0xf]
  %v1967 = vld [vmem:[%s1 + $0x18c] sm:$0xf]
  %v1968 = vld [vmem:[%s1 + $0x190] sm:$0xf]
  %v1969 = vld [vmem:[%s1 + $0x194] sm:$0xf]
  %v1970 = vld [vmem:[%s1 + $0x198] sm:$0xf]
  %v1971 = vld [vmem:[%s1 + $0x19c] sm:$0xf]
  %v1972 = vld [vmem:[%s1 + $0x1a0] sm:$0xf]
  %v1973 = vld [vmem:[%s1 + $0x1a4] sm:$0xf]
  %v1974 = vld [vmem:[%s1 + $0x1a8] sm:$0xf]
  %v1975 = vld [vmem:[%s1 + $0x1ac] sm:$0xf]
  %v1976 = vld [vmem:[%s1 + $0x1b0] sm:$0xf]
  %v1977 = vld [vmem:[%s1 + $0x1b4] sm:$0xf]
  %v1978 = vld [vmem:[%s1 + $0x1b8] sm:$0xf]
  %v1979 = vld [vmem:[%s1 + $0x1bc] sm:$0xf]
  %v1980 = vld [vmem:[%s1 + $0x1c0] sm:$0xf]
  %v1981 = vld [vmem:[%s1 + $0x1c4] sm:$0xf]
  %v1982 = vld [vmem:[%s1 + $0x1c8] sm:$0xf]
  %v1983 = vld [vmem:[%s1 + $0x1cc] sm:$0xf]
  %v1984 = vld [vmem:[%s1 + $0x1d0] sm:$0xf]
  %v1985 = vld [vmem:[%s1 + $0x1d4] sm:$0xf]
  %v1986 = vld [vmem:[%s1 + $0x1d8] sm:$0xf]
  %v1987 = vld [vmem:[%s1 + $0x1dc] sm:$0xf]
  %v1988 = vld [vmem:[%s1 + $0x1e0] sm:$0xf]
  %v1989 = vld [vmem:[%s1 + $0x1e4] sm:$0xf]
  %v1990 = vld [vmem:[%s1 + $0x1e8] sm:$0xf]
  %v1991 = vld [vmem:[%s1 + $0x1ec] sm:$0xf]
  %v1992 = vld [vmem:[%s1 + $0x1f0] sm:$0xf]
  %v1993 = vld [vmem:[%s1 + $0x1f4] sm:$0xf]
  %v1994 = vld [vmem:[%s1 + $0x1f8] sm:$0xf]
  %v1995 = vld [vmem:[%s1 + $0x1fc] sm:$0xf]
  %v1996 = vld [vmem:[%s1 + $0x200] sm:$0xf]
  %v1997 = vld [vmem:[%s1 + $0x204] sm:$0xf]
  %v1998 = vld [vmem:[%s1 + $0x208] sm:$0xf]
  %v1999 = vld [vmem:[%s1 + $0x20c] sm:$0xf]
  %v2000 = vld [vmem:[%s1 + $0x210] sm:$0xf]
  %v2001 = vld [vmem:[%s1 + $0x214] sm:$0xf]
  %v2002 = vld [vmem:[%s1 + $0x218] sm:$0xf]
  %v2003 = vld [vmem:[%s1 + $0x21c] sm:$0xf]
  %v2004 = vld [vmem:[%s1 + $0x220] sm:$0xf]
  %v2005 = vld [vmem:[%s1 + $0x224] sm:$0xf]
  %v2006 = vld [vmem:[%s1 + $0x228] sm:$0xf]
  %v2007 = vld [vmem:[%s1 + $0x22c] sm:$0xf]
  %v2008 = vld [vmem:[%s1 + $0x230] sm:$0xf]
  %v2009 = vld [vmem:[%s1 + $0x234] sm:$0xf]
  %v2010 = vld [vmem:[%s1 + $0x238] sm:$0xf]
  %v2011 = vld [vmem:[%s1 + $0x23c] sm:$0xf]
  %v2012 = vld [vmem:[%s1 + $0x240] sm:$0xf]
  %v2013 = vld [vmem:[%s1 + $0x244] sm:$0xf]
  %v2014 = vld [vmem:[%s1 + $0x248] sm:$0xf]
  %v2015 = vld [vmem:[%s1 + $0x24c] sm:$0xf]
  %v2016 = vld [vmem:[%s1 + $0x250] sm:$0xf]
  %v2017 = vld [vmem:[%s1 + $0x254] sm:$0xf]
  %v2018 = vld [vmem:[%s1 + $0x258] sm:$0xf]
  %v2019 = vld [vmem:[%s1 + $0x25c] sm:$0xf]
  %v2020 = vld [vmem:[%s1 + $0x260] sm:$0xf]
  %v2021 = vld [vmem:[%s1 + $0x264] sm:$0xf]
  %v2022 = vld [vmem:[%s1 + $0x268] sm:$0xf]
  %v2023 = vld [vmem:[%s1 + $0x26c] sm:$0xf]
  %v2024 = vld [vmem:[%s1 + $0x270] sm:$0xf]
  %v2025 = vld [vmem:[%s1 + $0x274] sm:$0xf]
  %v2026 = vld [vmem:[%s1 + $0x278] sm:$0xf]
  %v2027 = vld [vmem:[%s1 + $0x27c] sm:$0xf]
  %v2028 = vld [vmem:[%s1 + $0x280] sm:$0xf]
  %v2029 = vld [vmem:[%s1 + $0x284] sm:$0xf]
  %v2030 = vld [vmem:[%s1 + $0x288] sm:$0xf]
  %v2031 = vld [vmem:[%s1 + $0x28c] sm:$0xf]
  %v2032 = vld [vmem:[%s1 + $0x290] sm:$0xf]
  %v2033 = vld [vmem:[%s1 + $0x294] sm:$0xf]
  %v2034 = vld [vmem:[%s1 + $0x298] sm:$0xf]
  %v2035 = vld [vmem:[%s1 + $0x29c] sm:$0xf]
  %v2036 = vld [vmem:[%s1 + $0x2a0] sm:$0xf]
  %v2037 = vld [vmem:[%s1 + $0x2a4] sm:$0xf]
  %v2038 = vld [vmem:[%s1 + $0x2a8] sm:$0xf]
  %v2039 = vld [vmem:[%s1 + $0x2ac] sm:$0xf]
  %v2040 = vld [vmem:[%s1 + $0x2b0] sm:$0xf]
  %v2041 = vld [vmem:[%s1 + $0x2b4] sm:$0xf]
  %v2042 = vld [vmem:[%s1 + $0x2b8] sm:$0xf]
  %v2043 = vld [vmem:[%s1 + $0x2bc] sm:$0xf]
  %v2044 = vld [vmem:[%s1 + $0x2c0] sm:$0xf]
  %v2045 = vld [vmem:[%s1 + $0x2c4] sm:$0xf]
  %v2046 = vld [vmem:[%s1 + $0x2c8] sm:$0xf]
  %v2047 = vld [vmem:[%s1 + $0x2cc] sm:$0xf]
  %v2048 = vld [vmem:[%s1 + $0x2d0] sm:$0xf]
  %v2049 = vld [vmem:[%s1 + $0x2d4] sm:$0xf]
  %v2050 = vld [vmem:[%s1 + $0x2d8] sm:$0xf]
  %v2051 = vld [vmem:[%s1 + $0x2dc] sm:$0xf]
  %v2052 = vld [vmem:[%s1 + $0x2e0] sm:$0xf]
  %v2053 = vld [vmem:[%s1 + $0x2e4] sm:$0xf]
  %v2054 = vld [vmem:[%s1 + $0x2e8] sm:$0xf]
  %v2055 = vld [vmem:[%s1 + $0x2ec] sm:$0xf]
  %v2056 = vld [vmem:[%s1 + $0x2f0] sm:$0xf]
  %v2057 = vld [vmem:[%s1 + $0x2f4] sm:$0xf]
  %v2058 = vld [vmem:[%s1 + $0x2f8] sm:$0xf]
  %v2059 = vld [vmem:[%s1 + $0x2fc] sm:$0xf]
  %v2060 = vld [vmem:[%s1 + $0x300] sm:$0xf]
  %v2061 = vld [vmem:[%s1 + $0x304] sm:$0xf]
  %v2062 = vld [vmem:[%s1 + $0x308] sm:$0xf]
  %v2063 = vld [vmem:[%s1 + $0x30c] sm:$0xf]
  %v2260 = vunpack.c.l.b16 %v1868
  %v2261 = vunpack.c.l.b16 %v1869
  %v2262 = vunpack.c.l.b16 %v1870
  %v2263 = vunpack.c.l.b16 %v1871
  %v2264 = vunpack.c.l.b16 %v1872
  %v2265 = vunpack.c.l.b16 %v1873
  %v2266 = vunpack.c.l.b16 %v1874
  %v2267 = vunpack.c.l.b16 %v1875
  %v2268 = vunpack.c.l.b16 %v1876
  %v2269 = vunpack.c.l.b16 %v1877
  %v2270 = vunpack.c.l.b16 %v1878
  %v2271 = vunpack.c.l.b16 %v1879
  %v2272 = vunpack.c.l.b16 %v1880
  %v2273 = vunpack.c.l.b16 %v1881
  %v2274 = vunpack.c.l.b16 %v1882
  %v2275 = vunpack.c.l.b16 %v1883
  %v2276 = vunpack.c.l.b16 %v1884
  %v2277 = vunpack.c.l.b16 %v1885
  %v2278 = vunpack.c.l.b16 %v1886
  %v2279 = vunpack.c.l.b16 %v1887
  %v2280 = vunpack.c.l.b16 %v1888
  %v2281 = vunpack.c.l.b16 %v1889
  %v2282 = vunpack.c.l.b16 %v1890
  %v2283 = vunpack.c.l.b16 %v1891
  %v2284 = vunpack.c.l.b16 %v1892
  %v2285 = vunpack.c.l.b16 %v1893
  %v2286 = vunpack.c.l.b16 %v1894
  %v2287 = vunpack.c.l.b16 %v1895
  %v2288 = vunpack.c.l.b16 %v1896
  %v2289 = vunpack.c.l.b16 %v1897
  %v2290 = vunpack.c.l.b16 %v1898
  %v2291 = vunpack.c.l.b16 %v1899
  %v2292 = vunpack.c.l.b16 %v1900
  %v2293 = vunpack.c.l.b16 %v1901
  %v2294 = vunpack.c.l.b16 %v1902
  %v2295 = vunpack.c.l.b16 %v1903
  %v2296 = vunpack.c.l.b16 %v1904
  %v2297 = vunpack.c.l.b16 %v1905
  %v2298 = vunpack.c.l.b16 %v1906
  %v2299 = vunpack.c.l.b16 %v1907
  %v2300 = vunpack.c.l.b16 %v1908
  %v2301 = vunpack.c.l.b16 %v1909
  %v2302 = vunpack.c.l.b16 %v1910
  %v2303 = vunpack.c.l.b16 %v1911
  %v2304 = vunpack.c.l.b16 %v1912
  %v2305 = vunpack.c.l.b16 %v1913
  %v2306 = vunpack.c.l.b16 %v1914
  %v2307 = vunpack.c.l.b16 %v1915
  %v2308 = vunpack.c.l.b16 %v1916
  %v2309 = vunpack.c.l.b16 %v1917
  %v2310 = vunpack.c.l.b16 %v1918
  %v2311 = vunpack.c.l.b16 %v1919
  %v2312 = vunpack.c.l.b16 %v1920
  %v2313 = vunpack.c.l.b16 %v1921
  %v2314 = vunpack.c.l.b16 %v1922
  %v2315 = vunpack.c.l.b16 %v1923
  %v2316 = vunpack.c.l.b16 %v1924
  %v2317 = vunpack.c.l.b16 %v1925
  %v2318 = vunpack.c.l.b16 %v1926
  %v2319 = vunpack.c.l.b16 %v1927
  %v2320 = vunpack.c.l.b16 %v1928
  %v2321 = vunpack.c.l.b16 %v1929
  %v2322 = vunpack.c.l.b16 %v1930
  %v2323 = vunpack.c.l.b16 %v1931
  %v2324 = vunpack.c.l.b16 %v1932
  %v2325 = vunpack.c.l.b16 %v1933
  %v2326 = vunpack.c.l.b16 %v1934
  %v2327 = vunpack.c.l.b16 %v1935
  %v2328 = vunpack.c.l.b16 %v1936
  %v2329 = vunpack.c.l.b16 %v1937
  %v2330 = vunpack.c.l.b16 %v1938
  %v2331 = vunpack.c.l.b16 %v1939
  %v2332 = vunpack.c.l.b16 %v1940
  %v2333 = vunpack.c.l.b16 %v1941
  %v2334 = vunpack.c.l.b16 %v1942
  %v2335 = vunpack.c.l.b16 %v1943
  %v2336 = vunpack.c.l.b16 %v1944
  %v2337 = vunpack.c.l.b16 %v1945
  %v2338 = vunpack.c.l.b16 %v1946
  %v2339 = vunpack.c.l.b16 %v1947
  %v2340 = vunpack.c.l.b16 %v1948
  %v2341 = vunpack.c.l.b16 %v1949
  %v2342 = vunpack.c.l.b16 %v1950
  %v2343 = vunpack.c.l.b16 %v1951
  %v2344 = vunpack.c.l.b16 %v1952
  %v2345 = vunpack.c.l.b16 %v1953
  %v2346 = vunpack.c.l.b16 %v1954
  %v2347 = vunpack.c.l.b16 %v1955
  %v2348 = vunpack.c.l.b16 %v1956
  %v2349 = vunpack.c.l.b16 %v1957
  %v2350 = vunpack.c.l.b16 %v1958
  %v2351 = vunpack.c.l.b16 %v1959
  %v2352 = vunpack.c.l.b16 %v1960
  %v2353 = vunpack.c.l.b16 %v1961
  %v2354 = vunpack.c.l.b16 %v1962
  %v2355 = vunpack.c.l.b16 %v1963
  %v2356 = vunpack.c.l.b16 %v1964
  %v2357 = vunpack.c.l.b16 %v1965
  %v2358 = vunpack.c.l.b16 %v1966
  %v2359 = vunpack.c.l.b16 %v1967
  %v2360 = vunpack.c.l.b16 %v1968
  %v2361 = vunpack.c.l.b16 %v1969
  %v2362 = vunpack.c.l.b16 %v1970
  %v2363 = vunpack.c.l.b16 %v1971
  %v2364 = vunpack.c.l.b16 %v1972
  %v2365 = vunpack.c.l.b16 %v1973
  %v2366 = vunpack.c.l.b16 %v1974
  %v2367 = vunpack.c.l.b16 %v1975
  %v2368 = vunpack.c.l.b16 %v1976
  %v2369 = vunpack.c.l.b16 %v1977
  %v2370 = vunpack.c.l.b16 %v1978
  %v2371 = vunpack.c.l.b16 %v1979
  %v2372 = vunpack.c.l.b16 %v1980
  %v2373 = vunpack.c.l.b16 %v1981
  %v2374 = vunpack.c.l.b16 %v1982
  %v2375 = vunpack.c.l.b16 %v1983
  %v2376 = vunpack.c.l.b16 %v1984
  %v2377 = vunpack.c.l.b16 %v1985
  %v2378 = vunpack.c.l.b16 %v1986
  %v2379 = vunpack.c.l.b16 %v1987
  %v2380 = vunpack.c.l.b16 %v1988
  %v2381 = vunpack.c.l.b16 %v1989
  %v2382 = vunpack.c.l.b16 %v1990
  %v2383 = vunpack.c.l.b16 %v1991
  %v2384 = vunpack.c.l.b16 %v1992
  %v2385 = vunpack.c.l.b16 %v1993
  %v2386 = vunpack.c.l.b16 %v1994
  %v2387 = vunpack.c.l.b16 %v1995
  %v2388 = vunpack.c.l.b16 %v1996
  %v2389 = vunpack.c.l.b16 %v1997
  %v2390 = vunpack.c.l.b16 %v1998
  %v2391 = vunpack.c.l.b16 %v1999
  %v2392 = vunpack.c.l.b16 %v2000
  %v2393 = vunpack.c.l.b16 %v2001
  %v2394 = vunpack.c.l.b16 %v2002
  %v2395 = vunpack.c.l.b16 %v2003
  %v2396 = vunpack.c.l.b16 %v2004
  %v2397 = vunpack.c.l.b16 %v2005
  %v2398 = vunpack.c.l.b16 %v2006
  %v2399 = vunpack.c.l.b16 %v2007
  %v2400 = vunpack.c.l.b16 %v2008
  %v2401 = vunpack.c.l.b16 %v2009
  %v2402 = vunpack.c.l.b16 %v2010
  %v2403 = vunpack.c.l.b16 %v2011
  %v2404 = vunpack.c.l.b16 %v2012
  %v2405 = vunpack.c.l.b16 %v2013
  %v2406 = vunpack.c.l.b16 %v2014
  %v2407 = vunpack.c.l.b16 %v2015
  %v2408 = vunpack.c.l.b16 %v2016
  %v2409 = vunpack.c.l.b16 %v2017
  %v2410 = vunpack.c.l.b16 %v2018
  %v2411 = vunpack.c.l.b16 %v2019
  %v2412 = vunpack.c.l.b16 %v2020
  %v2413 = vunpack.c.l.b16 %v2021
  %v2414 = vunpack.c.l.b16 %v2022
  %v2415 = vunpack.c.l.b16 %v2023
  %v2416 = vunpack.c.l.b16 %v2024
  %v2417 = vunpack.c.l.b16 %v2025
  %v2418 = vunpack.c.l.b16 %v2026
  %v2419 = vunpack.c.l.b16 %v2027
  %v2420 = vunpack.c.l.b16 %v2028
  %v2421 = vunpack.c.l.b16 %v2029
  %v2422 = vunpack.c.l.b16 %v2030
  %v2423 = vunpack.c.l.b16 %v2031
  %v2424 = vunpack.c.l.b16 %v2032
  %v2425 = vunpack.c.l.b16 %v2033
  %v2426 = vunpack.c.l.b16 %v2034
  %v2427 = vunpack.c.l.b16 %v2035
  %v2428 = vunpack.c.l.b16 %v2036
  %v2429 = vunpack.c.l.b16 %v2037
  %v2430 = vunpack.c.l.b16 %v2038
  %v2431 = vunpack.c.l.b16 %v2039
  %v2432 = vunpack.c.l.b16 %v2040
  %v2433 = vunpack.c.l.b16 %v2041
  %v2434 = vunpack.c.l.b16 %v2042
  %v2435 = vunpack.c.l.b16 %v2043
  %v2436 = vunpack.c.l.b16 %v2044
  %v2437 = vunpack.c.l.b16 %v2045
  %v2438 = vunpack.c.l.b16 %v2046
  %v2439 = vunpack.c.l.b16 %v2047
  %v2440 = vunpack.c.l.b16 %v2048
  %v2441 = vunpack.c.l.b16 %v2049
  %v2442 = vunpack.c.l.b16 %v2050
  %v2443 = vunpack.c.l.b16 %v2051
  %v2444 = vunpack.c.l.b16 %v2052
  %v2445 = vunpack.c.l.b16 %v2053
  %v2446 = vunpack.c.l.b16 %v2054
  %v2447 = vunpack.c.l.b16 %v2055
  %v2448 = vunpack.c.l.b16 %v2056
  %v2449 = vunpack.c.l.b16 %v2057
  %v2450 = vunpack.c.l.b16 %v2058
  %v2451 = vunpack.c.l.b16 %v2059
  %v2452 = vunpack.c.l.b16 %v2060
  %v2453 = vunpack.c.l.b16 %v2061
  %v2454 = vunpack.c.l.b16 %v2062
  %v2455 = vunpack.c.l.b16 %v2063
  %v2456 = vpack.c.b16 %v2261, %v2260
  %v2457 = vpack.c.b16 %v2263, %v2262
  %v2458 = vpack.c.b16 %v2265, %v2264
  %v2459 = vpack.c.b16 %v2267, %v2266
  %v2460 = vpack.c.b16 %v2269, %v2268
  %v2461 = vpack.c.b16 %v2271, %v2270
  %v2462 = vpack.c.b16 %v2273, %v2272
  %v2463 = vpack.c.b16 %v2275, %v2274
  %v2464 = vpack.c.b16 %v2277, %v2276
  %v2465 = vpack.c.b16 %v2279, %v2278
  %v2466 = vpack.c.b16 %v2281, %v2280
  %v2467 = vpack.c.b16 %v2283, %v2282
  %v2468 = vpack.c.b16 %v2285, %v2284
  %v2469 = vpack.c.b16 %v2287, %v2286
  %v2470 = vpack.c.b16 %v2289, %v2288
  %v2471 = vpack.c.b16 %v2291, %v2290
  %v2472 = vpack.c.b16 %v2293, %v2292
  %v2473 = vpack.c.b16 %v2295, %v2294
  %v2474 = vpack.c.b16 %v2297, %v2296
  %v2475 = vpack.c.b16 %v2299, %v2298
  %v2476 = vpack.c.b16 %v2301, %v2300
  %v2477 = vpack.c.b16 %v2303, %v2302
  %v2478 = vpack.c.b16 %v2305, %v2304
  %v2479 = vpack.c.b16 %v2307, %v2306
  %v2480 = vpack.c.b16 %v2309, %v2308
  %v2481 = vpack.c.b16 %v2311, %v2310
  %v2482 = vpack.c.b16 %v2313, %v2312
  %v2483 = vpack.c.b16 %v2315, %v2314
  %v2484 = vpack.c.b16 %v2317, %v2316
  %v2485 = vpack.c.b16 %v2319, %v2318
  %v2486 = vpack.c.b16 %v2321, %v2320
  %v2487 = vpack.c.b16 %v2323, %v2322
  %v2488 = vpack.c.b16 %v2325, %v2324
  %v2489 = vpack.c.b16 %v2327, %v2326
  %v2490 = vpack.c.b16 %v2329, %v2328
  %v2491 = vpack.c.b16 %v2331, %v2330
  %v2492 = vpack.c.b16 %v2333, %v2332
  %v2493 = vpack.c.b16 %v2335, %v2334
  %v2494 = vpack.c.b16 %v2337, %v2336
  %v2495 = vpack.c.b16 %v2339, %v2338
  %v2496 = vpack.c.b16 %v2341, %v2340
  %v2497 = vpack.c.b16 %v2343, %v2342
  %v2498 = vpack.c.b16 %v2345, %v2344
  %v2499 = vpack.c.b16 %v2347, %v2346
  %v2500 = vpack.c.b16 %v2349, %v2348
  %v2501 = vpack.c.b16 %v2351, %v2350
  %v2502 = vpack.c.b16 %v2353, %v2352
  %v2503 = vpack.c.b16 %v2355, %v2354
  %v2504 = vpack.c.b16 %v2357, %v2356
  %v2505 = vpack.c.b16 %v2359, %v2358
  %v2506 = vpack.c.b16 %v2361, %v2360
  %v2507 = vpack.c.b16 %v2363, %v2362
  %v2508 = vpack.c.b16 %v2365, %v2364
  %v2509 = vpack.c.b16 %v2367, %v2366
  %v2510 = vpack.c.b16 %v2369, %v2368
  %v2511 = vpack.c.b16 %v2371, %v2370
  %v2512 = vpack.c.b16 %v2373, %v2372
  %v2513 = vpack.c.b16 %v2375, %v2374
  %v2514 = vpack.c.b16 %v2377, %v2376
  %v2515 = vpack.c.b16 %v2379, %v2378
  %v2516 = vpack.c.b16 %v2381, %v2380
  %v2517 = vpack.c.b16 %v2383, %v2382
  %v2518 = vpack.c.b16 %v2385, %v2384
  %v2519 = vpack.c.b16 %v2387, %v2386
  %v2520 = vpack.c.b16 %v2389, %v2388
  %v2521 = vpack.c.b16 %v2391, %v2390
  %v2522 = vpack.c.b16 %v2393, %v2392
  %v2523 = vpack.c.b16 %v2395, %v2394
  %v2524 = vpack.c.b16 %v2397, %v2396
  %v2525 = vpack.c.b16 %v2399, %v2398
  %v2526 = vpack.c.b16 %v2401, %v2400
  %v2527 = vpack.c.b16 %v2403, %v2402
  %v2528 = vpack.c.b16 %v2405, %v2404
  %v2529 = vpack.c.b16 %v2407, %v2406
  %v2530 = vpack.c.b16 %v2409, %v2408
  %v2531 = vpack.c.b16 %v2411, %v2410
  %v2532 = vpack.c.b16 %v2413, %v2412
  %v2533 = vpack.c.b16 %v2415, %v2414
  %v2534 = vpack.c.b16 %v2417, %v2416
  %v2535 = vpack.c.b16 %v2419, %v2418
  %v2536 = vpack.c.b16 %v2421, %v2420
  %v2537 = vpack.c.b16 %v2423, %v2422
  %v2538 = vpack.c.b16 %v2425, %v2424
  %v2539 = vpack.c.b16 %v2427, %v2426
  %v2540 = vpack.c.b16 %v2429, %v2428
  %v2541 = vpack.c.b16 %v2431, %v2430
  %v2542 = vpack.c.b16 %v2433, %v2432
  %v2543 = vpack.c.b16 %v2435, %v2434
  %v2544 = vpack.c.b16 %v2437, %v2436
  %v2545 = vpack.c.b16 %v2439, %v2438
  %v2546 = vpack.c.b16 %v2441, %v2440
  %v2547 = vpack.c.b16 %v2443, %v2442
  %v2548 = vpack.c.b16 %v2445, %v2444
  %v2549 = vpack.c.b16 %v2447, %v2446
  %v2550 = vpack.c.b16 %v2449, %v2448
  %v2551 = vpack.c.b16 %v2451, %v2450
  %v2552 = vpack.c.b16 %v2453, %v2452
  %v2553 = vpack.c.b16 %v2455, %v2454
  %v2555 = vsel %vm749, %v2456, 0
  %v2558 = vsel %vm749, %v2457, 0
  %v2561 = vsel %vm749, %v2458, 0
  %v2564 = vsel %vm749, %v2459, 0
  %v2567 = vsel %vm749, %v2460, 0
  %v2570 = vsel %vm749, %v2461, 0
  %v2573 = vsel %vm749, %v2462, 0
  %v2576 = vsel %vm749, %v2463, 0
  %v2579 = vsel %vm749, %v2464, 0
  %v2582 = vsel %vm749, %v2465, 0
  %v2585 = vsel %vm749, %v2466, 0
  %v2588 = vsel %vm749, %v2467, 0
  %v2591 = vsel %vm749, %v2468, 0
  %v2594 = vsel %vm749, %v2469, 0
  %v2597 = vsel %vm749, %v2470, 0
  %v2600 = vsel %vm749, %v2471, 0
  %v2603 = vsel %vm749, %v2472, 0
  %v2606 = vsel %vm749, %v2473, 0
  %v2609 = vsel %vm749, %v2474, 0
  %v2612 = vsel %vm749, %v2475, 0
  %v2615 = vsel %vm749, %v2476, 0
  %v2618 = vsel %vm749, %v2477, 0
  %v2621 = vsel %vm749, %v2478, 0
  %v2624 = vsel %vm749, %v2479, 0
  %v2627 = vsel %vm749, %v2480, 0
  %v2630 = vsel %vm749, %v2481, 0
  %v2633 = vsel %vm749, %v2482, 0
  %v2636 = vsel %vm749, %v2483, 0
  %v2639 = vsel %vm749, %v2484, 0
  %v2642 = vsel %vm749, %v2485, 0
  %v2645 = vsel %vm749, %v2486, 0
  %v2648 = vsel %vm749, %v2487, 0
  %v2651 = vsel %vm749, %v2488, 0
  %v2654 = vsel %vm749, %v2489, 0
  %v2657 = vsel %vm749, %v2490, 0
  %v2660 = vsel %vm749, %v2491, 0
  %v2663 = vsel %vm749, %v2492, 0
  %v2666 = vsel %vm749, %v2493, 0
  %v2669 = vsel %vm749, %v2494, 0
  %v2672 = vsel %vm749, %v2495, 0
  %v2675 = vsel %vm749, %v2496, 0
  %v2678 = vsel %vm749, %v2497, 0
  %v2681 = vsel %vm749, %v2498, 0
  %v2684 = vsel %vm749, %v2499, 0
  %v2687 = vsel %vm749, %v2500, 0
  %v2690 = vsel %vm749, %v2501, 0
  %v2693 = vsel %vm749, %v2502, 0
  %v2696 = vsel %vm749, %v2503, 0
  %v2699 = vsel %vm749, %v2504, 0
  %v2702 = vsel %vm749, %v2505, 0
  %v2705 = vsel %vm749, %v2506, 0
  %v2708 = vsel %vm749, %v2507, 0
  %v2711 = vsel %vm749, %v2508, 0
  %v2714 = vsel %vm749, %v2509, 0
  %v2717 = vsel %vm749, %v2510, 0
  %v2720 = vsel %vm749, %v2511, 0
  %v2723 = vsel %vm749, %v2512, 0
  %v2726 = vsel %vm749, %v2513, 0
  %v2729 = vsel %vm749, %v2514, 0
  %v2732 = vsel %vm749, %v2515, 0
  %v2735 = vsel %vm749, %v2516, 0
  %v2738 = vsel %vm749, %v2517, 0
  %v2741 = vsel %vm749, %v2518, 0
  %v2744 = vsel %vm749, %v2519, 0
  %v2747 = vsel %vm749, %v2520, 0
  %v2750 = vsel %vm749, %v2521, 0
  %v2753 = vsel %vm749, %v2522, 0
  %v2756 = vsel %vm749, %v2523, 0
  %v2759 = vsel %vm749, %v2524, 0
  %v2762 = vsel %vm749, %v2525, 0
  %v2765 = vsel %vm749, %v2526, 0
  %v2768 = vsel %vm749, %v2527, 0
  %v2771 = vsel %vm749, %v2528, 0
  %v2774 = vsel %vm749, %v2529, 0
  %v2777 = vsel %vm749, %v2530, 0
  %v2780 = vsel %vm749, %v2531, 0
  %v2783 = vsel %vm749, %v2532, 0
  %v2786 = vsel %vm749, %v2533, 0
  %v2789 = vsel %vm749, %v2534, 0
  %v2792 = vsel %vm749, %v2535, 0
  %v2795 = vsel %vm749, %v2536, 0
  %v2798 = vsel %vm749, %v2537, 0
  %v2801 = vsel %vm749, %v2538, 0
  %v2804 = vsel %vm749, %v2539, 0
  %v2807 = vsel %vm749, %v2540, 0
  %v2810 = vsel %vm749, %v2541, 0
  %v2813 = vsel %vm749, %v2542, 0
  %v2816 = vsel %vm749, %v2543, 0
  %v2819 = vsel %vm749, %v2544, 0
  %v2822 = vsel %vm749, %v2545, 0
  %v2825 = vsel %vm749, %v2546, 0
  %v2828 = vsel %vm749, %v2547, 0
  %v2831 = vsel %vm749, %v2548, 0
  %v2834 = vsel %vm749, %v2549, 0
  %v2837 = vsel %vm749, %v2550, 0
  %v2840 = vsel %vm749, %v2551, 0
  %v2843 = vsel %vm749, %v2552, 0
  %v2846 = vsel %vm749, %v2553, 0
  %2848 = vmatprep.subr.bf16.mxu0 0
  %2849 = vmatpush1.bf16.msra.mxu0 %v740
  %2850 = vmatprep.subr.bf16.mxu0 0
  %2851 = vmatpush1.bf16.msra.mxu0 %v741
  %2852 = vmatprep.subr.bf16.mxu0 0
  %2853 = vmatpush1.bf16.msra.mxu0 %v742
  %2854 = vmatprep.subr.bf16.mxu0 0
  %2855 = vmatpush1.bf16.msra.mxu0 %v743
  %2856 = vmatprep.subr.bf16.mxu0 0
  %2857 = vmatpush1.bf16.msra.mxu0 %v1049
  %2858 = vmatprep.subr.bf16.mxu0 0
  %2859 = vmatpush1.bf16.msra.mxu0 0
  %2860 = vmatprep.subr.bf16.mxu0 0
  %2861 = vmatpush1.bf16.msra.mxu0 0
  %2862 = vmatprep.subr.bf16.mxu0 0
  %2863 = vmatpush1.bf16.msra.mxu0 0
  %2864 = vmatprep.subr.bf16.mxu0 0
  %2865 = vmatpush1.bf16.msra.mxu0 0
  %2866 = vmatprep.subr.bf16.mxu0 0
  %2867 = vmatpush1.bf16.msra.mxu0 0
  %2868 = vmatprep.subr.bf16.mxu0 0
  %2869 = vmatpush1.bf16.msra.mxu0 0
  %2870 = vmatprep.subr.bf16.mxu0 0
  %2871 = vmatpush1.bf16.msra.mxu0 0
  %2872 = vmatprep.subr.bf16.mxu0 0
  %2873 = vmatpush1.bf16.msra.mxu0 0
  %2874 = vmatprep.subr.bf16.mxu0 0
  %2875 = vmatpush1.bf16.msra.mxu0 0
  %2876 = vmatprep.subr.bf16.mxu0 0
  %2877 = vmatpush1.bf16.msra.mxu0 0
  %2878 = vmatprep.subr.bf16.mxu0 0
  %2879 = vmatpush1.bf16.msra.mxu0 0
  %2880 = vmatprep.mubr.bf16.mxu0 0
  %2881 = vmatmul.mubr.bf16.gmra.mrb[0].mxu0 %v2555
  %v2882 = vpop.f32.mrb[0].mxu0
  %v2883 = vadd.f32 0.0, %v2882
  %v2884 = vpop.f32.mrb[0].mxu0
  %v2885 = vpop.f32.mrb[0].mxu0
  %v2886 = vadd.f32 0.0, %v2885
  %v2887 = vpop.f32.mrb[0].mxu0
  %2888 = vmatprep.mubr.bf16.mxu0 0
  %2889 = vmatmul.mubr.bf16.gmra.mrb[0].mxu0 %v2558
  %v2890 = vpop.f32.mrb[0].mxu0
  %v2891 = vadd.f32 0.0, %v2890
  %v2892 = vpop.f32.mrb[0].mxu0
  %v2893 = vpop.f32.mrb[0].mxu0
  %v2894 = vadd.f32 0.0, %v2893
  %v2895 = vpop.f32.mrb[0].mxu0
  %2896 = vmatprep.mubr.bf16.mxu0 0
  %2897 = vmatmul.mubr.bf16.gmra.mrb[0].mxu0 %v2561
  %v2898 = vpop.f32.mrb[0].mxu0
  %v2899 = vadd.f32 0.0, %v2898
  %v2900 = vpop.f32.mrb[0].mxu0
  %v2901 = vpop.f32.mrb[0].mxu0
  %v2902 = vadd.f32 0.0, %v2901
  %v2903 = vpop.f32.mrb[0].mxu0
  %2904 = vmatprep.mubr.bf16.mxu0 0
  %2905 = vmatmul.mubr.bf16.gmra.mrb[0].mxu0 %v2564
  %v2906 = vpop.f32.mrb[0].mxu0
  %v2907 = vadd.f32 0.0, %v2906
  %v2908 = vpop.f32.mrb[0].mxu0
  %v2909 = vpop.f32.mrb[0].mxu0
  %v2910 = vadd.f32 0.0, %v2909
  %v2911 = vpop.f32.mrb[0].mxu0
  %2912 = vmatprep.mubr.bf16.mxu0 0
  %2913 = vmatmul.mubr.bf16.gmra.mrb[0].mxu0 %v2567
  %v2914 = vpop.f32.mrb[0].mxu0
  %v2915 = vadd.f32 0.0, %v2914
  %v2916 = vpop.f32.mrb[0].mxu0
  %v2917 = vpop.f32.mrb[0].mxu0
  %v2918 = vadd.f32 0.0, %v2917
  %v2919 = vpop.f32.mrb[0].mxu0
  %2920 = vmatprep.mubr.bf16.mxu0 0
  %2921 = vmatmul.mubr.bf16.gmra.mrb[0].mxu0 %v2570
  %v2922 = vpop.f32.mrb[0].mxu0
  %v2923 = vadd.f32 0.0, %v2922
  %v2924 = vpop.f32.mrb[0].mxu0
  %v2925 = vpop.f32.mrb[0].mxu0
  %v2926 = vadd.f32 0.0, %v2925
  %v2927 = vpop.f32.mrb[0].mxu0
  %2928 = vmatprep.mubr.bf16.mxu0 0
  %2929 = vmatmul.mubr.bf16.gmra.mrb[0].mxu0 %v2573
  %v2930 = vpop.f32.mrb[0].mxu0
  %v2931 = vadd.f32 0.0, %v2930
  %v2932 = vpop.f32.mrb[0].mxu0
  %v2933 = vpop.f32.mrb[0].mxu0
  %v2934 = vadd.f32 0.0, %v2933
  %v2935 = vpop.f32.mrb[0].mxu0
  %2936 = vmatprep.mubr.bf16.mxu0 0
  %2937 = vmatmul.mubr.bf16.gmra.mrb[0].mxu0 %v2576
  %v2938 = vpop.f32.mrb[0].mxu0
  %v2939 = vadd.f32 0.0, %v2938
  %v2940 = vpop.f32.mrb[0].mxu0
  %v2941 = vpop.f32.mrb[0].mxu0
  %v2942 = vadd.f32 0.0, %v2941
  %v2943 = vpop.f32.mrb[0].mxu0
  %2944 = vmatprep.mubr.bf16.mxu0 0
  %2945 = vmatmul.mubr.bf16.gmra.mrb[0].mxu0 %v2579
  %v2946 = vpop.f32.mrb[0].mxu0
  %v2947 = vadd.f32 0.0, %v2946
  %v2948 = vpop.f32.mrb[0].mxu0
  %v2949 = vpop.f32.mrb[0].mxu0
  %v2950 = vadd.f32 0.0, %v2949
  %v2951 = vpop.f32.mrb[0].mxu0
  %2952 = vmatprep.mubr.bf16.mxu0 0
  %2953 = vmatmul.mubr.bf16.gmra.mrb[0].mxu0 %v2582
  %v2954 = vpop.f32.mrb[0].mxu0
  %v2955 = vadd.f32 0.0, %v2954
  %v2956 = vpop.f32.mrb[0].mxu0
  %v2957 = vpop.f32.mrb[0].mxu0
  %v2958 = vadd.f32 0.0, %v2957
  %v2959 = vpop.f32.mrb[0].mxu0
  %2960 = vmatprep.mubr.bf16.mxu0 0
  %2961 = vmatmul.mubr.bf16.gmra.mrb[0].mxu0 %v2585
  %v2962 = vpop.f32.mrb[0].mxu0
  %v2963 = vadd.f32 0.0, %v2962
  %v2964 = vpop.f32.mrb[0].mxu0
  %v2965 = vpop.f32.mrb[0].mxu0
  %v2966 = vadd.f32 0.0, %v2965
  %v2967 = vpop.f32.mrb[0].mxu0
  %2968 = vmatprep.mubr.bf16.mxu0 0
  %2969 = vmatmul.mubr.bf16.gmra.mrb[0].mxu0 %v2588
  %v2970 = vpop.f32.mrb[0].mxu0
  %v2971 = vadd.f32 0.0, %v2970
  %v2972 = vpop.f32.mrb[0].mxu0
  %v2973 = vpop.f32.mrb[0].mxu0
  %v2974 = vadd.f32 0.0, %v2973
  %v2975 = vpop.f32.mrb[0].mxu0
  %2976 = vmatprep.mubr.bf16.mxu0 0
  %2977 = vmatmul.mubr.bf16.gmra.mrb[0].mxu0 %v2591
  %v2978 = vpop.f32.mrb[0].mxu0
  %v2979 = vadd.f32 0.0, %v2978
  %v2980 = vpop.f32.mrb[0].mxu0
  %v2981 = vpop.f32.mrb[0].mxu0
  %v2982 = vadd.f32 0.0, %v2981
  %v2983 = vpop.f32.mrb[0].mxu0
  %2984 = vmatprep.mubr.bf16.mxu0 0
  %2985 = vmatmul.mubr.bf16.gmra.mrb[0].mxu0 %v2594
  %v2986 = vpop.f32.mrb[0].mxu0
  %v2987 = vadd.f32 0.0, %v2986
  %v2988 = vpop.f32.mrb[0].mxu0
  %v2989 = vpop.f32.mrb[0].mxu0
  %v2990 = vadd.f32 0.0, %v2989
  %v2991 = vpop.f32.mrb[0].mxu0
  %2992 = vmatprep.mubr.bf16.mxu0 0
  %2993 = vmatmul.mubr.bf16.gmra.mrb[0].mxu0 %v2597
  %v2994 = vpop.f32.mrb[0].mxu0
  %v2995 = vadd.f32 0.0, %v2994
  %v2996 = vpop.f32.mrb[0].mxu0
  %v2997 = vpop.f32.mrb[0].mxu0
  %v2998 = vadd.f32 0.0, %v2997
  %v2999 = vpop.f32.mrb[0].mxu0
  %3000 = vmatprep.mubr.bf16.mxu0 0
  %3001 = vmatmul.mubr.bf16.gmra.mrb[0].mxu0 %v2600
  %v3002 = vpop.f32.mrb[0].mxu0
  %v3003 = vadd.f32 0.0, %v3002
  %v3004 = vpop.f32.mrb[0].mxu0
  %v3005 = vpop.f32.mrb[0].mxu0
  %v3006 = vadd.f32 0.0, %v3005
  %v3007 = vpop.f32.mrb[0].mxu0
  %3008 = vmatprep.mubr.bf16.mxu0 0
  %3009 = vmatmul.mubr.bf16.gmra.mrb[0].mxu0 %v2603
  %v3010 = vpop.f32.mrb[0].mxu0
  %v3011 = vadd.f32 0.0, %v3010
  %v3012 = vpop.f32.mrb[0].mxu0
  %v3013 = vpop.f32.mrb[0].mxu0
  %v3014 = vadd.f32 0.0, %v3013
  %v3015 = vpop.f32.mrb[0].mxu0
  %3016 = vmatprep.mubr.bf16.mxu0 0
  %3017 = vmatmul.mubr.bf16.gmra.mrb[0].mxu0 %v2606
  %v3018 = vpop.f32.mrb[0].mxu0
  %v3019 = vadd.f32 0.0, %v3018
  %v3020 = vpop.f32.mrb[0].mxu0
  %v3021 = vpop.f32.mrb[0].mxu0
  %v3022 = vadd.f32 0.0, %v3021
  %v3023 = vpop.f32.mrb[0].mxu0
  %3024 = vmatprep.mubr.bf16.mxu0 0
  %3025 = vmatmul.mubr.bf16.gmra.mrb[0].mxu0 %v2609
  %v3026 = vpop.f32.mrb[0].mxu0
  %v3027 = vadd.f32 0.0, %v3026
  %v3028 = vpop.f32.mrb[0].mxu0
  %v3029 = vpop.f32.mrb[0].mxu0
  %v3030 = vadd.f32 0.0, %v3029
  %v3031 = vpop.f32.mrb[0].mxu0
  %3032 = vmatprep.mubr.bf16.mxu0 0
  %3033 = vmatmul.mubr.bf16.gmra.mrb[0].mxu0 %v2612
  %v3034 = vpop.f32.mrb[0].mxu0
  %v3035 = vadd.f32 0.0, %v3034
  %v3036 = vpop.f32.mrb[0].mxu0
  %v3037 = vpop.f32.mrb[0].mxu0
  %v3038 = vadd.f32 0.0, %v3037
  %v3039 = vpop.f32.mrb[0].mxu0
  %3040 = vmatprep.mubr.bf16.mxu0 0
  %3041 = vmatmul.mubr.bf16.gmra.mrb[0].mxu0 %v2615
  %v3042 = vpop.f32.mrb[0].mxu0
  %v3043 = vadd.f32 0.0, %v3042
  %v3044 = vpop.f32.mrb[0].mxu0
  %v3045 = vpop.f32.mrb[0].mxu0
  %v3046 = vadd.f32 0.0, %v3045
  %v3047 = vpop.f32.mrb[0].mxu0
  %3048 = vmatprep.mubr.bf16.mxu0 0
  %3049 = vmatmul.mubr.bf16.gmra.mrb[0].mxu0 %v2618
  %v3050 = vpop.f32.mrb[0].mxu0
  %v3051 = vadd.f32 0.0, %v3050
  %v3052 = vpop.f32.mrb[0].mxu0
  %v3053 = vpop.f32.mrb[0].mxu0
  %v3054 = vadd.f32 0.0, %v3053
  %v3055 = vpop.f32.mrb[0].mxu0
  %3056 = vmatprep.mubr.bf16.mxu0 0
  %3057 = vmatmul.mubr.bf16.gmra.mrb[0].mxu0 %v2621
  %v3058 = vpop.f32.mrb[0].mxu0
  %v3059 = vadd.f32 0.0, %v3058
  %v3060 = vpop.f32.mrb[0].mxu0
  %v3061 = vpop.f32.mrb[0].mxu0
  %v3062 = vadd.f32 0.0, %v3061
  %v3063 = vpop.f32.mrb[0].mxu0
  %3064 = vmatprep.mubr.bf16.mxu0 0
  %3065 = vmatmul.mubr.bf16.gmra.mrb[0].mxu0 %v2624
  %v3066 = vpop.f32.mrb[0].mxu0
  %v3067 = vadd.f32 0.0, %v3066
  %v3068 = vpop.f32.mrb[0].mxu0
  %v3069 = vpop.f32.mrb[0].mxu0
  %v3070 = vadd.f32 0.0, %v3069
  %v3071 = vpop.f32.mrb[0].mxu0
  %3072 = vmatprep.mubr.bf16.mxu0 0
  %3073 = vmatmul.mubr.bf16.gmra.mrb[0].mxu0 %v2627
  %v3074 = vpop.f32.mrb[0].mxu0
  %v3075 = vadd.f32 0.0, %v3074
  %v3076 = vpop.f32.mrb[0].mxu0
  %v3077 = vpop.f32.mrb[0].mxu0
  %v3078 = vadd.f32 0.0, %v3077
  %v3079 = vpop.f32.mrb[0].mxu0
  %3080 = vmatprep.mubr.bf16.mxu0 0
  %3081 = vmatmul.mubr.bf16.gmra.mrb[0].mxu0 %v2630
  %v3082 = vpop.f32.mrb[0].mxu0
  %v3083 = vadd.f32 0.0, %v3082
  %v3084 = vpop.f32.mrb[0].mxu0
  %v3085 = vpop.f32.mrb[0].mxu0
  %v3086 = vadd.f32 0.0, %v3085
  %v3087 = vpop.f32.mrb[0].mxu0
  %3088 = vmatprep.mubr.bf16.mxu0 0
  %3089 = vmatmul.mubr.bf16.gmra.mrb[0].mxu0 %v2633
  %v3090 = vpop.f32.mrb[0].mxu0
  %v3091 = vadd.f32 0.0, %v3090
  %v3092 = vpop.f32.mrb[0].mxu0
  %v3093 = vpop.f32.mrb[0].mxu0
  %v3094 = vadd.f32 0.0, %v3093
  %v3095 = vpop.f32.mrb[0].mxu0
  %3096 = vmatprep.mubr.bf16.mxu0 0
  %3097 = vmatmul.mubr.bf16.gmra.mrb[0].mxu0 %v2636
  %v3098 = vpop.f32.mrb[0].mxu0
  %v3099 = vadd.f32 0.0, %v3098
  %v3100 = vpop.f32.mrb[0].mxu0
  %v3101 = vpop.f32.mrb[0].mxu0
  %v3102 = vadd.f32 0.0, %v3101
  %v3103 = vpop.f32.mrb[0].mxu0
  %3104 = vmatprep.mubr.bf16.mxu0 0
  %3105 = vmatmul.mubr.bf16.gmra.mrb[0].mxu0 %v2639
  %v3106 = vpop.f32.mrb[0].mxu0
  %v3107 = vadd.f32 0.0, %v3106
  %v3108 = vpop.f32.mrb[0].mxu0
  %v3109 = vpop.f32.mrb[0].mxu0
  %v3110 = vadd.f32 0.0, %v3109
  %v3111 = vpop.f32.mrb[0].mxu0
  %3112 = vmatprep.mubr.bf16.mxu0 0
  %3113 = vmatmul.mubr.bf16.gmra.mrb[0].mxu0 %v2642
  %v3114 = vpop.f32.mrb[0].mxu0
  %v3115 = vadd.f32 0.0, %v3114
  %v3116 = vpop.f32.mrb[0].mxu0
  %v3117 = vpop.f32.mrb[0].mxu0
  %v3118 = vadd.f32 0.0, %v3117
  %v3119 = vpop.f32.mrb[0].mxu0
  %3120 = vmatprep.mubr.bf16.mxu0 0
  %3121 = vmatmul.mubr.bf16.gmra.mrb[0].mxu0 %v2645
  %v3122 = vpop.f32.mrb[0].mxu0
  %v3123 = vadd.f32 0.0, %v3122
  %v3124 = vpop.f32.mrb[0].mxu0
  %v3125 = vpop.f32.mrb[0].mxu0
  %v3126 = vadd.f32 0.0, %v3125
  %v3127 = vpop.f32.mrb[0].mxu0
  %3128 = vmatprep.mubr.bf16.mxu0 0
  %3129 = vmatmul.mubr.bf16.gmra.mrb[0].mxu0 %v2648
  %v3130 = vpop.f32.mrb[0].mxu0
  %v3131 = vadd.f32 0.0, %v3130
  %v3132 = vpop.f32.mrb[0].mxu0
  %v3133 = vpop.f32.mrb[0].mxu0
  %v3134 = vadd.f32 0.0, %v3133
  %v3135 = vpop.f32.mrb[0].mxu0
  %3136 = vmatprep.mubr.bf16.mxu0 0
  %3137 = vmatmul.mubr.bf16.gmra.mrb[0].mxu0 %v2651
  %v3138 = vpop.f32.mrb[0].mxu0
  %v3139 = vadd.f32 0.0, %v3138
  %v3140 = vpop.f32.mrb[0].mxu0
  %v3141 = vpop.f32.mrb[0].mxu0
  %v3142 = vadd.f32 0.0, %v3141
  %v3143 = vpop.f32.mrb[0].mxu0
  %3144 = vmatprep.mubr.bf16.mxu0 0
  %3145 = vmatmul.mubr.bf16.gmra.mrb[0].mxu0 %v2654
  %v3146 = vpop.f32.mrb[0].mxu0
  %v3147 = vadd.f32 0.0, %v3146
  %v3148 = vpop.f32.mrb[0].mxu0
  %v3149 = vpop.f32.mrb[0].mxu0
  %v3150 = vadd.f32 0.0, %v3149
  %v3151 = vpop.f32.mrb[0].mxu0
  %3152 = vmatprep.mubr.bf16.mxu0 0
  %3153 = vmatmul.mubr.bf16.gmra.mrb[0].mxu0 %v2657
  %v3154 = vpop.f32.mrb[0].mxu0
  %v3155 = vadd.f32 0.0, %v3154
  %v3156 = vpop.f32.mrb[0].mxu0
  %v3157 = vpop.f32.mrb[0].mxu0
  %v3158 = vadd.f32 0.0, %v3157
  %v3159 = vpop.f32.mrb[0].mxu0
  %3160 = vmatprep.mubr.bf16.mxu0 0
  %3161 = vmatmul.mubr.bf16.gmra.mrb[0].mxu0 %v2660
  %v3162 = vpop.f32.mrb[0].mxu0
  %v3163 = vadd.f32 0.0, %v3162
  %v3164 = vpop.f32.mrb[0].mxu0
  %v3165 = vpop.f32.mrb[0].mxu0
  %v3166 = vadd.f32 0.0, %v3165
  %v3167 = vpop.f32.mrb[0].mxu0
  %3168 = vmatprep.mubr.bf16.mxu0 0
  %3169 = vmatmul.mubr.bf16.gmra.mrb[0].mxu0 %v2663
  %v3170 = vpop.f32.mrb[0].mxu0
  %v3171 = vadd.f32 0.0, %v3170
  %v3172 = vpop.f32.mrb[0].mxu0
  %v3173 = vpop.f32.mrb[0].mxu0
  %v3174 = vadd.f32 0.0, %v3173
  %v3175 = vpop.f32.mrb[0].mxu0
  %3176 = vmatprep.mubr.bf16.mxu0 0
  %3177 = vmatmul.mubr.bf16.gmra.mrb[0].mxu0 %v2666
  %v3178 = vpop.f32.mrb[0].mxu0
  %v3179 = vadd.f32 0.0, %v3178
  %v3180 = vpop.f32.mrb[0].mxu0
  %v3181 = vpop.f32.mrb[0].mxu0
  %v3182 = vadd.f32 0.0, %v3181
  %v3183 = vpop.f32.mrb[0].mxu0
  %3184 = vmatprep.mubr.bf16.mxu0 0
  %3185 = vmatmul.mubr.bf16.gmra.mrb[0].mxu0 %v2669
  %v3186 = vpop.f32.mrb[0].mxu0
  %v3187 = vadd.f32 0.0, %v3186
  %v3188 = vpop.f32.mrb[0].mxu0
  %v3189 = vpop.f32.mrb[0].mxu0
  %v3190 = vadd.f32 0.0, %v3189
  %v3191 = vpop.f32.mrb[0].mxu0
  %3192 = vmatprep.mubr.bf16.mxu0 0
  %3193 = vmatmul.mubr.bf16.gmra.mrb[0].mxu0 %v2672
  %v3194 = vpop.f32.mrb[0].mxu0
  %v3195 = vadd.f32 0.0, %v3194
  %v3196 = vpop.f32.mrb[0].mxu0
  %v3197 = vpop.f32.mrb[0].mxu0
  %v3198 = vadd.f32 0.0, %v3197
  %v3199 = vpop.f32.mrb[0].mxu0
  %3200 = vmatprep.mubr.bf16.mxu0 0
  %3201 = vmatmul.mubr.bf16.gmra.mrb[0].mxu0 %v2675
  %v3202 = vpop.f32.mrb[0].mxu0
  %v3203 = vadd.f32 0.0, %v3202
  %v3204 = vpop.f32.mrb[0].mxu0
  %v3205 = vpop.f32.mrb[0].mxu0
  %v3206 = vadd.f32 0.0, %v3205
  %v3207 = vpop.f32.mrb[0].mxu0
  %3208 = vmatprep.mubr.bf16.mxu0 0
  %3209 = vmatmul.mubr.bf16.gmra.mrb[0].mxu0 %v2678
  %v3210 = vpop.f32.mrb[0].mxu0
  %v3211 = vadd.f32 0.0, %v3210
  %v3212 = vpop.f32.mrb[0].mxu0
  %v3213 = vpop.f32.mrb[0].mxu0
  %v3214 = vadd.f32 0.0, %v3213
  %v3215 = vpop.f32.mrb[0].mxu0
  %3216 = vmatprep.mubr.bf16.mxu0 0
  %3217 = vmatmul.mubr.bf16.gmra.mrb[0].mxu0 %v2681
  %v3218 = vpop.f32.mrb[0].mxu0
  %v3219 = vadd.f32 0.0, %v3218
  %v3220 = vpop.f32.mrb[0].mxu0
  %v3221 = vpop.f32.mrb[0].mxu0
  %v3222 = vadd.f32 0.0, %v3221
  %v3223 = vpop.f32.mrb[0].mxu0
  %3224 = vmatprep.mubr.bf16.mxu0 0
  %3225 = vmatmul.mubr.bf16.gmra.mrb[0].mxu0 %v2684
  %v3226 = vpop.f32.mrb[0].mxu0
  %v3227 = vadd.f32 0.0, %v3226
  %v3228 = vpop.f32.mrb[0].mxu0
  %v3229 = vpop.f32.mrb[0].mxu0
  %v3230 = vadd.f32 0.0, %v3229
  %v3231 = vpop.f32.mrb[0].mxu0
  %3232 = vmatprep.mubr.bf16.mxu0 0
  %3233 = vmatmul.mubr.bf16.gmra.mrb[0].mxu0 %v2687
  %v3234 = vpop.f32.mrb[0].mxu0
  %v3235 = vadd.f32 0.0, %v3234
  %v3236 = vpop.f32.mrb[0].mxu0
  %v3237 = vpop.f32.mrb[0].mxu0
  %v3238 = vadd.f32 0.0, %v3237
  %v3239 = vpop.f32.mrb[0].mxu0
  %3240 = vmatprep.mubr.bf16.mxu0 0
  %3241 = vmatmul.mubr.bf16.gmra.mrb[0].mxu0 %v2690
  %v3242 = vpop.f32.mrb[0].mxu0
  %v3243 = vadd.f32 0.0, %v3242
  %v3244 = vpop.f32.mrb[0].mxu0
  %v3245 = vpop.f32.mrb[0].mxu0
  %v3246 = vadd.f32 0.0, %v3245
  %v3247 = vpop.f32.mrb[0].mxu0
  %3248 = vmatprep.mubr.bf16.mxu0 0
  %3249 = vmatmul.mubr.bf16.gmra.mrb[0].mxu0 %v2693
  %v3250 = vpop.f32.mrb[0].mxu0
  %v3251 = vadd.f32 0.0, %v3250
  %v3252 = vpop.f32.mrb[0].mxu0
  %v3253 = vpop.f32.mrb[0].mxu0
  %v3254 = vadd.f32 0.0, %v3253
  %v3255 = vpop.f32.mrb[0].mxu0
  %3256 = vmatprep.mubr.bf16.mxu0 0
  %3257 = vmatmul.mubr.bf16.gmra.mrb[0].mxu0 %v2696
  %v3258 = vpop.f32.mrb[0].mxu0
  %v3259 = vadd.f32 0.0, %v3258
  %v3260 = vpop.f32.mrb[0].mxu0
  %v3261 = vpop.f32.mrb[0].mxu0
  %v3262 = vadd.f32 0.0, %v3261
  %v3263 = vpop.f32.mrb[0].mxu0
  %3264 = vmatprep.mubr.bf16.mxu0 0
  %3265 = vmatmul.mubr.bf16.gmra.mrb[0].mxu0 %v2699
  %v3266 = vpop.f32.mrb[0].mxu0
  %v3267 = vadd.f32 0.0, %v3266
  %v3268 = vpop.f32.mrb[0].mxu0
  %v3269 = vpop.f32.mrb[0].mxu0
  %v3270 = vadd.f32 0.0, %v3269
  %v3271 = vpop.f32.mrb[0].mxu0
  %3272 = vmatprep.mubr.bf16.mxu0 0
  %3273 = vmatmul.mubr.bf16.gmra.mrb[0].mxu0 %v2702
  %v3274 = vpop.f32.mrb[0].mxu0
  %v3275 = vadd.f32 0.0, %v3274
  %v3276 = vpop.f32.mrb[0].mxu0
  %v3277 = vpop.f32.mrb[0].mxu0
  %v3278 = vadd.f32 0.0, %v3277
  %v3279 = vpop.f32.mrb[0].mxu0
  %3280 = vmatprep.mubr.bf16.mxu0 0
  %3281 = vmatmul.mubr.bf16.gmra.mrb[0].mxu0 %v2705
  %v3282 = vpop.f32.mrb[0].mxu0
  %v3283 = vadd.f32 0.0, %v3282
  %v3284 = vpop.f32.mrb[0].mxu0
  %v3285 = vpop.f32.mrb[0].mxu0
  %v3286 = vadd.f32 0.0, %v3285
  %v3287 = vpop.f32.mrb[0].mxu0
  %3288 = vmatprep.mubr.bf16.mxu0 0
  %3289 = vmatmul.mubr.bf16.gmra.mrb[0].mxu0 %v2708
  %v3290 = vpop.f32.mrb[0].mxu0
  %v3291 = vadd.f32 0.0, %v3290
  %v3292 = vpop.f32.mrb[0].mxu0
  %v3293 = vpop.f32.mrb[0].mxu0
  %v3294 = vadd.f32 0.0, %v3293
  %v3295 = vpop.f32.mrb[0].mxu0
  %3296 = vmatprep.mubr.bf16.mxu0 0
  %3297 = vmatmul.mubr.bf16.gmra.mrb[0].mxu0 %v2711
  %v3298 = vpop.f32.mrb[0].mxu0
  %v3299 = vadd.f32 0.0, %v3298
  %v3300 = vpop.f32.mrb[0].mxu0
  %v3301 = vpop.f32.mrb[0].mxu0
  %v3302 = vadd.f32 0.0, %v3301
  %v3303 = vpop.f32.mrb[0].mxu0
  %3304 = vmatprep.mubr.bf16.mxu0 0
  %3305 = vmatmul.mubr.bf16.gmra.mrb[0].mxu0 %v2714
  %v3306 = vpop.f32.mrb[0].mxu0
  %v3307 = vadd.f32 0.0, %v3306
  %v3308 = vpop.f32.mrb[0].mxu0
  %v3309 = vpop.f32.mrb[0].mxu0
  %v3310 = vadd.f32 0.0, %v3309
  %v3311 = vpop.f32.mrb[0].mxu0
  %3312 = vmatprep.mubr.bf16.mxu0 0
  %3313 = vmatmul.mubr.bf16.gmra.mrb[0].mxu0 %v2717
  %v3314 = vpop.f32.mrb[0].mxu0
  %v3315 = vadd.f32 0.0, %v3314
  %v3316 = vpop.f32.mrb[0].mxu0
  %v3317 = vpop.f32.mrb[0].mxu0
  %v3318 = vadd.f32 0.0, %v3317
  %v3319 = vpop.f32.mrb[0].mxu0
  %3320 = vmatprep.mubr.bf16.mxu0 0
  %3321 = vmatmul.mubr.bf16.gmra.mrb[0].mxu0 %v2720
  %v3322 = vpop.f32.mrb[0].mxu0
  %v3323 = vadd.f32 0.0, %v3322
  %v3324 = vpop.f32.mrb[0].mxu0
  %v3325 = vpop.f32.mrb[0].mxu0
  %v3326 = vadd.f32 0.0, %v3325
  %v3327 = vpop.f32.mrb[0].mxu0
  %3328 = vmatprep.mubr.bf16.mxu0 0
  %3329 = vmatmul.mubr.bf16.gmra.mrb[0].mxu0 %v2723
  %v3330 = vpop.f32.mrb[0].mxu0
  %v3331 = vadd.f32 0.0, %v3330
  %v3332 = vpop.f32.mrb[0].mxu0
  %v3333 = vpop.f32.mrb[0].mxu0
  %v3334 = vadd.f32 0.0, %v3333
  %v3335 = vpop.f32.mrb[0].mxu0
  %3336 = vmatprep.mubr.bf16.mxu0 0
  %3337 = vmatmul.mubr.bf16.gmra.mrb[0].mxu0 %v2726
  %v3338 = vpop.f32.mrb[0].mxu0
  %v3339 = vadd.f32 0.0, %v3338
  %v3340 = vpop.f32.mrb[0].mxu0
  %v3341 = vpop.f32.mrb[0].mxu0
  %v3342 = vadd.f32 0.0, %v3341
  %v3343 = vpop.f32.mrb[0].mxu0
  %3344 = vmatprep.mubr.bf16.mxu0 0
  %3345 = vmatmul.mubr.bf16.gmra.mrb[0].mxu0 %v2729
  %v3346 = vpop.f32.mrb[0].mxu0
  %v3347 = vadd.f32 0.0, %v3346
  %v3348 = vpop.f32.mrb[0].mxu0
  %v3349 = vpop.f32.mrb[0].mxu0
  %v3350 = vadd.f32 0.0, %v3349
  %v3351 = vpop.f32.mrb[0].mxu0
  %3352 = vmatprep.mubr.bf16.mxu0 0
  %3353 = vmatmul.mubr.bf16.gmra.mrb[0].mxu0 %v2732
  %v3354 = vpop.f32.mrb[0].mxu0
  %v3355 = vadd.f32 0.0, %v3354
  %v3356 = vpop.f32.mrb[0].mxu0
  %v3357 = vpop.f32.mrb[0].mxu0
  %v3358 = vadd.f32 0.0, %v3357
  %v3359 = vpop.f32.mrb[0].mxu0
  %3360 = vmatprep.mubr.bf16.mxu0 0
  %3361 = vmatmul.mubr.bf16.gmra.mrb[0].mxu0 %v2735
  %v3362 = vpop.f32.mrb[0].mxu0
  %v3363 = vadd.f32 0.0, %v3362
  %v3364 = vpop.f32.mrb[0].mxu0
  %v3365 = vpop.f32.mrb[0].mxu0
  %v3366 = vadd.f32 0.0, %v3365
  %v3367 = vpop.f32.mrb[0].mxu0
  %3368 = vmatprep.mubr.bf16.mxu0 0
  %3369 = vmatmul.mubr.bf16.gmra.mrb[0].mxu0 %v2738
  %v3370 = vpop.f32.mrb[0].mxu0
  %v3371 = vadd.f32 0.0, %v3370
  %v3372 = vpop.f32.mrb[0].mxu0
  %v3373 = vpop.f32.mrb[0].mxu0
  %v3374 = vadd.f32 0.0, %v3373
  %v3375 = vpop.f32.mrb[0].mxu0
  %3376 = vmatprep.mubr.bf16.mxu0 0
  %3377 = vmatmul.mubr.bf16.gmra.mrb[0].mxu0 %v2741
  %v3378 = vpop.f32.mrb[0].mxu0
  %v3379 = vadd.f32 0.0, %v3378
  %v3380 = vpop.f32.mrb[0].mxu0
  %v3381 = vpop.f32.mrb[0].mxu0
  %v3382 = vadd.f32 0.0, %v3381
  %v3383 = vpop.f32.mrb[0].mxu0
  %3384 = vmatprep.mubr.bf16.mxu0 0
  %3385 = vmatmul.mubr.bf16.gmra.mrb[0].mxu0 %v2744
  %v3386 = vpop.f32.mrb[0].mxu0
  %v3387 = vadd.f32 0.0, %v3386
  %v3388 = vpop.f32.mrb[0].mxu0
  %v3389 = vpop.f32.mrb[0].mxu0
  %v3390 = vadd.f32 0.0, %v3389
  %v3391 = vpop.f32.mrb[0].mxu0
  %3392 = vmatprep.mubr.bf16.mxu0 0
  %3393 = vmatmul.mubr.bf16.gmra.mrb[0].mxu0 %v2747
  %v3394 = vpop.f32.mrb[0].mxu0
  %v3395 = vadd.f32 0.0, %v3394
  %v3396 = vpop.f32.mrb[0].mxu0
  %v3397 = vpop.f32.mrb[0].mxu0
  %v3398 = vadd.f32 0.0, %v3397
  %v3399 = vpop.f32.mrb[0].mxu0
  %3400 = vmatprep.mubr.bf16.mxu0 0
  %3401 = vmatmul.mubr.bf16.gmra.mrb[0].mxu0 %v2750
  %v3402 = vpop.f32.mrb[0].mxu0
  %v3403 = vadd.f32 0.0, %v3402
  %v3404 = vpop.f32.mrb[0].mxu0
  %v3405 = vpop.f32.mrb[0].mxu0
  %v3406 = vadd.f32 0.0, %v3405
  %v3407 = vpop.f32.mrb[0].mxu0
  %3408 = vmatprep.mubr.bf16.mxu0 0
  %3409 = vmatmul.mubr.bf16.gmra.mrb[0].mxu0 %v2753
  %v3410 = vpop.f32.mrb[0].mxu0
  %v3411 = vadd.f32 0.0, %v3410
  %v3412 = vpop.f32.mrb[0].mxu0
  %v3413 = vpop.f32.mrb[0].mxu0
  %v3414 = vadd.f32 0.0, %v3413
  %v3415 = vpop.f32.mrb[0].mxu0
  %3416 = vmatprep.mubr.bf16.mxu0 0
  %3417 = vmatmul.mubr.bf16.gmra.mrb[0].mxu0 %v2756
  %v3418 = vpop.f32.mrb[0].mxu0
  %v3419 = vadd.f32 0.0, %v3418
  %v3420 = vpop.f32.mrb[0].mxu0
  %v3421 = vpop.f32.mrb[0].mxu0
  %v3422 = vadd.f32 0.0, %v3421
  %v3423 = vpop.f32.mrb[0].mxu0
  %3424 = vmatprep.mubr.bf16.mxu0 0
  %3425 = vmatmul.mubr.bf16.gmra.mrb[0].mxu0 %v2759
  %v3426 = vpop.f32.mrb[0].mxu0
  %v3427 = vadd.f32 0.0, %v3426
  %v3428 = vpop.f32.mrb[0].mxu0
  %v3429 = vpop.f32.mrb[0].mxu0
  %v3430 = vadd.f32 0.0, %v3429
  %v3431 = vpop.f32.mrb[0].mxu0
  %3432 = vmatprep.mubr.bf16.mxu0 0
  %3433 = vmatmul.mubr.bf16.gmra.mrb[0].mxu0 %v2762
  %v3434 = vpop.f32.mrb[0].mxu0
  %v3435 = vadd.f32 0.0, %v3434
  %v3436 = vpop.f32.mrb[0].mxu0
  %v3437 = vpop.f32.mrb[0].mxu0
  %v3438 = vadd.f32 0.0, %v3437
  %v3439 = vpop.f32.mrb[0].mxu0
  %3440 = vmatprep.mubr.bf16.mxu0 0
  %3441 = vmatmul.mubr.bf16.gmra.mrb[0].mxu0 %v2765
  %v3442 = vpop.f32.mrb[0].mxu0
  %v3443 = vadd.f32 0.0, %v3442
  %v3444 = vpop.f32.mrb[0].mxu0
  %v3445 = vpop.f32.mrb[0].mxu0
  %v3446 = vadd.f32 0.0, %v3445
  %v3447 = vpop.f32.mrb[0].mxu0
  %3448 = vmatprep.mubr.bf16.mxu0 0
  %3449 = vmatmul.mubr.bf16.gmra.mrb[0].mxu0 %v2768
  %v3450 = vpop.f32.mrb[0].mxu0
  %v3451 = vadd.f32 0.0, %v3450
  %v3452 = vpop.f32.mrb[0].mxu0
  %v3453 = vpop.f32.mrb[0].mxu0
  %v3454 = vadd.f32 0.0, %v3453
  %v3455 = vpop.f32.mrb[0].mxu0
  %3456 = vmatprep.mubr.bf16.mxu0 0
  %3457 = vmatmul.mubr.bf16.gmra.mrb[0].mxu0 %v2771
  %v3458 = vpop.f32.mrb[0].mxu0
  %v3459 = vadd.f32 0.0, %v3458
  %v3460 = vpop.f32.mrb[0].mxu0
  %v3461 = vpop.f32.mrb[0].mxu0
  %v3462 = vadd.f32 0.0, %v3461
  %v3463 = vpop.f32.mrb[0].mxu0
  %3464 = vmatprep.mubr.bf16.mxu0 0
  %3465 = vmatmul.mubr.bf16.gmra.mrb[0].mxu0 %v2774
  %v3466 = vpop.f32.mrb[0].mxu0
  %v3467 = vadd.f32 0.0, %v3466
  %v3468 = vpop.f32.mrb[0].mxu0
  %v3469 = vpop.f32.mrb[0].mxu0
  %v3470 = vadd.f32 0.0, %v3469
  %v3471 = vpop.f32.mrb[0].mxu0
  %3472 = vmatprep.mubr.bf16.mxu0 0
  %3473 = vmatmul.mubr.bf16.gmra.mrb[0].mxu0 %v2777
  %v3474 = vpop.f32.mrb[0].mxu0
  %v3475 = vadd.f32 0.0, %v3474
  %v3476 = vpop.f32.mrb[0].mxu0
  %v3477 = vpop.f32.mrb[0].mxu0
  %v3478 = vadd.f32 0.0, %v3477
  %v3479 = vpop.f32.mrb[0].mxu0
  %3480 = vmatprep.mubr.bf16.mxu0 0
  %3481 = vmatmul.mubr.bf16.gmra.mrb[0].mxu0 %v2780
  %v3482 = vpop.f32.mrb[0].mxu0
  %v3483 = vadd.f32 0.0, %v3482
  %v3484 = vpop.f32.mrb[0].mxu0
  %v3485 = vpop.f32.mrb[0].mxu0
  %v3486 = vadd.f32 0.0, %v3485
  %v3487 = vpop.f32.mrb[0].mxu0
  %3488 = vmatprep.mubr.bf16.mxu0 0
  %3489 = vmatmul.mubr.bf16.gmra.mrb[0].mxu0 %v2783
  %v3490 = vpop.f32.mrb[0].mxu0
  %v3491 = vadd.f32 0.0, %v3490
  %v3492 = vpop.f32.mrb[0].mxu0
  %v3493 = vpop.f32.mrb[0].mxu0
  %v3494 = vadd.f32 0.0, %v3493
  %v3495 = vpop.f32.mrb[0].mxu0
  %3496 = vmatprep.mubr.bf16.mxu0 0
  %3497 = vmatmul.mubr.bf16.gmra.mrb[0].mxu0 %v2786
  %v3498 = vpop.f32.mrb[0].mxu0
  %v3499 = vadd.f32 0.0, %v3498
  %v3500 = vpop.f32.mrb[0].mxu0
  %v3501 = vpop.f32.mrb[0].mxu0
  %v3502 = vadd.f32 0.0, %v3501
  %v3503 = vpop.f32.mrb[0].mxu0
  %3504 = vmatprep.mubr.bf16.mxu0 0
  %3505 = vmatmul.mubr.bf16.gmra.mrb[0].mxu0 %v2789
  %v3506 = vpop.f32.mrb[0].mxu0
  %v3507 = vadd.f32 0.0, %v3506
  %v3508 = vpop.f32.mrb[0].mxu0
  %v3509 = vpop.f32.mrb[0].mxu0
  %v3510 = vadd.f32 0.0, %v3509
  %v3511 = vpop.f32.mrb[0].mxu0
  %3512 = vmatprep.mubr.bf16.mxu0 0
  %3513 = vmatmul.mubr.bf16.gmra.mrb[0].mxu0 %v2792
  %v3514 = vpop.f32.mrb[0].mxu0
  %v3515 = vadd.f32 0.0, %v3514
  %v3516 = vpop.f32.mrb[0].mxu0
  %v3517 = vpop.f32.mrb[0].mxu0
  %v3518 = vadd.f32 0.0, %v3517
  %v3519 = vpop.f32.mrb[0].mxu0
  %3520 = vmatprep.mubr.bf16.mxu0 0
  %3521 = vmatmul.mubr.bf16.gmra.mrb[0].mxu0 %v2795
  %v3522 = vpop.f32.mrb[0].mxu0
  %v3523 = vadd.f32 0.0, %v3522
  %v3524 = vpop.f32.mrb[0].mxu0
  %v3525 = vpop.f32.mrb[0].mxu0
  %v3526 = vadd.f32 0.0, %v3525
  %v3527 = vpop.f32.mrb[0].mxu0
  %3528 = vmatprep.mubr.bf16.mxu0 0
  %3529 = vmatmul.mubr.bf16.gmra.mrb[0].mxu0 %v2798
  %v3530 = vpop.f32.mrb[0].mxu0
  %v3531 = vadd.f32 0.0, %v3530
  %v3532 = vpop.f32.mrb[0].mxu0
  %v3533 = vpop.f32.mrb[0].mxu0
  %v3534 = vadd.f32 0.0, %v3533
  %v3535 = vpop.f32.mrb[0].mxu0
  %3536 = vmatprep.mubr.bf16.mxu0 0
  %3537 = vmatmul.mubr.bf16.gmra.mrb[0].mxu0 %v2801
  %v3538 = vpop.f32.mrb[0].mxu0
  %v3539 = vadd.f32 0.0, %v3538
  %v3540 = vpop.f32.mrb[0].mxu0
  %v3541 = vpop.f32.mrb[0].mxu0
  %v3542 = vadd.f32 0.0, %v3541
  %v3543 = vpop.f32.mrb[0].mxu0
  %3544 = vmatprep.mubr.bf16.mxu0 0
  %3545 = vmatmul.mubr.bf16.gmra.mrb[0].mxu0 %v2804
  %v3546 = vpop.f32.mrb[0].mxu0
  %v3547 = vadd.f32 0.0, %v3546
  %v3548 = vpop.f32.mrb[0].mxu0
  %v3549 = vpop.f32.mrb[0].mxu0
  %v3550 = vadd.f32 0.0, %v3549
  %v3551 = vpop.f32.mrb[0].mxu0
  %3552 = vmatprep.mubr.bf16.mxu0 0
  %3553 = vmatmul.mubr.bf16.gmra.mrb[0].mxu0 %v2807
  %v3554 = vpop.f32.mrb[0].mxu0
  %v3555 = vadd.f32 0.0, %v3554
  %v3556 = vpop.f32.mrb[0].mxu0
  %v3557 = vpop.f32.mrb[0].mxu0
  %v3558 = vadd.f32 0.0, %v3557
  %v3559 = vpop.f32.mrb[0].mxu0
  %3560 = vmatprep.mubr.bf16.mxu0 0
  %3561 = vmatmul.mubr.bf16.gmra.mrb[0].mxu0 %v2810
  %v3562 = vpop.f32.mrb[0].mxu0
  %v3563 = vadd.f32 0.0, %v3562
  %v3564 = vpop.f32.mrb[0].mxu0
  %v3565 = vpop.f32.mrb[0].mxu0
  %v3566 = vadd.f32 0.0, %v3565
  %v3567 = vpop.f32.mrb[0].mxu0
  %3568 = vmatprep.mubr.bf16.mxu0 0
  %3569 = vmatmul.mubr.bf16.gmra.mrb[0].mxu0 %v2813
  %v3570 = vpop.f32.mrb[0].mxu0
  %v3571 = vadd.f32 0.0, %v3570
  %v3572 = vpop.f32.mrb[0].mxu0
  %v3573 = vpop.f32.mrb[0].mxu0
  %v3574 = vadd.f32 0.0, %v3573
  %v3575 = vpop.f32.mrb[0].mxu0
  %3576 = vmatprep.mubr.bf16.mxu0 0
  %3577 = vmatmul.mubr.bf16.gmra.mrb[0].mxu0 %v2816
  %v3578 = vpop.f32.mrb[0].mxu0
  %v3579 = vadd.f32 0.0, %v3578
  %v3580 = vpop.f32.mrb[0].mxu0
  %v3581 = vpop.f32.mrb[0].mxu0
  %v3582 = vadd.f32 0.0, %v3581
  %v3583 = vpop.f32.mrb[0].mxu0
  %3584 = vmatprep.mubr.bf16.mxu0 0
  %3585 = vmatmul.mubr.bf16.gmra.mrb[0].mxu0 %v2819
  %v3586 = vpop.f32.mrb[0].mxu0
  %v3587 = vadd.f32 0.0, %v3586
  %v3588 = vpop.f32.mrb[0].mxu0
  %v3589 = vpop.f32.mrb[0].mxu0
  %v3590 = vadd.f32 0.0, %v3589
  %v3591 = vpop.f32.mrb[0].mxu0
  %3592 = vmatprep.mubr.bf16.mxu0 0
  %3593 = vmatmul.mubr.bf16.gmra.mrb[0].mxu0 %v2822
  %v3594 = vpop.f32.mrb[0].mxu0
  %v3595 = vadd.f32 0.0, %v3594
  %v3596 = vpop.f32.mrb[0].mxu0
  %v3597 = vpop.f32.mrb[0].mxu0
  %v3598 = vadd.f32 0.0, %v3597
  %v3599 = vpop.f32.mrb[0].mxu0
  %3600 = vmatprep.mubr.bf16.mxu0 0
  %3601 = vmatmul.mubr.bf16.gmra.mrb[0].mxu0 %v2825
  %v3602 = vpop.f32.mrb[0].mxu0
  %v3603 = vadd.f32 0.0, %v3602
  %v3604 = vpop.f32.mrb[0].mxu0
  %v3605 = vpop.f32.mrb[0].mxu0
  %v3606 = vadd.f32 0.0, %v3605
  %v3607 = vpop.f32.mrb[0].mxu0
  %3608 = vmatprep.mubr.bf16.mxu0 0
  %3609 = vmatmul.mubr.bf16.gmra.mrb[0].mxu0 %v2828
  %v3610 = vpop.f32.mrb[0].mxu0
  %v3611 = vadd.f32 0.0, %v3610
  %v3612 = vpop.f32.mrb[0].mxu0
  %v3613 = vpop.f32.mrb[0].mxu0
  %v3614 = vadd.f32 0.0, %v3613
  %v3615 = vpop.f32.mrb[0].mxu0
  %3616 = vmatprep.mubr.bf16.mxu0 0
  %3617 = vmatmul.mubr.bf16.gmra.mrb[0].mxu0 %v2831
  %v3618 = vpop.f32.mrb[0].mxu0
  %v3619 = vadd.f32 0.0, %v3618
  %v3620 = vpop.f32.mrb[0].mxu0
  %v3621 = vpop.f32.mrb[0].mxu0
  %v3622 = vadd.f32 0.0, %v3621
  %v3623 = vpop.f32.mrb[0].mxu0
  %3624 = vmatprep.mubr.bf16.mxu0 0
  %3625 = vmatmul.mubr.bf16.gmra.mrb[0].mxu0 %v2834
  %v3626 = vpop.f32.mrb[0].mxu0
  %v3627 = vadd.f32 0.0, %v3626
  %v3628 = vpop.f32.mrb[0].mxu0
  %v3629 = vpop.f32.mrb[0].mxu0
  %v3630 = vadd.f32 0.0, %v3629
  %v3631 = vpop.f32.mrb[0].mxu0
  %3632 = vmatprep.mubr.bf16.mxu0 0
  %3633 = vmatmul.mubr.bf16.gmra.mrb[0].mxu0 %v2837
  %v3634 = vpop.f32.mrb[0].mxu0
  %v3635 = vadd.f32 0.0, %v3634
  %v3636 = vpop.f32.mrb[0].mxu0
  %v3637 = vpop.f32.mrb[0].mxu0
  %v3638 = vadd.f32 0.0, %v3637
  %v3639 = vpop.f32.mrb[0].mxu0
  %3640 = vmatprep.mubr.bf16.mxu0 0
  %3641 = vmatmul.mubr.bf16.gmra.mrb[0].mxu0 %v2840
  %v3642 = vpop.f32.mrb[0].mxu0
  %v3643 = vadd.f32 0.0, %v3642
  %v3644 = vpop.f32.mrb[0].mxu0
  %v3645 = vpop.f32.mrb[0].mxu0
  %v3646 = vadd.f32 0.0, %v3645
  %v3647 = vpop.f32.mrb[0].mxu0
  %3648 = vmatprep.mubr.bf16.mxu0 0
  %3649 = vmatmul.mubr.bf16.gmra.mrb[0].mxu0 %v2843
  %v3650 = vpop.f32.mrb[0].mxu0
  %v3651 = vadd.f32 0.0, %v3650
  %v3652 = vpop.f32.mrb[0].mxu0
  %v3653 = vpop.f32.mrb[0].mxu0
  %v3654 = vadd.f32 0.0, %v3653
  %v3655 = vpop.f32.mrb[0].mxu0
  %3656 = vmatprep.mubr.bf16.mxu0 0
  %3657 = vmatmul.mubr.bf16.gmra.mrb[0].mxu0 %v2846
  %v3658 = vpop.f32.mrb[0].mxu0
  %v3659 = vadd.f32 0.0, %v3658
  %v3660 = vpop.f32.mrb[0].mxu0
  %v3661 = vpop.f32.mrb[0].mxu0
  %v3662 = vadd.f32 0.0, %v3661
  %v3663 = vpop.f32.mrb[0].mxu0
  %3664 = vdwg.mxu0
  %v3665 = vmax.f32 %v1086, %v2883
  %v3666 = vmax.f32 %v1089, %v2886
  %v3667 = vmax.f32 %v1094, %v2891
  %v3668 = vmax.f32 %v1097, %v2894
  %v3669 = vmax.f32 %v1102, %v2899
  %v3670 = vmax.f32 %v1105, %v2902
  %v3671 = vmax.f32 %v1110, %v2907
  %v3672 = vmax.f32 %v1113, %v2910
  %v3673 = vmax.f32 %v1118, %v2915
  %v3674 = vmax.f32 %v1121, %v2918
  %v3675 = vmax.f32 %v1126, %v2923
  %v3676 = vmax.f32 %v1129, %v2926
  %v3677 = vmax.f32 %v1134, %v2931
  %v3678 = vmax.f32 %v1137, %v2934
  %v3679 = vmax.f32 %v1142, %v2939
  %v3680 = vmax.f32 %v1145, %v2942
  %v3681 = vmax.f32 %v1150, %v2947
  %v3682 = vmax.f32 %v1153, %v2950
  %v3683 = vmax.f32 %v1158, %v2955
  %v3684 = vmax.f32 %v1161, %v2958
  %v3685 = vmax.f32 %v1166, %v2963
  %v3686 = vmax.f32 %v1169, %v2966
  %v3687 = vmax.f32 %v1174, %v2971
  %v3688 = vmax.f32 %v1177, %v2974
  %v3689 = vmax.f32 %v1182, %v2979
  %v3690 = vmax.f32 %v1185, %v2982
  %v3691 = vmax.f32 %v1190, %v2987
  %v3692 = vmax.f32 %v1193, %v2990
  %v3693 = vmax.f32 %v1198, %v2995
  %v3694 = vmax.f32 %v1201, %v2998
  %v3695 = vmax.f32 %v1206, %v3003
  %v3696 = vmax.f32 %v1209, %v3006
  %v3697 = vmax.f32 %v1214, %v3011
  %v3698 = vmax.f32 %v1217, %v3014
  %v3699 = vmax.f32 %v1222, %v3019
  %v3700 = vmax.f32 %v1225, %v3022
  %v3701 = vmax.f32 %v1230, %v3027
  %v3702 = vmax.f32 %v1233, %v3030
  %v3703 = vmax.f32 %v1238, %v3035
  %v3704 = vmax.f32 %v1241, %v3038
  %v3705 = vmax.f32 %v1246, %v3043
  %v3706 = vmax.f32 %v1249, %v3046
  %v3707 = vmax.f32 %v1254, %v3051
  %v3708 = vmax.f32 %v1257, %v3054
  %v3709 = vmax.f32 %v1262, %v3059
  %v3710 = vmax.f32 %v1265, %v3062
  %v3711 = vmax.f32 %v1270, %v3067
  %v3712 = vmax.f32 %v1273, %v3070
  %v3713 = vmax.f32 %v1278, %v3075
  %v3714 = vmax.f32 %v1281, %v3078
  %v3715 = vmax.f32 %v1286, %v3083
  %v3716 = vmax.f32 %v1289, %v3086
  %v3717 = vmax.f32 %v1294, %v3091
  %v3718 = vmax.f32 %v1297, %v3094
  %v3719 = vmax.f32 %v1302, %v3099
  %v3720 = vmax.f32 %v1305, %v3102
  %v3721 = vmax.f32 %v1310, %v3107
  %v3722 = vmax.f32 %v1313, %v3110
  %v3723 = vmax.f32 %v1318, %v3115
  %v3724 = vmax.f32 %v1321, %v3118
  %v3725 = vmax.f32 %v1326, %v3123
  %v3726 = vmax.f32 %v1329, %v3126
  %v3727 = vmax.f32 %v1334, %v3131
  %v3728 = vmax.f32 %v1337, %v3134
  %v3729 = vmax.f32 %v1342, %v3139
  %v3730 = vmax.f32 %v1345, %v3142
  %v3731 = vmax.f32 %v1350, %v3147
  %v3732 = vmax.f32 %v1353, %v3150
  %v3733 = vmax.f32 %v1358, %v3155
  %v3734 = vmax.f32 %v1361, %v3158
  %v3735 = vmax.f32 %v1366, %v3163
  %v3736 = vmax.f32 %v1369, %v3166
  %v3737 = vmax.f32 %v1374, %v3171
  %v3738 = vmax.f32 %v1377, %v3174
  %v3739 = vmax.f32 %v1382, %v3179
  %v3740 = vmax.f32 %v1385, %v3182
  %v3741 = vmax.f32 %v1390, %v3187
  %v3742 = vmax.f32 %v1393, %v3190
  %v3743 = vmax.f32 %v1398, %v3195
  %v3744 = vmax.f32 %v1401, %v3198
  %v3745 = vmax.f32 %v1406, %v3203
  %v3746 = vmax.f32 %v1409, %v3206
  %v3747 = vmax.f32 %v1414, %v3211
  %v3748 = vmax.f32 %v1417, %v3214
  %v3749 = vmax.f32 %v1422, %v3219
  %v3750 = vmax.f32 %v1425, %v3222
  %v3751 = vmax.f32 %v1430, %v3227
  %v3752 = vmax.f32 %v1433, %v3230
  %v3753 = vmax.f32 %v1438, %v3235
  %v3754 = vmax.f32 %v1441, %v3238
  %v3755 = vmax.f32 %v1446, %v3243
  %v3756 = vmax.f32 %v1449, %v3246
  %v3757 = vmax.f32 %v1454, %v3251
  %v3758 = vmax.f32 %v1457, %v3254
  %v3759 = vmax.f32 %v1462, %v3259
  %v3760 = vmax.f32 %v1465, %v3262
  %v3761 = vmax.f32 %v1470, %v3267
  %v3762 = vmax.f32 %v1473, %v3270
  %v3763 = vmax.f32 %v1478, %v3275
  %v3764 = vmax.f32 %v1481, %v3278
  %v3765 = vmax.f32 %v1486, %v3283
  %v3766 = vmax.f32 %v1489, %v3286
  %v3767 = vmax.f32 %v1494, %v3291
  %v3768 = vmax.f32 %v1497, %v3294
  %v3769 = vmax.f32 %v1502, %v3299
  %v3770 = vmax.f32 %v1505, %v3302
  %v3771 = vmax.f32 %v1510, %v3307
  %v3772 = vmax.f32 %v1513, %v3310
  %v3773 = vmax.f32 %v1518, %v3315
  %v3774 = vmax.f32 %v1521, %v3318
  %v3775 = vmax.f32 %v1526, %v3323
  %v3776 = vmax.f32 %v1529, %v3326
  %v3777 = vmax.f32 %v1534, %v3331
  %v3778 = vmax.f32 %v1537, %v3334
  %v3779 = vmax.f32 %v1542, %v3339
  %v3780 = vmax.f32 %v1545, %v3342
  %v3781 = vmax.f32 %v1550, %v3347
  %v3782 = vmax.f32 %v1553, %v3350
  %v3783 = vmax.f32 %v1558, %v3355
  %v3784 = vmax.f32 %v1561, %v3358
  %v3785 = vmax.f32 %v1566, %v3363
  %v3786 = vmax.f32 %v1569, %v3366
  %v3787 = vmax.f32 %v1574, %v3371
  %v3788 = vmax.f32 %v1577, %v3374
  %v3789 = vmax.f32 %v1582, %v3379
  %v3790 = vmax.f32 %v1585, %v3382
  %v3791 = vmax.f32 %v1590, %v3387
  %v3792 = vmax.f32 %v1593, %v3390
  %v3793 = vmax.f32 %v1598, %v3395
  %v3794 = vmax.f32 %v1601, %v3398
  %v3795 = vmax.f32 %v1606, %v3403
  %v3796 = vmax.f32 %v1609, %v3406
  %v3797 = vmax.f32 %v1614, %v3411
  %v3798 = vmax.f32 %v1617, %v3414
  %v3799 = vmax.f32 %v1622, %v3419
  %v3800 = vmax.f32 %v1625, %v3422
  %v3801 = vmax.f32 %v1630, %v3427
  %v3802 = vmax.f32 %v1633, %v3430
  %v3803 = vmax.f32 %v1638, %v3435
  %v3804 = vmax.f32 %v1641, %v3438
  %v3805 = vmax.f32 %v1646, %v3443
  %v3806 = vmax.f32 %v1649, %v3446
  %v3807 = vmax.f32 %v1654, %v3451
  %v3808 = vmax.f32 %v1657, %v3454
  %v3809 = vmax.f32 %v1662, %v3459
  %v3810 = vmax.f32 %v1665, %v3462
  %v3811 = vmax.f32 %v1670, %v3467
  %v3812 = vmax.f32 %v1673, %v3470
  %v3813 = vmax.f32 %v1678, %v3475
  %v3814 = vmax.f32 %v1681, %v3478
  %v3815 = vmax.f32 %v1686, %v3483
  %v3816 = vmax.f32 %v1689, %v3486
  %v3817 = vmax.f32 %v1694, %v3491
  %v3818 = vmax.f32 %v1697, %v3494
  %v3819 = vmax.f32 %v1702, %v3499
  %v3820 = vmax.f32 %v1705, %v3502
  %v3821 = vmax.f32 %v1710, %v3507
  %v3822 = vmax.f32 %v1713, %v3510
  %v3823 = vmax.f32 %v1718, %v3515
  %v3824 = vmax.f32 %v1721, %v3518
  %v3825 = vmax.f32 %v1726, %v3523
  %v3826 = vmax.f32 %v1729, %v3526
  %v3827 = vmax.f32 %v1734, %v3531
  %v3828 = vmax.f32 %v1737, %v3534
  %v3829 = vmax.f32 %v1742, %v3539
  %v3830 = vmax.f32 %v1745, %v3542
  %v3831 = vmax.f32 %v1750, %v3547
  %v3832 = vmax.f32 %v1753, %v3550
  %v3833 = vmax.f32 %v1758, %v3555
  %v3834 = vmax.f32 %v1761, %v3558
  %v3835 = vmax.f32 %v1766, %v3563
  %v3836 = vmax.f32 %v1769, %v3566
  %v3837 = vmax.f32 %v1774, %v3571
  %v3838 = vmax.f32 %v1777, %v3574
  %v3839 = vmax.f32 %v1782, %v3579
  %v3840 = vmax.f32 %v1785, %v3582
  %v3841 = vmax.f32 %v1790, %v3587
  %v3842 = vmax.f32 %v1793, %v3590
  %v3843 = vmax.f32 %v1798, %v3595
  %v3844 = vmax.f32 %v1801, %v3598
  %v3845 = vmax.f32 %v1806, %v3603
  %v3846 = vmax.f32 %v1809, %v3606
  %v3847 = vmax.f32 %v1814, %v3611
  %v3848 = vmax.f32 %v1817, %v3614
  %v3849 = vmax.f32 %v1822, %v3619
  %v3850 = vmax.f32 %v1825, %v3622
  %v3851 = vmax.f32 %v1830, %v3627
  %v3852 = vmax.f32 %v1833, %v3630
  %v3853 = vmax.f32 %v1838, %v3635
  %v3854 = vmax.f32 %v1841, %v3638
  %v3855 = vmax.f32 %v1846, %v3643
  %v3856 = vmax.f32 %v1849, %v3646
  %v3857 = vmax.f32 %v1854, %v3651
  %v3858 = vmax.f32 %v1857, %v3654
  %v3859 = vmax.f32 %v1862, %v3659
  %v3860 = vmax.f32 %v1865, %v3662
  %v3861 = vld [vmem:[%s2] sm:$0xf]
  %v3862 = vld [vmem:[%s2 + $0x4] sm:$0xf]
  %v3863 = vld [vmem:[%s2 + $0x8] sm:$0xf]
  %v3864 = vld [vmem:[%s2 + $0xc] sm:$0xf]
  %v3865 = vld [vmem:[%s2 + $0x10] sm:$0xf]
  %v3866 = vld [vmem:[%s2 + $0x14] sm:$0xf]
  %v3867 = vld [vmem:[%s2 + $0x18] sm:$0xf]
  %v3868 = vld [vmem:[%s2 + $0x1c] sm:$0xf]
  %v3869 = vld [vmem:[%s2 + $0x20] sm:$0xf]
  %v3870 = vld [vmem:[%s2 + $0x24] sm:$0xf]
  %v3871 = vld [vmem:[%s2 + $0x28] sm:$0xf]
  %v3872 = vld [vmem:[%s2 + $0x2c] sm:$0xf]
  %v3873 = vld [vmem:[%s2 + $0x30] sm:$0xf]
  %v3874 = vld [vmem:[%s2 + $0x34] sm:$0xf]
  %v3875 = vld [vmem:[%s2 + $0x38] sm:$0xf]
  %v3876 = vld [vmem:[%s2 + $0x3c] sm:$0xf]
  %v3877 = vld [vmem:[%s2 + $0x40] sm:$0xf]
  %v3878 = vld [vmem:[%s2 + $0x44] sm:$0xf]
  %v3879 = vld [vmem:[%s2 + $0x48] sm:$0xf]
  %v3880 = vld [vmem:[%s2 + $0x4c] sm:$0xf]
  %v3881 = vld [vmem:[%s2 + $0x50] sm:$0xf]
  %v3882 = vld [vmem:[%s2 + $0x54] sm:$0xf]
  %v3883 = vld [vmem:[%s2 + $0x58] sm:$0xf]
  %v3884 = vld [vmem:[%s2 + $0x5c] sm:$0xf]
  %v3885 = vld [vmem:[%s2 + $0x60] sm:$0xf]
  %v3886 = vld [vmem:[%s2 + $0x64] sm:$0xf]
  %v3887 = vld [vmem:[%s2 + $0x68] sm:$0xf]
  %v3888 = vld [vmem:[%s2 + $0x6c] sm:$0xf]
  %v3889 = vld [vmem:[%s2 + $0x70] sm:$0xf]
  %v3890 = vld [vmem:[%s2 + $0x74] sm:$0xf]
  %v3891 = vld [vmem:[%s2 + $0x78] sm:$0xf]
  %v3892 = vld [vmem:[%s2 + $0x7c] sm:$0xf]
  %v3893 = vld [vmem:[%s2 + $0x80] sm:$0xf]
  %v3894 = vld [vmem:[%s2 + $0x84] sm:$0xf]
  %v3895 = vld [vmem:[%s2 + $0x88] sm:$0xf]
  %v3896 = vld [vmem:[%s2 + $0x8c] sm:$0xf]
  %v3897 = vld [vmem:[%s2 + $0x90] sm:$0xf]
  %v3898 = vld [vmem:[%s2 + $0x94] sm:$0xf]
  %v3899 = vld [vmem:[%s2 + $0x98] sm:$0xf]
  %v3900 = vld [vmem:[%s2 + $0x9c] sm:$0xf]
  %v3901 = vld [vmem:[%s2 + $0xa0] sm:$0xf]
  %v3902 = vld [vmem:[%s2 + $0xa4] sm:$0xf]
  %v3903 = vld [vmem:[%s2 + $0xa8] sm:$0xf]
  %v3904 = vld [vmem:[%s2 + $0xac] sm:$0xf]
  %v3905 = vld [vmem:[%s2 + $0xb0] sm:$0xf]
  %v3906 = vld [vmem:[%s2 + $0xb4] sm:$0xf]
  %v3907 = vld [vmem:[%s2 + $0xb8] sm:$0xf]
  %v3908 = vld [vmem:[%s2 + $0xbc] sm:$0xf]
  %v3909 = vld [vmem:[%s2 + $0xc0] sm:$0xf]
  %v3910 = vld [vmem:[%s2 + $0xc4] sm:$0xf]
  %v3911 = vld [vmem:[%s2 + $0xc8] sm:$0xf]
  %v3912 = vld [vmem:[%s2 + $0xcc] sm:$0xf]
  %v3913 = vld [vmem:[%s2 + $0xd0] sm:$0xf]
  %v3914 = vld [vmem:[%s2 + $0xd4] sm:$0xf]
  %v3915 = vld [vmem:[%s2 + $0xd8] sm:$0xf]
  %v3916 = vld [vmem:[%s2 + $0xdc] sm:$0xf]
  %v3917 = vld [vmem:[%s2 + $0xe0] sm:$0xf]
  %v3918 = vld [vmem:[%s2 + $0xe4] sm:$0xf]
  %v3919 = vld [vmem:[%s2 + $0xe8] sm:$0xf]
  %v3920 = vld [vmem:[%s2 + $0xec] sm:$0xf]
  %v3921 = vld [vmem:[%s2 + $0xf0] sm:$0xf]
  %v3922 = vld [vmem:[%s2 + $0xf4] sm:$0xf]
  %v3923 = vld [vmem:[%s2 + $0xf8] sm:$0xf]
  %v3924 = vld [vmem:[%s2 + $0xfc] sm:$0xf]
  %v3925 = vld [vmem:[%s2 + $0x100] sm:$0xf]
  %v3926 = vld [vmem:[%s2 + $0x104] sm:$0xf]
  %v3927 = vld [vmem:[%s2 + $0x108] sm:$0xf]
  %v3928 = vld [vmem:[%s2 + $0x10c] sm:$0xf]
  %v3929 = vld [vmem:[%s2 + $0x110] sm:$0xf]
  %v3930 = vld [vmem:[%s2 + $0x114] sm:$0xf]
  %v3931 = vld [vmem:[%s2 + $0x118] sm:$0xf]
  %v3932 = vld [vmem:[%s2 + $0x11c] sm:$0xf]
  %v3933 = vld [vmem:[%s2 + $0x120] sm:$0xf]
  %v3934 = vld [vmem:[%s2 + $0x124] sm:$0xf]
  %v3935 = vld [vmem:[%s2 + $0x128] sm:$0xf]
  %v3936 = vld [vmem:[%s2 + $0x12c] sm:$0xf]
  %v3937 = vld [vmem:[%s2 + $0x130] sm:$0xf]
  %v3938 = vld [vmem:[%s2 + $0x134] sm:$0xf]
  %v3939 = vld [vmem:[%s2 + $0x138] sm:$0xf]
  %v3940 = vld [vmem:[%s2 + $0x13c] sm:$0xf]
  %v3941 = vld [vmem:[%s2 + $0x140] sm:$0xf]
  %v3942 = vld [vmem:[%s2 + $0x144] sm:$0xf]
  %v3943 = vld [vmem:[%s2 + $0x148] sm:$0xf]
  %v3944 = vld [vmem:[%s2 + $0x14c] sm:$0xf]
  %v3945 = vld [vmem:[%s2 + $0x150] sm:$0xf]
  %v3946 = vld [vmem:[%s2 + $0x154] sm:$0xf]
  %v3947 = vld [vmem:[%s2 + $0x158] sm:$0xf]
  %v3948 = vld [vmem:[%s2 + $0x15c] sm:$0xf]
  %v3949 = vld [vmem:[%s2 + $0x160] sm:$0xf]
  %v3950 = vld [vmem:[%s2 + $0x164] sm:$0xf]
  %v3951 = vld [vmem:[%s2 + $0x168] sm:$0xf]
  %v3952 = vld [vmem:[%s2 + $0x16c] sm:$0xf]
  %v3953 = vld [vmem:[%s2 + $0x170] sm:$0xf]
  %v3954 = vld [vmem:[%s2 + $0x174] sm:$0xf]
  %v3955 = vld [vmem:[%s2 + $0x178] sm:$0xf]
  %v3956 = vld [vmem:[%s2 + $0x17c] sm:$0xf]
  %v3957 = vld [vmem:[%s2 + $0x180] sm:$0xf]
  %v3958 = vld [vmem:[%s2 + $0x184] sm:$0xf]
  %v3959 = vld [vmem:[%s2 + $0x188] sm:$0xf]
  %v3960 = vld [vmem:[%s2 + $0x18c] sm:$0xf]
  %v3961 = vld [vmem:[%s2 + $0x190] sm:$0xf]
  %v3962 = vld [vmem:[%s2 + $0x194] sm:$0xf]
  %v3963 = vld [vmem:[%s2 + $0x198] sm:$0xf]
  %v3964 = vld [vmem:[%s2 + $0x19c] sm:$0xf]
  %v3965 = vld [vmem:[%s2 + $0x1a0] sm:$0xf]
  %v3966 = vld [vmem:[%s2 + $0x1a4] sm:$0xf]
  %v3967 = vld [vmem:[%s2 + $0x1a8] sm:$0xf]
  %v3968 = vld [vmem:[%s2 + $0x1ac] sm:$0xf]
  %v3969 = vld [vmem:[%s2 + $0x1b0] sm:$0xf]
  %v3970 = vld [vmem:[%s2 + $0x1b4] sm:$0xf]
  %v3971 = vld [vmem:[%s2 + $0x1b8] sm:$0xf]
  %v3972 = vld [vmem:[%s2 + $0x1bc] sm:$0xf]
  %v3973 = vld [vmem:[%s2 + $0x1c0] sm:$0xf]
  %v3974 = vld [vmem:[%s2 + $0x1c4] sm:$0xf]
  %v3975 = vld [vmem:[%s2 + $0x1c8] sm:$0xf]
  %v3976 = vld [vmem:[%s2 + $0x1cc] sm:$0xf]
  %v3977 = vld [vmem:[%s2 + $0x1d0] sm:$0xf]
  %v3978 = vld [vmem:[%s2 + $0x1d4] sm:$0xf]
  %v3979 = vld [vmem:[%s2 + $0x1d8] sm:$0xf]
  %v3980 = vld [vmem:[%s2 + $0x1dc] sm:$0xf]
  %v3981 = vld [vmem:[%s2 + $0x1e0] sm:$0xf]
  %v3982 = vld [vmem:[%s2 + $0x1e4] sm:$0xf]
  %v3983 = vld [vmem:[%s2 + $0x1e8] sm:$0xf]
  %v3984 = vld [vmem:[%s2 + $0x1ec] sm:$0xf]
  %v3985 = vld [vmem:[%s2 + $0x1f0] sm:$0xf]
  %v3986 = vld [vmem:[%s2 + $0x1f4] sm:$0xf]
  %v3987 = vld [vmem:[%s2 + $0x1f8] sm:$0xf]
  %v3988 = vld [vmem:[%s2 + $0x1fc] sm:$0xf]
  %v3989 = vld [vmem:[%s2 + $0x200] sm:$0xf]
  %v3990 = vld [vmem:[%s2 + $0x204] sm:$0xf]
  %v3991 = vld [vmem:[%s2 + $0x208] sm:$0xf]
  %v3992 = vld [vmem:[%s2 + $0x20c] sm:$0xf]
  %v3993 = vld [vmem:[%s2 + $0x210] sm:$0xf]
  %v3994 = vld [vmem:[%s2 + $0x214] sm:$0xf]
  %v3995 = vld [vmem:[%s2 + $0x218] sm:$0xf]
  %v3996 = vld [vmem:[%s2 + $0x21c] sm:$0xf]
  %v3997 = vld [vmem:[%s2 + $0x220] sm:$0xf]
  %v3998 = vld [vmem:[%s2 + $0x224] sm:$0xf]
  %v3999 = vld [vmem:[%s2 + $0x228] sm:$0xf]
  %v4000 = vld [vmem:[%s2 + $0x22c] sm:$0xf]
  %v4001 = vld [vmem:[%s2 + $0x230] sm:$0xf]
  %v4002 = vld [vmem:[%s2 + $0x234] sm:$0xf]
  %v4003 = vld [vmem:[%s2 + $0x238] sm:$0xf]
  %v4004 = vld [vmem:[%s2 + $0x23c] sm:$0xf]
  %v4005 = vld [vmem:[%s2 + $0x240] sm:$0xf]
  %v4006 = vld [vmem:[%s2 + $0x244] sm:$0xf]
  %v4007 = vld [vmem:[%s2 + $0x248] sm:$0xf]
  %v4008 = vld [vmem:[%s2 + $0x24c] sm:$0xf]
  %v4009 = vld [vmem:[%s2 + $0x250] sm:$0xf]
  %v4010 = vld [vmem:[%s2 + $0x254] sm:$0xf]
  %v4011 = vld [vmem:[%s2 + $0x258] sm:$0xf]
  %v4012 = vld [vmem:[%s2 + $0x25c] sm:$0xf]
  %v4013 = vld [vmem:[%s2 + $0x260] sm:$0xf]
  %v4014 = vld [vmem:[%s2 + $0x264] sm:$0xf]
  %v4015 = vld [vmem:[%s2 + $0x268] sm:$0xf]
  %v4016 = vld [vmem:[%s2 + $0x26c] sm:$0xf]
  %v4017 = vld [vmem:[%s2 + $0x270] sm:$0xf]
  %v4018 = vld [vmem:[%s2 + $0x274] sm:$0xf]
  %v4019 = vld [vmem:[%s2 + $0x278] sm:$0xf]
  %v4020 = vld [vmem:[%s2 + $0x27c] sm:$0xf]
  %v4021 = vld [vmem:[%s2 + $0x280] sm:$0xf]
  %v4022 = vld [vmem:[%s2 + $0x284] sm:$0xf]
  %v4023 = vld [vmem:[%s2 + $0x288] sm:$0xf]
  %v4024 = vld [vmem:[%s2 + $0x28c] sm:$0xf]
  %v4025 = vld [vmem:[%s2 + $0x290] sm:$0xf]
  %v4026 = vld [vmem:[%s2 + $0x294] sm:$0xf]
  %v4027 = vld [vmem:[%s2 + $0x298] sm:$0xf]
  %v4028 = vld [vmem:[%s2 + $0x29c] sm:$0xf]
  %v4029 = vld [vmem:[%s2 + $0x2a0] sm:$0xf]
  %v4030 = vld [vmem:[%s2 + $0x2a4] sm:$0xf]
  %v4031 = vld [vmem:[%s2 + $0x2a8] sm:$0xf]
  %v4032 = vld [vmem:[%s2 + $0x2ac] sm:$0xf]
  %v4033 = vld [vmem:[%s2 + $0x2b0] sm:$0xf]
  %v4034 = vld [vmem:[%s2 + $0x2b4] sm:$0xf]
  %v4035 = vld [vmem:[%s2 + $0x2b8] sm:$0xf]
  %v4036 = vld [vmem:[%s2 + $0x2bc] sm:$0xf]
  %v4037 = vld [vmem:[%s2 + $0x2c0] sm:$0xf]
  %v4038 = vld [vmem:[%s2 + $0x2c4] sm:$0xf]
  %v4039 = vld [vmem:[%s2 + $0x2c8] sm:$0xf]
  %v4040 = vld [vmem:[%s2 + $0x2cc] sm:$0xf]
  %v4041 = vld [vmem:[%s2 + $0x2d0] sm:$0xf]
  %v4042 = vld [vmem:[%s2 + $0x2d4] sm:$0xf]
  %v4043 = vld [vmem:[%s2 + $0x2d8] sm:$0xf]
  %v4044 = vld [vmem:[%s2 + $0x2dc] sm:$0xf]
  %v4045 = vld [vmem:[%s2 + $0x2e0] sm:$0xf]
  %v4046 = vld [vmem:[%s2 + $0x2e4] sm:$0xf]
  %v4047 = vld [vmem:[%s2 + $0x2e8] sm:$0xf]
  %v4048 = vld [vmem:[%s2 + $0x2ec] sm:$0xf]
  %v4049 = vld [vmem:[%s2 + $0x2f0] sm:$0xf]
  %v4050 = vld [vmem:[%s2 + $0x2f4] sm:$0xf]
  %v4051 = vld [vmem:[%s2 + $0x2f8] sm:$0xf]
  %v4052 = vld [vmem:[%s2 + $0x2fc] sm:$0xf]
  %v4053 = vld [vmem:[%s2 + $0x300] sm:$0xf]
  %v4054 = vld [vmem:[%s2 + $0x304] sm:$0xf]
  %v4055 = vld [vmem:[%s2 + $0x308] sm:$0xf]
  %v4056 = vld [vmem:[%s2 + $0x30c] sm:$0xf]
  %v4253 = vunpack.c.l.b16 %v3861
  %v4254 = vunpack.c.l.b16 %v3862
  %v4255 = vunpack.c.l.b16 %v3863
  %v4256 = vunpack.c.l.b16 %v3864
  %v4257 = vunpack.c.l.b16 %v3865
  %v4258 = vunpack.c.l.b16 %v3866
  %v4259 = vunpack.c.l.b16 %v3867
  %v4260 = vunpack.c.l.b16 %v3868
  %v4261 = vunpack.c.l.b16 %v3869
  %v4262 = vunpack.c.l.b16 %v3870
  %v4263 = vunpack.c.l.b16 %v3871
  %v4264 = vunpack.c.l.b16 %v3872
  %v4265 = vunpack.c.l.b16 %v3873
  %v4266 = vunpack.c.l.b16 %v3874
  %v4267 = vunpack.c.l.b16 %v3875
  %v4268 = vunpack.c.l.b16 %v3876
  %v4269 = vunpack.c.l.b16 %v3877
  %v4270 = vunpack.c.l.b16 %v3878
  %v4271 = vunpack.c.l.b16 %v3879
  %v4272 = vunpack.c.l.b16 %v3880
  %v4273 = vunpack.c.l.b16 %v3881
  %v4274 = vunpack.c.l.b16 %v3882
  %v4275 = vunpack.c.l.b16 %v3883
  %v4276 = vunpack.c.l.b16 %v3884
  %v4277 = vunpack.c.l.b16 %v3885
  %v4278 = vunpack.c.l.b16 %v3886
  %v4279 = vunpack.c.l.b16 %v3887
  %v4280 = vunpack.c.l.b16 %v3888
  %v4281 = vunpack.c.l.b16 %v3889
  %v4282 = vunpack.c.l.b16 %v3890
  %v4283 = vunpack.c.l.b16 %v3891
  %v4284 = vunpack.c.l.b16 %v3892
  %v4285 = vunpack.c.l.b16 %v3893
  %v4286 = vunpack.c.l.b16 %v3894
  %v4287 = vunpack.c.l.b16 %v3895
  %v4288 = vunpack.c.l.b16 %v3896
  %v4289 = vunpack.c.l.b16 %v3897
  %v4290 = vunpack.c.l.b16 %v3898
  %v4291 = vunpack.c.l.b16 %v3899
  %v4292 = vunpack.c.l.b16 %v3900
  %v4293 = vunpack.c.l.b16 %v3901
  %v4294 = vunpack.c.l.b16 %v3902
  %v4295 = vunpack.c.l.b16 %v3903
  %v4296 = vunpack.c.l.b16 %v3904
  %v4297 = vunpack.c.l.b16 %v3905
  %v4298 = vunpack.c.l.b16 %v3906
  %v4299 = vunpack.c.l.b16 %v3907
  %v4300 = vunpack.c.l.b16 %v3908
  %v4301 = vunpack.c.l.b16 %v3909
  %v4302 = vunpack.c.l.b16 %v3910
  %v4303 = vunpack.c.l.b16 %v3911
  %v4304 = vunpack.c.l.b16 %v3912
  %v4305 = vunpack.c.l.b16 %v3913
  %v4306 = vunpack.c.l.b16 %v3914
  %v4307 = vunpack.c.l.b16 %v3915
  %v4308 = vunpack.c.l.b16 %v3916
  %v4309 = vunpack.c.l.b16 %v3917
  %v4310 = vunpack.c.l.b16 %v3918
  %v4311 = vunpack.c.l.b16 %v3919
  %v4312 = vunpack.c.l.b16 %v3920
  %v4313 = vunpack.c.l.b16 %v3921
  %v4314 = vunpack.c.l.b16 %v3922
  %v4315 = vunpack.c.l.b16 %v3923
  %v4316 = vunpack.c.l.b16 %v3924
  %v4317 = vunpack.c.l.b16 %v3925
  %v4318 = vunpack.c.l.b16 %v3926
  %v4319 = vunpack.c.l.b16 %v3927
  %v4320 = vunpack.c.l.b16 %v3928
  %v4321 = vunpack.c.l.b16 %v3929
  %v4322 = vunpack.c.l.b16 %v3930
  %v4323 = vunpack.c.l.b16 %v3931
  %v4324 = vunpack.c.l.b16 %v3932
  %v4325 = vunpack.c.l.b16 %v3933
  %v4326 = vunpack.c.l.b16 %v3934
  %v4327 = vunpack.c.l.b16 %v3935
  %v4328 = vunpack.c.l.b16 %v3936
  %v4329 = vunpack.c.l.b16 %v3937
  %v4330 = vunpack.c.l.b16 %v3938
  %v4331 = vunpack.c.l.b16 %v3939
  %v4332 = vunpack.c.l.b16 %v3940
  %v4333 = vunpack.c.l.b16 %v3941
  %v4334 = vunpack.c.l.b16 %v3942
  %v4335 = vunpack.c.l.b16 %v3943
  %v4336 = vunpack.c.l.b16 %v3944
  %v4337 = vunpack.c.l.b16 %v3945
  %v4338 = vunpack.c.l.b16 %v3946
  %v4339 = vunpack.c.l.b16 %v3947
  %v4340 = vunpack.c.l.b16 %v3948
  %v4341 = vunpack.c.l.b16 %v3949
  %v4342 = vunpack.c.l.b16 %v3950
  %v4343 = vunpack.c.l.b16 %v3951
  %v4344 = vunpack.c.l.b16 %v3952
  %v4345 = vunpack.c.l.b16 %v3953
  %v4346 = vunpack.c.l.b16 %v3954
  %v4347 = vunpack.c.l.b16 %v3955
  %v4348 = vunpack.c.l.b16 %v3956
  %v4349 = vunpack.c.l.b16 %v3957
  %v4350 = vunpack.c.l.b16 %v3958
  %v4351 = vunpack.c.l.b16 %v3959
  %v4352 = vunpack.c.l.b16 %v3960
  %v4353 = vunpack.c.l.b16 %v3961
  %v4354 = vunpack.c.l.b16 %v3962
  %v4355 = vunpack.c.l.b16 %v3963
  %v4356 = vunpack.c.l.b16 %v3964
  %v4357 = vunpack.c.l.b16 %v3965
  %v4358 = vunpack.c.l.b16 %v3966
  %v4359 = vunpack.c.l.b16 %v3967
  %v4360 = vunpack.c.l.b16 %v3968
  %v4361 = vunpack.c.l.b16 %v3969
  %v4362 = vunpack.c.l.b16 %v3970
  %v4363 = vunpack.c.l.b16 %v3971
  %v4364 = vunpack.c.l.b16 %v3972
  %v4365 = vunpack.c.l.b16 %v3973
  %v4366 = vunpack.c.l.b16 %v3974
  %v4367 = vunpack.c.l.b16 %v3975
  %v4368 = vunpack.c.l.b16 %v3976
  %v4369 = vunpack.c.l.b16 %v3977
  %v4370 = vunpack.c.l.b16 %v3978
  %v4371 = vunpack.c.l.b16 %v3979
  %v4372 = vunpack.c.l.b16 %v3980
  %v4373 = vunpack.c.l.b16 %v3981
  %v4374 = vunpack.c.l.b16 %v3982
  %v4375 = vunpack.c.l.b16 %v3983
  %v4376 = vunpack.c.l.b16 %v3984
  %v4377 = vunpack.c.l.b16 %v3985
  %v4378 = vunpack.c.l.b16 %v3986
  %v4379 = vunpack.c.l.b16 %v3987
  %v4380 = vunpack.c.l.b16 %v3988
  %v4381 = vunpack.c.l.b16 %v3989
  %v4382 = vunpack.c.l.b16 %v3990
  %v4383 = vunpack.c.l.b16 %v3991
  %v4384 = vunpack.c.l.b16 %v3992
  %v4385 = vunpack.c.l.b16 %v3993
  %v4386 = vunpack.c.l.b16 %v3994
  %v4387 = vunpack.c.l.b16 %v3995
  %v4388 = vunpack.c.l.b16 %v3996
  %v4389 = vunpack.c.l.b16 %v3997
  %v4390 = vunpack.c.l.b16 %v3998
  %v4391 = vunpack.c.l.b16 %v3999
  %v4392 = vunpack.c.l.b16 %v4000
  %v4393 = vunpack.c.l.b16 %v4001
  %v4394 = vunpack.c.l.b16 %v4002
  %v4395 = vunpack.c.l.b16 %v4003
  %v4396 = vunpack.c.l.b16 %v4004
  %v4397 = vunpack.c.l.b16 %v4005
  %v4398 = vunpack.c.l.b16 %v4006
  %v4399 = vunpack.c.l.b16 %v4007
  %v4400 = vunpack.c.l.b16 %v4008
  %v4401 = vunpack.c.l.b16 %v4009
  %v4402 = vunpack.c.l.b16 %v4010
  %v4403 = vunpack.c.l.b16 %v4011
  %v4404 = vunpack.c.l.b16 %v4012
  %v4405 = vunpack.c.l.b16 %v4013
  %v4406 = vunpack.c.l.b16 %v4014
  %v4407 = vunpack.c.l.b16 %v4015
  %v4408 = vunpack.c.l.b16 %v4016
  %v4409 = vunpack.c.l.b16 %v4017
  %v4410 = vunpack.c.l.b16 %v4018
  %v4411 = vunpack.c.l.b16 %v4019
  %v4412 = vunpack.c.l.b16 %v4020
  %v4413 = vunpack.c.l.b16 %v4021
  %v4414 = vunpack.c.l.b16 %v4022
  %v4415 = vunpack.c.l.b16 %v4023
  %v4416 = vunpack.c.l.b16 %v4024
  %v4417 = vunpack.c.l.b16 %v4025
  %v4418 = vunpack.c.l.b16 %v4026
  %v4419 = vunpack.c.l.b16 %v4027
  %v4420 = vunpack.c.l.b16 %v4028
  %v4421 = vunpack.c.l.b16 %v4029
  %v4422 = vunpack.c.l.b16 %v4030
  %v4423 = vunpack.c.l.b16 %v4031
  %v4424 = vunpack.c.l.b16 %v4032
  %v4425 = vunpack.c.l.b16 %v4033
  %v4426 = vunpack.c.l.b16 %v4034
  %v4427 = vunpack.c.l.b16 %v4035
  %v4428 = vunpack.c.l.b16 %v4036
  %v4429 = vunpack.c.l.b16 %v4037
  %v4430 = vunpack.c.l.b16 %v4038
  %v4431 = vunpack.c.l.b16 %v4039
  %v4432 = vunpack.c.l.b16 %v4040
  %v4433 = vunpack.c.l.b16 %v4041
  %v4434 = vunpack.c.l.b16 %v4042
  %v4435 = vunpack.c.l.b16 %v4043
  %v4436 = vunpack.c.l.b16 %v4044
  %v4437 = vunpack.c.l.b16 %v4045
  %v4438 = vunpack.c.l.b16 %v4046
  %v4439 = vunpack.c.l.b16 %v4047
  %v4440 = vunpack.c.l.b16 %v4048
  %v4441 = vunpack.c.l.b16 %v4049
  %v4442 = vunpack.c.l.b16 %v4050
  %v4443 = vunpack.c.l.b16 %v4051
  %v4444 = vunpack.c.l.b16 %v4052
  %v4445 = vunpack.c.l.b16 %v4053
  %v4446 = vunpack.c.l.b16 %v4054
  %v4447 = vunpack.c.l.b16 %v4055
  %v4448 = vunpack.c.l.b16 %v4056
  %v4449 = vpack.c.b16 %v4254, %v4253
  %v4450 = vpack.c.b16 %v4256, %v4255
  %v4451 = vpack.c.b16 %v4258, %v4257
  %v4452 = vpack.c.b16 %v4260, %v4259
  %v4453 = vpack.c.b16 %v4262, %v4261
  %v4454 = vpack.c.b16 %v4264, %v4263
  %v4455 = vpack.c.b16 %v4266, %v4265
  %v4456 = vpack.c.b16 %v4268, %v4267
  %v4457 = vpack.c.b16 %v4270, %v4269
  %v4458 = vpack.c.b16 %v4272, %v4271
  %v4459 = vpack.c.b16 %v4274, %v4273
  %v4460 = vpack.c.b16 %v4276, %v4275
  %v4461 = vpack.c.b16 %v4278, %v4277
  %v4462 = vpack.c.b16 %v4280, %v4279
  %v4463 = vpack.c.b16 %v4282, %v4281
  %v4464 = vpack.c.b16 %v4284, %v4283
  %v4465 = vpack.c.b16 %v4286, %v4285
  %v4466 = vpack.c.b16 %v4288, %v4287
  %v4467 = vpack.c.b16 %v4290, %v4289
  %v4468 = vpack.c.b16 %v4292, %v4291
  %v4469 = vpack.c.b16 %v4294, %v4293
  %v4470 = vpack.c.b16 %v4296, %v4295
  %v4471 = vpack.c.b16 %v4298, %v4297
  %v4472 = vpack.c.b16 %v4300, %v4299
  %v4473 = vpack.c.b16 %v4302, %v4301
  %v4474 = vpack.c.b16 %v4304, %v4303
  %v4475 = vpack.c.b16 %v4306, %v4305
  %v4476 = vpack.c.b16 %v4308, %v4307
  %v4477 = vpack.c.b16 %v4310, %v4309
  %v4478 = vpack.c.b16 %v4312, %v4311
  %v4479 = vpack.c.b16 %v4314, %v4313
  %v4480 = vpack.c.b16 %v4316, %v4315
  %v4481 = vpack.c.b16 %v4318, %v4317
  %v4482 = vpack.c.b16 %v4320, %v4319
  %v4483 = vpack.c.b16 %v4322, %v4321
  %v4484 = vpack.c.b16 %v4324, %v4323
  %v4485 = vpack.c.b16 %v4326, %v4325
  %v4486 = vpack.c.b16 %v4328, %v4327
  %v4487 = vpack.c.b16 %v4330, %v4329
  %v4488 = vpack.c.b16 %v4332, %v4331
  %v4489 = vpack.c.b16 %v4334, %v4333
  %v4490 = vpack.c.b16 %v4336, %v4335
  %v4491 = vpack.c.b16 %v4338, %v4337
  %v4492 = vpack.c.b16 %v4340, %v4339
  %v4493 = vpack.c.b16 %v4342, %v4341
  %v4494 = vpack.c.b16 %v4344, %v4343
  %v4495 = vpack.c.b16 %v4346, %v4345
  %v4496 = vpack.c.b16 %v4348, %v4347
  %v4497 = vpack.c.b16 %v4350, %v4349
  %v4498 = vpack.c.b16 %v4352, %v4351
  %v4499 = vpack.c.b16 %v4354, %v4353
  %v4500 = vpack.c.b16 %v4356, %v4355
  %v4501 = vpack.c.b16 %v4358, %v4357
  %v4502 = vpack.c.b16 %v4360, %v4359
  %v4503 = vpack.c.b16 %v4362, %v4361
  %v4504 = vpack.c.b16 %v4364, %v4363
  %v4505 = vpack.c.b16 %v4366, %v4365
  %v4506 = vpack.c.b16 %v4368, %v4367
  %v4507 = vpack.c.b16 %v4370, %v4369
  %v4508 = vpack.c.b16 %v4372, %v4371
  %v4509 = vpack.c.b16 %v4374, %v4373
  %v4510 = vpack.c.b16 %v4376, %v4375
  %v4511 = vpack.c.b16 %v4378, %v4377
  %v4512 = vpack.c.b16 %v4380, %v4379
  %v4513 = vpack.c.b16 %v4382, %v4381
  %v4514 = vpack.c.b16 %v4384, %v4383
  %v4515 = vpack.c.b16 %v4386, %v4385
  %v4516 = vpack.c.b16 %v4388, %v4387
  %v4517 = vpack.c.b16 %v4390, %v4389
  %v4518 = vpack.c.b16 %v4392, %v4391
  %v4519 = vpack.c.b16 %v4394, %v4393
  %v4520 = vpack.c.b16 %v4396, %v4395
  %v4521 = vpack.c.b16 %v4398, %v4397
  %v4522 = vpack.c.b16 %v4400, %v4399
  %v4523 = vpack.c.b16 %v4402, %v4401
  %v4524 = vpack.c.b16 %v4404, %v4403
  %v4525 = vpack.c.b16 %v4406, %v4405
  %v4526 = vpack.c.b16 %v4408, %v4407
  %v4527 = vpack.c.b16 %v4410, %v4409
  %v4528 = vpack.c.b16 %v4412, %v4411
  %v4529 = vpack.c.b16 %v4414, %v4413
  %v4530 = vpack.c.b16 %v4416, %v4415
  %v4531 = vpack.c.b16 %v4418, %v4417
  %v4532 = vpack.c.b16 %v4420, %v4419
  %v4533 = vpack.c.b16 %v4422, %v4421
  %v4534 = vpack.c.b16 %v4424, %v4423
  %v4535 = vpack.c.b16 %v4426, %v4425
  %v4536 = vpack.c.b16 %v4428, %v4427
  %v4537 = vpack.c.b16 %v4430, %v4429
  %v4538 = vpack.c.b16 %v4432, %v4431
  %v4539 = vpack.c.b16 %v4434, %v4433
  %v4540 = vpack.c.b16 %v4436, %v4435
  %v4541 = vpack.c.b16 %v4438, %v4437
  %v4542 = vpack.c.b16 %v4440, %v4439
  %v4543 = vpack.c.b16 %v4442, %v4441
  %v4544 = vpack.c.b16 %v4444, %v4443
  %v4545 = vpack.c.b16 %v4446, %v4445
  %v4546 = vpack.c.b16 %v4448, %v4447
  %v4548 = vsel %vm749, %v4449, 0
  %v4551 = vsel %vm749, %v4450, 0
  %v4554 = vsel %vm749, %v4451, 0
  %v4557 = vsel %vm749, %v4452, 0
  %v4560 = vsel %vm749, %v4453, 0
  %v4563 = vsel %vm749, %v4454, 0
  %v4566 = vsel %vm749, %v4455, 0
  %v4569 = vsel %vm749, %v4456, 0
  %v4572 = vsel %vm749, %v4457, 0
  %v4575 = vsel %vm749, %v4458, 0
  %v4578 = vsel %vm749, %v4459, 0
  %v4581 = vsel %vm749, %v4460, 0
  %v4584 = vsel %vm749, %v4461, 0
  %v4587 = vsel %vm749, %v4462, 0
  %v4590 = vsel %vm749, %v4463, 0
  %v4593 = vsel %vm749, %v4464, 0
  %v4596 = vsel %vm749, %v4465, 0
  %v4599 = vsel %vm749, %v4466, 0
  %v4602 = vsel %vm749, %v4467, 0
  %v4605 = vsel %vm749, %v4468, 0
  %v4608 = vsel %vm749, %v4469, 0
  %v4611 = vsel %vm749, %v4470, 0
  %v4614 = vsel %vm749, %v4471, 0
  %v4617 = vsel %vm749, %v4472, 0
  %v4620 = vsel %vm749, %v4473, 0
  %v4623 = vsel %vm749, %v4474, 0
  %v4626 = vsel %vm749, %v4475, 0
  %v4629 = vsel %vm749, %v4476, 0
  %v4632 = vsel %vm749, %v4477, 0
  %v4635 = vsel %vm749, %v4478, 0
  %v4638 = vsel %vm749, %v4479, 0
  %v4641 = vsel %vm749, %v4480, 0
  %v4644 = vsel %vm749, %v4481, 0
  %v4647 = vsel %vm749, %v4482, 0
  %v4650 = vsel %vm749, %v4483, 0
  %v4653 = vsel %vm749, %v4484, 0
  %v4656 = vsel %vm749, %v4485, 0
  %v4659 = vsel %vm749, %v4486, 0
  %v4662 = vsel %vm749, %v4487, 0
  %v4665 = vsel %vm749, %v4488, 0
  %v4668 = vsel %vm749, %v4489, 0
  %v4671 = vsel %vm749, %v4490, 0
  %v4674 = vsel %vm749, %v4491, 0
  %v4677 = vsel %vm749, %v4492, 0
  %v4680 = vsel %vm749, %v4493, 0
  %v4683 = vsel %vm749, %v4494, 0
  %v4686 = vsel %vm749, %v4495, 0
  %v4689 = vsel %vm749, %v4496, 0
  %v4692 = vsel %vm749, %v4497, 0
  %v4695 = vsel %vm749, %v4498, 0
  %v4698 = vsel %vm749, %v4499, 0
  %v4701 = vsel %vm749, %v4500, 0
  %v4704 = vsel %vm749, %v4501, 0
  %v4707 = vsel %vm749, %v4502, 0
  %v4710 = vsel %vm749, %v4503, 0
  %v4713 = vsel %vm749, %v4504, 0
  %v4716 = vsel %vm749, %v4505, 0
  %v4719 = vsel %vm749, %v4506, 0
  %v4722 = vsel %vm749, %v4507, 0
  %v4725 = vsel %vm749, %v4508, 0
  %v4728 = vsel %vm749, %v4509, 0
  %v4731 = vsel %vm749, %v4510, 0
  %v4734 = vsel %vm749, %v4511, 0
  %v4737 = vsel %vm749, %v4512, 0
  %v4740 = vsel %vm749, %v4513, 0
  %v4743 = vsel %vm749, %v4514, 0
  %v4746 = vsel %vm749, %v4515, 0
  %v4749 = vsel %vm749, %v4516, 0
  %v4752 = vsel %vm749, %v4517, 0
  %v4755 = vsel %vm749, %v4518, 0
  %v4758 = vsel %vm749, %v4519, 0
  %v4761 = vsel %vm749, %v4520, 0
  %v4764 = vsel %vm749, %v4521, 0
  %v4767 = vsel %vm749, %v4522, 0
  %v4770 = vsel %vm749, %v4523, 0
  %v4773 = vsel %vm749, %v4524, 0
  %v4776 = vsel %vm749, %v4525, 0
  %v4779 = vsel %vm749, %v4526, 0
  %v4782 = vsel %vm749, %v4527, 0
  %v4785 = vsel %vm749, %v4528, 0
  %v4788 = vsel %vm749, %v4529, 0
  %v4791 = vsel %vm749, %v4530, 0
  %v4794 = vsel %vm749, %v4531, 0
  %v4797 = vsel %vm749, %v4532, 0
  %v4800 = vsel %vm749, %v4533, 0
  %v4803 = vsel %vm749, %v4534, 0
  %v4806 = vsel %vm749, %v4535, 0
  %v4809 = vsel %vm749, %v4536, 0
  %v4812 = vsel %vm749, %v4537, 0
  %v4815 = vsel %vm749, %v4538, 0
  %v4818 = vsel %vm749, %v4539, 0
  %v4821 = vsel %vm749, %v4540, 0
  %v4824 = vsel %vm749, %v4541, 0
  %v4827 = vsel %vm749, %v4542, 0
  %v4830 = vsel %vm749, %v4543, 0
  %v4833 = vsel %vm749, %v4544, 0
  %v4836 = vsel %vm749, %v4545, 0
  %v4839 = vsel %vm749, %v4546, 0
  %4841 = vmatprep.subr.bf16.mxu0 0
  %4842 = vmatpush1.bf16.msra.mxu0 %v740
  %4843 = vmatprep.subr.bf16.mxu0 0
  %4844 = vmatpush1.bf16.msra.mxu0 %v741
  %4845 = vmatprep.subr.bf16.mxu0 0
  %4846 = vmatpush1.bf16.msra.mxu0 %v742
  %4847 = vmatprep.subr.bf16.mxu0 0
  %4848 = vmatpush1.bf16.msra.mxu0 %v743
  %4849 = vmatprep.subr.bf16.mxu0 0
  %4850 = vmatpush1.bf16.msra.mxu0 %v1049
  %4851 = vmatprep.subr.bf16.mxu0 0
  %4852 = vmatpush1.bf16.msra.mxu0 0
  %4853 = vmatprep.subr.bf16.mxu0 0
  %4854 = vmatpush1.bf16.msra.mxu0 0
  %4855 = vmatprep.subr.bf16.mxu0 0
  %4856 = vmatpush1.bf16.msra.mxu0 0
  %4857 = vmatprep.subr.bf16.mxu0 0
  %4858 = vmatpush1.bf16.msra.mxu0 0
  %4859 = vmatprep.subr.bf16.mxu0 0
  %4860 = vmatpush1.bf16.msra.mxu0 0
  %4861 = vmatprep.subr.bf16.mxu0 0
  %4862 = vmatpush1.bf16.msra.mxu0 0
  %4863 = vmatprep.subr.bf16.mxu0 0
  %4864 = vmatpush1.bf16.msra.mxu0 0
  %4865 = vmatprep.subr.bf16.mxu0 0
  %4866 = vmatpush1.bf16.msra.mxu0 0
  %4867 = vmatprep.subr.bf16.mxu0 0
  %4868 = vmatpush1.bf16.msra.mxu0 0
  %4869 = vmatprep.subr.bf16.mxu0 0
  %4870 = vmatpush1.bf16.msra.mxu0 0
  %4871 = vmatprep.subr.bf16.mxu0 0
  %4872 = vmatpush1.bf16.msra.mxu0 0
  %4873 = vmatprep.mubr.bf16.mxu0 0
  %4874 = vmatmul.mubr.bf16.gmra.mrb[0].mxu0 %v4548
  %v4875 = vpop.f32.mrb[0].mxu0
  %v4876 = vadd.f32 0.0, %v4875
  %v4877 = vpop.f32.mrb[0].mxu0
  %v4878 = vpop.f32.mrb[0].mxu0
  %v4879 = vadd.f32 0.0, %v4878
  %v4880 = vpop.f32.mrb[0].mxu0
  %4881 = vmatprep.mubr.bf16.mxu0 0
  %4882 = vmatmul.mubr.bf16.gmra.mrb[0].mxu0 %v4551
  %v4883 = vpop.f32.mrb[0].mxu0
  %v4884 = vadd.f32 0.0, %v4883
  %v4885 = vpop.f32.mrb[0].mxu0
  %v4886 = vpop.f32.mrb[0].mxu0
  %v4887 = vadd.f32 0.0, %v4886
  %v4888 = vpop.f32.mrb[0].mxu0
  %4889 = vmatprep.mubr.bf16.mxu0 0
  %4890 = vmatmul.mubr.bf16.gmra.mrb[0].mxu0 %v4554
  %v4891 = vpop.f32.mrb[0].mxu0
  %v4892 = vadd.f32 0.0, %v4891
  %v4893 = vpop.f32.mrb[0].mxu0
  %v4894 = vpop.f32.mrb[0].mxu0
  %v4895 = vadd.f32 0.0, %v4894
  %v4896 = vpop.f32.mrb[0].mxu0
  %4897 = vmatprep.mubr.bf16.mxu0 0
  %4898 = vmatmul.mubr.bf16.gmra.mrb[0].mxu0 %v4557
  %v4899 = vpop.f32.mrb[0].mxu0
  %v4900 = vadd.f32 0.0, %v4899
  %v4901 = vpop.f32.mrb[0].mxu0
  %v4902 = vpop.f32.mrb[0].mxu0
  %v4903 = vadd.f32 0.0, %v4902
  %v4904 = vpop.f32.mrb[0].mxu0
  %4905 = vmatprep.mubr.bf16.mxu0 0
  %4906 = vmatmul.mubr.bf16.gmra.mrb[0].mxu0 %v4560
  %v4907 = vpop.f32.mrb[0].mxu0
  %v4908 = vadd.f32 0.0, %v4907
  %v4909 = vpop.f32.mrb[0].mxu0
  %v4910 = vpop.f32.mrb[0].mxu0
  %v4911 = vadd.f32 0.0, %v4910
  %v4912 = vpop.f32.mrb[0].mxu0
  %4913 = vmatprep.mubr.bf16.mxu0 0
  %4914 = vmatmul.mubr.bf16.gmra.mrb[0].mxu0 %v4563
  %v4915 = vpop.f32.mrb[0].mxu0
  %v4916 = vadd.f32 0.0, %v4915
  %v4917 = vpop.f32.mrb[0].mxu0
  %v4918 = vpop.f32.mrb[0].mxu0
  %v4919 = vadd.f32 0.0, %v4918
  %v4920 = vpop.f32.mrb[0].mxu0
  %4921 = vmatprep.mubr.bf16.mxu0 0
  %4922 = vmatmul.mubr.bf16.gmra.mrb[0].mxu0 %v4566
  %v4923 = vpop.f32.mrb[0].mxu0
  %v4924 = vadd.f32 0.0, %v4923
  %v4925 = vpop.f32.mrb[0].mxu0
  %v4926 = vpop.f32.mrb[0].mxu0
  %v4927 = vadd.f32 0.0, %v4926
  %v4928 = vpop.f32.mrb[0].mxu0
  %4929 = vmatprep.mubr.bf16.mxu0 0
  %4930 = vmatmul.mubr.bf16.gmra.mrb[0].mxu0 %v4569
  %v4931 = vpop.f32.mrb[0].mxu0
  %v4932 = vadd.f32 0.0, %v4931
  %v4933 = vpop.f32.mrb[0].mxu0
  %v4934 = vpop.f32.mrb[0].mxu0
  %v4935 = vadd.f32 0.0, %v4934
  %v4936 = vpop.f32.mrb[0].mxu0
  %4937 = vmatprep.mubr.bf16.mxu0 0
  %4938 = vmatmul.mubr.bf16.gmra.mrb[0].mxu0 %v4572
  %v4939 = vpop.f32.mrb[0].mxu0
  %v4940 = vadd.f32 0.0, %v4939
  %v4941 = vpop.f32.mrb[0].mxu0
  %v4942 = vpop.f32.mrb[0].mxu0
  %v4943 = vadd.f32 0.0, %v4942
  %v4944 = vpop.f32.mrb[0].mxu0
  %4945 = vmatprep.mubr.bf16.mxu0 0
  %4946 = vmatmul.mubr.bf16.gmra.mrb[0].mxu0 %v4575
  %v4947 = vpop.f32.mrb[0].mxu0
  %v4948 = vadd.f32 0.0, %v4947
  %v4949 = vpop.f32.mrb[0].mxu0
  %v4950 = vpop.f32.mrb[0].mxu0
  %v4951 = vadd.f32 0.0, %v4950
  %v4952 = vpop.f32.mrb[0].mxu0
  %4953 = vmatprep.mubr.bf16.mxu0 0
  %4954 = vmatmul.mubr.bf16.gmra.mrb[0].mxu0 %v4578
  %v4955 = vpop.f32.mrb[0].mxu0
  %v4956 = vadd.f32 0.0, %v4955
  %v4957 = vpop.f32.mrb[0].mxu0
  %v4958 = vpop.f32.mrb[0].mxu0
  %v4959 = vadd.f32 0.0, %v4958
  %v4960 = vpop.f32.mrb[0].mxu0
  %4961 = vmatprep.mubr.bf16.mxu0 0
  %4962 = vmatmul.mubr.bf16.gmra.mrb[0].mxu0 %v4581
  %v4963 = vpop.f32.mrb[0].mxu0
  %v4964 = vadd.f32 0.0, %v4963
  %v4965 = vpop.f32.mrb[0].mxu0
  %v4966 = vpop.f32.mrb[0].mxu0
  %v4967 = vadd.f32 0.0, %v4966
  %v4968 = vpop.f32.mrb[0].mxu0
  %4969 = vmatprep.mubr.bf16.mxu0 0
  %4970 = vmatmul.mubr.bf16.gmra.mrb[0].mxu0 %v4584
  %v4971 = vpop.f32.mrb[0].mxu0
  %v4972 = vadd.f32 0.0, %v4971
  %v4973 = vpop.f32.mrb[0].mxu0
  %v4974 = vpop.f32.mrb[0].mxu0
  %v4975 = vadd.f32 0.0, %v4974
  %v4976 = vpop.f32.mrb[0].mxu0
  %4977 = vmatprep.mubr.bf16.mxu0 0
  %4978 = vmatmul.mubr.bf16.gmra.mrb[0].mxu0 %v4587
  %v4979 = vpop.f32.mrb[0].mxu0
  %v4980 = vadd.f32 0.0, %v4979
  %v4981 = vpop.f32.mrb[0].mxu0
  %v4982 = vpop.f32.mrb[0].mxu0
  %v4983 = vadd.f32 0.0, %v4982
  %v4984 = vpop.f32.mrb[0].mxu0
  %4985 = vmatprep.mubr.bf16.mxu0 0
  %4986 = vmatmul.mubr.bf16.gmra.mrb[0].mxu0 %v4590
  %v4987 = vpop.f32.mrb[0].mxu0
  %v4988 = vadd.f32 0.0, %v4987
  %v4989 = vpop.f32.mrb[0].mxu0
  %v4990 = vpop.f32.mrb[0].mxu0
  %v4991 = vadd.f32 0.0, %v4990
  %v4992 = vpop.f32.mrb[0].mxu0
  %4993 = vmatprep.mubr.bf16.mxu0 0
  %4994 = vmatmul.mubr.bf16.gmra.mrb[0].mxu0 %v4593
  %v4995 = vpop.f32.mrb[0].mxu0
  %v4996 = vadd.f32 0.0, %v4995
  %v4997 = vpop.f32.mrb[0].mxu0
  %v4998 = vpop.f32.mrb[0].mxu0
  %v4999 = vadd.f32 0.0, %v4998
  %v5000 = vpop.f32.mrb[0].mxu0
  %5001 = vmatprep.mubr.bf16.mxu0 0
  %5002 = vmatmul.mubr.bf16.gmra.mrb[0].mxu0 %v4596
  %v5003 = vpop.f32.mrb[0].mxu0
  %v5004 = vadd.f32 0.0, %v5003
  %v5005 = vpop.f32.mrb[0].mxu0
  %v5006 = vpop.f32.mrb[0].mxu0
  %v5007 = vadd.f32 0.0, %v5006
  %v5008 = vpop.f32.mrb[0].mxu0
  %5009 = vmatprep.mubr.bf16.mxu0 0
  %5010 = vmatmul.mubr.bf16.gmra.mrb[0].mxu0 %v4599
  %v5011 = vpop.f32.mrb[0].mxu0
  %v5012 = vadd.f32 0.0, %v5011
  %v5013 = vpop.f32.mrb[0].mxu0
  %v5014 = vpop.f32.mrb[0].mxu0
  %v5015 = vadd.f32 0.0, %v5014
  %v5016 = vpop.f32.mrb[0].mxu0
  %5017 = vmatprep.mubr.bf16.mxu0 0
  %5018 = vmatmul.mubr.bf16.gmra.mrb[0].mxu0 %v4602
  %v5019 = vpop.f32.mrb[0].mxu0
  %v5020 = vadd.f32 0.0, %v5019
  %v5021 = vpop.f32.mrb[0].mxu0
  %v5022 = vpop.f32.mrb[0].mxu0
  %v5023 = vadd.f32 0.0, %v5022
  %v5024 = vpop.f32.mrb[0].mxu0
  %5025 = vmatprep.mubr.bf16.mxu0 0
  %5026 = vmatmul.mubr.bf16.gmra.mrb[0].mxu0 %v4605
  %v5027 = vpop.f32.mrb[0].mxu0
  %v5028 = vadd.f32 0.0, %v5027
  %v5029 = vpop.f32.mrb[0].mxu0
  %v5030 = vpop.f32.mrb[0].mxu0
  %v5031 = vadd.f32 0.0, %v5030
  %v5032 = vpop.f32.mrb[0].mxu0
  %5033 = vmatprep.mubr.bf16.mxu0 0
  %5034 = vmatmul.mubr.bf16.gmra.mrb[0].mxu0 %v4608
  %v5035 = vpop.f32.mrb[0].mxu0
  %v5036 = vadd.f32 0.0, %v5035
  %v5037 = vpop.f32.mrb[0].mxu0
  %v5038 = vpop.f32.mrb[0].mxu0
  %v5039 = vadd.f32 0.0, %v5038
  %v5040 = vpop.f32.mrb[0].mxu0
  %5041 = vmatprep.mubr.bf16.mxu0 0
  %5042 = vmatmul.mubr.bf16.gmra.mrb[0].mxu0 %v4611
  %v5043 = vpop.f32.mrb[0].mxu0
  %v5044 = vadd.f32 0.0, %v5043
  %v5045 = vpop.f32.mrb[0].mxu0
  %v5046 = vpop.f32.mrb[0].mxu0
  %v5047 = vadd.f32 0.0, %v5046
  %v5048 = vpop.f32.mrb[0].mxu0
  %5049 = vmatprep.mubr.bf16.mxu0 0
  %5050 = vmatmul.mubr.bf16.gmra.mrb[0].mxu0 %v4614
  %v5051 = vpop.f32.mrb[0].mxu0
  %v5052 = vadd.f32 0.0, %v5051
  %v5053 = vpop.f32.mrb[0].mxu0
  %v5054 = vpop.f32.mrb[0].mxu0
  %v5055 = vadd.f32 0.0, %v5054
  %v5056 = vpop.f32.mrb[0].mxu0
  %5057 = vmatprep.mubr.bf16.mxu0 0
  %5058 = vmatmul.mubr.bf16.gmra.mrb[0].mxu0 %v4617
  %v5059 = vpop.f32.mrb[0].mxu0
  %v5060 = vadd.f32 0.0, %v5059
  %v5061 = vpop.f32.mrb[0].mxu0
  %v5062 = vpop.f32.mrb[0].mxu0
  %v5063 = vadd.f32 0.0, %v5062
  %v5064 = vpop.f32.mrb[0].mxu0
  %5065 = vmatprep.mubr.bf16.mxu0 0
  %5066 = vmatmul.mubr.bf16.gmra.mrb[0].mxu0 %v4620
  %v5067 = vpop.f32.mrb[0].mxu0
  %v5068 = vadd.f32 0.0, %v5067
  %v5069 = vpop.f32.mrb[0].mxu0
  %v5070 = vpop.f32.mrb[0].mxu0
  %v5071 = vadd.f32 0.0, %v5070
  %v5072 = vpop.f32.mrb[0].mxu0
  %5073 = vmatprep.mubr.bf16.mxu0 0
  %5074 = vmatmul.mubr.bf16.gmra.mrb[0].mxu0 %v4623
  %v5075 = vpop.f32.mrb[0].mxu0
  %v5076 = vadd.f32 0.0, %v5075
  %v5077 = vpop.f32.mrb[0].mxu0
  %v5078 = vpop.f32.mrb[0].mxu0
  %v5079 = vadd.f32 0.0, %v5078
  %v5080 = vpop.f32.mrb[0].mxu0
  %5081 = vmatprep.mubr.bf16.mxu0 0
  %5082 = vmatmul.mubr.bf16.gmra.mrb[0].mxu0 %v4626
  %v5083 = vpop.f32.mrb[0].mxu0
  %v5084 = vadd.f32 0.0, %v5083
  %v5085 = vpop.f32.mrb[0].mxu0
  %v5086 = vpop.f32.mrb[0].mxu0
  %v5087 = vadd.f32 0.0, %v5086
  %v5088 = vpop.f32.mrb[0].mxu0
  %5089 = vmatprep.mubr.bf16.mxu0 0
  %5090 = vmatmul.mubr.bf16.gmra.mrb[0].mxu0 %v4629
  %v5091 = vpop.f32.mrb[0].mxu0
  %v5092 = vadd.f32 0.0, %v5091
  %v5093 = vpop.f32.mrb[0].mxu0
  %v5094 = vpop.f32.mrb[0].mxu0
  %v5095 = vadd.f32 0.0, %v5094
  %v5096 = vpop.f32.mrb[0].mxu0
  %5097 = vmatprep.mubr.bf16.mxu0 0
  %5098 = vmatmul.mubr.bf16.gmra.mrb[0].mxu0 %v4632
  %v5099 = vpop.f32.mrb[0].mxu0
  %v5100 = vadd.f32 0.0, %v5099
  %v5101 = vpop.f32.mrb[0].mxu0
  %v5102 = vpop.f32.mrb[0].mxu0
  %v5103 = vadd.f32 0.0, %v5102
  %v5104 = vpop.f32.mrb[0].mxu0
  %5105 = vmatprep.mubr.bf16.mxu0 0
  %5106 = vmatmul.mubr.bf16.gmra.mrb[0].mxu0 %v4635
  %v5107 = vpop.f32.mrb[0].mxu0
  %v5108 = vadd.f32 0.0, %v5107
  %v5109 = vpop.f32.mrb[0].mxu0
  %v5110 = vpop.f32.mrb[0].mxu0
  %v5111 = vadd.f32 0.0, %v5110
  %v5112 = vpop.f32.mrb[0].mxu0
  %5113 = vmatprep.mubr.bf16.mxu0 0
  %5114 = vmatmul.mubr.bf16.gmra.mrb[0].mxu0 %v4638
  %v5115 = vpop.f32.mrb[0].mxu0
  %v5116 = vadd.f32 0.0, %v5115
  %v5117 = vpop.f32.mrb[0].mxu0
  %v5118 = vpop.f32.mrb[0].mxu0
  %v5119 = vadd.f32 0.0, %v5118
  %v5120 = vpop.f32.mrb[0].mxu0
  %5121 = vmatprep.mubr.bf16.mxu0 0
  %5122 = vmatmul.mubr.bf16.gmra.mrb[0].mxu0 %v4641
  %v5123 = vpop.f32.mrb[0].mxu0
  %v5124 = vadd.f32 0.0, %v5123
  %v5125 = vpop.f32.mrb[0].mxu0
  %v5126 = vpop.f32.mrb[0].mxu0
  %v5127 = vadd.f32 0.0, %v5126
  %v5128 = vpop.f32.mrb[0].mxu0
  %5129 = vmatprep.mubr.bf16.mxu0 0
  %5130 = vmatmul.mubr.bf16.gmra.mrb[0].mxu0 %v4644
  %v5131 = vpop.f32.mrb[0].mxu0
  %v5132 = vadd.f32 0.0, %v5131
  %v5133 = vpop.f32.mrb[0].mxu0
  %v5134 = vpop.f32.mrb[0].mxu0
  %v5135 = vadd.f32 0.0, %v5134
  %v5136 = vpop.f32.mrb[0].mxu0
  %5137 = vmatprep.mubr.bf16.mxu0 0
  %5138 = vmatmul.mubr.bf16.gmra.mrb[0].mxu0 %v4647
  %v5139 = vpop.f32.mrb[0].mxu0
  %v5140 = vadd.f32 0.0, %v5139
  %v5141 = vpop.f32.mrb[0].mxu0
  %v5142 = vpop.f32.mrb[0].mxu0
  %v5143 = vadd.f32 0.0, %v5142
  %v5144 = vpop.f32.mrb[0].mxu0
  %5145 = vmatprep.mubr.bf16.mxu0 0
  %5146 = vmatmul.mubr.bf16.gmra.mrb[0].mxu0 %v4650
  %v5147 = vpop.f32.mrb[0].mxu0
  %v5148 = vadd.f32 0.0, %v5147
  %v5149 = vpop.f32.mrb[0].mxu0
  %v5150 = vpop.f32.mrb[0].mxu0
  %v5151 = vadd.f32 0.0, %v5150
  %v5152 = vpop.f32.mrb[0].mxu0
  %5153 = vmatprep.mubr.bf16.mxu0 0
  %5154 = vmatmul.mubr.bf16.gmra.mrb[0].mxu0 %v4653
  %v5155 = vpop.f32.mrb[0].mxu0
  %v5156 = vadd.f32 0.0, %v5155
  %v5157 = vpop.f32.mrb[0].mxu0
  %v5158 = vpop.f32.mrb[0].mxu0
  %v5159 = vadd.f32 0.0, %v5158
  %v5160 = vpop.f32.mrb[0].mxu0
  %5161 = vmatprep.mubr.bf16.mxu0 0
  %5162 = vmatmul.mubr.bf16.gmra.mrb[0].mxu0 %v4656
  %v5163 = vpop.f32.mrb[0].mxu0
  %v5164 = vadd.f32 0.0, %v5163
  %v5165 = vpop.f32.mrb[0].mxu0
  %v5166 = vpop.f32.mrb[0].mxu0
  %v5167 = vadd.f32 0.0, %v5166
  %v5168 = vpop.f32.mrb[0].mxu0
  %5169 = vmatprep.mubr.bf16.mxu0 0
  %5170 = vmatmul.mubr.bf16.gmra.mrb[0].mxu0 %v4659
  %v5171 = vpop.f32.mrb[0].mxu0
  %v5172 = vadd.f32 0.0, %v5171
  %v5173 = vpop.f32.mrb[0].mxu0
  %v5174 = vpop.f32.mrb[0].mxu0
  %v5175 = vadd.f32 0.0, %v5174
  %v5176 = vpop.f32.mrb[0].mxu0
  %5177 = vmatprep.mubr.bf16.mxu0 0
  %5178 = vmatmul.mubr.bf16.gmra.mrb[0].mxu0 %v4662
  %v5179 = vpop.f32.mrb[0].mxu0
  %v5180 = vadd.f32 0.0, %v5179
  %v5181 = vpop.f32.mrb[0].mxu0
  %v5182 = vpop.f32.mrb[0].mxu0
  %v5183 = vadd.f32 0.0, %v5182
  %v5184 = vpop.f32.mrb[0].mxu0
  %5185 = vmatprep.mubr.bf16.mxu0 0
  %5186 = vmatmul.mubr.bf16.gmra.mrb[0].mxu0 %v4665
  %v5187 = vpop.f32.mrb[0].mxu0
  %v5188 = vadd.f32 0.0, %v5187
  %v5189 = vpop.f32.mrb[0].mxu0
  %v5190 = vpop.f32.mrb[0].mxu0
  %v5191 = vadd.f32 0.0, %v5190
  %v5192 = vpop.f32.mrb[0].mxu0
  %5193 = vmatprep.mubr.bf16.mxu0 0
  %5194 = vmatmul.mubr.bf16.gmra.mrb[0].mxu0 %v4668
  %v5195 = vpop.f32.mrb[0].mxu0
  %v5196 = vadd.f32 0.0, %v5195
  %v5197 = vpop.f32.mrb[0].mxu0
  %v5198 = vpop.f32.mrb[0].mxu0
  %v5199 = vadd.f32 0.0, %v5198
  %v5200 = vpop.f32.mrb[0].mxu0
  %5201 = vmatprep.mubr.bf16.mxu0 0
  %5202 = vmatmul.mubr.bf16.gmra.mrb[0].mxu0 %v4671
  %v5203 = vpop.f32.mrb[0].mxu0
  %v5204 = vadd.f32 0.0, %v5203
  %v5205 = vpop.f32.mrb[0].mxu0
  %v5206 = vpop.f32.mrb[0].mxu0
  %v5207 = vadd.f32 0.0, %v5206
  %v5208 = vpop.f32.mrb[0].mxu0
  %5209 = vmatprep.mubr.bf16.mxu0 0
  %5210 = vmatmul.mubr.bf16.gmra.mrb[0].mxu0 %v4674
  %v5211 = vpop.f32.mrb[0].mxu0
  %v5212 = vadd.f32 0.0, %v5211
  %v5213 = vpop.f32.mrb[0].mxu0
  %v5214 = vpop.f32.mrb[0].mxu0
  %v5215 = vadd.f32 0.0, %v5214
  %v5216 = vpop.f32.mrb[0].mxu0
  %5217 = vmatprep.mubr.bf16.mxu0 0
  %5218 = vmatmul.mubr.bf16.gmra.mrb[0].mxu0 %v4677
  %v5219 = vpop.f32.mrb[0].mxu0
  %v5220 = vadd.f32 0.0, %v5219
  %v5221 = vpop.f32.mrb[0].mxu0
  %v5222 = vpop.f32.mrb[0].mxu0
  %v5223 = vadd.f32 0.0, %v5222
  %v5224 = vpop.f32.mrb[0].mxu0
  %5225 = vmatprep.mubr.bf16.mxu0 0
  %5226 = vmatmul.mubr.bf16.gmra.mrb[0].mxu0 %v4680
  %v5227 = vpop.f32.mrb[0].mxu0
  %v5228 = vadd.f32 0.0, %v5227
  %v5229 = vpop.f32.mrb[0].mxu0
  %v5230 = vpop.f32.mrb[0].mxu0
  %v5231 = vadd.f32 0.0, %v5230
  %v5232 = vpop.f32.mrb[0].mxu0
  %5233 = vmatprep.mubr.bf16.mxu0 0
  %5234 = vmatmul.mubr.bf16.gmra.mrb[0].mxu0 %v4683
  %v5235 = vpop.f32.mrb[0].mxu0
  %v5236 = vadd.f32 0.0, %v5235
  %v5237 = vpop.f32.mrb[0].mxu0
  %v5238 = vpop.f32.mrb[0].mxu0
  %v5239 = vadd.f32 0.0, %v5238
  %v5240 = vpop.f32.mrb[0].mxu0
  %5241 = vmatprep.mubr.bf16.mxu0 0
  %5242 = vmatmul.mubr.bf16.gmra.mrb[0].mxu0 %v4686
  %v5243 = vpop.f32.mrb[0].mxu0
  %v5244 = vadd.f32 0.0, %v5243
  %v5245 = vpop.f32.mrb[0].mxu0
  %v5246 = vpop.f32.mrb[0].mxu0
  %v5247 = vadd.f32 0.0, %v5246
  %v5248 = vpop.f32.mrb[0].mxu0
  %5249 = vmatprep.mubr.bf16.mxu0 0
  %5250 = vmatmul.mubr.bf16.gmra.mrb[0].mxu0 %v4689
  %v5251 = vpop.f32.mrb[0].mxu0
  %v5252 = vadd.f32 0.0, %v5251
  %v5253 = vpop.f32.mrb[0].mxu0
  %v5254 = vpop.f32.mrb[0].mxu0
  %v5255 = vadd.f32 0.0, %v5254
  %v5256 = vpop.f32.mrb[0].mxu0
  %5257 = vmatprep.mubr.bf16.mxu0 0
  %5258 = vmatmul.mubr.bf16.gmra.mrb[0].mxu0 %v4692
  %v5259 = vpop.f32.mrb[0].mxu0
  %v5260 = vadd.f32 0.0, %v5259
  %v5261 = vpop.f32.mrb[0].mxu0
  %v5262 = vpop.f32.mrb[0].mxu0
  %v5263 = vadd.f32 0.0, %v5262
  %v5264 = vpop.f32.mrb[0].mxu0
  %5265 = vmatprep.mubr.bf16.mxu0 0
  %5266 = vmatmul.mubr.bf16.gmra.mrb[0].mxu0 %v4695
  %v5267 = vpop.f32.mrb[0].mxu0
  %v5268 = vadd.f32 0.0, %v5267
  %v5269 = vpop.f32.mrb[0].mxu0
  %v5270 = vpop.f32.mrb[0].mxu0
  %v5271 = vadd.f32 0.0, %v5270
  %v5272 = vpop.f32.mrb[0].mxu0
  %5273 = vmatprep.mubr.bf16.mxu0 0
  %5274 = vmatmul.mubr.bf16.gmra.mrb[0].mxu0 %v4698
  %v5275 = vpop.f32.mrb[0].mxu0
  %v5276 = vadd.f32 0.0, %v5275
  %v5277 = vpop.f32.mrb[0].mxu0
  %v5278 = vpop.f32.mrb[0].mxu0
  %v5279 = vadd.f32 0.0, %v5278
  %v5280 = vpop.f32.mrb[0].mxu0
  %5281 = vmatprep.mubr.bf16.mxu0 0
  %5282 = vmatmul.mubr.bf16.gmra.mrb[0].mxu0 %v4701
  %v5283 = vpop.f32.mrb[0].mxu0
  %v5284 = vadd.f32 0.0, %v5283
  %v5285 = vpop.f32.mrb[0].mxu0
  %v5286 = vpop.f32.mrb[0].mxu0
  %v5287 = vadd.f32 0.0, %v5286
  %v5288 = vpop.f32.mrb[0].mxu0
  %5289 = vmatprep.mubr.bf16.mxu0 0
  %5290 = vmatmul.mubr.bf16.gmra.mrb[0].mxu0 %v4704
  %v5291 = vpop.f32.mrb[0].mxu0
  %v5292 = vadd.f32 0.0, %v5291
  %v5293 = vpop.f32.mrb[0].mxu0
  %v5294 = vpop.f32.mrb[0].mxu0
  %v5295 = vadd.f32 0.0, %v5294
  %v5296 = vpop.f32.mrb[0].mxu0
  %5297 = vmatprep.mubr.bf16.mxu0 0
  %5298 = vmatmul.mubr.bf16.gmra.mrb[0].mxu0 %v4707
  %v5299 = vpop.f32.mrb[0].mxu0
  %v5300 = vadd.f32 0.0, %v5299
  %v5301 = vpop.f32.mrb[0].mxu0
  %v5302 = vpop.f32.mrb[0].mxu0
  %v5303 = vadd.f32 0.0, %v5302
  %v5304 = vpop.f32.mrb[0].mxu0
  %5305 = vmatprep.mubr.bf16.mxu0 0
  %5306 = vmatmul.mubr.bf16.gmra.mrb[0].mxu0 %v4710
  %v5307 = vpop.f32.mrb[0].mxu0
  %v5308 = vadd.f32 0.0, %v5307
  %v5309 = vpop.f32.mrb[0].mxu0
  %v5310 = vpop.f32.mrb[0].mxu0
  %v5311 = vadd.f32 0.0, %v5310
  %v5312 = vpop.f32.mrb[0].mxu0
  %5313 = vmatprep.mubr.bf16.mxu0 0
  %5314 = vmatmul.mubr.bf16.gmra.mrb[0].mxu0 %v4713
  %v5315 = vpop.f32.mrb[0].mxu0
  %v5316 = vadd.f32 0.0, %v5315
  %v5317 = vpop.f32.mrb[0].mxu0
  %v5318 = vpop.f32.mrb[0].mxu0
  %v5319 = vadd.f32 0.0, %v5318
  %v5320 = vpop.f32.mrb[0].mxu0
  %5321 = vmatprep.mubr.bf16.mxu0 0
  %5322 = vmatmul.mubr.bf16.gmra.mrb[0].mxu0 %v4716
  %v5323 = vpop.f32.mrb[0].mxu0
  %v5324 = vadd.f32 0.0, %v5323
  %v5325 = vpop.f32.mrb[0].mxu0
  %v5326 = vpop.f32.mrb[0].mxu0
  %v5327 = vadd.f32 0.0, %v5326
  %v5328 = vpop.f32.mrb[0].mxu0
  %5329 = vmatprep.mubr.bf16.mxu0 0
  %5330 = vmatmul.mubr.bf16.gmra.mrb[0].mxu0 %v4719
  %v5331 = vpop.f32.mrb[0].mxu0
  %v5332 = vadd.f32 0.0, %v5331
  %v5333 = vpop.f32.mrb[0].mxu0
  %v5334 = vpop.f32.mrb[0].mxu0
  %v5335 = vadd.f32 0.0, %v5334
  %v5336 = vpop.f32.mrb[0].mxu0
  %5337 = vmatprep.mubr.bf16.mxu0 0
  %5338 = vmatmul.mubr.bf16.gmra.mrb[0].mxu0 %v4722
  %v5339 = vpop.f32.mrb[0].mxu0
  %v5340 = vadd.f32 0.0, %v5339
  %v5341 = vpop.f32.mrb[0].mxu0
  %v5342 = vpop.f32.mrb[0].mxu0
  %v5343 = vadd.f32 0.0, %v5342
  %v5344 = vpop.f32.mrb[0].mxu0
  %5345 = vmatprep.mubr.bf16.mxu0 0
  %5346 = vmatmul.mubr.bf16.gmra.mrb[0].mxu0 %v4725
  %v5347 = vpop.f32.mrb[0].mxu0
  %v5348 = vadd.f32 0.0, %v5347
  %v5349 = vpop.f32.mrb[0].mxu0
  %v5350 = vpop.f32.mrb[0].mxu0
  %v5351 = vadd.f32 0.0, %v5350
  %v5352 = vpop.f32.mrb[0].mxu0
  %5353 = vmatprep.mubr.bf16.mxu0 0
  %5354 = vmatmul.mubr.bf16.gmra.mrb[0].mxu0 %v4728
  %v5355 = vpop.f32.mrb[0].mxu0
  %v5356 = vadd.f32 0.0, %v5355
  %v5357 = vpop.f32.mrb[0].mxu0
  %v5358 = vpop.f32.mrb[0].mxu0
  %v5359 = vadd.f32 0.0, %v5358
  %v5360 = vpop.f32.mrb[0].mxu0
  %5361 = vmatprep.mubr.bf16.mxu0 0
  %5362 = vmatmul.mubr.bf16.gmra.mrb[0].mxu0 %v4731
  %v5363 = vpop.f32.mrb[0].mxu0
  %v5364 = vadd.f32 0.0, %v5363
  %v5365 = vpop.f32.mrb[0].mxu0
  %v5366 = vpop.f32.mrb[0].mxu0
  %v5367 = vadd.f32 0.0, %v5366
  %v5368 = vpop.f32.mrb[0].mxu0
  %5369 = vmatprep.mubr.bf16.mxu0 0
  %5370 = vmatmul.mubr.bf16.gmra.mrb[0].mxu0 %v4734
  %v5371 = vpop.f32.mrb[0].mxu0
  %v5372 = vadd.f32 0.0, %v5371
  %v5373 = vpop.f32.mrb[0].mxu0
  %v5374 = vpop.f32.mrb[0].mxu0
  %v5375 = vadd.f32 0.0, %v5374
  %v5376 = vpop.f32.mrb[0].mxu0
  %5377 = vmatprep.mubr.bf16.mxu0 0
  %5378 = vmatmul.mubr.bf16.gmra.mrb[0].mxu0 %v4737
  %v5379 = vpop.f32.mrb[0].mxu0
  %v5380 = vadd.f32 0.0, %v5379
  %v5381 = vpop.f32.mrb[0].mxu0
  %v5382 = vpop.f32.mrb[0].mxu0
  %v5383 = vadd.f32 0.0, %v5382
  %v5384 = vpop.f32.mrb[0].mxu0
  %5385 = vmatprep.mubr.bf16.mxu0 0
  %5386 = vmatmul.mubr.bf16.gmra.mrb[0].mxu0 %v4740
  %v5387 = vpop.f32.mrb[0].mxu0
  %v5388 = vadd.f32 0.0, %v5387
  %v5389 = vpop.f32.mrb[0].mxu0
  %v5390 = vpop.f32.mrb[0].mxu0
  %v5391 = vadd.f32 0.0, %v5390
  %v5392 = vpop.f32.mrb[0].mxu0
  %5393 = vmatprep.mubr.bf16.mxu0 0
  %5394 = vmatmul.mubr.bf16.gmra.mrb[0].mxu0 %v4743
  %v5395 = vpop.f32.mrb[0].mxu0
  %v5396 = vadd.f32 0.0, %v5395
  %v5397 = vpop.f32.mrb[0].mxu0
  %v5398 = vpop.f32.mrb[0].mxu0
  %v5399 = vadd.f32 0.0, %v5398
  %v5400 = vpop.f32.mrb[0].mxu0
  %5401 = vmatprep.mubr.bf16.mxu0 0
  %5402 = vmatmul.mubr.bf16.gmra.mrb[0].mxu0 %v4746
  %v5403 = vpop.f32.mrb[0].mxu0
  %v5404 = vadd.f32 0.0, %v5403
  %v5405 = vpop.f32.mrb[0].mxu0
  %v5406 = vpop.f32.mrb[0].mxu0
  %v5407 = vadd.f32 0.0, %v5406
  %v5408 = vpop.f32.mrb[0].mxu0
  %5409 = vmatprep.mubr.bf16.mxu0 0
  %5410 = vmatmul.mubr.bf16.gmra.mrb[0].mxu0 %v4749
  %v5411 = vpop.f32.mrb[0].mxu0
  %v5412 = vadd.f32 0.0, %v5411
  %v5413 = vpop.f32.mrb[0].mxu0
  %v5414 = vpop.f32.mrb[0].mxu0
  %v5415 = vadd.f32 0.0, %v5414
  %v5416 = vpop.f32.mrb[0].mxu0
  %5417 = vmatprep.mubr.bf16.mxu0 0
  %5418 = vmatmul.mubr.bf16.gmra.mrb[0].mxu0 %v4752
  %v5419 = vpop.f32.mrb[0].mxu0
  %v5420 = vadd.f32 0.0, %v5419
  %v5421 = vpop.f32.mrb[0].mxu0
  %v5422 = vpop.f32.mrb[0].mxu0
  %v5423 = vadd.f32 0.0, %v5422
  %v5424 = vpop.f32.mrb[0].mxu0
  %5425 = vmatprep.mubr.bf16.mxu0 0
  %5426 = vmatmul.mubr.bf16.gmra.mrb[0].mxu0 %v4755
  %v5427 = vpop.f32.mrb[0].mxu0
  %v5428 = vadd.f32 0.0, %v5427
  %v5429 = vpop.f32.mrb[0].mxu0
  %v5430 = vpop.f32.mrb[0].mxu0
  %v5431 = vadd.f32 0.0, %v5430
  %v5432 = vpop.f32.mrb[0].mxu0
  %5433 = vmatprep.mubr.bf16.mxu0 0
  %5434 = vmatmul.mubr.bf16.gmra.mrb[0].mxu0 %v4758
  %v5435 = vpop.f32.mrb[0].mxu0
  %v5436 = vadd.f32 0.0, %v5435
  %v5437 = vpop.f32.mrb[0].mxu0
  %v5438 = vpop.f32.mrb[0].mxu0
  %v5439 = vadd.f32 0.0, %v5438
  %v5440 = vpop.f32.mrb[0].mxu0
  %5441 = vmatprep.mubr.bf16.mxu0 0
  %5442 = vmatmul.mubr.bf16.gmra.mrb[0].mxu0 %v4761
  %v5443 = vpop.f32.mrb[0].mxu0
  %v5444 = vadd.f32 0.0, %v5443
  %v5445 = vpop.f32.mrb[0].mxu0
  %v5446 = vpop.f32.mrb[0].mxu0
  %v5447 = vadd.f32 0.0, %v5446
  %v5448 = vpop.f32.mrb[0].mxu0
  %5449 = vmatprep.mubr.bf16.mxu0 0
  %5450 = vmatmul.mubr.bf16.gmra.mrb[0].mxu0 %v4764
  %v5451 = vpop.f32.mrb[0].mxu0
  %v5452 = vadd.f32 0.0, %v5451
  %v5453 = vpop.f32.mrb[0].mxu0
  %v5454 = vpop.f32.mrb[0].mxu0
  %v5455 = vadd.f32 0.0, %v5454
  %v5456 = vpop.f32.mrb[0].mxu0
  %5457 = vmatprep.mubr.bf16.mxu0 0
  %5458 = vmatmul.mubr.bf16.gmra.mrb[0].mxu0 %v4767
  %v5459 = vpop.f32.mrb[0].mxu0
  %v5460 = vadd.f32 0.0, %v5459
  %v5461 = vpop.f32.mrb[0].mxu0
  %v5462 = vpop.f32.mrb[0].mxu0
  %v5463 = vadd.f32 0.0, %v5462
  %v5464 = vpop.f32.mrb[0].mxu0
  %5465 = vmatprep.mubr.bf16.mxu0 0
  %5466 = vmatmul.mubr.bf16.gmra.mrb[0].mxu0 %v4770
  %v5467 = vpop.f32.mrb[0].mxu0
  %v5468 = vadd.f32 0.0, %v5467
  %v5469 = vpop.f32.mrb[0].mxu0
  %v5470 = vpop.f32.mrb[0].mxu0
  %v5471 = vadd.f32 0.0, %v5470
  %v5472 = vpop.f32.mrb[0].mxu0
  %5473 = vmatprep.mubr.bf16.mxu0 0
  %5474 = vmatmul.mubr.bf16.gmra.mrb[0].mxu0 %v4773
  %v5475 = vpop.f32.mrb[0].mxu0
  %v5476 = vadd.f32 0.0, %v5475
  %v5477 = vpop.f32.mrb[0].mxu0
  %v5478 = vpop.f32.mrb[0].mxu0
  %v5479 = vadd.f32 0.0, %v5478
  %v5480 = vpop.f32.mrb[0].mxu0
  %5481 = vmatprep.mubr.bf16.mxu0 0
  %5482 = vmatmul.mubr.bf16.gmra.mrb[0].mxu0 %v4776
  %v5483 = vpop.f32.mrb[0].mxu0
  %v5484 = vadd.f32 0.0, %v5483
  %v5485 = vpop.f32.mrb[0].mxu0
  %v5486 = vpop.f32.mrb[0].mxu0
  %v5487 = vadd.f32 0.0, %v5486
  %v5488 = vpop.f32.mrb[0].mxu0
  %5489 = vmatprep.mubr.bf16.mxu0 0
  %5490 = vmatmul.mubr.bf16.gmra.mrb[0].mxu0 %v4779
  %v5491 = vpop.f32.mrb[0].mxu0
  %v5492 = vadd.f32 0.0, %v5491
  %v5493 = vpop.f32.mrb[0].mxu0
  %v5494 = vpop.f32.mrb[0].mxu0
  %v5495 = vadd.f32 0.0, %v5494
  %v5496 = vpop.f32.mrb[0].mxu0
  %5497 = vmatprep.mubr.bf16.mxu0 0
  %5498 = vmatmul.mubr.bf16.gmra.mrb[0].mxu0 %v4782
  %v5499 = vpop.f32.mrb[0].mxu0
  %v5500 = vadd.f32 0.0, %v5499
  %v5501 = vpop.f32.mrb[0].mxu0
  %v5502 = vpop.f32.mrb[0].mxu0
  %v5503 = vadd.f32 0.0, %v5502
  %v5504 = vpop.f32.mrb[0].mxu0
  %5505 = vmatprep.mubr.bf16.mxu0 0
  %5506 = vmatmul.mubr.bf16.gmra.mrb[0].mxu0 %v4785
  %v5507 = vpop.f32.mrb[0].mxu0
  %v5508 = vadd.f32 0.0, %v5507
  %v5509 = vpop.f32.mrb[0].mxu0
  %v5510 = vpop.f32.mrb[0].mxu0
  %v5511 = vadd.f32 0.0, %v5510
  %v5512 = vpop.f32.mrb[0].mxu0
  %5513 = vmatprep.mubr.bf16.mxu0 0
  %5514 = vmatmul.mubr.bf16.gmra.mrb[0].mxu0 %v4788
  %v5515 = vpop.f32.mrb[0].mxu0
  %v5516 = vadd.f32 0.0, %v5515
  %v5517 = vpop.f32.mrb[0].mxu0
  %v5518 = vpop.f32.mrb[0].mxu0
  %v5519 = vadd.f32 0.0, %v5518
  %v5520 = vpop.f32.mrb[0].mxu0
  %5521 = vmatprep.mubr.bf16.mxu0 0
  %5522 = vmatmul.mubr.bf16.gmra.mrb[0].mxu0 %v4791
  %v5523 = vpop.f32.mrb[0].mxu0
  %v5524 = vadd.f32 0.0, %v5523
  %v5525 = vpop.f32.mrb[0].mxu0
  %v5526 = vpop.f32.mrb[0].mxu0
  %v5527 = vadd.f32 0.0, %v5526
  %v5528 = vpop.f32.mrb[0].mxu0
  %5529 = vmatprep.mubr.bf16.mxu0 0
  %5530 = vmatmul.mubr.bf16.gmra.mrb[0].mxu0 %v4794
  %v5531 = vpop.f32.mrb[0].mxu0
  %v5532 = vadd.f32 0.0, %v5531
  %v5533 = vpop.f32.mrb[0].mxu0
  %v5534 = vpop.f32.mrb[0].mxu0
  %v5535 = vadd.f32 0.0, %v5534
  %v5536 = vpop.f32.mrb[0].mxu0
  %5537 = vmatprep.mubr.bf16.mxu0 0
  %5538 = vmatmul.mubr.bf16.gmra.mrb[0].mxu0 %v4797
  %v5539 = vpop.f32.mrb[0].mxu0
  %v5540 = vadd.f32 0.0, %v5539
  %v5541 = vpop.f32.mrb[0].mxu0
  %v5542 = vpop.f32.mrb[0].mxu0
  %v5543 = vadd.f32 0.0, %v5542
  %v5544 = vpop.f32.mrb[0].mxu0
  %5545 = vmatprep.mubr.bf16.mxu0 0
  %5546 = vmatmul.mubr.bf16.gmra.mrb[0].mxu0 %v4800
  %v5547 = vpop.f32.mrb[0].mxu0
  %v5548 = vadd.f32 0.0, %v5547
  %v5549 = vpop.f32.mrb[0].mxu0
  %v5550 = vpop.f32.mrb[0].mxu0
  %v5551 = vadd.f32 0.0, %v5550
  %v5552 = vpop.f32.mrb[0].mxu0
  %5553 = vmatprep.mubr.bf16.mxu0 0
  %5554 = vmatmul.mubr.bf16.gmra.mrb[0].mxu0 %v4803
  %v5555 = vpop.f32.mrb[0].mxu0
  %v5556 = vadd.f32 0.0, %v5555
  %v5557 = vpop.f32.mrb[0].mxu0
  %v5558 = vpop.f32.mrb[0].mxu0
  %v5559 = vadd.f32 0.0, %v5558
  %v5560 = vpop.f32.mrb[0].mxu0
  %5561 = vmatprep.mubr.bf16.mxu0 0
  %5562 = vmatmul.mubr.bf16.gmra.mrb[0].mxu0 %v4806
  %v5563 = vpop.f32.mrb[0].mxu0
  %v5564 = vadd.f32 0.0, %v5563
  %v5565 = vpop.f32.mrb[0].mxu0
  %v5566 = vpop.f32.mrb[0].mxu0
  %v5567 = vadd.f32 0.0, %v5566
  %v5568 = vpop.f32.mrb[0].mxu0
  %5569 = vmatprep.mubr.bf16.mxu0 0
  %5570 = vmatmul.mubr.bf16.gmra.mrb[0].mxu0 %v4809
  %v5571 = vpop.f32.mrb[0].mxu0
  %v5572 = vadd.f32 0.0, %v5571
  %v5573 = vpop.f32.mrb[0].mxu0
  %v5574 = vpop.f32.mrb[0].mxu0
  %v5575 = vadd.f32 0.0, %v5574
  %v5576 = vpop.f32.mrb[0].mxu0
  %5577 = vmatprep.mubr.bf16.mxu0 0
  %5578 = vmatmul.mubr.bf16.gmra.mrb[0].mxu0 %v4812
  %v5579 = vpop.f32.mrb[0].mxu0
  %v5580 = vadd.f32 0.0, %v5579
  %v5581 = vpop.f32.mrb[0].mxu0
  %v5582 = vpop.f32.mrb[0].mxu0
  %v5583 = vadd.f32 0.0, %v5582
  %v5584 = vpop.f32.mrb[0].mxu0
  %5585 = vmatprep.mubr.bf16.mxu0 0
  %5586 = vmatmul.mubr.bf16.gmra.mrb[0].mxu0 %v4815
  %v5587 = vpop.f32.mrb[0].mxu0
  %v5588 = vadd.f32 0.0, %v5587
  %v5589 = vpop.f32.mrb[0].mxu0
  %v5590 = vpop.f32.mrb[0].mxu0
  %v5591 = vadd.f32 0.0, %v5590
  %v5592 = vpop.f32.mrb[0].mxu0
  %5593 = vmatprep.mubr.bf16.mxu0 0
  %5594 = vmatmul.mubr.bf16.gmra.mrb[0].mxu0 %v4818
  %v5595 = vpop.f32.mrb[0].mxu0
  %v5596 = vadd.f32 0.0, %v5595
  %v5597 = vpop.f32.mrb[0].mxu0
  %v5598 = vpop.f32.mrb[0].mxu0
  %v5599 = vadd.f32 0.0, %v5598
  %v5600 = vpop.f32.mrb[0].mxu0
  %5601 = vmatprep.mubr.bf16.mxu0 0
  %5602 = vmatmul.mubr.bf16.gmra.mrb[0].mxu0 %v4821
  %v5603 = vpop.f32.mrb[0].mxu0
  %v5604 = vadd.f32 0.0, %v5603
  %v5605 = vpop.f32.mrb[0].mxu0
  %v5606 = vpop.f32.mrb[0].mxu0
  %v5607 = vadd.f32 0.0, %v5606
  %v5608 = vpop.f32.mrb[0].mxu0
  %5609 = vmatprep.mubr.bf16.mxu0 0
  %5610 = vmatmul.mubr.bf16.gmra.mrb[0].mxu0 %v4824
  %v5611 = vpop.f32.mrb[0].mxu0
  %v5612 = vadd.f32 0.0, %v5611
  %v5613 = vpop.f32.mrb[0].mxu0
  %v5614 = vpop.f32.mrb[0].mxu0
  %v5615 = vadd.f32 0.0, %v5614
  %v5616 = vpop.f32.mrb[0].mxu0
  %5617 = vmatprep.mubr.bf16.mxu0 0
  %5618 = vmatmul.mubr.bf16.gmra.mrb[0].mxu0 %v4827
  %v5619 = vpop.f32.mrb[0].mxu0
  %v5620 = vadd.f32 0.0, %v5619
  %v5621 = vpop.f32.mrb[0].mxu0
  %v5622 = vpop.f32.mrb[0].mxu0
  %v5623 = vadd.f32 0.0, %v5622
  %v5624 = vpop.f32.mrb[0].mxu0
  %5625 = vmatprep.mubr.bf16.mxu0 0
  %5626 = vmatmul.mubr.bf16.gmra.mrb[0].mxu0 %v4830
  %v5627 = vpop.f32.mrb[0].mxu0
  %v5628 = vadd.f32 0.0, %v5627
  %v5629 = vpop.f32.mrb[0].mxu0
  %v5630 = vpop.f32.mrb[0].mxu0
  %v5631 = vadd.f32 0.0, %v5630
  %v5632 = vpop.f32.mrb[0].mxu0
  %5633 = vmatprep.mubr.bf16.mxu0 0
  %5634 = vmatmul.mubr.bf16.gmra.mrb[0].mxu0 %v4833
  %v5635 = vpop.f32.mrb[0].mxu0
  %v5636 = vadd.f32 0.0, %v5635
  %v5637 = vpop.f32.mrb[0].mxu0
  %v5638 = vpop.f32.mrb[0].mxu0
  %v5639 = vadd.f32 0.0, %v5638
  %v5640 = vpop.f32.mrb[0].mxu0
  %5641 = vmatprep.mubr.bf16.mxu0 0
  %5642 = vmatmul.mubr.bf16.gmra.mrb[0].mxu0 %v4836
  %v5643 = vpop.f32.mrb[0].mxu0
  %v5644 = vadd.f32 0.0, %v5643
  %v5645 = vpop.f32.mrb[0].mxu0
  %v5646 = vpop.f32.mrb[0].mxu0
  %v5647 = vadd.f32 0.0, %v5646
  %v5648 = vpop.f32.mrb[0].mxu0
  %5649 = vmatprep.mubr.bf16.mxu0 0
  %5650 = vmatmul.mubr.bf16.gmra.mrb[0].mxu0 %v4839
  %v5651 = vpop.f32.mrb[0].mxu0
  %v5652 = vadd.f32 0.0, %v5651
  %v5653 = vpop.f32.mrb[0].mxu0
  %v5654 = vpop.f32.mrb[0].mxu0
  %v5655 = vadd.f32 0.0, %v5654
  %v5656 = vpop.f32.mrb[0].mxu0
  %5657 = vdwg.mxu0
  %v5658 = vmax.f32 %v3665, %v4876
  %v5659 = vmax.f32 %v3666, %v4879
  %v5660 = vmax.f32 %v3667, %v4884
  %v5661 = vmax.f32 %v3668, %v4887
  %v5662 = vmax.f32 %v3669, %v4892
  %v5663 = vmax.f32 %v3670, %v4895
  %v5664 = vmax.f32 %v3671, %v4900
  %v5665 = vmax.f32 %v3672, %v4903
  %v5666 = vmax.f32 %v3673, %v4908
  %v5667 = vmax.f32 %v3674, %v4911
  %v5668 = vmax.f32 %v3675, %v4916
  %v5669 = vmax.f32 %v3676, %v4919
  %v5670 = vmax.f32 %v3677, %v4924
  %v5671 = vmax.f32 %v3678, %v4927
  %v5672 = vmax.f32 %v3679, %v4932
  %v5673 = vmax.f32 %v3680, %v4935
  %v5674 = vmax.f32 %v3681, %v4940
  %v5675 = vmax.f32 %v3682, %v4943
  %v5676 = vmax.f32 %v3683, %v4948
  %v5677 = vmax.f32 %v3684, %v4951
  %v5678 = vmax.f32 %v3685, %v4956
  %v5679 = vmax.f32 %v3686, %v4959
  %v5680 = vmax.f32 %v3687, %v4964
  %v5681 = vmax.f32 %v3688, %v4967
  %v5682 = vmax.f32 %v3689, %v4972
  %v5683 = vmax.f32 %v3690, %v4975
  %v5684 = vmax.f32 %v3691, %v4980
  %v5685 = vmax.f32 %v3692, %v4983
  %v5686 = vmax.f32 %v3693, %v4988
  %v5687 = vmax.f32 %v3694, %v4991
  %v5688 = vmax.f32 %v3695, %v4996
  %v5689 = vmax.f32 %v3696, %v4999
  %v5690 = vmax.f32 %v3697, %v5004
  %v5691 = vmax.f32 %v3698, %v5007
  %v5692 = vmax.f32 %v3699, %v5012
  %v5693 = vmax.f32 %v3700, %v5015
  %v5694 = vmax.f32 %v3701, %v5020
  %v5695 = vmax.f32 %v3702, %v5023
  %v5696 = vmax.f32 %v3703, %v5028
  %v5697 = vmax.f32 %v3704, %v5031
  %v5698 = vmax.f32 %v3705, %v5036
  %v5699 = vmax.f32 %v3706, %v5039
  %v5700 = vmax.f32 %v3707, %v5044
  %v5701 = vmax.f32 %v3708, %v5047
  %v5702 = vmax.f32 %v3709, %v5052
  %v5703 = vmax.f32 %v3710, %v5055
  %v5704 = vmax.f32 %v3711, %v5060
  %v5705 = vmax.f32 %v3712, %v5063
  %v5706 = vmax.f32 %v3713, %v5068
  %v5707 = vmax.f32 %v3714, %v5071
  %v5708 = vmax.f32 %v3715, %v5076
  %v5709 = vmax.f32 %v3716, %v5079
  %v5710 = vmax.f32 %v3717, %v5084
  %v5711 = vmax.f32 %v3718, %v5087
  %v5712 = vmax.f32 %v3719, %v5092
  %v5713 = vmax.f32 %v3720, %v5095
  %v5714 = vmax.f32 %v3721, %v5100
  %v5715 = vmax.f32 %v3722, %v5103
  %v5716 = vmax.f32 %v3723, %v5108
  %v5717 = vmax.f32 %v3724, %v5111
  %v5718 = vmax.f32 %v3725, %v5116
  %v5719 = vmax.f32 %v3726, %v5119
  %v5720 = vmax.f32 %v3727, %v5124
  %v5721 = vmax.f32 %v3728, %v5127
  %v5722 = vmax.f32 %v3729, %v5132
  %v5723 = vmax.f32 %v3730, %v5135
  %v5724 = vmax.f32 %v3731, %v5140
  %v5725 = vmax.f32 %v3732, %v5143
  %v5726 = vmax.f32 %v3733, %v5148
  %v5727 = vmax.f32 %v3734, %v5151
  %v5728 = vmax.f32 %v3735, %v5156
  %v5729 = vmax.f32 %v3736, %v5159
  %v5730 = vmax.f32 %v3737, %v5164
  %v5731 = vmax.f32 %v3738, %v5167
  %v5732 = vmax.f32 %v3739, %v5172
  %v5733 = vmax.f32 %v3740, %v5175
  %v5734 = vmax.f32 %v3741, %v5180
  %v5735 = vmax.f32 %v3742, %v5183
  %v5736 = vmax.f32 %v3743, %v5188
  %v5737 = vmax.f32 %v3744, %v5191
  %v5738 = vmax.f32 %v3745, %v5196
  %v5739 = vmax.f32 %v3746, %v5199
  %v5740 = vmax.f32 %v3747, %v5204
  %v5741 = vmax.f32 %v3748, %v5207
  %v5742 = vmax.f32 %v3749, %v5212
  %v5743 = vmax.f32 %v3750, %v5215
  %v5744 = vmax.f32 %v3751, %v5220
  %v5745 = vmax.f32 %v3752, %v5223
  %v5746 = vmax.f32 %v3753, %v5228
  %v5747 = vmax.f32 %v3754, %v5231
  %v5748 = vmax.f32 %v3755, %v5236
  %v5749 = vmax.f32 %v3756, %v5239
  %v5750 = vmax.f32 %v3757, %v5244
  %v5751 = vmax.f32 %v3758, %v5247
  %v5752 = vmax.f32 %v3759, %v5252
  %v5753 = vmax.f32 %v3760, %v5255
  %v5754 = vmax.f32 %v3761, %v5260
  %v5755 = vmax.f32 %v3762, %v5263
  %v5756 = vmax.f32 %v3763, %v5268
  %v5757 = vmax.f32 %v3764, %v5271
  %v5758 = vmax.f32 %v3765, %v5276
  %v5759 = vmax.f32 %v3766, %v5279
  %v5760 = vmax.f32 %v3767, %v5284
  %v5761 = vmax.f32 %v3768, %v5287
  %v5762 = vmax.f32 %v3769, %v5292
  %v5763 = vmax.f32 %v3770, %v5295
  %v5764 = vmax.f32 %v3771, %v5300
  %v5765 = vmax.f32 %v3772, %v5303
  %v5766 = vmax.f32 %v3773, %v5308
  %v5767 = vmax.f32 %v3774, %v5311
  %v5768 = vmax.f32 %v3775, %v5316
  %v5769 = vmax.f32 %v3776, %v5319
  %v5770 = vmax.f32 %v3777, %v5324
  %v5771 = vmax.f32 %v3778, %v5327
  %v5772 = vmax.f32 %v3779, %v5332
  %v5773 = vmax.f32 %v3780, %v5335
  %v5774 = vmax.f32 %v3781, %v5340
  %v5775 = vmax.f32 %v3782, %v5343
  %v5776 = vmax.f32 %v3783, %v5348
  %v5777 = vmax.f32 %v3784, %v5351
  %v5778 = vmax.f32 %v3785, %v5356
  %v5779 = vmax.f32 %v3786, %v5359
  %v5780 = vmax.f32 %v3787, %v5364
  %v5781 = vmax.f32 %v3788, %v5367
  %v5782 = vmax.f32 %v3789, %v5372
  %v5783 = vmax.f32 %v3790, %v5375
  %v5784 = vmax.f32 %v3791, %v5380
  %v5785 = vmax.f32 %v3792, %v5383
  %v5786 = vmax.f32 %v3793, %v5388
  %v5787 = vmax.f32 %v3794, %v5391
  %v5788 = vmax.f32 %v3795, %v5396
  %v5789 = vmax.f32 %v3796, %v5399
  %v5790 = vmax.f32 %v3797, %v5404
  %v5791 = vmax.f32 %v3798, %v5407
  %v5792 = vmax.f32 %v3799, %v5412
  %v5793 = vmax.f32 %v3800, %v5415
  %v5794 = vmax.f32 %v3801, %v5420
  %v5795 = vmax.f32 %v3802, %v5423
  %v5796 = vmax.f32 %v3803, %v5428
  %v5797 = vmax.f32 %v3804, %v5431
  %v5798 = vmax.f32 %v3805, %v5436
  %v5799 = vmax.f32 %v3806, %v5439
  %v5800 = vmax.f32 %v3807, %v5444
  %v5801 = vmax.f32 %v3808, %v5447
  %v5802 = vmax.f32 %v3809, %v5452
  %v5803 = vmax.f32 %v3810, %v5455
  %v5804 = vmax.f32 %v3811, %v5460
  %v5805 = vmax.f32 %v3812, %v5463
  %v5806 = vmax.f32 %v3813, %v5468
  %v5807 = vmax.f32 %v3814, %v5471
  %v5808 = vmax.f32 %v3815, %v5476
  %v5809 = vmax.f32 %v3816, %v5479
  %v5810 = vmax.f32 %v3817, %v5484
  %v5811 = vmax.f32 %v3818, %v5487
  %v5812 = vmax.f32 %v3819, %v5492
  %v5813 = vmax.f32 %v3820, %v5495
  %v5814 = vmax.f32 %v3821, %v5500
  %v5815 = vmax.f32 %v3822, %v5503
  %v5816 = vmax.f32 %v3823, %v5508
  %v5817 = vmax.f32 %v3824, %v5511
  %v5818 = vmax.f32 %v3825, %v5516
  %v5819 = vmax.f32 %v3826, %v5519
  %v5820 = vmax.f32 %v3827, %v5524
  %v5821 = vmax.f32 %v3828, %v5527
  %v5822 = vmax.f32 %v3829, %v5532
  %v5823 = vmax.f32 %v3830, %v5535
  %v5824 = vmax.f32 %v3831, %v5540
  %v5825 = vmax.f32 %v3832, %v5543
  %v5826 = vmax.f32 %v3833, %v5548
  %v5827 = vmax.f32 %v3834, %v5551
  %v5828 = vmax.f32 %v3835, %v5556
  %v5829 = vmax.f32 %v3836, %v5559
  %v5830 = vmax.f32 %v3837, %v5564
  %v5831 = vmax.f32 %v3838, %v5567
  %v5832 = vmax.f32 %v3839, %v5572
  %v5833 = vmax.f32 %v3840, %v5575
  %v5834 = vmax.f32 %v3841, %v5580
  %v5835 = vmax.f32 %v3842, %v5583
  %v5836 = vmax.f32 %v3843, %v5588
  %v5837 = vmax.f32 %v3844, %v5591
  %v5838 = vmax.f32 %v3845, %v5596
  %v5839 = vmax.f32 %v3846, %v5599
  %v5840 = vmax.f32 %v3847, %v5604
  %v5841 = vmax.f32 %v3848, %v5607
  %v5842 = vmax.f32 %v3849, %v5612
  %v5843 = vmax.f32 %v3850, %v5615
  %v5844 = vmax.f32 %v3851, %v5620
  %v5845 = vmax.f32 %v3852, %v5623
  %v5846 = vmax.f32 %v3853, %v5628
  %v5847 = vmax.f32 %v3854, %v5631
  %v5848 = vmax.f32 %v3855, %v5636
  %v5849 = vmax.f32 %v3856, %v5639
  %v5850 = vmax.f32 %v3857, %v5644
  %v5851 = vmax.f32 %v3858, %v5647
  %v5852 = vmax.f32 %v3859, %v5652
  %v5853 = vmax.f32 %v3860, %v5655
  %v5854 = vld [vmem:[%s3] sm:$0xf]
  %v5855 = vld [vmem:[%s3 + $0x4] sm:$0xf]
  %v5856 = vld [vmem:[%s3 + $0x8] sm:$0xf]
  %v5857 = vld [vmem:[%s3 + $0xc] sm:$0xf]
  %v5858 = vld [vmem:[%s3 + $0x10] sm:$0xf]
  %v5859 = vld [vmem:[%s3 + $0x14] sm:$0xf]
  %v5860 = vld [vmem:[%s3 + $0x18] sm:$0xf]
  %v5861 = vld [vmem:[%s3 + $0x1c] sm:$0xf]
  %v5862 = vld [vmem:[%s3 + $0x20] sm:$0xf]
  %v5863 = vld [vmem:[%s3 + $0x24] sm:$0xf]
  %v5864 = vld [vmem:[%s3 + $0x28] sm:$0xf]
  %v5865 = vld [vmem:[%s3 + $0x2c] sm:$0xf]
  %v5866 = vld [vmem:[%s3 + $0x30] sm:$0xf]
  %v5867 = vld [vmem:[%s3 + $0x34] sm:$0xf]
  %v5868 = vld [vmem:[%s3 + $0x38] sm:$0xf]
  %v5869 = vld [vmem:[%s3 + $0x3c] sm:$0xf]
  %v5870 = vld [vmem:[%s3 + $0x40] sm:$0xf]
  %v5871 = vld [vmem:[%s3 + $0x44] sm:$0xf]
  %v5872 = vld [vmem:[%s3 + $0x48] sm:$0xf]
  %v5873 = vld [vmem:[%s3 + $0x4c] sm:$0xf]
  %v5874 = vld [vmem:[%s3 + $0x50] sm:$0xf]
  %v5875 = vld [vmem:[%s3 + $0x54] sm:$0xf]
  %v5876 = vld [vmem:[%s3 + $0x58] sm:$0xf]
  %v5877 = vld [vmem:[%s3 + $0x5c] sm:$0xf]
  %v5878 = vld [vmem:[%s3 + $0x60] sm:$0xf]
  %v5879 = vld [vmem:[%s3 + $0x64] sm:$0xf]
  %v5880 = vld [vmem:[%s3 + $0x68] sm:$0xf]
  %v5881 = vld [vmem:[%s3 + $0x6c] sm:$0xf]
  %v5882 = vld [vmem:[%s3 + $0x70] sm:$0xf]
  %v5883 = vld [vmem:[%s3 + $0x74] sm:$0xf]
  %v5884 = vld [vmem:[%s3 + $0x78] sm:$0xf]
  %v5885 = vld [vmem:[%s3 + $0x7c] sm:$0xf]
  %v5886 = vld [vmem:[%s3 + $0x80] sm:$0xf]
  %v5887 = vld [vmem:[%s3 + $0x84] sm:$0xf]
  %v5888 = vld [vmem:[%s3 + $0x88] sm:$0xf]
  %v5889 = vld [vmem:[%s3 + $0x8c] sm:$0xf]
  %v5890 = vld [vmem:[%s3 + $0x90] sm:$0xf]
  %v5891 = vld [vmem:[%s3 + $0x94] sm:$0xf]
  %v5892 = vld [vmem:[%s3 + $0x98] sm:$0xf]
  %v5893 = vld [vmem:[%s3 + $0x9c] sm:$0xf]
  %v5894 = vld [vmem:[%s3 + $0xa0] sm:$0xf]
  %v5895 = vld [vmem:[%s3 + $0xa4] sm:$0xf]
  %v5896 = vld [vmem:[%s3 + $0xa8] sm:$0xf]
  %v5897 = vld [vmem:[%s3 + $0xac] sm:$0xf]
  %v5898 = vld [vmem:[%s3 + $0xb0] sm:$0xf]
  %v5899 = vld [vmem:[%s3 + $0xb4] sm:$0xf]
  %v5900 = vld [vmem:[%s3 + $0xb8] sm:$0xf]
  %v5901 = vld [vmem:[%s3 + $0xbc] sm:$0xf]
  %v5902 = vld [vmem:[%s3 + $0xc0] sm:$0xf]
  %v5903 = vld [vmem:[%s3 + $0xc4] sm:$0xf]
  %v5904 = vld [vmem:[%s3 + $0xc8] sm:$0xf]
  %v5905 = vld [vmem:[%s3 + $0xcc] sm:$0xf]
  %v5906 = vld [vmem:[%s3 + $0xd0] sm:$0xf]
  %v5907 = vld [vmem:[%s3 + $0xd4] sm:$0xf]
  %v5908 = vld [vmem:[%s3 + $0xd8] sm:$0xf]
  %v5909 = vld [vmem:[%s3 + $0xdc] sm:$0xf]
  %v5910 = vld [vmem:[%s3 + $0xe0] sm:$0xf]
  %v5911 = vld [vmem:[%s3 + $0xe4] sm:$0xf]
  %v5912 = vld [vmem:[%s3 + $0xe8] sm:$0xf]
  %v5913 = vld [vmem:[%s3 + $0xec] sm:$0xf]
  %v5914 = vld [vmem:[%s3 + $0xf0] sm:$0xf]
  %v5915 = vld [vmem:[%s3 + $0xf4] sm:$0xf]
  %v5916 = vld [vmem:[%s3 + $0xf8] sm:$0xf]
  %v5917 = vld [vmem:[%s3 + $0xfc] sm:$0xf]
  %v5918 = vld [vmem:[%s3 + $0x100] sm:$0xf]
  %v5919 = vld [vmem:[%s3 + $0x104] sm:$0xf]
  %v5920 = vld [vmem:[%s3 + $0x108] sm:$0xf]
  %v5921 = vld [vmem:[%s3 + $0x10c] sm:$0xf]
  %v5922 = vld [vmem:[%s3 + $0x110] sm:$0xf]
  %v5923 = vld [vmem:[%s3 + $0x114] sm:$0xf]
  %v5924 = vld [vmem:[%s3 + $0x118] sm:$0xf]
  %v5925 = vld [vmem:[%s3 + $0x11c] sm:$0xf]
  %v5926 = vld [vmem:[%s3 + $0x120] sm:$0xf]
  %v5927 = vld [vmem:[%s3 + $0x124] sm:$0xf]
  %v5928 = vld [vmem:[%s3 + $0x128] sm:$0xf]
  %v5929 = vld [vmem:[%s3 + $0x12c] sm:$0xf]
  %v5930 = vld [vmem:[%s3 + $0x130] sm:$0xf]
  %v5931 = vld [vmem:[%s3 + $0x134] sm:$0xf]
  %v5932 = vld [vmem:[%s3 + $0x138] sm:$0xf]
  %v5933 = vld [vmem:[%s3 + $0x13c] sm:$0xf]
  %v5934 = vld [vmem:[%s3 + $0x140] sm:$0xf]
  %v5935 = vld [vmem:[%s3 + $0x144] sm:$0xf]
  %v5936 = vld [vmem:[%s3 + $0x148] sm:$0xf]
  %v5937 = vld [vmem:[%s3 + $0x14c] sm:$0xf]
  %v5938 = vld [vmem:[%s3 + $0x150] sm:$0xf]
  %v5939 = vld [vmem:[%s3 + $0x154] sm:$0xf]
  %v5940 = vld [vmem:[%s3 + $0x158] sm:$0xf]
  %v5941 = vld [vmem:[%s3 + $0x15c] sm:$0xf]
  %v5942 = vld [vmem:[%s3 + $0x160] sm:$0xf]
  %v5943 = vld [vmem:[%s3 + $0x164] sm:$0xf]
  %v5944 = vld [vmem:[%s3 + $0x168] sm:$0xf]
  %v5945 = vld [vmem:[%s3 + $0x16c] sm:$0xf]
  %v5946 = vld [vmem:[%s3 + $0x170] sm:$0xf]
  %v5947 = vld [vmem:[%s3 + $0x174] sm:$0xf]
  %v5948 = vld [vmem:[%s3 + $0x178] sm:$0xf]
  %v5949 = vld [vmem:[%s3 + $0x17c] sm:$0xf]
  %v5950 = vld [vmem:[%s3 + $0x180] sm:$0xf]
  %v5951 = vld [vmem:[%s3 + $0x184] sm:$0xf]
  %v5952 = vld [vmem:[%s3 + $0x188] sm:$0xf]
  %v5953 = vld [vmem:[%s3 + $0x18c] sm:$0xf]
  %v5954 = vld [vmem:[%s3 + $0x190] sm:$0xf]
  %v5955 = vld [vmem:[%s3 + $0x194] sm:$0xf]
  %v5956 = vld [vmem:[%s3 + $0x198] sm:$0xf]
  %v5957 = vld [vmem:[%s3 + $0x19c] sm:$0xf]
  %v5958 = vld [vmem:[%s3 + $0x1a0] sm:$0xf]
  %v5959 = vld [vmem:[%s3 + $0x1a4] sm:$0xf]
  %v5960 = vld [vmem:[%s3 + $0x1a8] sm:$0xf]
  %v5961 = vld [vmem:[%s3 + $0x1ac] sm:$0xf]
  %v5962 = vld [vmem:[%s3 + $0x1b0] sm:$0xf]
  %v5963 = vld [vmem:[%s3 + $0x1b4] sm:$0xf]
  %v5964 = vld [vmem:[%s3 + $0x1b8] sm:$0xf]
  %v5965 = vld [vmem:[%s3 + $0x1bc] sm:$0xf]
  %v5966 = vld [vmem:[%s3 + $0x1c0] sm:$0xf]
  %v5967 = vld [vmem:[%s3 + $0x1c4] sm:$0xf]
  %v5968 = vld [vmem:[%s3 + $0x1c8] sm:$0xf]
  %v5969 = vld [vmem:[%s3 + $0x1cc] sm:$0xf]
  %v5970 = vld [vmem:[%s3 + $0x1d0] sm:$0xf]
  %v5971 = vld [vmem:[%s3 + $0x1d4] sm:$0xf]
  %v5972 = vld [vmem:[%s3 + $0x1d8] sm:$0xf]
  %v5973 = vld [vmem:[%s3 + $0x1dc] sm:$0xf]
  %v5974 = vld [vmem:[%s3 + $0x1e0] sm:$0xf]
  %v5975 = vld [vmem:[%s3 + $0x1e4] sm:$0xf]
  %v5976 = vld [vmem:[%s3 + $0x1e8] sm:$0xf]
  %v5977 = vld [vmem:[%s3 + $0x1ec] sm:$0xf]
  %v5978 = vld [vmem:[%s3 + $0x1f0] sm:$0xf]
  %v5979 = vld [vmem:[%s3 + $0x1f4] sm:$0xf]
  %v5980 = vld [vmem:[%s3 + $0x1f8] sm:$0xf]
  %v5981 = vld [vmem:[%s3 + $0x1fc] sm:$0xf]
  %v5982 = vld [vmem:[%s3 + $0x200] sm:$0xf]
  %v5983 = vld [vmem:[%s3 + $0x204] sm:$0xf]
  %v5984 = vld [vmem:[%s3 + $0x208] sm:$0xf]
  %v5985 = vld [vmem:[%s3 + $0x20c] sm:$0xf]
  %v5986 = vld [vmem:[%s3 + $0x210] sm:$0xf]
  %v5987 = vld [vmem:[%s3 + $0x214] sm:$0xf]
  %v5988 = vld [vmem:[%s3 + $0x218] sm:$0xf]
  %v5989 = vld [vmem:[%s3 + $0x21c] sm:$0xf]
  %v5990 = vld [vmem:[%s3 + $0x220] sm:$0xf]
  %v5991 = vld [vmem:[%s3 + $0x224] sm:$0xf]
  %v5992 = vld [vmem:[%s3 + $0x228] sm:$0xf]
  %v5993 = vld [vmem:[%s3 + $0x22c] sm:$0xf]
  %v5994 = vld [vmem:[%s3 + $0x230] sm:$0xf]
  %v5995 = vld [vmem:[%s3 + $0x234] sm:$0xf]
  %v5996 = vld [vmem:[%s3 + $0x238] sm:$0xf]
  %v5997 = vld [vmem:[%s3 + $0x23c] sm:$0xf]
  %v5998 = vld [vmem:[%s3 + $0x240] sm:$0xf]
  %v5999 = vld [vmem:[%s3 + $0x244] sm:$0xf]
  %v6000 = vld [vmem:[%s3 + $0x248] sm:$0xf]
  %v6001 = vld [vmem:[%s3 + $0x24c] sm:$0xf]
  %v6002 = vld [vmem:[%s3 + $0x250] sm:$0xf]
  %v6003 = vld [vmem:[%s3 + $0x254] sm:$0xf]
  %v6004 = vld [vmem:[%s3 + $0x258] sm:$0xf]
  %v6005 = vld [vmem:[%s3 + $0x25c] sm:$0xf]
  %v6006 = vld [vmem:[%s3 + $0x260] sm:$0xf]
  %v6007 = vld [vmem:[%s3 + $0x264] sm:$0xf]
  %v6008 = vld [vmem:[%s3 + $0x268] sm:$0xf]
  %v6009 = vld [vmem:[%s3 + $0x26c] sm:$0xf]
  %v6010 = vld [vmem:[%s3 + $0x270] sm:$0xf]
  %v6011 = vld [vmem:[%s3 + $0x274] sm:$0xf]
  %v6012 = vld [vmem:[%s3 + $0x278] sm:$0xf]
  %v6013 = vld [vmem:[%s3 + $0x27c] sm:$0xf]
  %v6014 = vld [vmem:[%s3 + $0x280] sm:$0xf]
  %v6015 = vld [vmem:[%s3 + $0x284] sm:$0xf]
  %v6016 = vld [vmem:[%s3 + $0x288] sm:$0xf]
  %v6017 = vld [vmem:[%s3 + $0x28c] sm:$0xf]
  %v6018 = vld [vmem:[%s3 + $0x290] sm:$0xf]
  %v6019 = vld [vmem:[%s3 + $0x294] sm:$0xf]
  %v6020 = vld [vmem:[%s3 + $0x298] sm:$0xf]
  %v6021 = vld [vmem:[%s3 + $0x29c] sm:$0xf]
  %v6022 = vld [vmem:[%s3 + $0x2a0] sm:$0xf]
  %v6023 = vld [vmem:[%s3 + $0x2a4] sm:$0xf]
  %v6024 = vld [vmem:[%s3 + $0x2a8] sm:$0xf]
  %v6025 = vld [vmem:[%s3 + $0x2ac] sm:$0xf]
  %v6026 = vld [vmem:[%s3 + $0x2b0] sm:$0xf]
  %v6027 = vld [vmem:[%s3 + $0x2b4] sm:$0xf]
  %v6028 = vld [vmem:[%s3 + $0x2b8] sm:$0xf]
  %v6029 = vld [vmem:[%s3 + $0x2bc] sm:$0xf]
  %v6030 = vld [vmem:[%s3 + $0x2c0] sm:$0xf]
  %v6031 = vld [vmem:[%s3 + $0x2c4] sm:$0xf]
  %v6032 = vld [vmem:[%s3 + $0x2c8] sm:$0xf]
  %v6033 = vld [vmem:[%s3 + $0x2cc] sm:$0xf]
  %v6034 = vld [vmem:[%s3 + $0x2d0] sm:$0xf]
  %v6035 = vld [vmem:[%s3 + $0x2d4] sm:$0xf]
  %v6036 = vld [vmem:[%s3 + $0x2d8] sm:$0xf]
  %v6037 = vld [vmem:[%s3 + $0x2dc] sm:$0xf]
  %v6038 = vld [vmem:[%s3 + $0x2e0] sm:$0xf]
  %v6039 = vld [vmem:[%s3 + $0x2e4] sm:$0xf]
  %v6040 = vld [vmem:[%s3 + $0x2e8] sm:$0xf]
  %v6041 = vld [vmem:[%s3 + $0x2ec] sm:$0xf]
  %v6042 = vld [vmem:[%s3 + $0x2f0] sm:$0xf]
  %v6043 = vld [vmem:[%s3 + $0x2f4] sm:$0xf]
  %v6044 = vld [vmem:[%s3 + $0x2f8] sm:$0xf]
  %v6045 = vld [vmem:[%s3 + $0x2fc] sm:$0xf]
  %v6046 = vld [vmem:[%s3 + $0x300] sm:$0xf]
  %v6047 = vld [vmem:[%s3 + $0x304] sm:$0xf]
  %v6048 = vld [vmem:[%s3 + $0x308] sm:$0xf]
  %v6049 = vld [vmem:[%s3 + $0x30c] sm:$0xf]
  %v6246 = vunpack.c.l.b16 %v5854
  %v6247 = vunpack.c.l.b16 %v5855
  %v6248 = vunpack.c.l.b16 %v5856
  %v6249 = vunpack.c.l.b16 %v5857
  %v6250 = vunpack.c.l.b16 %v5858
  %v6251 = vunpack.c.l.b16 %v5859
  %v6252 = vunpack.c.l.b16 %v5860
  %v6253 = vunpack.c.l.b16 %v5861
  %v6254 = vunpack.c.l.b16 %v5862
  %v6255 = vunpack.c.l.b16 %v5863
  %v6256 = vunpack.c.l.b16 %v5864
  %v6257 = vunpack.c.l.b16 %v5865
  %v6258 = vunpack.c.l.b16 %v5866
  %v6259 = vunpack.c.l.b16 %v5867
  %v6260 = vunpack.c.l.b16 %v5868
  %v6261 = vunpack.c.l.b16 %v5869
  %v6262 = vunpack.c.l.b16 %v5870
  %v6263 = vunpack.c.l.b16 %v5871
  %v6264 = vunpack.c.l.b16 %v5872
  %v6265 = vunpack.c.l.b16 %v5873
  %v6266 = vunpack.c.l.b16 %v5874
  %v6267 = vunpack.c.l.b16 %v5875
  %v6268 = vunpack.c.l.b16 %v5876
  %v6269 = vunpack.c.l.b16 %v5877
  %v6270 = vunpack.c.l.b16 %v5878
  %v6271 = vunpack.c.l.b16 %v5879
  %v6272 = vunpack.c.l.b16 %v5880
  %v6273 = vunpack.c.l.b16 %v5881
  %v6274 = vunpack.c.l.b16 %v5882
  %v6275 = vunpack.c.l.b16 %v5883
  %v6276 = vunpack.c.l.b16 %v5884
  %v6277 = vunpack.c.l.b16 %v5885
  %v6278 = vunpack.c.l.b16 %v5886
  %v6279 = vunpack.c.l.b16 %v5887
  %v6280 = vunpack.c.l.b16 %v5888
  %v6281 = vunpack.c.l.b16 %v5889
  %v6282 = vunpack.c.l.b16 %v5890
  %v6283 = vunpack.c.l.b16 %v5891
  %v6284 = vunpack.c.l.b16 %v5892
  %v6285 = vunpack.c.l.b16 %v5893
  %v6286 = vunpack.c.l.b16 %v5894
  %v6287 = vunpack.c.l.b16 %v5895
  %v6288 = vunpack.c.l.b16 %v5896
  %v6289 = vunpack.c.l.b16 %v5897
  %v6290 = vunpack.c.l.b16 %v5898
  %v6291 = vunpack.c.l.b16 %v5899
  %v6292 = vunpack.c.l.b16 %v5900
  %v6293 = vunpack.c.l.b16 %v5901
  %v6294 = vunpack.c.l.b16 %v5902
  %v6295 = vunpack.c.l.b16 %v5903
  %v6296 = vunpack.c.l.b16 %v5904
  %v6297 = vunpack.c.l.b16 %v5905
  %v6298 = vunpack.c.l.b16 %v5906
  %v6299 = vunpack.c.l.b16 %v5907
  %v6300 = vunpack.c.l.b16 %v5908
  %v6301 = vunpack.c.l.b16 %v5909
  %v6302 = vunpack.c.l.b16 %v5910
  %v6303 = vunpack.c.l.b16 %v5911
  %v6304 = vunpack.c.l.b16 %v5912
  %v6305 = vunpack.c.l.b16 %v5913
  %v6306 = vunpack.c.l.b16 %v5914
  %v6307 = vunpack.c.l.b16 %v5915
  %v6308 = vunpack.c.l.b16 %v5916
  %v6309 = vunpack.c.l.b16 %v5917
  %v6310 = vunpack.c.l.b16 %v5918
  %v6311 = vunpack.c.l.b16 %v5919
  %v6312 = vunpack.c.l.b16 %v5920
  %v6313 = vunpack.c.l.b16 %v5921
  %v6314 = vunpack.c.l.b16 %v5922
  %v6315 = vunpack.c.l.b16 %v5923
  %v6316 = vunpack.c.l.b16 %v5924
  %v6317 = vunpack.c.l.b16 %v5925
  %v6318 = vunpack.c.l.b16 %v5926
  %v6319 = vunpack.c.l.b16 %v5927
  %v6320 = vunpack.c.l.b16 %v5928
  %v6321 = vunpack.c.l.b16 %v5929
  %v6322 = vunpack.c.l.b16 %v5930
  %v6323 = vunpack.c.l.b16 %v5931
  %v6324 = vunpack.c.l.b16 %v5932
  %v6325 = vunpack.c.l.b16 %v5933
  %v6326 = vunpack.c.l.b16 %v5934
  %v6327 = vunpack.c.l.b16 %v5935
  %v6328 = vunpack.c.l.b16 %v5936
  %v6329 = vunpack.c.l.b16 %v5937
  %v6330 = vunpack.c.l.b16 %v5938
  %v6331 = vunpack.c.l.b16 %v5939
  %v6332 = vunpack.c.l.b16 %v5940
  %v6333 = vunpack.c.l.b16 %v5941
  %v6334 = vunpack.c.l.b16 %v5942
  %v6335 = vunpack.c.l.b16 %v5943
  %v6336 = vunpack.c.l.b16 %v5944
  %v6337 = vunpack.c.l.b16 %v5945
  %v6338 = vunpack.c.l.b16 %v5946
  %v6339 = vunpack.c.l.b16 %v5947
  %v6340 = vunpack.c.l.b16 %v5948
  %v6341 = vunpack.c.l.b16 %v5949
  %v6342 = vunpack.c.l.b16 %v5950
  %v6343 = vunpack.c.l.b16 %v5951
  %v6344 = vunpack.c.l.b16 %v5952
  %v6345 = vunpack.c.l.b16 %v5953
  %v6346 = vunpack.c.l.b16 %v5954
  %v6347 = vunpack.c.l.b16 %v5955
  %v6348 = vunpack.c.l.b16 %v5956
  %v6349 = vunpack.c.l.b16 %v5957
  %v6350 = vunpack.c.l.b16 %v5958
  %v6351 = vunpack.c.l.b16 %v5959
  %v6352 = vunpack.c.l.b16 %v5960
  %v6353 = vunpack.c.l.b16 %v5961
  %v6354 = vunpack.c.l.b16 %v5962
  %v6355 = vunpack.c.l.b16 %v5963
  %v6356 = vunpack.c.l.b16 %v5964
  %v6357 = vunpack.c.l.b16 %v5965
  %v6358 = vunpack.c.l.b16 %v5966
  %v6359 = vunpack.c.l.b16 %v5967
  %v6360 = vunpack.c.l.b16 %v5968
  %v6361 = vunpack.c.l.b16 %v5969
  %v6362 = vunpack.c.l.b16 %v5970
  %v6363 = vunpack.c.l.b16 %v5971
  %v6364 = vunpack.c.l.b16 %v5972
  %v6365 = vunpack.c.l.b16 %v5973
  %v6366 = vunpack.c.l.b16 %v5974
  %v6367 = vunpack.c.l.b16 %v5975
  %v6368 = vunpack.c.l.b16 %v5976
  %v6369 = vunpack.c.l.b16 %v5977
  %v6370 = vunpack.c.l.b16 %v5978
  %v6371 = vunpack.c.l.b16 %v5979
  %v6372 = vunpack.c.l.b16 %v5980
  %v6373 = vunpack.c.l.b16 %v5981
  %v6374 = vunpack.c.l.b16 %v5982
  %v6375 = vunpack.c.l.b16 %v5983
  %v6376 = vunpack.c.l.b16 %v5984
  %v6377 = vunpack.c.l.b16 %v5985
  %v6378 = vunpack.c.l.b16 %v5986
  %v6379 = vunpack.c.l.b16 %v5987
  %v6380 = vunpack.c.l.b16 %v5988
  %v6381 = vunpack.c.l.b16 %v5989
  %v6382 = vunpack.c.l.b16 %v5990
  %v6383 = vunpack.c.l.b16 %v5991
  %v6384 = vunpack.c.l.b16 %v5992
  %v6385 = vunpack.c.l.b16 %v5993
  %v6386 = vunpack.c.l.b16 %v5994
  %v6387 = vunpack.c.l.b16 %v5995
  %v6388 = vunpack.c.l.b16 %v5996
  %v6389 = vunpack.c.l.b16 %v5997
  %v6390 = vunpack.c.l.b16 %v5998
  %v6391 = vunpack.c.l.b16 %v5999
  %v6392 = vunpack.c.l.b16 %v6000
  %v6393 = vunpack.c.l.b16 %v6001
  %v6394 = vunpack.c.l.b16 %v6002
  %v6395 = vunpack.c.l.b16 %v6003
  %v6396 = vunpack.c.l.b16 %v6004
  %v6397 = vunpack.c.l.b16 %v6005
  %v6398 = vunpack.c.l.b16 %v6006
  %v6399 = vunpack.c.l.b16 %v6007
  %v6400 = vunpack.c.l.b16 %v6008
  %v6401 = vunpack.c.l.b16 %v6009
  %v6402 = vunpack.c.l.b16 %v6010
  %v6403 = vunpack.c.l.b16 %v6011
  %v6404 = vunpack.c.l.b16 %v6012
  %v6405 = vunpack.c.l.b16 %v6013
  %v6406 = vunpack.c.l.b16 %v6014
  %v6407 = vunpack.c.l.b16 %v6015
  %v6408 = vunpack.c.l.b16 %v6016
  %v6409 = vunpack.c.l.b16 %v6017
  %v6410 = vunpack.c.l.b16 %v6018
  %v6411 = vunpack.c.l.b16 %v6019
  %v6412 = vunpack.c.l.b16 %v6020
  %v6413 = vunpack.c.l.b16 %v6021
  %v6414 = vunpack.c.l.b16 %v6022
  %v6415 = vunpack.c.l.b16 %v6023
  %v6416 = vunpack.c.l.b16 %v6024
  %v6417 = vunpack.c.l.b16 %v6025
  %v6418 = vunpack.c.l.b16 %v6026
  %v6419 = vunpack.c.l.b16 %v6027
  %v6420 = vunpack.c.l.b16 %v6028
  %v6421 = vunpack.c.l.b16 %v6029
  %v6422 = vunpack.c.l.b16 %v6030
  %v6423 = vunpack.c.l.b16 %v6031
  %v6424 = vunpack.c.l.b16 %v6032
  %v6425 = vunpack.c.l.b16 %v6033
  %v6426 = vunpack.c.l.b16 %v6034
  %v6427 = vunpack.c.l.b16 %v6035
  %v6428 = vunpack.c.l.b16 %v6036
  %v6429 = vunpack.c.l.b16 %v6037
  %v6430 = vunpack.c.l.b16 %v6038
  %v6431 = vunpack.c.l.b16 %v6039
  %v6432 = vunpack.c.l.b16 %v6040
  %v6433 = vunpack.c.l.b16 %v6041
  %v6434 = vunpack.c.l.b16 %v6042
  %v6435 = vunpack.c.l.b16 %v6043
  %v6436 = vunpack.c.l.b16 %v6044
  %v6437 = vunpack.c.l.b16 %v6045
  %v6438 = vunpack.c.l.b16 %v6046
  %v6439 = vunpack.c.l.b16 %v6047
  %v6440 = vunpack.c.l.b16 %v6048
  %v6441 = vunpack.c.l.b16 %v6049
  %v6442 = vpack.c.b16 %v6247, %v6246
  %v6443 = vpack.c.b16 %v6249, %v6248
  %v6444 = vpack.c.b16 %v6251, %v6250
  %v6445 = vpack.c.b16 %v6253, %v6252
  %v6446 = vpack.c.b16 %v6255, %v6254
  %v6447 = vpack.c.b16 %v6257, %v6256
  %v6448 = vpack.c.b16 %v6259, %v6258
  %v6449 = vpack.c.b16 %v6261, %v6260
  %v6450 = vpack.c.b16 %v6263, %v6262
  %v6451 = vpack.c.b16 %v6265, %v6264
  %v6452 = vpack.c.b16 %v6267, %v6266
  %v6453 = vpack.c.b16 %v6269, %v6268
  %v6454 = vpack.c.b16 %v6271, %v6270
  %v6455 = vpack.c.b16 %v6273, %v6272
  %v6456 = vpack.c.b16 %v6275, %v6274
  %v6457 = vpack.c.b16 %v6277, %v6276
  %v6458 = vpack.c.b16 %v6279, %v6278
  %v6459 = vpack.c.b16 %v6281, %v6280
  %v6460 = vpack.c.b16 %v6283, %v6282
  %v6461 = vpack.c.b16 %v6285, %v6284
  %v6462 = vpack.c.b16 %v6287, %v6286
  %v6463 = vpack.c.b16 %v6289, %v6288
  %v6464 = vpack.c.b16 %v6291, %v6290
  %v6465 = vpack.c.b16 %v6293, %v6292
  %v6466 = vpack.c.b16 %v6295, %v6294
  %v6467 = vpack.c.b16 %v6297, %v6296
  %v6468 = vpack.c.b16 %v6299, %v6298
  %v6469 = vpack.c.b16 %v6301, %v6300
  %v6470 = vpack.c.b16 %v6303, %v6302
  %v6471 = vpack.c.b16 %v6305, %v6304
  %v6472 = vpack.c.b16 %v6307, %v6306
  %v6473 = vpack.c.b16 %v6309, %v6308
  %v6474 = vpack.c.b16 %v6311, %v6310
  %v6475 = vpack.c.b16 %v6313, %v6312
  %v6476 = vpack.c.b16 %v6315, %v6314
  %v6477 = vpack.c.b16 %v6317, %v6316
  %v6478 = vpack.c.b16 %v6319, %v6318
  %v6479 = vpack.c.b16 %v6321, %v6320
  %v6480 = vpack.c.b16 %v6323, %v6322
  %v6481 = vpack.c.b16 %v6325, %v6324
  %v6482 = vpack.c.b16 %v6327, %v6326
  %v6483 = vpack.c.b16 %v6329, %v6328
  %v6484 = vpack.c.b16 %v6331, %v6330
  %v6485 = vpack.c.b16 %v6333, %v6332
  %v6486 = vpack.c.b16 %v6335, %v6334
  %v6487 = vpack.c.b16 %v6337, %v6336
  %v6488 = vpack.c.b16 %v6339, %v6338
  %v6489 = vpack.c.b16 %v6341, %v6340
  %v6490 = vpack.c.b16 %v6343, %v6342
  %v6491 = vpack.c.b16 %v6345, %v6344
  %v6492 = vpack.c.b16 %v6347, %v6346
  %v6493 = vpack.c.b16 %v6349, %v6348
  %v6494 = vpack.c.b16 %v6351, %v6350
  %v6495 = vpack.c.b16 %v6353, %v6352
  %v6496 = vpack.c.b16 %v6355, %v6354
  %v6497 = vpack.c.b16 %v6357, %v6356
  %v6498 = vpack.c.b16 %v6359, %v6358
  %v6499 = vpack.c.b16 %v6361, %v6360
  %v6500 = vpack.c.b16 %v6363, %v6362
  %v6501 = vpack.c.b16 %v6365, %v6364
  %v6502 = vpack.c.b16 %v6367, %v6366
  %v6503 = vpack.c.b16 %v6369, %v6368
  %v6504 = vpack.c.b16 %v6371, %v6370
  %v6505 = vpack.c.b16 %v6373, %v6372
  %v6506 = vpack.c.b16 %v6375, %v6374
  %v6507 = vpack.c.b16 %v6377, %v6376
  %v6508 = vpack.c.b16 %v6379, %v6378
  %v6509 = vpack.c.b16 %v6381, %v6380
  %v6510 = vpack.c.b16 %v6383, %v6382
  %v6511 = vpack.c.b16 %v6385, %v6384
  %v6512 = vpack.c.b16 %v6387, %v6386
  %v6513 = vpack.c.b16 %v6389, %v6388
  %v6514 = vpack.c.b16 %v6391, %v6390
  %v6515 = vpack.c.b16 %v6393, %v6392
  %v6516 = vpack.c.b16 %v6395, %v6394
  %v6517 = vpack.c.b16 %v6397, %v6396
  %v6518 = vpack.c.b16 %v6399, %v6398
  %v6519 = vpack.c.b16 %v6401, %v6400
  %v6520 = vpack.c.b16 %v6403, %v6402
  %v6521 = vpack.c.b16 %v6405, %v6404
  %v6522 = vpack.c.b16 %v6407, %v6406
  %v6523 = vpack.c.b16 %v6409, %v6408
  %v6524 = vpack.c.b16 %v6411, %v6410
  %v6525 = vpack.c.b16 %v6413, %v6412
  %v6526 = vpack.c.b16 %v6415, %v6414
  %v6527 = vpack.c.b16 %v6417, %v6416
  %v6528 = vpack.c.b16 %v6419, %v6418
  %v6529 = vpack.c.b16 %v6421, %v6420
  %v6530 = vpack.c.b16 %v6423, %v6422
  %v6531 = vpack.c.b16 %v6425, %v6424
  %v6532 = vpack.c.b16 %v6427, %v6426
  %v6533 = vpack.c.b16 %v6429, %v6428
  %v6534 = vpack.c.b16 %v6431, %v6430
  %v6535 = vpack.c.b16 %v6433, %v6432
  %v6536 = vpack.c.b16 %v6435, %v6434
  %v6537 = vpack.c.b16 %v6437, %v6436
  %v6538 = vpack.c.b16 %v6439, %v6438
  %v6539 = vpack.c.b16 %v6441, %v6440
  %v6541 = vsel %vm749, %v6442, 0
  %v6544 = vsel %vm749, %v6443, 0
  %v6547 = vsel %vm749, %v6444, 0
  %v6550 = vsel %vm749, %v6445, 0
  %v6553 = vsel %vm749, %v6446, 0
  %v6556 = vsel %vm749, %v6447, 0
  %v6559 = vsel %vm749, %v6448, 0
  %v6562 = vsel %vm749, %v6449, 0
  %v6565 = vsel %vm749, %v6450, 0
  %v6568 = vsel %vm749, %v6451, 0
  %v6571 = vsel %vm749, %v6452, 0
  %v6574 = vsel %vm749, %v6453, 0
  %v6577 = vsel %vm749, %v6454, 0
  %v6580 = vsel %vm749, %v6455, 0
  %v6583 = vsel %vm749, %v6456, 0
  %v6586 = vsel %vm749, %v6457, 0
  %v6589 = vsel %vm749, %v6458, 0
  %v6592 = vsel %vm749, %v6459, 0
  %v6595 = vsel %vm749, %v6460, 0
  %v6598 = vsel %vm749, %v6461, 0
  %v6601 = vsel %vm749, %v6462, 0
  %v6604 = vsel %vm749, %v6463, 0
  %v6607 = vsel %vm749, %v6464, 0
  %v6610 = vsel %vm749, %v6465, 0
  %v6613 = vsel %vm749, %v6466, 0
  %v6616 = vsel %vm749, %v6467, 0
  %v6619 = vsel %vm749, %v6468, 0
  %v6622 = vsel %vm749, %v6469, 0
  %v6625 = vsel %vm749, %v6470, 0
  %v6628 = vsel %vm749, %v6471, 0
  %v6631 = vsel %vm749, %v6472, 0
  %v6634 = vsel %vm749, %v6473, 0
  %v6637 = vsel %vm749, %v6474, 0
  %v6640 = vsel %vm749, %v6475, 0
  %v6643 = vsel %vm749, %v6476, 0
  %v6646 = vsel %vm749, %v6477, 0
  %v6649 = vsel %vm749, %v6478, 0
  %v6652 = vsel %vm749, %v6479, 0
  %v6655 = vsel %vm749, %v6480, 0
  %v6658 = vsel %vm749, %v6481, 0
  %v6661 = vsel %vm749, %v6482, 0
  %v6664 = vsel %vm749, %v6483, 0
  %v6667 = vsel %vm749, %v6484, 0
  %v6670 = vsel %vm749, %v6485, 0
  %v6673 = vsel %vm749, %v6486, 0
  %v6676 = vsel %vm749, %v6487, 0
  %v6679 = vsel %vm749, %v6488, 0
  %v6682 = vsel %vm749, %v6489, 0
  %v6685 = vsel %vm749, %v6490, 0
  %v6688 = vsel %vm749, %v6491, 0
  %v6691 = vsel %vm749, %v6492, 0
  %v6694 = vsel %vm749, %v6493, 0
  %v6697 = vsel %vm749, %v6494, 0
  %v6700 = vsel %vm749, %v6495, 0
  %v6703 = vsel %vm749, %v6496, 0
  %v6706 = vsel %vm749, %v6497, 0
  %v6709 = vsel %vm749, %v6498, 0
  %v6712 = vsel %vm749, %v6499, 0
  %v6715 = vsel %vm749, %v6500, 0
  %v6718 = vsel %vm749, %v6501, 0
  %v6721 = vsel %vm749, %v6502, 0
  %v6724 = vsel %vm749, %v6503, 0
  %v6727 = vsel %vm749, %v6504, 0
  %v6730 = vsel %vm749, %v6505, 0
  %v6733 = vsel %vm749, %v6506, 0
  %v6736 = vsel %vm749, %v6507, 0
  %v6739 = vsel %vm749, %v6508, 0
  %v6742 = vsel %vm749, %v6509, 0
  %v6745 = vsel %vm749, %v6510, 0
  %v6748 = vsel %vm749, %v6511, 0
  %v6751 = vsel %vm749, %v6512, 0
  %v6754 = vsel %vm749, %v6513, 0
  %v6757 = vsel %vm749, %v6514, 0
  %v6760 = vsel %vm749, %v6515, 0
  %v6763 = vsel %vm749, %v6516, 0
  %v6766 = vsel %vm749, %v6517, 0
  %v6769 = vsel %vm749, %v6518, 0
  %v6772 = vsel %vm749, %v6519, 0
  %v6775 = vsel %vm749, %v6520, 0
  %v6778 = vsel %vm749, %v6521, 0
  %v6781 = vsel %vm749, %v6522, 0
  %v6784 = vsel %vm749, %v6523, 0
  %v6787 = vsel %vm749, %v6524, 0
  %v6790 = vsel %vm749, %v6525, 0
  %v6793 = vsel %vm749, %v6526, 0
  %v6796 = vsel %vm749, %v6527, 0
  %v6799 = vsel %vm749, %v6528, 0
  %v6802 = vsel %vm749, %v6529, 0
  %v6805 = vsel %vm749, %v6530, 0
  %v6808 = vsel %vm749, %v6531, 0
  %v6811 = vsel %vm749, %v6532, 0
  %v6814 = vsel %vm749, %v6533, 0
  %v6817 = vsel %vm749, %v6534, 0
  %v6820 = vsel %vm749, %v6535, 0
  %v6823 = vsel %vm749, %v6536, 0
  %v6826 = vsel %vm749, %v6537, 0
  %v6829 = vsel %vm749, %v6538, 0
  %v6832 = vsel %vm749, %v6539, 0
  %6834 = vmatprep.subr.bf16.mxu0 0
  %6835 = vmatpush1.bf16.msra.mxu0 %v740
  %6836 = vmatprep.subr.bf16.mxu0 0
  %6837 = vmatpush1.bf16.msra.mxu0 %v741
  %6838 = vmatprep.subr.bf16.mxu0 0
  %6839 = vmatpush1.bf16.msra.mxu0 %v742
  %6840 = vmatprep.subr.bf16.mxu0 0
  %6841 = vmatpush1.bf16.msra.mxu0 %v743
  %6842 = vmatprep.subr.bf16.mxu0 0
  %6843 = vmatpush1.bf16.msra.mxu0 %v1049
  %6844 = vmatprep.subr.bf16.mxu0 0
  %6845 = vmatpush1.bf16.msra.mxu0 0
  %6846 = vmatprep.subr.bf16.mxu0 0
  %6847 = vmatpush1.bf16.msra.mxu0 0
  %6848 = vmatprep.subr.bf16.mxu0 0
  %6849 = vmatpush1.bf16.msra.mxu0 0
  %6850 = vmatprep.subr.bf16.mxu0 0
  %6851 = vmatpush1.bf16.msra.mxu0 0
  %6852 = vmatprep.subr.bf16.mxu0 0
  %6853 = vmatpush1.bf16.msra.mxu0 0
  %6854 = vmatprep.subr.bf16.mxu0 0
  %6855 = vmatpush1.bf16.msra.mxu0 0
  %6856 = vmatprep.subr.bf16.mxu0 0
  %6857 = vmatpush1.bf16.msra.mxu0 0
  %6858 = vmatprep.subr.bf16.mxu0 0
  %6859 = vmatpush1.bf16.msra.mxu0 0
  %6860 = vmatprep.subr.bf16.mxu0 0
  %6861 = vmatpush1.bf16.msra.mxu0 0
  %6862 = vmatprep.subr.bf16.mxu0 0
  %6863 = vmatpush1.bf16.msra.mxu0 0
  %6864 = vmatprep.subr.bf16.mxu0 0
  %6865 = vmatpush1.bf16.msra.mxu0 0
  %6866 = vmatprep.mubr.bf16.mxu0 0
  %6867 = vmatmul.mubr.bf16.gmra.mrb[0].mxu0 %v6541
  %v6868 = vpop.f32.mrb[0].mxu0
  %v6869 = vadd.f32 0.0, %v6868
  %v6870 = vpop.f32.mrb[0].mxu0
  %v6871 = vpop.f32.mrb[0].mxu0
  %v6872 = vadd.f32 0.0, %v6871
  %v6873 = vpop.f32.mrb[0].mxu0
  %6874 = vmatprep.mubr.bf16.mxu0 0
  %6875 = vmatmul.mubr.bf16.gmra.mrb[0].mxu0 %v6544
  %v6876 = vpop.f32.mrb[0].mxu0
  %v6877 = vadd.f32 0.0, %v6876
  %v6878 = vpop.f32.mrb[0].mxu0
  %v6879 = vpop.f32.mrb[0].mxu0
  %v6880 = vadd.f32 0.0, %v6879
  %v6881 = vpop.f32.mrb[0].mxu0
  %6882 = vmatprep.mubr.bf16.mxu0 0
  %6883 = vmatmul.mubr.bf16.gmra.mrb[0].mxu0 %v6547
  %v6884 = vpop.f32.mrb[0].mxu0
  %v6885 = vadd.f32 0.0, %v6884
  %v6886 = vpop.f32.mrb[0].mxu0
  %v6887 = vpop.f32.mrb[0].mxu0
  %v6888 = vadd.f32 0.0, %v6887
  %v6889 = vpop.f32.mrb[0].mxu0
  %6890 = vmatprep.mubr.bf16.mxu0 0
  %6891 = vmatmul.mubr.bf16.gmra.mrb[0].mxu0 %v6550
  %v6892 = vpop.f32.mrb[0].mxu0
  %v6893 = vadd.f32 0.0, %v6892
  %v6894 = vpop.f32.mrb[0].mxu0
  %v6895 = vpop.f32.mrb[0].mxu0
  %v6896 = vadd.f32 0.0, %v6895
  %v6897 = vpop.f32.mrb[0].mxu0
  %6898 = vmatprep.mubr.bf16.mxu0 0
  %6899 = vmatmul.mubr.bf16.gmra.mrb[0].mxu0 %v6553
  %v6900 = vpop.f32.mrb[0].mxu0
  %v6901 = vadd.f32 0.0, %v6900
  %v6902 = vpop.f32.mrb[0].mxu0
  %v6903 = vpop.f32.mrb[0].mxu0
  %v6904 = vadd.f32 0.0, %v6903
  %v6905 = vpop.f32.mrb[0].mxu0
  %6906 = vmatprep.mubr.bf16.mxu0 0
  %6907 = vmatmul.mubr.bf16.gmra.mrb[0].mxu0 %v6556
  %v6908 = vpop.f32.mrb[0].mxu0
  %v6909 = vadd.f32 0.0, %v6908
  %v6910 = vpop.f32.mrb[0].mxu0
  %v6911 = vpop.f32.mrb[0].mxu0
  %v6912 = vadd.f32 0.0, %v6911
  %v6913 = vpop.f32.mrb[0].mxu0
  %6914 = vmatprep.mubr.bf16.mxu0 0
  %6915 = vmatmul.mubr.bf16.gmra.mrb[0].mxu0 %v6559
  %v6916 = vpop.f32.mrb[0].mxu0
  %v6917 = vadd.f32 0.0, %v6916
  %v6918 = vpop.f32.mrb[0].mxu0
  %v6919 = vpop.f32.mrb[0].mxu0
  %v6920 = vadd.f32 0.0, %v6919
  %v6921 = vpop.f32.mrb[0].mxu0
  %6922 = vmatprep.mubr.bf16.mxu0 0
  %6923 = vmatmul.mubr.bf16.gmra.mrb[0].mxu0 %v6562
  %v6924 = vpop.f32.mrb[0].mxu0
  %v6925 = vadd.f32 0.0, %v6924
  %v6926 = vpop.f32.mrb[0].mxu0
  %v6927 = vpop.f32.mrb[0].mxu0
  %v6928 = vadd.f32 0.0, %v6927
  %v6929 = vpop.f32.mrb[0].mxu0
  %6930 = vmatprep.mubr.bf16.mxu0 0
  %6931 = vmatmul.mubr.bf16.gmra.mrb[0].mxu0 %v6565
  %v6932 = vpop.f32.mrb[0].mxu0
  %v6933 = vadd.f32 0.0, %v6932
  %v6934 = vpop.f32.mrb[0].mxu0
  %v6935 = vpop.f32.mrb[0].mxu0
  %v6936 = vadd.f32 0.0, %v6935
  %v6937 = vpop.f32.mrb[0].mxu0
  %6938 = vmatprep.mubr.bf16.mxu0 0
  %6939 = vmatmul.mubr.bf16.gmra.mrb[0].mxu0 %v6568
  %v6940 = vpop.f32.mrb[0].mxu0
  %v6941 = vadd.f32 0.0, %v6940
  %v6942 = vpop.f32.mrb[0].mxu0
  %v6943 = vpop.f32.mrb[0].mxu0
  %v6944 = vadd.f32 0.0, %v6943
  %v6945 = vpop.f32.mrb[0].mxu0
  %6946 = vmatprep.mubr.bf16.mxu0 0
  %6947 = vmatmul.mubr.bf16.gmra.mrb[0].mxu0 %v6571
  %v6948 = vpop.f32.mrb[0].mxu0
  %v6949 = vadd.f32 0.0, %v6948
  %v6950 = vpop.f32.mrb[0].mxu0
  %v6951 = vpop.f32.mrb[0].mxu0
  %v6952 = vadd.f32 0.0, %v6951
  %v6953 = vpop.f32.mrb[0].mxu0
  %6954 = vmatprep.mubr.bf16.mxu0 0
  %6955 = vmatmul.mubr.bf16.gmra.mrb[0].mxu0 %v6574
  %v6956 = vpop.f32.mrb[0].mxu0
  %v6957 = vadd.f32 0.0, %v6956
  %v6958 = vpop.f32.mrb[0].mxu0
  %v6959 = vpop.f32.mrb[0].mxu0
  %v6960 = vadd.f32 0.0, %v6959
  %v6961 = vpop.f32.mrb[0].mxu0
  %6962 = vmatprep.mubr.bf16.mxu0 0
  %6963 = vmatmul.mubr.bf16.gmra.mrb[0].mxu0 %v6577
  %v6964 = vpop.f32.mrb[0].mxu0
  %v6965 = vadd.f32 0.0, %v6964
  %v6966 = vpop.f32.mrb[0].mxu0
  %v6967 = vpop.f32.mrb[0].mxu0
  %v6968 = vadd.f32 0.0, %v6967
  %v6969 = vpop.f32.mrb[0].mxu0
  %6970 = vmatprep.mubr.bf16.mxu0 0
  %6971 = vmatmul.mubr.bf16.gmra.mrb[0].mxu0 %v6580
  %v6972 = vpop.f32.mrb[0].mxu0
  %v6973 = vadd.f32 0.0, %v6972
  %v6974 = vpop.f32.mrb[0].mxu0
  %v6975 = vpop.f32.mrb[0].mxu0
  %v6976 = vadd.f32 0.0, %v6975
  %v6977 = vpop.f32.mrb[0].mxu0
  %6978 = vmatprep.mubr.bf16.mxu0 0
  %6979 = vmatmul.mubr.bf16.gmra.mrb[0].mxu0 %v6583
  %v6980 = vpop.f32.mrb[0].mxu0
  %v6981 = vadd.f32 0.0, %v6980
  %v6982 = vpop.f32.mrb[0].mxu0
  %v6983 = vpop.f32.mrb[0].mxu0
  %v6984 = vadd.f32 0.0, %v6983
  %v6985 = vpop.f32.mrb[0].mxu0
  %6986 = vmatprep.mubr.bf16.mxu0 0
  %6987 = vmatmul.mubr.bf16.gmra.mrb[0].mxu0 %v6586
  %v6988 = vpop.f32.mrb[0].mxu0
  %v6989 = vadd.f32 0.0, %v6988
  %v6990 = vpop.f32.mrb[0].mxu0
  %v6991 = vpop.f32.mrb[0].mxu0
  %v6992 = vadd.f32 0.0, %v6991
  %v6993 = vpop.f32.mrb[0].mxu0
  %6994 = vmatprep.mubr.bf16.mxu0 0
  %6995 = vmatmul.mubr.bf16.gmra.mrb[0].mxu0 %v6589
  %v6996 = vpop.f32.mrb[0].mxu0
  %v6997 = vadd.f32 0.0, %v6996
  %v6998 = vpop.f32.mrb[0].mxu0
  %v6999 = vpop.f32.mrb[0].mxu0
  %v7000 = vadd.f32 0.0, %v6999
  %v7001 = vpop.f32.mrb[0].mxu0
  %7002 = vmatprep.mubr.bf16.mxu0 0
  %7003 = vmatmul.mubr.bf16.gmra.mrb[0].mxu0 %v6592
  %v7004 = vpop.f32.mrb[0].mxu0
  %v7005 = vadd.f32 0.0, %v7004
  %v7006 = vpop.f32.mrb[0].mxu0
  %v7007 = vpop.f32.mrb[0].mxu0
  %v7008 = vadd.f32 0.0, %v7007
  %v7009 = vpop.f32.mrb[0].mxu0
  %7010 = vmatprep.mubr.bf16.mxu0 0
  %7011 = vmatmul.mubr.bf16.gmra.mrb[0].mxu0 %v6595
  %v7012 = vpop.f32.mrb[0].mxu0
  %v7013 = vadd.f32 0.0, %v7012
  %v7014 = vpop.f32.mrb[0].mxu0
  %v7015 = vpop.f32.mrb[0].mxu0
  %v7016 = vadd.f32 0.0, %v7015
  %v7017 = vpop.f32.mrb[0].mxu0
  %7018 = vmatprep.mubr.bf16.mxu0 0
  %7019 = vmatmul.mubr.bf16.gmra.mrb[0].mxu0 %v6598
  %v7020 = vpop.f32.mrb[0].mxu0
  %v7021 = vadd.f32 0.0, %v7020
  %v7022 = vpop.f32.mrb[0].mxu0
  %v7023 = vpop.f32.mrb[0].mxu0
  %v7024 = vadd.f32 0.0, %v7023
  %v7025 = vpop.f32.mrb[0].mxu0
  %7026 = vmatprep.mubr.bf16.mxu0 0
  %7027 = vmatmul.mubr.bf16.gmra.mrb[0].mxu0 %v6601
  %v7028 = vpop.f32.mrb[0].mxu0
  %v7029 = vadd.f32 0.0, %v7028
  %v7030 = vpop.f32.mrb[0].mxu0
  %v7031 = vpop.f32.mrb[0].mxu0
  %v7032 = vadd.f32 0.0, %v7031
  %v7033 = vpop.f32.mrb[0].mxu0
  %7034 = vmatprep.mubr.bf16.mxu0 0
  %7035 = vmatmul.mubr.bf16.gmra.mrb[0].mxu0 %v6604
  %v7036 = vpop.f32.mrb[0].mxu0
  %v7037 = vadd.f32 0.0, %v7036
  %v7038 = vpop.f32.mrb[0].mxu0
  %v7039 = vpop.f32.mrb[0].mxu0
  %v7040 = vadd.f32 0.0, %v7039
  %v7041 = vpop.f32.mrb[0].mxu0
  %7042 = vmatprep.mubr.bf16.mxu0 0
  %7043 = vmatmul.mubr.bf16.gmra.mrb[0].mxu0 %v6607
  %v7044 = vpop.f32.mrb[0].mxu0
  %v7045 = vadd.f32 0.0, %v7044
  %v7046 = vpop.f32.mrb[0].mxu0
  %v7047 = vpop.f32.mrb[0].mxu0
  %v7048 = vadd.f32 0.0, %v7047
  %v7049 = vpop.f32.mrb[0].mxu0
  %7050 = vmatprep.mubr.bf16.mxu0 0
  %7051 = vmatmul.mubr.bf16.gmra.mrb[0].mxu0 %v6610
  %v7052 = vpop.f32.mrb[0].mxu0
  %v7053 = vadd.f32 0.0, %v7052
  %v7054 = vpop.f32.mrb[0].mxu0
  %v7055 = vpop.f32.mrb[0].mxu0
  %v7056 = vadd.f32 0.0, %v7055
  %v7057 = vpop.f32.mrb[0].mxu0
  %7058 = vmatprep.mubr.bf16.mxu0 0
  %7059 = vmatmul.mubr.bf16.gmra.mrb[0].mxu0 %v6613
  %v7060 = vpop.f32.mrb[0].mxu0
  %v7061 = vadd.f32 0.0, %v7060
  %v7062 = vpop.f32.mrb[0].mxu0
  %v7063 = vpop.f32.mrb[0].mxu0
  %v7064 = vadd.f32 0.0, %v7063
  %v7065 = vpop.f32.mrb[0].mxu0
  %7066 = vmatprep.mubr.bf16.mxu0 0
  %7067 = vmatmul.mubr.bf16.gmra.mrb[0].mxu0 %v6616
  %v7068 = vpop.f32.mrb[0].mxu0
  %v7069 = vadd.f32 0.0, %v7068
  %v7070 = vpop.f32.mrb[0].mxu0
  %v7071 = vpop.f32.mrb[0].mxu0
  %v7072 = vadd.f32 0.0, %v7071
  %v7073 = vpop.f32.mrb[0].mxu0
  %7074 = vmatprep.mubr.bf16.mxu0 0
  %7075 = vmatmul.mubr.bf16.gmra.mrb[0].mxu0 %v6619
  %v7076 = vpop.f32.mrb[0].mxu0
  %v7077 = vadd.f32 0.0, %v7076
  %v7078 = vpop.f32.mrb[0].mxu0
  %v7079 = vpop.f32.mrb[0].mxu0
  %v7080 = vadd.f32 0.0, %v7079
  %v7081 = vpop.f32.mrb[0].mxu0
  %7082 = vmatprep.mubr.bf16.mxu0 0
  %7083 = vmatmul.mubr.bf16.gmra.mrb[0].mxu0 %v6622
  %v7084 = vpop.f32.mrb[0].mxu0
  %v7085 = vadd.f32 0.0, %v7084
  %v7086 = vpop.f32.mrb[0].mxu0
  %v7087 = vpop.f32.mrb[0].mxu0
  %v7088 = vadd.f32 0.0, %v7087
  %v7089 = vpop.f32.mrb[0].mxu0
  %7090 = vmatprep.mubr.bf16.mxu0 0
  %7091 = vmatmul.mubr.bf16.gmra.mrb[0].mxu0 %v6625
  %v7092 = vpop.f32.mrb[0].mxu0
  %v7093 = vadd.f32 0.0, %v7092
  %v7094 = vpop.f32.mrb[0].mxu0
  %v7095 = vpop.f32.mrb[0].mxu0
  %v7096 = vadd.f32 0.0, %v7095
  %v7097 = vpop.f32.mrb[0].mxu0
  %7098 = vmatprep.mubr.bf16.mxu0 0
  %7099 = vmatmul.mubr.bf16.gmra.mrb[0].mxu0 %v6628
  %v7100 = vpop.f32.mrb[0].mxu0
  %v7101 = vadd.f32 0.0, %v7100
  %v7102 = vpop.f32.mrb[0].mxu0
  %v7103 = vpop.f32.mrb[0].mxu0
  %v7104 = vadd.f32 0.0, %v7103
  %v7105 = vpop.f32.mrb[0].mxu0
  %7106 = vmatprep.mubr.bf16.mxu0 0
  %7107 = vmatmul.mubr.bf16.gmra.mrb[0].mxu0 %v6631
  %v7108 = vpop.f32.mrb[0].mxu0
  %v7109 = vadd.f32 0.0, %v7108
  %v7110 = vpop.f32.mrb[0].mxu0
  %v7111 = vpop.f32.mrb[0].mxu0
  %v7112 = vadd.f32 0.0, %v7111
  %v7113 = vpop.f32.mrb[0].mxu0
  %7114 = vmatprep.mubr.bf16.mxu0 0
  %7115 = vmatmul.mubr.bf16.gmra.mrb[0].mxu0 %v6634
  %v7116 = vpop.f32.mrb[0].mxu0
  %v7117 = vadd.f32 0.0, %v7116
  %v7118 = vpop.f32.mrb[0].mxu0
  %v7119 = vpop.f32.mrb[0].mxu0
  %v7120 = vadd.f32 0.0, %v7119
  %v7121 = vpop.f32.mrb[0].mxu0
  %7122 = vmatprep.mubr.bf16.mxu0 0
  %7123 = vmatmul.mubr.bf16.gmra.mrb[0].mxu0 %v6637
  %v7124 = vpop.f32.mrb[0].mxu0
  %v7125 = vadd.f32 0.0, %v7124
  %v7126 = vpop.f32.mrb[0].mxu0
  %v7127 = vpop.f32.mrb[0].mxu0
  %v7128 = vadd.f32 0.0, %v7127
  %v7129 = vpop.f32.mrb[0].mxu0
  %7130 = vmatprep.mubr.bf16.mxu0 0
  %7131 = vmatmul.mubr.bf16.gmra.mrb[0].mxu0 %v6640
  %v7132 = vpop.f32.mrb[0].mxu0
  %v7133 = vadd.f32 0.0, %v7132
  %v7134 = vpop.f32.mrb[0].mxu0
  %v7135 = vpop.f32.mrb[0].mxu0
  %v7136 = vadd.f32 0.0, %v7135
  %v7137 = vpop.f32.mrb[0].mxu0
  %7138 = vmatprep.mubr.bf16.mxu0 0
  %7139 = vmatmul.mubr.bf16.gmra.mrb[0].mxu0 %v6643
  %v7140 = vpop.f32.mrb[0].mxu0
  %v7141 = vadd.f32 0.0, %v7140
  %v7142 = vpop.f32.mrb[0].mxu0
  %v7143 = vpop.f32.mrb[0].mxu0
  %v7144 = vadd.f32 0.0, %v7143
  %v7145 = vpop.f32.mrb[0].mxu0
  %7146 = vmatprep.mubr.bf16.mxu0 0
  %7147 = vmatmul.mubr.bf16.gmra.mrb[0].mxu0 %v6646
  %v7148 = vpop.f32.mrb[0].mxu0
  %v7149 = vadd.f32 0.0, %v7148
  %v7150 = vpop.f32.mrb[0].mxu0
  %v7151 = vpop.f32.mrb[0].mxu0
  %v7152 = vadd.f32 0.0, %v7151
  %v7153 = vpop.f32.mrb[0].mxu0
  %7154 = vmatprep.mubr.bf16.mxu0 0
  %7155 = vmatmul.mubr.bf16.gmra.mrb[0].mxu0 %v6649
  %v7156 = vpop.f32.mrb[0].mxu0
  %v7157 = vadd.f32 0.0, %v7156
  %v7158 = vpop.f32.mrb[0].mxu0
  %v7159 = vpop.f32.mrb[0].mxu0
  %v7160 = vadd.f32 0.0, %v7159
  %v7161 = vpop.f32.mrb[0].mxu0
  %7162 = vmatprep.mubr.bf16.mxu0 0
  %7163 = vmatmul.mubr.bf16.gmra.mrb[0].mxu0 %v6652
  %v7164 = vpop.f32.mrb[0].mxu0
  %v7165 = vadd.f32 0.0, %v7164
  %v7166 = vpop.f32.mrb[0].mxu0
  %v7167 = vpop.f32.mrb[0].mxu0
  %v7168 = vadd.f32 0.0, %v7167
  %v7169 = vpop.f32.mrb[0].mxu0
  %7170 = vmatprep.mubr.bf16.mxu0 0
  %7171 = vmatmul.mubr.bf16.gmra.mrb[0].mxu0 %v6655
  %v7172 = vpop.f32.mrb[0].mxu0
  %v7173 = vadd.f32 0.0, %v7172
  %v7174 = vpop.f32.mrb[0].mxu0
  %v7175 = vpop.f32.mrb[0].mxu0
  %v7176 = vadd.f32 0.0, %v7175
  %v7177 = vpop.f32.mrb[0].mxu0
  %7178 = vmatprep.mubr.bf16.mxu0 0
  %7179 = vmatmul.mubr.bf16.gmra.mrb[0].mxu0 %v6658
  %v7180 = vpop.f32.mrb[0].mxu0
  %v7181 = vadd.f32 0.0, %v7180
  %v7182 = vpop.f32.mrb[0].mxu0
  %v7183 = vpop.f32.mrb[0].mxu0
  %v7184 = vadd.f32 0.0, %v7183
  %v7185 = vpop.f32.mrb[0].mxu0
  %7186 = vmatprep.mubr.bf16.mxu0 0
  %7187 = vmatmul.mubr.bf16.gmra.mrb[0].mxu0 %v6661
  %v7188 = vpop.f32.mrb[0].mxu0
  %v7189 = vadd.f32 0.0, %v7188
  %v7190 = vpop.f32.mrb[0].mxu0
  %v7191 = vpop.f32.mrb[0].mxu0
  %v7192 = vadd.f32 0.0, %v7191
  %v7193 = vpop.f32.mrb[0].mxu0
  %7194 = vmatprep.mubr.bf16.mxu0 0
  %7195 = vmatmul.mubr.bf16.gmra.mrb[0].mxu0 %v6664
  %v7196 = vpop.f32.mrb[0].mxu0
  %v7197 = vadd.f32 0.0, %v7196
  %v7198 = vpop.f32.mrb[0].mxu0
  %v7199 = vpop.f32.mrb[0].mxu0
  %v7200 = vadd.f32 0.0, %v7199
  %v7201 = vpop.f32.mrb[0].mxu0
  %7202 = vmatprep.mubr.bf16.mxu0 0
  %7203 = vmatmul.mubr.bf16.gmra.mrb[0].mxu0 %v6667
  %v7204 = vpop.f32.mrb[0].mxu0
  %v7205 = vadd.f32 0.0, %v7204
  %v7206 = vpop.f32.mrb[0].mxu0
  %v7207 = vpop.f32.mrb[0].mxu0
  %v7208 = vadd.f32 0.0, %v7207
  %v7209 = vpop.f32.mrb[0].mxu0
  %7210 = vmatprep.mubr.bf16.mxu0 0
  %7211 = vmatmul.mubr.bf16.gmra.mrb[0].mxu0 %v6670
  %v7212 = vpop.f32.mrb[0].mxu0
  %v7213 = vadd.f32 0.0, %v7212
  %v7214 = vpop.f32.mrb[0].mxu0
  %v7215 = vpop.f32.mrb[0].mxu0
  %v7216 = vadd.f32 0.0, %v7215
  %v7217 = vpop.f32.mrb[0].mxu0
  %7218 = vmatprep.mubr.bf16.mxu0 0
  %7219 = vmatmul.mubr.bf16.gmra.mrb[0].mxu0 %v6673
  %v7220 = vpop.f32.mrb[0].mxu0
  %v7221 = vadd.f32 0.0, %v7220
  %v7222 = vpop.f32.mrb[0].mxu0
  %v7223 = vpop.f32.mrb[0].mxu0
  %v7224 = vadd.f32 0.0, %v7223
  %v7225 = vpop.f32.mrb[0].mxu0
  %7226 = vmatprep.mubr.bf16.mxu0 0
  %7227 = vmatmul.mubr.bf16.gmra.mrb[0].mxu0 %v6676
  %v7228 = vpop.f32.mrb[0].mxu0
  %v7229 = vadd.f32 0.0, %v7228
  %v7230 = vpop.f32.mrb[0].mxu0
  %v7231 = vpop.f32.mrb[0].mxu0
  %v7232 = vadd.f32 0.0, %v7231
  %v7233 = vpop.f32.mrb[0].mxu0
  %7234 = vmatprep.mubr.bf16.mxu0 0
  %7235 = vmatmul.mubr.bf16.gmra.mrb[0].mxu0 %v6679
  %v7236 = vpop.f32.mrb[0].mxu0
  %v7237 = vadd.f32 0.0, %v7236
  %v7238 = vpop.f32.mrb[0].mxu0
  %v7239 = vpop.f32.mrb[0].mxu0
  %v7240 = vadd.f32 0.0, %v7239
  %v7241 = vpop.f32.mrb[0].mxu0
  %7242 = vmatprep.mubr.bf16.mxu0 0
  %7243 = vmatmul.mubr.bf16.gmra.mrb[0].mxu0 %v6682
  %v7244 = vpop.f32.mrb[0].mxu0
  %v7245 = vadd.f32 0.0, %v7244
  %v7246 = vpop.f32.mrb[0].mxu0
  %v7247 = vpop.f32.mrb[0].mxu0
  %v7248 = vadd.f32 0.0, %v7247
  %v7249 = vpop.f32.mrb[0].mxu0
  %7250 = vmatprep.mubr.bf16.mxu0 0
  %7251 = vmatmul.mubr.bf16.gmra.mrb[0].mxu0 %v6685
  %v7252 = vpop.f32.mrb[0].mxu0
  %v7253 = vadd.f32 0.0, %v7252
  %v7254 = vpop.f32.mrb[0].mxu0
  %v7255 = vpop.f32.mrb[0].mxu0
  %v7256 = vadd.f32 0.0, %v7255
  %v7257 = vpop.f32.mrb[0].mxu0
  %7258 = vmatprep.mubr.bf16.mxu0 0
  %7259 = vmatmul.mubr.bf16.gmra.mrb[0].mxu0 %v6688
  %v7260 = vpop.f32.mrb[0].mxu0
  %v7261 = vadd.f32 0.0, %v7260
  %v7262 = vpop.f32.mrb[0].mxu0
  %v7263 = vpop.f32.mrb[0].mxu0
  %v7264 = vadd.f32 0.0, %v7263
  %v7265 = vpop.f32.mrb[0].mxu0
  %7266 = vmatprep.mubr.bf16.mxu0 0
  %7267 = vmatmul.mubr.bf16.gmra.mrb[0].mxu0 %v6691
  %v7268 = vpop.f32.mrb[0].mxu0
  %v7269 = vadd.f32 0.0, %v7268
  %v7270 = vpop.f32.mrb[0].mxu0
  %v7271 = vpop.f32.mrb[0].mxu0
  %v7272 = vadd.f32 0.0, %v7271
  %v7273 = vpop.f32.mrb[0].mxu0
  %7274 = vmatprep.mubr.bf16.mxu0 0
  %7275 = vmatmul.mubr.bf16.gmra.mrb[0].mxu0 %v6694
  %v7276 = vpop.f32.mrb[0].mxu0
  %v7277 = vadd.f32 0.0, %v7276
  %v7278 = vpop.f32.mrb[0].mxu0
  %v7279 = vpop.f32.mrb[0].mxu0
  %v7280 = vadd.f32 0.0, %v7279
  %v7281 = vpop.f32.mrb[0].mxu0
  %7282 = vmatprep.mubr.bf16.mxu0 0
  %7283 = vmatmul.mubr.bf16.gmra.mrb[0].mxu0 %v6697
  %v7284 = vpop.f32.mrb[0].mxu0
  %v7285 = vadd.f32 0.0, %v7284
  %v7286 = vpop.f32.mrb[0].mxu0
  %v7287 = vpop.f32.mrb[0].mxu0
  %v7288 = vadd.f32 0.0, %v7287
  %v7289 = vpop.f32.mrb[0].mxu0
  %7290 = vmatprep.mubr.bf16.mxu0 0
  %7291 = vmatmul.mubr.bf16.gmra.mrb[0].mxu0 %v6700
  %v7292 = vpop.f32.mrb[0].mxu0
  %v7293 = vadd.f32 0.0, %v7292
  %v7294 = vpop.f32.mrb[0].mxu0
  %v7295 = vpop.f32.mrb[0].mxu0
  %v7296 = vadd.f32 0.0, %v7295
  %v7297 = vpop.f32.mrb[0].mxu0
  %7298 = vmatprep.mubr.bf16.mxu0 0
  %7299 = vmatmul.mubr.bf16.gmra.mrb[0].mxu0 %v6703
  %v7300 = vpop.f32.mrb[0].mxu0
  %v7301 = vadd.f32 0.0, %v7300
  %v7302 = vpop.f32.mrb[0].mxu0
  %v7303 = vpop.f32.mrb[0].mxu0
  %v7304 = vadd.f32 0.0, %v7303
  %v7305 = vpop.f32.mrb[0].mxu0
  %7306 = vmatprep.mubr.bf16.mxu0 0
  %7307 = vmatmul.mubr.bf16.gmra.mrb[0].mxu0 %v6706
  %v7308 = vpop.f32.mrb[0].mxu0
  %v7309 = vadd.f32 0.0, %v7308
  %v7310 = vpop.f32.mrb[0].mxu0
  %v7311 = vpop.f32.mrb[0].mxu0
  %v7312 = vadd.f32 0.0, %v7311
  %v7313 = vpop.f32.mrb[0].mxu0
  %7314 = vmatprep.mubr.bf16.mxu0 0
  %7315 = vmatmul.mubr.bf16.gmra.mrb[0].mxu0 %v6709
  %v7316 = vpop.f32.mrb[0].mxu0
  %v7317 = vadd.f32 0.0, %v7316
  %v7318 = vpop.f32.mrb[0].mxu0
  %v7319 = vpop.f32.mrb[0].mxu0
  %v7320 = vadd.f32 0.0, %v7319
  %v7321 = vpop.f32.mrb[0].mxu0
  %7322 = vmatprep.mubr.bf16.mxu0 0
  %7323 = vmatmul.mubr.bf16.gmra.mrb[0].mxu0 %v6712
  %v7324 = vpop.f32.mrb[0].mxu0
  %v7325 = vadd.f32 0.0, %v7324
  %v7326 = vpop.f32.mrb[0].mxu0
  %v7327 = vpop.f32.mrb[0].mxu0
  %v7328 = vadd.f32 0.0, %v7327
  %v7329 = vpop.f32.mrb[0].mxu0
  %7330 = vmatprep.mubr.bf16.mxu0 0
  %7331 = vmatmul.mubr.bf16.gmra.mrb[0].mxu0 %v6715
  %v7332 = vpop.f32.mrb[0].mxu0
  %v7333 = vadd.f32 0.0, %v7332
  %v7334 = vpop.f32.mrb[0].mxu0
  %v7335 = vpop.f32.mrb[0].mxu0
  %v7336 = vadd.f32 0.0, %v7335
  %v7337 = vpop.f32.mrb[0].mxu0
  %7338 = vmatprep.mubr.bf16.mxu0 0
  %7339 = vmatmul.mubr.bf16.gmra.mrb[0].mxu0 %v6718
  %v7340 = vpop.f32.mrb[0].mxu0
  %v7341 = vadd.f32 0.0, %v7340
  %v7342 = vpop.f32.mrb[0].mxu0
  %v7343 = vpop.f32.mrb[0].mxu0
  %v7344 = vadd.f32 0.0, %v7343
  %v7345 = vpop.f32.mrb[0].mxu0
  %7346 = vmatprep.mubr.bf16.mxu0 0
  %7347 = vmatmul.mubr.bf16.gmra.mrb[0].mxu0 %v6721
  %v7348 = vpop.f32.mrb[0].mxu0
  %v7349 = vadd.f32 0.0, %v7348
  %v7350 = vpop.f32.mrb[0].mxu0
  %v7351 = vpop.f32.mrb[0].mxu0
  %v7352 = vadd.f32 0.0, %v7351
  %v7353 = vpop.f32.mrb[0].mxu0
  %7354 = vmatprep.mubr.bf16.mxu0 0
  %7355 = vmatmul.mubr.bf16.gmra.mrb[0].mxu0 %v6724
  %v7356 = vpop.f32.mrb[0].mxu0
  %v7357 = vadd.f32 0.0, %v7356
  %v7358 = vpop.f32.mrb[0].mxu0
  %v7359 = vpop.f32.mrb[0].mxu0
  %v7360 = vadd.f32 0.0, %v7359
  %v7361 = vpop.f32.mrb[0].mxu0
  %7362 = vmatprep.mubr.bf16.mxu0 0
  %7363 = vmatmul.mubr.bf16.gmra.mrb[0].mxu0 %v6727
  %v7364 = vpop.f32.mrb[0].mxu0
  %v7365 = vadd.f32 0.0, %v7364
  %v7366 = vpop.f32.mrb[0].mxu0
  %v7367 = vpop.f32.mrb[0].mxu0
  %v7368 = vadd.f32 0.0, %v7367
  %v7369 = vpop.f32.mrb[0].mxu0
  %7370 = vmatprep.mubr.bf16.mxu0 0
  %7371 = vmatmul.mubr.bf16.gmra.mrb[0].mxu0 %v6730
  %v7372 = vpop.f32.mrb[0].mxu0
  %v7373 = vadd.f32 0.0, %v7372
  %v7374 = vpop.f32.mrb[0].mxu0
  %v7375 = vpop.f32.mrb[0].mxu0
  %v7376 = vadd.f32 0.0, %v7375
  %v7377 = vpop.f32.mrb[0].mxu0
  %7378 = vmatprep.mubr.bf16.mxu0 0
  %7379 = vmatmul.mubr.bf16.gmra.mrb[0].mxu0 %v6733
  %v7380 = vpop.f32.mrb[0].mxu0
  %v7381 = vadd.f32 0.0, %v7380
  %v7382 = vpop.f32.mrb[0].mxu0
  %v7383 = vpop.f32.mrb[0].mxu0
  %v7384 = vadd.f32 0.0, %v7383
  %v7385 = vpop.f32.mrb[0].mxu0
  %7386 = vmatprep.mubr.bf16.mxu0 0
  %7387 = vmatmul.mubr.bf16.gmra.mrb[0].mxu0 %v6736
  %v7388 = vpop.f32.mrb[0].mxu0
  %v7389 = vadd.f32 0.0, %v7388
  %v7390 = vpop.f32.mrb[0].mxu0
  %v7391 = vpop.f32.mrb[0].mxu0
  %v7392 = vadd.f32 0.0, %v7391
  %v7393 = vpop.f32.mrb[0].mxu0
  %7394 = vmatprep.mubr.bf16.mxu0 0
  %7395 = vmatmul.mubr.bf16.gmra.mrb[0].mxu0 %v6739
  %v7396 = vpop.f32.mrb[0].mxu0
  %v7397 = vadd.f32 0.0, %v7396
  %v7398 = vpop.f32.mrb[0].mxu0
  %v7399 = vpop.f32.mrb[0].mxu0
  %v7400 = vadd.f32 0.0, %v7399
  %v7401 = vpop.f32.mrb[0].mxu0
  %7402 = vmatprep.mubr.bf16.mxu0 0
  %7403 = vmatmul.mubr.bf16.gmra.mrb[0].mxu0 %v6742
  %v7404 = vpop.f32.mrb[0].mxu0
  %v7405 = vadd.f32 0.0, %v7404
  %v7406 = vpop.f32.mrb[0].mxu0
  %v7407 = vpop.f32.mrb[0].mxu0
  %v7408 = vadd.f32 0.0, %v7407
  %v7409 = vpop.f32.mrb[0].mxu0
  %7410 = vmatprep.mubr.bf16.mxu0 0
  %7411 = vmatmul.mubr.bf16.gmra.mrb[0].mxu0 %v6745
  %v7412 = vpop.f32.mrb[0].mxu0
  %v7413 = vadd.f32 0.0, %v7412
  %v7414 = vpop.f32.mrb[0].mxu0
  %v7415 = vpop.f32.mrb[0].mxu0
  %v7416 = vadd.f32 0.0, %v7415
  %v7417 = vpop.f32.mrb[0].mxu0
  %7418 = vmatprep.mubr.bf16.mxu0 0
  %7419 = vmatmul.mubr.bf16.gmra.mrb[0].mxu0 %v6748
  %v7420 = vpop.f32.mrb[0].mxu0
  %v7421 = vadd.f32 0.0, %v7420
  %v7422 = vpop.f32.mrb[0].mxu0
  %v7423 = vpop.f32.mrb[0].mxu0
  %v7424 = vadd.f32 0.0, %v7423
  %v7425 = vpop.f32.mrb[0].mxu0
  %7426 = vmatprep.mubr.bf16.mxu0 0
  %7427 = vmatmul.mubr.bf16.gmra.mrb[0].mxu0 %v6751
  %v7428 = vpop.f32.mrb[0].mxu0
  %v7429 = vadd.f32 0.0, %v7428
  %v7430 = vpop.f32.mrb[0].mxu0
  %v7431 = vpop.f32.mrb[0].mxu0
  %v7432 = vadd.f32 0.0, %v7431
  %v7433 = vpop.f32.mrb[0].mxu0
  %7434 = vmatprep.mubr.bf16.mxu0 0
  %7435 = vmatmul.mubr.bf16.gmra.mrb[0].mxu0 %v6754
  %v7436 = vpop.f32.mrb[0].mxu0
  %v7437 = vadd.f32 0.0, %v7436
  %v7438 = vpop.f32.mrb[0].mxu0
  %v7439 = vpop.f32.mrb[0].mxu0
  %v7440 = vadd.f32 0.0, %v7439
  %v7441 = vpop.f32.mrb[0].mxu0
  %7442 = vmatprep.mubr.bf16.mxu0 0
  %7443 = vmatmul.mubr.bf16.gmra.mrb[0].mxu0 %v6757
  %v7444 = vpop.f32.mrb[0].mxu0
  %v7445 = vadd.f32 0.0, %v7444
  %v7446 = vpop.f32.mrb[0].mxu0
  %v7447 = vpop.f32.mrb[0].mxu0
  %v7448 = vadd.f32 0.0, %v7447
  %v7449 = vpop.f32.mrb[0].mxu0
  %7450 = vmatprep.mubr.bf16.mxu0 0
  %7451 = vmatmul.mubr.bf16.gmra.mrb[0].mxu0 %v6760
  %v7452 = vpop.f32.mrb[0].mxu0
  %v7453 = vadd.f32 0.0, %v7452
  %v7454 = vpop.f32.mrb[0].mxu0
  %v7455 = vpop.f32.mrb[0].mxu0
  %v7456 = vadd.f32 0.0, %v7455
  %v7457 = vpop.f32.mrb[0].mxu0
  %7458 = vmatprep.mubr.bf16.mxu0 0
  %7459 = vmatmul.mubr.bf16.gmra.mrb[0].mxu0 %v6763
  %v7460 = vpop.f32.mrb[0].mxu0
  %v7461 = vadd.f32 0.0, %v7460
  %v7462 = vpop.f32.mrb[0].mxu0
  %v7463 = vpop.f32.mrb[0].mxu0
  %v7464 = vadd.f32 0.0, %v7463
  %v7465 = vpop.f32.mrb[0].mxu0
  %7466 = vmatprep.mubr.bf16.mxu0 0
  %7467 = vmatmul.mubr.bf16.gmra.mrb[0].mxu0 %v6766
  %v7468 = vpop.f32.mrb[0].mxu0
  %v7469 = vadd.f32 0.0, %v7468
  %v7470 = vpop.f32.mrb[0].mxu0
  %v7471 = vpop.f32.mrb[0].mxu0
  %v7472 = vadd.f32 0.0, %v7471
  %v7473 = vpop.f32.mrb[0].mxu0
  %7474 = vmatprep.mubr.bf16.mxu0 0
  %7475 = vmatmul.mubr.bf16.gmra.mrb[0].mxu0 %v6769
  %v7476 = vpop.f32.mrb[0].mxu0
  %v7477 = vadd.f32 0.0, %v7476
  %v7478 = vpop.f32.mrb[0].mxu0
  %v7479 = vpop.f32.mrb[0].mxu0
  %v7480 = vadd.f32 0.0, %v7479
  %v7481 = vpop.f32.mrb[0].mxu0
  %7482 = vmatprep.mubr.bf16.mxu0 0
  %7483 = vmatmul.mubr.bf16.gmra.mrb[0].mxu0 %v6772
  %v7484 = vpop.f32.mrb[0].mxu0
  %v7485 = vadd.f32 0.0, %v7484
  %v7486 = vpop.f32.mrb[0].mxu0
  %v7487 = vpop.f32.mrb[0].mxu0
  %v7488 = vadd.f32 0.0, %v7487
  %v7489 = vpop.f32.mrb[0].mxu0
  %7490 = vmatprep.mubr.bf16.mxu0 0
  %7491 = vmatmul.mubr.bf16.gmra.mrb[0].mxu0 %v6775
  %v7492 = vpop.f32.mrb[0].mxu0
  %v7493 = vadd.f32 0.0, %v7492
  %v7494 = vpop.f32.mrb[0].mxu0
  %v7495 = vpop.f32.mrb[0].mxu0
  %v7496 = vadd.f32 0.0, %v7495
  %v7497 = vpop.f32.mrb[0].mxu0
  %7498 = vmatprep.mubr.bf16.mxu0 0
  %7499 = vmatmul.mubr.bf16.gmra.mrb[0].mxu0 %v6778
  %v7500 = vpop.f32.mrb[0].mxu0
  %v7501 = vadd.f32 0.0, %v7500
  %v7502 = vpop.f32.mrb[0].mxu0
  %v7503 = vpop.f32.mrb[0].mxu0
  %v7504 = vadd.f32 0.0, %v7503
  %v7505 = vpop.f32.mrb[0].mxu0
  %7506 = vmatprep.mubr.bf16.mxu0 0
  %7507 = vmatmul.mubr.bf16.gmra.mrb[0].mxu0 %v6781
  %v7508 = vpop.f32.mrb[0].mxu0
  %v7509 = vadd.f32 0.0, %v7508
  %v7510 = vpop.f32.mrb[0].mxu0
  %v7511 = vpop.f32.mrb[0].mxu0
  %v7512 = vadd.f32 0.0, %v7511
  %v7513 = vpop.f32.mrb[0].mxu0
  %7514 = vmatprep.mubr.bf16.mxu0 0
  %7515 = vmatmul.mubr.bf16.gmra.mrb[0].mxu0 %v6784
  %v7516 = vpop.f32.mrb[0].mxu0
  %v7517 = vadd.f32 0.0, %v7516
  %v7518 = vpop.f32.mrb[0].mxu0
  %v7519 = vpop.f32.mrb[0].mxu0
  %v7520 = vadd.f32 0.0, %v7519
  %v7521 = vpop.f32.mrb[0].mxu0
  %7522 = vmatprep.mubr.bf16.mxu0 0
  %7523 = vmatmul.mubr.bf16.gmra.mrb[0].mxu0 %v6787
  %v7524 = vpop.f32.mrb[0].mxu0
  %v7525 = vadd.f32 0.0, %v7524
  %v7526 = vpop.f32.mrb[0].mxu0
  %v7527 = vpop.f32.mrb[0].mxu0
  %v7528 = vadd.f32 0.0, %v7527
  %v7529 = vpop.f32.mrb[0].mxu0
  %7530 = vmatprep.mubr.bf16.mxu0 0
  %7531 = vmatmul.mubr.bf16.gmra.mrb[0].mxu0 %v6790
  %v7532 = vpop.f32.mrb[0].mxu0
  %v7533 = vadd.f32 0.0, %v7532
  %v7534 = vpop.f32.mrb[0].mxu0
  %v7535 = vpop.f32.mrb[0].mxu0
  %v7536 = vadd.f32 0.0, %v7535
  %v7537 = vpop.f32.mrb[0].mxu0
  %7538 = vmatprep.mubr.bf16.mxu0 0
  %7539 = vmatmul.mubr.bf16.gmra.mrb[0].mxu0 %v6793
  %v7540 = vpop.f32.mrb[0].mxu0
  %v7541 = vadd.f32 0.0, %v7540
  %v7542 = vpop.f32.mrb[0].mxu0
  %v7543 = vpop.f32.mrb[0].mxu0
  %v7544 = vadd.f32 0.0, %v7543
  %v7545 = vpop.f32.mrb[0].mxu0
  %7546 = vmatprep.mubr.bf16.mxu0 0
  %7547 = vmatmul.mubr.bf16.gmra.mrb[0].mxu0 %v6796
  %v7548 = vpop.f32.mrb[0].mxu0
  %v7549 = vadd.f32 0.0, %v7548
  %v7550 = vpop.f32.mrb[0].mxu0
  %v7551 = vpop.f32.mrb[0].mxu0
  %v7552 = vadd.f32 0.0, %v7551
  %v7553 = vpop.f32.mrb[0].mxu0
  %7554 = vmatprep.mubr.bf16.mxu0 0
  %7555 = vmatmul.mubr.bf16.gmra.mrb[0].mxu0 %v6799
  %v7556 = vpop.f32.mrb[0].mxu0
  %v7557 = vadd.f32 0.0, %v7556
  %v7558 = vpop.f32.mrb[0].mxu0
  %v7559 = vpop.f32.mrb[0].mxu0
  %v7560 = vadd.f32 0.0, %v7559
  %v7561 = vpop.f32.mrb[0].mxu0
  %7562 = vmatprep.mubr.bf16.mxu0 0
  %7563 = vmatmul.mubr.bf16.gmra.mrb[0].mxu0 %v6802
  %v7564 = vpop.f32.mrb[0].mxu0
  %v7565 = vadd.f32 0.0, %v7564
  %v7566 = vpop.f32.mrb[0].mxu0
  %v7567 = vpop.f32.mrb[0].mxu0
  %v7568 = vadd.f32 0.0, %v7567
  %v7569 = vpop.f32.mrb[0].mxu0
  %7570 = vmatprep.mubr.bf16.mxu0 0
  %7571 = vmatmul.mubr.bf16.gmra.mrb[0].mxu0 %v6805
  %v7572 = vpop.f32.mrb[0].mxu0
  %v7573 = vadd.f32 0.0, %v7572
  %v7574 = vpop.f32.mrb[0].mxu0
  %v7575 = vpop.f32.mrb[0].mxu0
  %v7576 = vadd.f32 0.0, %v7575
  %v7577 = vpop.f32.mrb[0].mxu0
  %7578 = vmatprep.mubr.bf16.mxu0 0
  %7579 = vmatmul.mubr.bf16.gmra.mrb[0].mxu0 %v6808
  %v7580 = vpop.f32.mrb[0].mxu0
  %v7581 = vadd.f32 0.0, %v7580
  %v7582 = vpop.f32.mrb[0].mxu0
  %v7583 = vpop.f32.mrb[0].mxu0
  %v7584 = vadd.f32 0.0, %v7583
  %v7585 = vpop.f32.mrb[0].mxu0
  %7586 = vmatprep.mubr.bf16.mxu0 0
  %7587 = vmatmul.mubr.bf16.gmra.mrb[0].mxu0 %v6811
  %v7588 = vpop.f32.mrb[0].mxu0
  %v7589 = vadd.f32 0.0, %v7588
  %v7590 = vpop.f32.mrb[0].mxu0
  %v7591 = vpop.f32.mrb[0].mxu0
  %v7592 = vadd.f32 0.0, %v7591
  %v7593 = vpop.f32.mrb[0].mxu0
  %7594 = vmatprep.mubr.bf16.mxu0 0
  %7595 = vmatmul.mubr.bf16.gmra.mrb[0].mxu0 %v6814
  %v7596 = vpop.f32.mrb[0].mxu0
  %v7597 = vadd.f32 0.0, %v7596
  %v7598 = vpop.f32.mrb[0].mxu0
  %v7599 = vpop.f32.mrb[0].mxu0
  %v7600 = vadd.f32 0.0, %v7599
  %v7601 = vpop.f32.mrb[0].mxu0
  %7602 = vmatprep.mubr.bf16.mxu0 0
  %7603 = vmatmul.mubr.bf16.gmra.mrb[0].mxu0 %v6817
  %v7604 = vpop.f32.mrb[0].mxu0
  %v7605 = vadd.f32 0.0, %v7604
  %v7606 = vpop.f32.mrb[0].mxu0
  %v7607 = vpop.f32.mrb[0].mxu0
  %v7608 = vadd.f32 0.0, %v7607
  %v7609 = vpop.f32.mrb[0].mxu0
  %7610 = vmatprep.mubr.bf16.mxu0 0
  %7611 = vmatmul.mubr.bf16.gmra.mrb[0].mxu0 %v6820
  %v7612 = vpop.f32.mrb[0].mxu0
  %v7613 = vadd.f32 0.0, %v7612
  %v7614 = vpop.f32.mrb[0].mxu0
  %v7615 = vpop.f32.mrb[0].mxu0
  %v7616 = vadd.f32 0.0, %v7615
  %v7617 = vpop.f32.mrb[0].mxu0
  %7618 = vmatprep.mubr.bf16.mxu0 0
  %7619 = vmatmul.mubr.bf16.gmra.mrb[0].mxu0 %v6823
  %v7620 = vpop.f32.mrb[0].mxu0
  %v7621 = vadd.f32 0.0, %v7620
  %v7622 = vpop.f32.mrb[0].mxu0
  %v7623 = vpop.f32.mrb[0].mxu0
  %v7624 = vadd.f32 0.0, %v7623
  %v7625 = vpop.f32.mrb[0].mxu0
  %7626 = vmatprep.mubr.bf16.mxu0 0
  %7627 = vmatmul.mubr.bf16.gmra.mrb[0].mxu0 %v6826
  %v7628 = vpop.f32.mrb[0].mxu0
  %v7629 = vadd.f32 0.0, %v7628
  %v7630 = vpop.f32.mrb[0].mxu0
  %v7631 = vpop.f32.mrb[0].mxu0
  %v7632 = vadd.f32 0.0, %v7631
  %v7633 = vpop.f32.mrb[0].mxu0
  %7634 = vmatprep.mubr.bf16.mxu0 0
  %7635 = vmatmul.mubr.bf16.gmra.mrb[0].mxu0 %v6829
  %v7636 = vpop.f32.mrb[0].mxu0
  %v7637 = vadd.f32 0.0, %v7636
  %v7638 = vpop.f32.mrb[0].mxu0
  %v7639 = vpop.f32.mrb[0].mxu0
  %v7640 = vadd.f32 0.0, %v7639
  %v7641 = vpop.f32.mrb[0].mxu0
  %7642 = vmatprep.mubr.bf16.mxu0 0
  %7643 = vmatmul.mubr.bf16.gmra.mrb[0].mxu0 %v6832
  %v7644 = vpop.f32.mrb[0].mxu0
  %v7645 = vadd.f32 0.0, %v7644
  %v7646 = vpop.f32.mrb[0].mxu0
  %v7647 = vpop.f32.mrb[0].mxu0
  %v7648 = vadd.f32 0.0, %v7647
  %v7649 = vpop.f32.mrb[0].mxu0
  %7650 = vdwg.mxu0
  %v7651 = vmax.f32 %v5658, %v6869
  %v7652 = vmax.f32 %v5659, %v6872
  %v7653 = vmax.f32 %v5660, %v6877
  %v7654 = vmax.f32 %v5661, %v6880
  %v7655 = vmax.f32 %v5662, %v6885
  %v7656 = vmax.f32 %v5663, %v6888
  %v7657 = vmax.f32 %v5664, %v6893
  %v7658 = vmax.f32 %v5665, %v6896
  %v7659 = vmax.f32 %v5666, %v6901
  %v7660 = vmax.f32 %v5667, %v6904
  %v7661 = vmax.f32 %v5668, %v6909
  %v7662 = vmax.f32 %v5669, %v6912
  %v7663 = vmax.f32 %v5670, %v6917
  %v7664 = vmax.f32 %v5671, %v6920
  %v7665 = vmax.f32 %v5672, %v6925
  %v7666 = vmax.f32 %v5673, %v6928
  %v7667 = vmax.f32 %v5674, %v6933
  %v7668 = vmax.f32 %v5675, %v6936
  %v7669 = vmax.f32 %v5676, %v6941
  %v7670 = vmax.f32 %v5677, %v6944
  %v7671 = vmax.f32 %v5678, %v6949
  %v7672 = vmax.f32 %v5679, %v6952
  %v7673 = vmax.f32 %v5680, %v6957
  %v7674 = vmax.f32 %v5681, %v6960
  %v7675 = vmax.f32 %v5682, %v6965
  %v7676 = vmax.f32 %v5683, %v6968
  %v7677 = vmax.f32 %v5684, %v6973
  %v7678 = vmax.f32 %v5685, %v6976
  %v7679 = vmax.f32 %v5686, %v6981
  %v7680 = vmax.f32 %v5687, %v6984
  %v7681 = vmax.f32 %v5688, %v6989
  %v7682 = vmax.f32 %v5689, %v6992
  %v7683 = vmax.f32 %v5690, %v6997
  %v7684 = vmax.f32 %v5691, %v7000
  %v7685 = vmax.f32 %v5692, %v7005
  %v7686 = vmax.f32 %v5693, %v7008
  %v7687 = vmax.f32 %v5694, %v7013
  %v7688 = vmax.f32 %v5695, %v7016
  %v7689 = vmax.f32 %v5696, %v7021
  %v7690 = vmax.f32 %v5697, %v7024
  %v7691 = vmax.f32 %v5698, %v7029
  %v7692 = vmax.f32 %v5699, %v7032
  %v7693 = vmax.f32 %v5700, %v7037
  %v7694 = vmax.f32 %v5701, %v7040
  %v7695 = vmax.f32 %v5702, %v7045
  %v7696 = vmax.f32 %v5703, %v7048
  %v7697 = vmax.f32 %v5704, %v7053
  %v7698 = vmax.f32 %v5705, %v7056
  %v7699 = vmax.f32 %v5706, %v7061
  %v7700 = vmax.f32 %v5707, %v7064
  %v7701 = vmax.f32 %v5708, %v7069
  %v7702 = vmax.f32 %v5709, %v7072
  %v7703 = vmax.f32 %v5710, %v7077
  %v7704 = vmax.f32 %v5711, %v7080
  %v7705 = vmax.f32 %v5712, %v7085
  %v7706 = vmax.f32 %v5713, %v7088
  %v7707 = vmax.f32 %v5714, %v7093
  %v7708 = vmax.f32 %v5715, %v7096
  %v7709 = vmax.f32 %v5716, %v7101
  %v7710 = vmax.f32 %v5717, %v7104
  %v7711 = vmax.f32 %v5718, %v7109
  %v7712 = vmax.f32 %v5719, %v7112
  %v7713 = vmax.f32 %v5720, %v7117
  %v7714 = vmax.f32 %v5721, %v7120
  %v7715 = vmax.f32 %v5722, %v7125
  %v7716 = vmax.f32 %v5723, %v7128
  %v7717 = vmax.f32 %v5724, %v7133
  %v7718 = vmax.f32 %v5725, %v7136
  %v7719 = vmax.f32 %v5726, %v7141
  %v7720 = vmax.f32 %v5727, %v7144
  %v7721 = vmax.f32 %v5728, %v7149
  %v7722 = vmax.f32 %v5729, %v7152
  %v7723 = vmax.f32 %v5730, %v7157
  %v7724 = vmax.f32 %v5731, %v7160
  %v7725 = vmax.f32 %v5732, %v7165
  %v7726 = vmax.f32 %v5733, %v7168
  %v7727 = vmax.f32 %v5734, %v7173
  %v7728 = vmax.f32 %v5735, %v7176
  %v7729 = vmax.f32 %v5736, %v7181
  %v7730 = vmax.f32 %v5737, %v7184
  %v7731 = vmax.f32 %v5738, %v7189
  %v7732 = vmax.f32 %v5739, %v7192
  %v7733 = vmax.f32 %v5740, %v7197
  %v7734 = vmax.f32 %v5741, %v7200
  %v7735 = vmax.f32 %v5742, %v7205
  %v7736 = vmax.f32 %v5743, %v7208
  %v7737 = vmax.f32 %v5744, %v7213
  %v7738 = vmax.f32 %v5745, %v7216
  %v7739 = vmax.f32 %v5746, %v7221
  %v7740 = vmax.f32 %v5747, %v7224
  %v7741 = vmax.f32 %v5748, %v7229
  %v7742 = vmax.f32 %v5749, %v7232
  %v7743 = vmax.f32 %v5750, %v7237
  %v7744 = vmax.f32 %v5751, %v7240
  %v7745 = vmax.f32 %v5752, %v7245
  %v7746 = vmax.f32 %v5753, %v7248
  %v7747 = vmax.f32 %v5754, %v7253
  %v7748 = vmax.f32 %v5755, %v7256
  %v7749 = vmax.f32 %v5756, %v7261
  %v7750 = vmax.f32 %v5757, %v7264
  %v7751 = vmax.f32 %v5758, %v7269
  %v7752 = vmax.f32 %v5759, %v7272
  %v7753 = vmax.f32 %v5760, %v7277
  %v7754 = vmax.f32 %v5761, %v7280
  %v7755 = vmax.f32 %v5762, %v7285
  %v7756 = vmax.f32 %v5763, %v7288
  %v7757 = vmax.f32 %v5764, %v7293
  %v7758 = vmax.f32 %v5765, %v7296
  %v7759 = vmax.f32 %v5766, %v7301
  %v7760 = vmax.f32 %v5767, %v7304
  %v7761 = vmax.f32 %v5768, %v7309
  %v7762 = vmax.f32 %v5769, %v7312
  %v7763 = vmax.f32 %v5770, %v7317
  %v7764 = vmax.f32 %v5771, %v7320
  %v7765 = vmax.f32 %v5772, %v7325
  %v7766 = vmax.f32 %v5773, %v7328
  %v7767 = vmax.f32 %v5774, %v7333
  %v7768 = vmax.f32 %v5775, %v7336
  %v7769 = vmax.f32 %v5776, %v7341
  %v7770 = vmax.f32 %v5777, %v7344
  %v7771 = vmax.f32 %v5778, %v7349
  %v7772 = vmax.f32 %v5779, %v7352
  %v7773 = vmax.f32 %v5780, %v7357
  %v7774 = vmax.f32 %v5781, %v7360
  %v7775 = vmax.f32 %v5782, %v7365
  %v7776 = vmax.f32 %v5783, %v7368
  %v7777 = vmax.f32 %v5784, %v7373
  %v7778 = vmax.f32 %v5785, %v7376
  %v7779 = vmax.f32 %v5786, %v7381
  %v7780 = vmax.f32 %v5787, %v7384
  %v7781 = vmax.f32 %v5788, %v7389
  %v7782 = vmax.f32 %v5789, %v7392
  %v7783 = vmax.f32 %v5790, %v7397
  %v7784 = vmax.f32 %v5791, %v7400
  %v7785 = vmax.f32 %v5792, %v7405
  %v7786 = vmax.f32 %v5793, %v7408
  %v7787 = vmax.f32 %v5794, %v7413
  %v7788 = vmax.f32 %v5795, %v7416
  %v7789 = vmax.f32 %v5796, %v7421
  %v7790 = vmax.f32 %v5797, %v7424
  %v7791 = vmax.f32 %v5798, %v7429
  %v7792 = vmax.f32 %v5799, %v7432
  %v7793 = vmax.f32 %v5800, %v7437
  %v7794 = vmax.f32 %v5801, %v7440
  %v7795 = vmax.f32 %v5802, %v7445
  %v7796 = vmax.f32 %v5803, %v7448
  %v7797 = vmax.f32 %v5804, %v7453
  %v7798 = vmax.f32 %v5805, %v7456
  %v7799 = vmax.f32 %v5806, %v7461
  %v7800 = vmax.f32 %v5807, %v7464
  %v7801 = vmax.f32 %v5808, %v7469
  %v7802 = vmax.f32 %v5809, %v7472
  %v7803 = vmax.f32 %v5810, %v7477
  %v7804 = vmax.f32 %v5811, %v7480
  %v7805 = vmax.f32 %v5812, %v7485
  %v7806 = vmax.f32 %v5813, %v7488
  %v7807 = vmax.f32 %v5814, %v7493
  %v7808 = vmax.f32 %v5815, %v7496
  %v7809 = vmax.f32 %v5816, %v7501
  %v7810 = vmax.f32 %v5817, %v7504
  %v7811 = vmax.f32 %v5818, %v7509
  %v7812 = vmax.f32 %v5819, %v7512
  %v7813 = vmax.f32 %v5820, %v7517
  %v7814 = vmax.f32 %v5821, %v7520
  %v7815 = vmax.f32 %v5822, %v7525
  %v7816 = vmax.f32 %v5823, %v7528
  %v7817 = vmax.f32 %v5824, %v7533
  %v7818 = vmax.f32 %v5825, %v7536
  %v7819 = vmax.f32 %v5826, %v7541
  %v7820 = vmax.f32 %v5827, %v7544
  %v7821 = vmax.f32 %v5828, %v7549
  %v7822 = vmax.f32 %v5829, %v7552
  %v7823 = vmax.f32 %v5830, %v7557
  %v7824 = vmax.f32 %v5831, %v7560
  %v7825 = vmax.f32 %v5832, %v7565
  %v7826 = vmax.f32 %v5833, %v7568
  %v7827 = vmax.f32 %v5834, %v7573
  %v7828 = vmax.f32 %v5835, %v7576
  %v7829 = vmax.f32 %v5836, %v7581
  %v7830 = vmax.f32 %v5837, %v7584
  %v7831 = vmax.f32 %v5838, %v7589
  %v7832 = vmax.f32 %v5839, %v7592
  %v7833 = vmax.f32 %v5840, %v7597
  %v7834 = vmax.f32 %v5841, %v7600
  %v7835 = vmax.f32 %v5842, %v7605
  %v7836 = vmax.f32 %v5843, %v7608
  %v7837 = vmax.f32 %v5844, %v7613
  %v7838 = vmax.f32 %v5845, %v7616
  %v7839 = vmax.f32 %v5846, %v7621
  %v7840 = vmax.f32 %v5847, %v7624
  %v7841 = vmax.f32 %v5848, %v7629
  %v7842 = vmax.f32 %v5849, %v7632
  %v7843 = vmax.f32 %v5850, %v7637
  %v7844 = vmax.f32 %v5851, %v7640
  %v7845 = vmax.f32 %v5852, %v7645
  %v7846 = vmax.f32 %v5853, %v7648
  %v7847 = vld [vmem:[%s5] sm:$0x1]
  %v7849 = vlaneseq
  %v7850 = vshrl.u32 %v7849, 7
  %v7851 = vsub.s32 0, %v7850
  %v7852 = vrot.slane %v7847, %v7851
  %v7854 = vadd.f32 %v7651, %v7852
  %v7855 = vadd.f32 %v7652, %v7852
  %v7856 = vadd.f32 %v7653, %v7852
  %v7857 = vadd.f32 %v7654, %v7852
  %v7858 = vadd.f32 %v7655, %v7852
  %v7859 = vadd.f32 %v7656, %v7852
  %v7860 = vadd.f32 %v7657, %v7852
  %v7861 = vadd.f32 %v7658, %v7852
  %v7862 = vadd.f32 %v7659, %v7852
  %v7863 = vadd.f32 %v7660, %v7852
  %v7864 = vadd.f32 %v7661, %v7852
  %v7865 = vadd.f32 %v7662, %v7852
  %v7866 = vadd.f32 %v7663, %v7852
  %v7867 = vadd.f32 %v7664, %v7852
  %v7868 = vadd.f32 %v7665, %v7852
  %v7869 = vadd.f32 %v7666, %v7852
  %v7870 = vadd.f32 %v7667, %v7852
  %v7871 = vadd.f32 %v7668, %v7852
  %v7872 = vadd.f32 %v7669, %v7852
  %v7873 = vadd.f32 %v7670, %v7852
  %v7874 = vadd.f32 %v7671, %v7852
  %v7875 = vadd.f32 %v7672, %v7852
  %v7876 = vadd.f32 %v7673, %v7852
  %v7877 = vadd.f32 %v7674, %v7852
  %v7878 = vadd.f32 %v7675, %v7852
  %v7879 = vadd.f32 %v7676, %v7852
  %v7880 = vadd.f32 %v7677, %v7852
  %v7881 = vadd.f32 %v7678, %v7852
  %v7882 = vadd.f32 %v7679, %v7852
  %v7883 = vadd.f32 %v7680, %v7852
  %v7884 = vadd.f32 %v7681, %v7852
  %v7885 = vadd.f32 %v7682, %v7852
  %v7886 = vadd.f32 %v7683, %v7852
  %v7887 = vadd.f32 %v7684, %v7852
  %v7888 = vadd.f32 %v7685, %v7852
  %v7889 = vadd.f32 %v7686, %v7852
  %v7890 = vadd.f32 %v7687, %v7852
  %v7891 = vadd.f32 %v7688, %v7852
  %v7892 = vadd.f32 %v7689, %v7852
  %v7893 = vadd.f32 %v7690, %v7852
  %v7894 = vadd.f32 %v7691, %v7852
  %v7895 = vadd.f32 %v7692, %v7852
  %v7896 = vadd.f32 %v7693, %v7852
  %v7897 = vadd.f32 %v7694, %v7852
  %v7898 = vadd.f32 %v7695, %v7852
  %v7899 = vadd.f32 %v7696, %v7852
  %v7900 = vadd.f32 %v7697, %v7852
  %v7901 = vadd.f32 %v7698, %v7852
  %v7902 = vadd.f32 %v7699, %v7852
  %v7903 = vadd.f32 %v7700, %v7852
  %v7904 = vadd.f32 %v7701, %v7852
  %v7905 = vadd.f32 %v7702, %v7852
  %v7906 = vadd.f32 %v7703, %v7852
  %v7907 = vadd.f32 %v7704, %v7852
  %v7908 = vadd.f32 %v7705, %v7852
  %v7909 = vadd.f32 %v7706, %v7852
  %v7910 = vadd.f32 %v7707, %v7852
  %v7911 = vadd.f32 %v7708, %v7852
  %v7912 = vadd.f32 %v7709, %v7852
  %v7913 = vadd.f32 %v7710, %v7852
  %v7914 = vadd.f32 %v7711, %v7852
  %v7915 = vadd.f32 %v7712, %v7852
  %v7916 = vadd.f32 %v7713, %v7852
  %v7917 = vadd.f32 %v7714, %v7852
  %v7918 = vadd.f32 %v7715, %v7852
  %v7919 = vadd.f32 %v7716, %v7852
  %v7920 = vadd.f32 %v7717, %v7852
  %v7921 = vadd.f32 %v7718, %v7852
  %v7922 = vadd.f32 %v7719, %v7852
  %v7923 = vadd.f32 %v7720, %v7852
  %v7924 = vadd.f32 %v7721, %v7852
  %v7925 = vadd.f32 %v7722, %v7852
  %v7926 = vadd.f32 %v7723, %v7852
  %v7927 = vadd.f32 %v7724, %v7852
  %v7928 = vadd.f32 %v7725, %v7852
  %v7929 = vadd.f32 %v7726, %v7852
  %v7930 = vadd.f32 %v7727, %v7852
  %v7931 = vadd.f32 %v7728, %v7852
  %v7932 = vadd.f32 %v7729, %v7852
  %v7933 = vadd.f32 %v7730, %v7852
  %v7934 = vadd.f32 %v7731, %v7852
  %v7935 = vadd.f32 %v7732, %v7852
  %v7936 = vadd.f32 %v7733, %v7852
  %v7937 = vadd.f32 %v7734, %v7852
  %v7938 = vadd.f32 %v7735, %v7852
  %v7939 = vadd.f32 %v7736, %v7852
  %v7940 = vadd.f32 %v7737, %v7852
  %v7941 = vadd.f32 %v7738, %v7852
  %v7942 = vadd.f32 %v7739, %v7852
  %v7943 = vadd.f32 %v7740, %v7852
  %v7944 = vadd.f32 %v7741, %v7852
  %v7945 = vadd.f32 %v7742, %v7852
  %v7946 = vadd.f32 %v7743, %v7852
  %v7947 = vadd.f32 %v7744, %v7852
  %v7948 = vadd.f32 %v7745, %v7852
  %v7949 = vadd.f32 %v7746, %v7852
  %v7950 = vadd.f32 %v7747, %v7852
  %v7951 = vadd.f32 %v7748, %v7852
  %v7952 = vadd.f32 %v7749, %v7852
  %v7953 = vadd.f32 %v7750, %v7852
  %v7954 = vadd.f32 %v7751, %v7852
  %v7955 = vadd.f32 %v7752, %v7852
  %v7956 = vadd.f32 %v7753, %v7852
  %v7957 = vadd.f32 %v7754, %v7852
  %v7958 = vadd.f32 %v7755, %v7852
  %v7959 = vadd.f32 %v7756, %v7852
  %v7960 = vadd.f32 %v7757, %v7852
  %v7961 = vadd.f32 %v7758, %v7852
  %v7962 = vadd.f32 %v7759, %v7852
  %v7963 = vadd.f32 %v7760, %v7852
  %v7964 = vadd.f32 %v7761, %v7852
  %v7965 = vadd.f32 %v7762, %v7852
  %v7966 = vadd.f32 %v7763, %v7852
  %v7967 = vadd.f32 %v7764, %v7852
  %v7968 = vadd.f32 %v7765, %v7852
  %v7969 = vadd.f32 %v7766, %v7852
  %v7970 = vadd.f32 %v7767, %v7852
  %v7971 = vadd.f32 %v7768, %v7852
  %v7972 = vadd.f32 %v7769, %v7852
  %v7973 = vadd.f32 %v7770, %v7852
  %v7974 = vadd.f32 %v7771, %v7852
  %v7975 = vadd.f32 %v7772, %v7852
  %v7976 = vadd.f32 %v7773, %v7852
  %v7977 = vadd.f32 %v7774, %v7852
  %v7978 = vadd.f32 %v7775, %v7852
  %v7979 = vadd.f32 %v7776, %v7852
  %v7980 = vadd.f32 %v7777, %v7852
  %v7981 = vadd.f32 %v7778, %v7852
  %v7982 = vadd.f32 %v7779, %v7852
  %v7983 = vadd.f32 %v7780, %v7852
  %v7984 = vadd.f32 %v7781, %v7852
  %v7985 = vadd.f32 %v7782, %v7852
  %v7986 = vadd.f32 %v7783, %v7852
  %v7987 = vadd.f32 %v7784, %v7852
  %v7988 = vadd.f32 %v7785, %v7852
  %v7989 = vadd.f32 %v7786, %v7852
  %v7990 = vadd.f32 %v7787, %v7852
  %v7991 = vadd.f32 %v7788, %v7852
  %v7992 = vadd.f32 %v7789, %v7852
  %v7993 = vadd.f32 %v7790, %v7852
  %v7994 = vadd.f32 %v7791, %v7852
  %v7995 = vadd.f32 %v7792, %v7852
  %v7996 = vadd.f32 %v7793, %v7852
  %v7997 = vadd.f32 %v7794, %v7852
  %v7998 = vadd.f32 %v7795, %v7852
  %v7999 = vadd.f32 %v7796, %v7852
  %v8000 = vadd.f32 %v7797, %v7852
  %v8001 = vadd.f32 %v7798, %v7852
  %v8002 = vadd.f32 %v7799, %v7852
  %v8003 = vadd.f32 %v7800, %v7852
  %v8004 = vadd.f32 %v7801, %v7852
  %v8005 = vadd.f32 %v7802, %v7852
  %v8006 = vadd.f32 %v7803, %v7852
  %v8007 = vadd.f32 %v7804, %v7852
  %v8008 = vadd.f32 %v7805, %v7852
  %v8009 = vadd.f32 %v7806, %v7852
  %v8010 = vadd.f32 %v7807, %v7852
  %v8011 = vadd.f32 %v7808, %v7852
  %v8012 = vadd.f32 %v7809, %v7852
  %v8013 = vadd.f32 %v7810, %v7852
  %v8014 = vadd.f32 %v7811, %v7852
  %v8015 = vadd.f32 %v7812, %v7852
  %v8016 = vadd.f32 %v7813, %v7852
  %v8017 = vadd.f32 %v7814, %v7852
  %v8018 = vadd.f32 %v7815, %v7852
  %v8019 = vadd.f32 %v7816, %v7852
  %v8020 = vadd.f32 %v7817, %v7852
  %v8021 = vadd.f32 %v7818, %v7852
  %v8022 = vadd.f32 %v7819, %v7852
  %v8023 = vadd.f32 %v7820, %v7852
  %v8024 = vadd.f32 %v7821, %v7852
  %v8025 = vadd.f32 %v7822, %v7852
  %v8026 = vadd.f32 %v7823, %v7852
  %v8027 = vadd.f32 %v7824, %v7852
  %v8028 = vadd.f32 %v7825, %v7852
  %v8029 = vadd.f32 %v7826, %v7852
  %v8030 = vadd.f32 %v7827, %v7852
  %v8031 = vadd.f32 %v7828, %v7852
  %v8032 = vadd.f32 %v7829, %v7852
  %v8033 = vadd.f32 %v7830, %v7852
  %v8034 = vadd.f32 %v7831, %v7852
  %v8035 = vadd.f32 %v7832, %v7852
  %v8036 = vadd.f32 %v7833, %v7852
  %v8037 = vadd.f32 %v7834, %v7852
  %v8038 = vadd.f32 %v7835, %v7852
  %v8039 = vadd.f32 %v7836, %v7852
  %v8040 = vadd.f32 %v7837, %v7852
  %v8041 = vadd.f32 %v7838, %v7852
  %v8042 = vadd.f32 %v7839, %v7852
  %v8043 = vadd.f32 %v7840, %v7852
  %v8044 = vadd.f32 %v7841, %v7852
  %v8045 = vadd.f32 %v7842, %v7852
  %v8046 = vadd.f32 %v7843, %v7852
  %v8047 = vadd.f32 %v7844, %v7852
  %v8048 = vadd.f32 %v7845, %v7852
  %v8049 = vadd.f32 %v7846, %v7852
  %v8050 = vmax.f32 %v7854, 0.0
  %v8051 = vmax.f32 %v7855, 0.0
  %v8052 = vmax.f32 %v7856, 0.0
  %v8053 = vmax.f32 %v7857, 0.0
  %v8054 = vmax.f32 %v7858, 0.0
  %v8055 = vmax.f32 %v7859, 0.0
  %v8056 = vmax.f32 %v7860, 0.0
  %v8057 = vmax.f32 %v7861, 0.0
  %v8058 = vmax.f32 %v7862, 0.0
  %v8059 = vmax.f32 %v7863, 0.0
  %v8060 = vmax.f32 %v7864, 0.0
  %v8061 = vmax.f32 %v7865, 0.0
  %v8062 = vmax.f32 %v7866, 0.0
  %v8063 = vmax.f32 %v7867, 0.0
  %v8064 = vmax.f32 %v7868, 0.0
  %v8065 = vmax.f32 %v7869, 0.0
  %v8066 = vmax.f32 %v7870, 0.0
  %v8067 = vmax.f32 %v7871, 0.0
  %v8068 = vmax.f32 %v7872, 0.0
  %v8069 = vmax.f32 %v7873, 0.0
  %v8070 = vmax.f32 %v7874, 0.0
  %v8071 = vmax.f32 %v7875, 0.0
  %v8072 = vmax.f32 %v7876, 0.0
  %v8073 = vmax.f32 %v7877, 0.0
  %v8074 = vmax.f32 %v7878, 0.0
  %v8075 = vmax.f32 %v7879, 0.0
  %v8076 = vmax.f32 %v7880, 0.0
  %v8077 = vmax.f32 %v7881, 0.0
  %v8078 = vmax.f32 %v7882, 0.0
  %v8079 = vmax.f32 %v7883, 0.0
  %v8080 = vmax.f32 %v7884, 0.0
  %v8081 = vmax.f32 %v7885, 0.0
  %v8082 = vmax.f32 %v7886, 0.0
  %v8083 = vmax.f32 %v7887, 0.0
  %v8084 = vmax.f32 %v7888, 0.0
  %v8085 = vmax.f32 %v7889, 0.0
  %v8086 = vmax.f32 %v7890, 0.0
  %v8087 = vmax.f32 %v7891, 0.0
  %v8088 = vmax.f32 %v7892, 0.0
  %v8089 = vmax.f32 %v7893, 0.0
  %v8090 = vmax.f32 %v7894, 0.0
  %v8091 = vmax.f32 %v7895, 0.0
  %v8092 = vmax.f32 %v7896, 0.0
  %v8093 = vmax.f32 %v7897, 0.0
  %v8094 = vmax.f32 %v7898, 0.0
  %v8095 = vmax.f32 %v7899, 0.0
  %v8096 = vmax.f32 %v7900, 0.0
  %v8097 = vmax.f32 %v7901, 0.0
  %v8098 = vmax.f32 %v7902, 0.0
  %v8099 = vmax.f32 %v7903, 0.0
  %v8100 = vmax.f32 %v7904, 0.0
  %v8101 = vmax.f32 %v7905, 0.0
  %v8102 = vmax.f32 %v7906, 0.0
  %v8103 = vmax.f32 %v7907, 0.0
  %v8104 = vmax.f32 %v7908, 0.0
  %v8105 = vmax.f32 %v7909, 0.0
  %v8106 = vmax.f32 %v7910, 0.0
  %v8107 = vmax.f32 %v7911, 0.0
  %v8108 = vmax.f32 %v7912, 0.0
  %v8109 = vmax.f32 %v7913, 0.0
  %v8110 = vmax.f32 %v7914, 0.0
  %v8111 = vmax.f32 %v7915, 0.0
  %v8112 = vmax.f32 %v7916, 0.0
  %v8113 = vmax.f32 %v7917, 0.0
  %v8114 = vmax.f32 %v7918, 0.0
  %v8115 = vmax.f32 %v7919, 0.0
  %v8116 = vmax.f32 %v7920, 0.0
  %v8117 = vmax.f32 %v7921, 0.0
  %v8118 = vmax.f32 %v7922, 0.0
  %v8119 = vmax.f32 %v7923, 0.0
  %v8120 = vmax.f32 %v7924, 0.0
  %v8121 = vmax.f32 %v7925, 0.0
  %v8122 = vmax.f32 %v7926, 0.0
  %v8123 = vmax.f32 %v7927, 0.0
  %v8124 = vmax.f32 %v7928, 0.0
  %v8125 = vmax.f32 %v7929, 0.0
  %v8126 = vmax.f32 %v7930, 0.0
  %v8127 = vmax.f32 %v7931, 0.0
  %v8128 = vmax.f32 %v7932, 0.0
  %v8129 = vmax.f32 %v7933, 0.0
  %v8130 = vmax.f32 %v7934, 0.0
  %v8131 = vmax.f32 %v7935, 0.0
  %v8132 = vmax.f32 %v7936, 0.0
  %v8133 = vmax.f32 %v7937, 0.0
  %v8134 = vmax.f32 %v7938, 0.0
  %v8135 = vmax.f32 %v7939, 0.0
  %v8136 = vmax.f32 %v7940, 0.0
  %v8137 = vmax.f32 %v7941, 0.0
  %v8138 = vmax.f32 %v7942, 0.0
  %v8139 = vmax.f32 %v7943, 0.0
  %v8140 = vmax.f32 %v7944, 0.0
  %v8141 = vmax.f32 %v7945, 0.0
  %v8142 = vmax.f32 %v7946, 0.0
  %v8143 = vmax.f32 %v7947, 0.0
  %v8144 = vmax.f32 %v7948, 0.0
  %v8145 = vmax.f32 %v7949, 0.0
  %v8146 = vmax.f32 %v7950, 0.0
  %v8147 = vmax.f32 %v7951, 0.0
  %v8148 = vmax.f32 %v7952, 0.0
  %v8149 = vmax.f32 %v7953, 0.0
  %v8150 = vmax.f32 %v7954, 0.0
  %v8151 = vmax.f32 %v7955, 0.0
  %v8152 = vmax.f32 %v7956, 0.0
  %v8153 = vmax.f32 %v7957, 0.0
  %v8154 = vmax.f32 %v7958, 0.0
  %v8155 = vmax.f32 %v7959, 0.0
  %v8156 = vmax.f32 %v7960, 0.0
  %v8157 = vmax.f32 %v7961, 0.0
  %v8158 = vmax.f32 %v7962, 0.0
  %v8159 = vmax.f32 %v7963, 0.0
  %v8160 = vmax.f32 %v7964, 0.0
  %v8161 = vmax.f32 %v7965, 0.0
  %v8162 = vmax.f32 %v7966, 0.0
  %v8163 = vmax.f32 %v7967, 0.0
  %v8164 = vmax.f32 %v7968, 0.0
  %v8165 = vmax.f32 %v7969, 0.0
  %v8166 = vmax.f32 %v7970, 0.0
  %v8167 = vmax.f32 %v7971, 0.0
  %v8168 = vmax.f32 %v7972, 0.0
  %v8169 = vmax.f32 %v7973, 0.0
  %v8170 = vmax.f32 %v7974, 0.0
  %v8171 = vmax.f32 %v7975, 0.0
  %v8172 = vmax.f32 %v7976, 0.0
  %v8173 = vmax.f32 %v7977, 0.0
  %v8174 = vmax.f32 %v7978, 0.0
  %v8175 = vmax.f32 %v7979, 0.0
  %v8176 = vmax.f32 %v7980, 0.0
  %v8177 = vmax.f32 %v7981, 0.0
  %v8178 = vmax.f32 %v7982, 0.0
  %v8179 = vmax.f32 %v7983, 0.0
  %v8180 = vmax.f32 %v7984, 0.0
  %v8181 = vmax.f32 %v7985, 0.0
  %v8182 = vmax.f32 %v7986, 0.0
  %v8183 = vmax.f32 %v7987, 0.0
  %v8184 = vmax.f32 %v7988, 0.0
  %v8185 = vmax.f32 %v7989, 0.0
  %v8186 = vmax.f32 %v7990, 0.0
  %v8187 = vmax.f32 %v7991, 0.0
  %v8188 = vmax.f32 %v7992, 0.0
  %v8189 = vmax.f32 %v7993, 0.0
  %v8190 = vmax.f32 %v7994, 0.0
  %v8191 = vmax.f32 %v7995, 0.0
  %v8192 = vmax.f32 %v7996, 0.0
  %v8193 = vmax.f32 %v7997, 0.0
  %v8194 = vmax.f32 %v7998, 0.0
  %v8195 = vmax.f32 %v7999, 0.0
  %v8196 = vmax.f32 %v8000, 0.0
  %v8197 = vmax.f32 %v8001, 0.0
  %v8198 = vmax.f32 %v8002, 0.0
  %v8199 = vmax.f32 %v8003, 0.0
  %v8200 = vmax.f32 %v8004, 0.0
  %v8201 = vmax.f32 %v8005, 0.0
  %v8202 = vmax.f32 %v8006, 0.0
  %v8203 = vmax.f32 %v8007, 0.0
  %v8204 = vmax.f32 %v8008, 0.0
  %v8205 = vmax.f32 %v8009, 0.0
  %v8206 = vmax.f32 %v8010, 0.0
  %v8207 = vmax.f32 %v8011, 0.0
  %v8208 = vmax.f32 %v8012, 0.0
  %v8209 = vmax.f32 %v8013, 0.0
  %v8210 = vmax.f32 %v8014, 0.0
  %v8211 = vmax.f32 %v8015, 0.0
  %v8212 = vmax.f32 %v8016, 0.0
  %v8213 = vmax.f32 %v8017, 0.0
  %v8214 = vmax.f32 %v8018, 0.0
  %v8215 = vmax.f32 %v8019, 0.0
  %v8216 = vmax.f32 %v8020, 0.0
  %v8217 = vmax.f32 %v8021, 0.0
  %v8218 = vmax.f32 %v8022, 0.0
  %v8219 = vmax.f32 %v8023, 0.0
  %v8220 = vmax.f32 %v8024, 0.0
  %v8221 = vmax.f32 %v8025, 0.0
  %v8222 = vmax.f32 %v8026, 0.0
  %v8223 = vmax.f32 %v8027, 0.0
  %v8224 = vmax.f32 %v8028, 0.0
  %v8225 = vmax.f32 %v8029, 0.0
  %v8226 = vmax.f32 %v8030, 0.0
  %v8227 = vmax.f32 %v8031, 0.0
  %v8228 = vmax.f32 %v8032, 0.0
  %v8229 = vmax.f32 %v8033, 0.0
  %v8230 = vmax.f32 %v8034, 0.0
  %v8231 = vmax.f32 %v8035, 0.0
  %v8232 = vmax.f32 %v8036, 0.0
  %v8233 = vmax.f32 %v8037, 0.0
  %v8234 = vmax.f32 %v8038, 0.0
  %v8235 = vmax.f32 %v8039, 0.0
  %v8236 = vmax.f32 %v8040, 0.0
  %v8237 = vmax.f32 %v8041, 0.0
  %v8238 = vmax.f32 %v8042, 0.0
  %v8239 = vmax.f32 %v8043, 0.0
  %v8240 = vmax.f32 %v8044, 0.0
  %v8241 = vmax.f32 %v8045, 0.0
  %v8242 = vmax.f32 %v8046, 0.0
  %v8243 = vmax.f32 %v8047, 0.0
  %v8244 = vmax.f32 %v8048, 0.0
  %v8245 = vmax.f32 %v8049, 0.0
  %v8246 = vpack.c.bf16 %v8051, %v8050
  %v8247 = vpack.c.bf16 %v8053, %v8052
  %v8248 = vpack.c.bf16 %v8055, %v8054
  %v8249 = vpack.c.bf16 %v8057, %v8056
  %v8250 = vpack.c.bf16 %v8059, %v8058
  %v8251 = vpack.c.bf16 %v8061, %v8060
  %v8252 = vpack.c.bf16 %v8063, %v8062
  %v8253 = vpack.c.bf16 %v8065, %v8064
  %v8254 = vpack.c.bf16 %v8067, %v8066
  %v8255 = vpack.c.bf16 %v8069, %v8068
  %v8256 = vpack.c.bf16 %v8071, %v8070
  %v8257 = vpack.c.bf16 %v8073, %v8072
  %v8258 = vpack.c.bf16 %v8075, %v8074
  %v8259 = vpack.c.bf16 %v8077, %v8076
  %v8260 = vpack.c.bf16 %v8079, %v8078
  %v8261 = vpack.c.bf16 %v8081, %v8080
  %v8262 = vpack.c.bf16 %v8083, %v8082
  %v8263 = vpack.c.bf16 %v8085, %v8084
  %v8264 = vpack.c.bf16 %v8087, %v8086
  %v8265 = vpack.c.bf16 %v8089, %v8088
  %v8266 = vpack.c.bf16 %v8091, %v8090
  %v8267 = vpack.c.bf16 %v8093, %v8092
  %v8268 = vpack.c.bf16 %v8095, %v8094
  %v8269 = vpack.c.bf16 %v8097, %v8096
  %v8270 = vpack.c.bf16 %v8099, %v8098
  %v8271 = vpack.c.bf16 %v8101, %v8100
  %v8272 = vpack.c.bf16 %v8103, %v8102
  %v8273 = vpack.c.bf16 %v8105, %v8104
  %v8274 = vpack.c.bf16 %v8107, %v8106
  %v8275 = vpack.c.bf16 %v8109, %v8108
  %v8276 = vpack.c.bf16 %v8111, %v8110
  %v8277 = vpack.c.bf16 %v8113, %v8112
  %v8278 = vpack.c.bf16 %v8115, %v8114
  %v8279 = vpack.c.bf16 %v8117, %v8116
  %v8280 = vpack.c.bf16 %v8119, %v8118
  %v8281 = vpack.c.bf16 %v8121, %v8120
  %v8282 = vpack.c.bf16 %v8123, %v8122
  %v8283 = vpack.c.bf16 %v8125, %v8124
  %v8284 = vpack.c.bf16 %v8127, %v8126
  %v8285 = vpack.c.bf16 %v8129, %v8128
  %v8286 = vpack.c.bf16 %v8131, %v8130
  %v8287 = vpack.c.bf16 %v8133, %v8132
  %v8288 = vpack.c.bf16 %v8135, %v8134
  %v8289 = vpack.c.bf16 %v8137, %v8136
  %v8290 = vpack.c.bf16 %v8139, %v8138
  %v8291 = vpack.c.bf16 %v8141, %v8140
  %v8292 = vpack.c.bf16 %v8143, %v8142
  %v8293 = vpack.c.bf16 %v8145, %v8144
  %v8294 = vpack.c.bf16 %v8147, %v8146
  %v8295 = vpack.c.bf16 %v8149, %v8148
  %v8296 = vpack.c.bf16 %v8151, %v8150
  %v8297 = vpack.c.bf16 %v8153, %v8152
  %v8298 = vpack.c.bf16 %v8155, %v8154
  %v8299 = vpack.c.bf16 %v8157, %v8156
  %v8300 = vpack.c.bf16 %v8159, %v8158
  %v8301 = vpack.c.bf16 %v8161, %v8160
  %v8302 = vpack.c.bf16 %v8163, %v8162
  %v8303 = vpack.c.bf16 %v8165, %v8164
  %v8304 = vpack.c.bf16 %v8167, %v8166
  %v8305 = vpack.c.bf16 %v8169, %v8168
  %v8306 = vpack.c.bf16 %v8171, %v8170
  %v8307 = vpack.c.bf16 %v8173, %v8172
  %v8308 = vpack.c.bf16 %v8175, %v8174
  %v8309 = vpack.c.bf16 %v8177, %v8176
  %v8310 = vpack.c.bf16 %v8179, %v8178
  %v8311 = vpack.c.bf16 %v8181, %v8180
  %v8312 = vpack.c.bf16 %v8183, %v8182
  %v8313 = vpack.c.bf16 %v8185, %v8184
  %v8314 = vpack.c.bf16 %v8187, %v8186
  %v8315 = vpack.c.bf16 %v8189, %v8188
  %v8316 = vpack.c.bf16 %v8191, %v8190
  %v8317 = vpack.c.bf16 %v8193, %v8192
  %v8318 = vpack.c.bf16 %v8195, %v8194
  %v8319 = vpack.c.bf16 %v8197, %v8196
  %v8320 = vpack.c.bf16 %v8199, %v8198
  %v8321 = vpack.c.bf16 %v8201, %v8200
  %v8322 = vpack.c.bf16 %v8203, %v8202
  %v8323 = vpack.c.bf16 %v8205, %v8204
  %v8324 = vpack.c.bf16 %v8207, %v8206
  %v8325 = vpack.c.bf16 %v8209, %v8208
  %v8326 = vpack.c.bf16 %v8211, %v8210
  %v8327 = vpack.c.bf16 %v8213, %v8212
  %v8328 = vpack.c.bf16 %v8215, %v8214
  %v8329 = vpack.c.bf16 %v8217, %v8216
  %v8330 = vpack.c.bf16 %v8219, %v8218
  %v8331 = vpack.c.bf16 %v8221, %v8220
  %v8332 = vpack.c.bf16 %v8223, %v8222
  %v8333 = vpack.c.bf16 %v8225, %v8224
  %v8334 = vpack.c.bf16 %v8227, %v8226
  %v8335 = vpack.c.bf16 %v8229, %v8228
  %v8336 = vpack.c.bf16 %v8231, %v8230
  %v8337 = vpack.c.bf16 %v8233, %v8232
  %v8338 = vpack.c.bf16 %v8235, %v8234
  %v8339 = vpack.c.bf16 %v8237, %v8236
  %v8340 = vpack.c.bf16 %v8239, %v8238
  %v8341 = vpack.c.bf16 %v8241, %v8240
  %v8342 = vpack.c.bf16 %v8243, %v8242
  %v8343 = vpack.c.bf16 %v8245, %v8244
  %v8442 = vunpack.c.l.b16 %v8246
  %v8443 = vunpack.c.h.b16 %v8246
  %v8444 = vunpack.c.l.b16 %v8247
  %v8445 = vunpack.c.h.b16 %v8247
  %v8446 = vunpack.c.l.b16 %v8248
  %v8447 = vunpack.c.h.b16 %v8248
  %v8448 = vunpack.c.l.b16 %v8249
  %v8449 = vunpack.c.h.b16 %v8249
  %v8450 = vunpack.c.l.b16 %v8250
  %v8451 = vunpack.c.h.b16 %v8250
  %v8452 = vunpack.c.l.b16 %v8251
  %v8453 = vunpack.c.h.b16 %v8251
  %v8454 = vunpack.c.l.b16 %v8252
  %v8455 = vunpack.c.h.b16 %v8252
  %v8456 = vunpack.c.l.b16 %v8253
  %v8457 = vunpack.c.h.b16 %v8253
  %v8458 = vunpack.c.l.b16 %v8254
  %v8459 = vunpack.c.h.b16 %v8254
  %v8460 = vunpack.c.l.b16 %v8255
  %v8461 = vunpack.c.h.b16 %v8255
  %v8462 = vunpack.c.l.b16 %v8256
  %v8463 = vunpack.c.h.b16 %v8256
  %v8464 = vunpack.c.l.b16 %v8257
  %v8465 = vunpack.c.h.b16 %v8257
  %v8466 = vunpack.c.l.b16 %v8258
  %v8467 = vunpack.c.h.b16 %v8258
  %v8468 = vunpack.c.l.b16 %v8259
  %v8469 = vunpack.c.h.b16 %v8259
  %v8470 = vunpack.c.l.b16 %v8260
  %v8471 = vunpack.c.h.b16 %v8260
  %v8472 = vunpack.c.l.b16 %v8261
  %v8473 = vunpack.c.h.b16 %v8261
  %v8474 = vunpack.c.l.b16 %v8262
  %v8475 = vunpack.c.h.b16 %v8262
  %v8476 = vunpack.c.l.b16 %v8263
  %v8477 = vunpack.c.h.b16 %v8263
  %v8478 = vunpack.c.l.b16 %v8264
  %v8479 = vunpack.c.h.b16 %v8264
  %v8480 = vunpack.c.l.b16 %v8265
  %v8481 = vunpack.c.h.b16 %v8265
  %v8482 = vunpack.c.l.b16 %v8266
  %v8483 = vunpack.c.h.b16 %v8266
  %v8484 = vunpack.c.l.b16 %v8267
  %v8485 = vunpack.c.h.b16 %v8267
  %v8486 = vunpack.c.l.b16 %v8268
  %v8487 = vunpack.c.h.b16 %v8268
  %v8488 = vunpack.c.l.b16 %v8269
  %v8489 = vunpack.c.h.b16 %v8269
  %v8490 = vunpack.c.l.b16 %v8270
  %v8491 = vunpack.c.h.b16 %v8270
  %v8492 = vunpack.c.l.b16 %v8271
  %v8493 = vunpack.c.h.b16 %v8271
  %v8494 = vunpack.c.l.b16 %v8272
  %v8495 = vunpack.c.h.b16 %v8272
  %v8496 = vunpack.c.l.b16 %v8273
  %v8497 = vunpack.c.h.b16 %v8273
  %v8498 = vunpack.c.l.b16 %v8274
  %v8499 = vunpack.c.h.b16 %v8274
  %v8500 = vunpack.c.l.b16 %v8275
  %v8501 = vunpack.c.h.b16 %v8275
  %v8502 = vunpack.c.l.b16 %v8276
  %v8503 = vunpack.c.h.b16 %v8276
  %v8504 = vunpack.c.l.b16 %v8277
  %v8505 = vunpack.c.h.b16 %v8277
  %v8506 = vunpack.c.l.b16 %v8278
  %v8507 = vunpack.c.h.b16 %v8278
  %v8508 = vunpack.c.l.b16 %v8279
  %v8509 = vunpack.c.h.b16 %v8279
  %v8510 = vunpack.c.l.b16 %v8280
  %v8511 = vunpack.c.h.b16 %v8280
  %v8512 = vunpack.c.l.b16 %v8281
  %v8513 = vunpack.c.h.b16 %v8281
  %v8514 = vunpack.c.l.b16 %v8282
  %v8515 = vunpack.c.h.b16 %v8282
  %v8516 = vunpack.c.l.b16 %v8283
  %v8517 = vunpack.c.h.b16 %v8283
  %v8518 = vunpack.c.l.b16 %v8284
  %v8519 = vunpack.c.h.b16 %v8284
  %v8520 = vunpack.c.l.b16 %v8285
  %v8521 = vunpack.c.h.b16 %v8285
  %v8522 = vunpack.c.l.b16 %v8286
  %v8523 = vunpack.c.h.b16 %v8286
  %v8524 = vunpack.c.l.b16 %v8287
  %v8525 = vunpack.c.h.b16 %v8287
  %v8526 = vunpack.c.l.b16 %v8288
  %v8527 = vunpack.c.h.b16 %v8288
  %v8528 = vunpack.c.l.b16 %v8289
  %v8529 = vunpack.c.h.b16 %v8289
  %v8530 = vunpack.c.l.b16 %v8290
  %v8531 = vunpack.c.h.b16 %v8290
  %v8532 = vunpack.c.l.b16 %v8291
  %v8533 = vunpack.c.h.b16 %v8291
  %v8534 = vunpack.c.l.b16 %v8292
  %v8535 = vunpack.c.h.b16 %v8292
  %v8536 = vunpack.c.l.b16 %v8293
  %v8537 = vunpack.c.h.b16 %v8293
  %v8538 = vunpack.c.l.b16 %v8294
  %v8539 = vunpack.c.h.b16 %v8294
  %v8540 = vunpack.c.l.b16 %v8295
  %v8541 = vunpack.c.h.b16 %v8295
  %v8542 = vunpack.c.l.b16 %v8296
  %v8543 = vunpack.c.h.b16 %v8296
  %v8544 = vunpack.c.l.b16 %v8297
  %v8545 = vunpack.c.h.b16 %v8297
  %v8546 = vunpack.c.l.b16 %v8298
  %v8547 = vunpack.c.h.b16 %v8298
  %v8548 = vunpack.c.l.b16 %v8299
  %v8549 = vunpack.c.h.b16 %v8299
  %v8550 = vunpack.c.l.b16 %v8300
  %v8551 = vunpack.c.h.b16 %v8300
  %v8552 = vunpack.c.l.b16 %v8301
  %v8553 = vunpack.c.h.b16 %v8301
  %v8554 = vunpack.c.l.b16 %v8302
  %v8555 = vunpack.c.h.b16 %v8302
  %v8556 = vunpack.c.l.b16 %v8303
  %v8557 = vunpack.c.h.b16 %v8303
  %v8558 = vunpack.c.l.b16 %v8304
  %v8559 = vunpack.c.h.b16 %v8304
  %v8560 = vunpack.c.l.b16 %v8305
  %v8561 = vunpack.c.h.b16 %v8305
  %v8562 = vunpack.c.l.b16 %v8306
  %v8563 = vunpack.c.h.b16 %v8306
  %v8564 = vunpack.c.l.b16 %v8307
  %v8565 = vunpack.c.h.b16 %v8307
  %v8566 = vunpack.c.l.b16 %v8308
  %v8567 = vunpack.c.h.b16 %v8308
  %v8568 = vunpack.c.l.b16 %v8309
  %v8569 = vunpack.c.h.b16 %v8309
  %v8570 = vunpack.c.l.b16 %v8310
  %v8571 = vunpack.c.h.b16 %v8310
  %v8572 = vunpack.c.l.b16 %v8311
  %v8573 = vunpack.c.h.b16 %v8311
  %v8574 = vunpack.c.l.b16 %v8312
  %v8575 = vunpack.c.h.b16 %v8312
  %v8576 = vunpack.c.l.b16 %v8313
  %v8577 = vunpack.c.h.b16 %v8313
  %v8578 = vunpack.c.l.b16 %v8314
  %v8579 = vunpack.c.h.b16 %v8314
  %v8580 = vunpack.c.l.b16 %v8315
  %v8581 = vunpack.c.h.b16 %v8315
  %v8582 = vunpack.c.l.b16 %v8316
  %v8583 = vunpack.c.h.b16 %v8316
  %v8584 = vunpack.c.l.b16 %v8317
  %v8585 = vunpack.c.h.b16 %v8317
  %v8586 = vunpack.c.l.b16 %v8318
  %v8587 = vunpack.c.h.b16 %v8318
  %v8588 = vunpack.c.l.b16 %v8319
  %v8589 = vunpack.c.h.b16 %v8319
  %v8590 = vunpack.c.l.b16 %v8320
  %v8591 = vunpack.c.h.b16 %v8320
  %v8592 = vunpack.c.l.b16 %v8321
  %v8593 = vunpack.c.h.b16 %v8321
  %v8594 = vunpack.c.l.b16 %v8322
  %v8595 = vunpack.c.h.b16 %v8322
  %v8596 = vunpack.c.l.b16 %v8323
  %v8597 = vunpack.c.h.b16 %v8323
  %v8598 = vunpack.c.l.b16 %v8324
  %v8599 = vunpack.c.h.b16 %v8324
  %v8600 = vunpack.c.l.b16 %v8325
  %v8601 = vunpack.c.h.b16 %v8325
  %v8602 = vunpack.c.l.b16 %v8326
  %v8603 = vunpack.c.h.b16 %v8326
  %v8604 = vunpack.c.l.b16 %v8327
  %v8605 = vunpack.c.h.b16 %v8327
  %v8606 = vunpack.c.l.b16 %v8328
  %v8607 = vunpack.c.h.b16 %v8328
  %v8608 = vunpack.c.l.b16 %v8329
  %v8609 = vunpack.c.h.b16 %v8329
  %v8610 = vunpack.c.l.b16 %v8330
  %v8611 = vunpack.c.h.b16 %v8330
  %v8612 = vunpack.c.l.b16 %v8331
  %v8613 = vunpack.c.h.b16 %v8331
  %v8614 = vunpack.c.l.b16 %v8332
  %v8615 = vunpack.c.h.b16 %v8332
  %v8616 = vunpack.c.l.b16 %v8333
  %v8617 = vunpack.c.h.b16 %v8333
  %v8618 = vunpack.c.l.b16 %v8334
  %v8619 = vunpack.c.h.b16 %v8334
  %v8620 = vunpack.c.l.b16 %v8335
  %v8621 = vunpack.c.h.b16 %v8335
  %v8622 = vunpack.c.l.b16 %v8336
  %v8623 = vunpack.c.h.b16 %v8336
  %v8624 = vunpack.c.l.b16 %v8337
  %v8625 = vunpack.c.h.b16 %v8337
  %v8626 = vunpack.c.l.b16 %v8338
  %v8627 = vunpack.c.h.b16 %v8338
  %v8628 = vunpack.c.l.b16 %v8339
  %v8629 = vunpack.c.h.b16 %v8339
  %v8630 = vunpack.c.l.b16 %v8340
  %v8631 = vunpack.c.h.b16 %v8340
  %v8632 = vunpack.c.l.b16 %v8341
  %v8633 = vunpack.c.h.b16 %v8341
  %v8634 = vunpack.c.l.b16 %v8342
  %v8635 = vunpack.c.h.b16 %v8342
  %v8636 = vunpack.c.l.b16 %v8343
  %v8637 = vunpack.c.h.b16 %v8343
  %v8638 = vpack.c.b16 %v8442, %v8442
  %v8639 = vpack.c.b16 %v8443, %v8443
  %v8640 = vpack.c.b16 %v8444, %v8444
  %v8641 = vpack.c.b16 %v8445, %v8445
  %v8642 = vpack.c.b16 %v8446, %v8446
  %v8643 = vpack.c.b16 %v8447, %v8447
  %v8644 = vpack.c.b16 %v8448, %v8448
  %v8645 = vpack.c.b16 %v8449, %v8449
  %v8646 = vpack.c.b16 %v8450, %v8450
  %v8647 = vpack.c.b16 %v8451, %v8451
  %v8648 = vpack.c.b16 %v8452, %v8452
  %v8649 = vpack.c.b16 %v8453, %v8453
  %v8650 = vpack.c.b16 %v8454, %v8454
  %v8651 = vpack.c.b16 %v8455, %v8455
  %v8652 = vpack.c.b16 %v8456, %v8456
  %v8653 = vpack.c.b16 %v8457, %v8457
  %v8654 = vpack.c.b16 %v8458, %v8458
  %v8655 = vpack.c.b16 %v8459, %v8459
  %v8656 = vpack.c.b16 %v8460, %v8460
  %v8657 = vpack.c.b16 %v8461, %v8461
  %v8658 = vpack.c.b16 %v8462, %v8462
  %v8659 = vpack.c.b16 %v8463, %v8463
  %v8660 = vpack.c.b16 %v8464, %v8464
  %v8661 = vpack.c.b16 %v8465, %v8465
  %v8662 = vpack.c.b16 %v8466, %v8466
  %v8663 = vpack.c.b16 %v8467, %v8467
  %v8664 = vpack.c.b16 %v8468, %v8468
  %v8665 = vpack.c.b16 %v8469, %v8469
  %v8666 = vpack.c.b16 %v8470, %v8470
  %v8667 = vpack.c.b16 %v8471, %v8471
  %v8668 = vpack.c.b16 %v8472, %v8472
  %v8669 = vpack.c.b16 %v8473, %v8473
  %v8670 = vpack.c.b16 %v8474, %v8474
  %v8671 = vpack.c.b16 %v8475, %v8475
  %v8672 = vpack.c.b16 %v8476, %v8476
  %v8673 = vpack.c.b16 %v8477, %v8477
  %v8674 = vpack.c.b16 %v8478, %v8478
  %v8675 = vpack.c.b16 %v8479, %v8479
  %v8676 = vpack.c.b16 %v8480, %v8480
  %v8677 = vpack.c.b16 %v8481, %v8481
  %v8678 = vpack.c.b16 %v8482, %v8482
  %v8679 = vpack.c.b16 %v8483, %v8483
  %v8680 = vpack.c.b16 %v8484, %v8484
  %v8681 = vpack.c.b16 %v8485, %v8485
  %v8682 = vpack.c.b16 %v8486, %v8486
  %v8683 = vpack.c.b16 %v8487, %v8487
  %v8684 = vpack.c.b16 %v8488, %v8488
  %v8685 = vpack.c.b16 %v8489, %v8489
  %v8686 = vpack.c.b16 %v8490, %v8490
  %v8687 = vpack.c.b16 %v8491, %v8491
  %v8688 = vpack.c.b16 %v8492, %v8492
  %v8689 = vpack.c.b16 %v8493, %v8493
  %v8690 = vpack.c.b16 %v8494, %v8494
  %v8691 = vpack.c.b16 %v8495, %v8495
  %v8692 = vpack.c.b16 %v8496, %v8496
  %v8693 = vpack.c.b16 %v8497, %v8497
  %v8694 = vpack.c.b16 %v8498, %v8498
  %v8695 = vpack.c.b16 %v8499, %v8499
  %v8696 = vpack.c.b16 %v8500, %v8500
  %v8697 = vpack.c.b16 %v8501, %v8501
  %v8698 = vpack.c.b16 %v8502, %v8502
  %v8699 = vpack.c.b16 %v8503, %v8503
  %v8700 = vpack.c.b16 %v8504, %v8504
  %v8701 = vpack.c.b16 %v8505, %v8505
  %v8702 = vpack.c.b16 %v8506, %v8506
  %v8703 = vpack.c.b16 %v8507, %v8507
  %v8704 = vpack.c.b16 %v8508, %v8508
  %v8705 = vpack.c.b16 %v8509, %v8509
  %v8706 = vpack.c.b16 %v8510, %v8510
  %v8707 = vpack.c.b16 %v8511, %v8511
  %v8708 = vpack.c.b16 %v8512, %v8512
  %v8709 = vpack.c.b16 %v8513, %v8513
  %v8710 = vpack.c.b16 %v8514, %v8514
  %v8711 = vpack.c.b16 %v8515, %v8515
  %v8712 = vpack.c.b16 %v8516, %v8516
  %v8713 = vpack.c.b16 %v8517, %v8517
  %v8714 = vpack.c.b16 %v8518, %v8518
  %v8715 = vpack.c.b16 %v8519, %v8519
  %v8716 = vpack.c.b16 %v8520, %v8520
  %v8717 = vpack.c.b16 %v8521, %v8521
  %v8718 = vpack.c.b16 %v8522, %v8522
  %v8719 = vpack.c.b16 %v8523, %v8523
  %v8720 = vpack.c.b16 %v8524, %v8524
  %v8721 = vpack.c.b16 %v8525, %v8525
  %v8722 = vpack.c.b16 %v8526, %v8526
  %v8723 = vpack.c.b16 %v8527, %v8527
  %v8724 = vpack.c.b16 %v8528, %v8528
  %v8725 = vpack.c.b16 %v8529, %v8529
  %v8726 = vpack.c.b16 %v8530, %v8530
  %v8727 = vpack.c.b16 %v8531, %v8531
  %v8728 = vpack.c.b16 %v8532, %v8532
  %v8729 = vpack.c.b16 %v8533, %v8533
  %v8730 = vpack.c.b16 %v8534, %v8534
  %v8731 = vpack.c.b16 %v8535, %v8535
  %v8732 = vpack.c.b16 %v8536, %v8536
  %v8733 = vpack.c.b16 %v8537, %v8537
  %v8734 = vpack.c.b16 %v8538, %v8538
  %v8735 = vpack.c.b16 %v8539, %v8539
  %v8736 = vpack.c.b16 %v8540, %v8540
  %v8737 = vpack.c.b16 %v8541, %v8541
  %v8738 = vpack.c.b16 %v8542, %v8542
  %v8739 = vpack.c.b16 %v8543, %v8543
  %v8740 = vpack.c.b16 %v8544, %v8544
  %v8741 = vpack.c.b16 %v8545, %v8545
  %v8742 = vpack.c.b16 %v8546, %v8546
  %v8743 = vpack.c.b16 %v8547, %v8547
  %v8744 = vpack.c.b16 %v8548, %v8548
  %v8745 = vpack.c.b16 %v8549, %v8549
  %v8746 = vpack.c.b16 %v8550, %v8550
  %v8747 = vpack.c.b16 %v8551, %v8551
  %v8748 = vpack.c.b16 %v8552, %v8552
  %v8749 = vpack.c.b16 %v8553, %v8553
  %v8750 = vpack.c.b16 %v8554, %v8554
  %v8751 = vpack.c.b16 %v8555, %v8555
  %v8752 = vpack.c.b16 %v8556, %v8556
  %v8753 = vpack.c.b16 %v8557, %v8557
  %v8754 = vpack.c.b16 %v8558, %v8558
  %v8755 = vpack.c.b16 %v8559, %v8559
  %v8756 = vpack.c.b16 %v8560, %v8560
  %v8757 = vpack.c.b16 %v8561, %v8561
  %v8758 = vpack.c.b16 %v8562, %v8562
  %v8759 = vpack.c.b16 %v8563, %v8563
  %v8760 = vpack.c.b16 %v8564, %v8564
  %v8761 = vpack.c.b16 %v8565, %v8565
  %v8762 = vpack.c.b16 %v8566, %v8566
  %v8763 = vpack.c.b16 %v8567, %v8567
  %v8764 = vpack.c.b16 %v8568, %v8568
  %v8765 = vpack.c.b16 %v8569, %v8569
  %v8766 = vpack.c.b16 %v8570, %v8570
  %v8767 = vpack.c.b16 %v8571, %v8571
  %v8768 = vpack.c.b16 %v8572, %v8572
  %v8769 = vpack.c.b16 %v8573, %v8573
  %v8770 = vpack.c.b16 %v8574, %v8574
  %v8771 = vpack.c.b16 %v8575, %v8575
  %v8772 = vpack.c.b16 %v8576, %v8576
  %v8773 = vpack.c.b16 %v8577, %v8577
  %v8774 = vpack.c.b16 %v8578, %v8578
  %v8775 = vpack.c.b16 %v8579, %v8579
  %v8776 = vpack.c.b16 %v8580, %v8580
  %v8777 = vpack.c.b16 %v8581, %v8581
  %v8778 = vpack.c.b16 %v8582, %v8582
  %v8779 = vpack.c.b16 %v8583, %v8583
  %v8780 = vpack.c.b16 %v8584, %v8584
  %v8781 = vpack.c.b16 %v8585, %v8585
  %v8782 = vpack.c.b16 %v8586, %v8586
  %v8783 = vpack.c.b16 %v8587, %v8587
  %v8784 = vpack.c.b16 %v8588, %v8588
  %v8785 = vpack.c.b16 %v8589, %v8589
  %v8786 = vpack.c.b16 %v8590, %v8590
  %v8787 = vpack.c.b16 %v8591, %v8591
  %v8788 = vpack.c.b16 %v8592, %v8592
  %v8789 = vpack.c.b16 %v8593, %v8593
  %v8790 = vpack.c.b16 %v8594, %v8594
  %v8791 = vpack.c.b16 %v8595, %v8595
  %v8792 = vpack.c.b16 %v8596, %v8596
  %v8793 = vpack.c.b16 %v8597, %v8597
  %v8794 = vpack.c.b16 %v8598, %v8598
  %v8795 = vpack.c.b16 %v8599, %v8599
  %v8796 = vpack.c.b16 %v8600, %v8600
  %v8797 = vpack.c.b16 %v8601, %v8601
  %v8798 = vpack.c.b16 %v8602, %v8602
  %v8799 = vpack.c.b16 %v8603, %v8603
  %v8800 = vpack.c.b16 %v8604, %v8604
  %v8801 = vpack.c.b16 %v8605, %v8605
  %v8802 = vpack.c.b16 %v8606, %v8606
  %v8803 = vpack.c.b16 %v8607, %v8607
  %v8804 = vpack.c.b16 %v8608, %v8608
  %v8805 = vpack.c.b16 %v8609, %v8609
  %v8806 = vpack.c.b16 %v8610, %v8610
  %v8807 = vpack.c.b16 %v8611, %v8611
  %v8808 = vpack.c.b16 %v8612, %v8612
  %v8809 = vpack.c.b16 %v8613, %v8613
  %v8810 = vpack.c.b16 %v8614, %v8614
  %v8811 = vpack.c.b16 %v8615, %v8615
  %v8812 = vpack.c.b16 %v8616, %v8616
  %v8813 = vpack.c.b16 %v8617, %v8617
  %v8814 = vpack.c.b16 %v8618, %v8618
  %v8815 = vpack.c.b16 %v8619, %v8619
  %v8816 = vpack.c.b16 %v8620, %v8620
  %v8817 = vpack.c.b16 %v8621, %v8621
  %v8818 = vpack.c.b16 %v8622, %v8622
  %v8819 = vpack.c.b16 %v8623, %v8623
  %v8820 = vpack.c.b16 %v8624, %v8624
  %v8821 = vpack.c.b16 %v8625, %v8625
  %v8822 = vpack.c.b16 %v8626, %v8626
  %v8823 = vpack.c.b16 %v8627, %v8627
  %v8824 = vpack.c.b16 %v8628, %v8628
  %v8825 = vpack.c.b16 %v8629, %v8629
  %v8826 = vpack.c.b16 %v8630, %v8630
  %v8827 = vpack.c.b16 %v8631, %v8631
  %v8828 = vpack.c.b16 %v8632, %v8632
  %v8829 = vpack.c.b16 %v8633, %v8633
  %v8830 = vpack.c.b16 %v8634, %v8634
  %v8831 = vpack.c.b16 %v8635, %v8635
  %v8832 = vpack.c.b16 %v8636, %v8636
  %v8833 = vpack.c.b16 %v8637, %v8637
  %9030 = vst [vmem:[%s6] sm:$0xf] %v8638
  %9031 = vst [vmem:[%s6 + $0x4] sm:$0xf] %v8639
  %9032 = vst [vmem:[%s6 + $0x8] sm:$0xf] %v8640
  %9033 = vst [vmem:[%s6 + $0xc] sm:$0xf] %v8641
  %9034 = vst [vmem:[%s6 + $0x10] sm:$0xf] %v8642
  %9035 = vst [vmem:[%s6 + $0x14] sm:$0xf] %v8643
  %9036 = vst [vmem:[%s6 + $0x18] sm:$0xf] %v8644
  %9037 = vst [vmem:[%s6 + $0x1c] sm:$0xf] %v8645
  %9038 = vst [vmem:[%s6 + $0x20] sm:$0xf] %v8646
  %9039 = vst [vmem:[%s6 + $0x24] sm:$0xf] %v8647
  %9040 = vst [vmem:[%s6 + $0x28] sm:$0xf] %v8648
  %9041 = vst [vmem:[%s6 + $0x2c] sm:$0xf] %v8649
  %9042 = vst [vmem:[%s6 + $0x30] sm:$0xf] %v8650
  %9043 = vst [vmem:[%s6 + $0x34] sm:$0xf] %v8651
  %9044 = vst [vmem:[%s6 + $0x38] sm:$0xf] %v8652
  %9045 = vst [vmem:[%s6 + $0x3c] sm:$0xf] %v8653
  %9046 = vst [vmem:[%s6 + $0x40] sm:$0xf] %v8654
  %9047 = vst [vmem:[%s6 + $0x44] sm:$0xf] %v8655
  %9048 = vst [vmem:[%s6 + $0x48] sm:$0xf] %v8656
  %9049 = vst [vmem:[%s6 + $0x4c] sm:$0xf] %v8657
  %9050 = vst [vmem:[%s6 + $0x50] sm:$0xf] %v8658
  %9051 = vst [vmem:[%s6 + $0x54] sm:$0xf] %v8659
  %9052 = vst [vmem:[%s6 + $0x58] sm:$0xf] %v8660
  %9053 = vst [vmem:[%s6 + $0x5c] sm:$0xf] %v8661
  %9054 = vst [vmem:[%s6 + $0x60] sm:$0xf] %v8662
  %9055 = vst [vmem:[%s6 + $0x64] sm:$0xf] %v8663
  %9056 = vst [vmem:[%s6 + $0x68] sm:$0xf] %v8664
  %9057 = vst [vmem:[%s6 + $0x6c] sm:$0xf] %v8665
  %9058 = vst [vmem:[%s6 + $0x70] sm:$0xf] %v8666
  %9059 = vst [vmem:[%s6 + $0x74] sm:$0xf] %v8667
  %9060 = vst [vmem:[%s6 + $0x78] sm:$0xf] %v8668
  %9061 = vst [vmem:[%s6 + $0x7c] sm:$0xf] %v8669
  %9062 = vst [vmem:[%s6 + $0x80] sm:$0xf] %v8670
  %9063 = vst [vmem:[%s6 + $0x84] sm:$0xf] %v8671
  %9064 = vst [vmem:[%s6 + $0x88] sm:$0xf] %v8672
  %9065 = vst [vmem:[%s6 + $0x8c] sm:$0xf] %v8673
  %9066 = vst [vmem:[%s6 + $0x90] sm:$0xf] %v8674
  %9067 = vst [vmem:[%s6 + $0x94] sm:$0xf] %v8675
  %9068 = vst [vmem:[%s6 + $0x98] sm:$0xf] %v8676
  %9069 = vst [vmem:[%s6 + $0x9c] sm:$0xf] %v8677
  %9070 = vst [vmem:[%s6 + $0xa0] sm:$0xf] %v8678
  %9071 = vst [vmem:[%s6 + $0xa4] sm:$0xf] %v8679
  %9072 = vst [vmem:[%s6 + $0xa8] sm:$0xf] %v8680
  %9073 = vst [vmem:[%s6 + $0xac] sm:$0xf] %v8681
  %9074 = vst [vmem:[%s6 + $0xb0] sm:$0xf] %v8682
  %9075 = vst [vmem:[%s6 + $0xb4] sm:$0xf] %v8683
  %9076 = vst [vmem:[%s6 + $0xb8] sm:$0xf] %v8684
  %9077 = vst [vmem:[%s6 + $0xbc] sm:$0xf] %v8685
  %9078 = vst [vmem:[%s6 + $0xc0] sm:$0xf] %v8686
  %9079 = vst [vmem:[%s6 + $0xc4] sm:$0xf] %v8687
  %9080 = vst [vmem:[%s6 + $0xc8] sm:$0xf] %v8688
  %9081 = vst [vmem:[%s6 + $0xcc] sm:$0xf] %v8689
  %9082 = vst [vmem:[%s6 + $0xd0] sm:$0xf] %v8690
  %9083 = vst [vmem:[%s6 + $0xd4] sm:$0xf] %v8691
  %9084 = vst [vmem:[%s6 + $0xd8] sm:$0xf] %v8692
  %9085 = vst [vmem:[%s6 + $0xdc] sm:$0xf] %v8693
  %9086 = vst [vmem:[%s6 + $0xe0] sm:$0xf] %v8694
  %9087 = vst [vmem:[%s6 + $0xe4] sm:$0xf] %v8695
  %9088 = vst [vmem:[%s6 + $0xe8] sm:$0xf] %v8696
  %9089 = vst [vmem:[%s6 + $0xec] sm:$0xf] %v8697
  %9090 = vst [vmem:[%s6 + $0xf0] sm:$0xf] %v8698
  %9091 = vst [vmem:[%s6 + $0xf4] sm:$0xf] %v8699
  %9092 = vst [vmem:[%s6 + $0xf8] sm:$0xf] %v8700
  %9093 = vst [vmem:[%s6 + $0xfc] sm:$0xf] %v8701
  %9094 = vst [vmem:[%s6 + $0x100] sm:$0xf] %v8702
  %9095 = vst [vmem:[%s6 + $0x104] sm:$0xf] %v8703
  %9096 = vst [vmem:[%s6 + $0x108] sm:$0xf] %v8704
  %9097 = vst [vmem:[%s6 + $0x10c] sm:$0xf] %v8705
  %9098 = vst [vmem:[%s6 + $0x110] sm:$0xf] %v8706
  %9099 = vst [vmem:[%s6 + $0x114] sm:$0xf] %v8707
  %9100 = vst [vmem:[%s6 + $0x118] sm:$0xf] %v8708
  %9101 = vst [vmem:[%s6 + $0x11c] sm:$0xf] %v8709
  %9102 = vst [vmem:[%s6 + $0x120] sm:$0xf] %v8710
  %9103 = vst [vmem:[%s6 + $0x124] sm:$0xf] %v8711
  %9104 = vst [vmem:[%s6 + $0x128] sm:$0xf] %v8712
  %9105 = vst [vmem:[%s6 + $0x12c] sm:$0xf] %v8713
  %9106 = vst [vmem:[%s6 + $0x130] sm:$0xf] %v8714
  %9107 = vst [vmem:[%s6 + $0x134] sm:$0xf] %v8715
  %9108 = vst [vmem:[%s6 + $0x138] sm:$0xf] %v8716
  %9109 = vst [vmem:[%s6 + $0x13c] sm:$0xf] %v8717
  %9110 = vst [vmem:[%s6 + $0x140] sm:$0xf] %v8718
  %9111 = vst [vmem:[%s6 + $0x144] sm:$0xf] %v8719
  %9112 = vst [vmem:[%s6 + $0x148] sm:$0xf] %v8720
  %9113 = vst [vmem:[%s6 + $0x14c] sm:$0xf] %v8721
  %9114 = vst [vmem:[%s6 + $0x150] sm:$0xf] %v8722
  %9115 = vst [vmem:[%s6 + $0x154] sm:$0xf] %v8723
  %9116 = vst [vmem:[%s6 + $0x158] sm:$0xf] %v8724
  %9117 = vst [vmem:[%s6 + $0x15c] sm:$0xf] %v8725
  %9118 = vst [vmem:[%s6 + $0x160] sm:$0xf] %v8726
  %9119 = vst [vmem:[%s6 + $0x164] sm:$0xf] %v8727
  %9120 = vst [vmem:[%s6 + $0x168] sm:$0xf] %v8728
  %9121 = vst [vmem:[%s6 + $0x16c] sm:$0xf] %v8729
  %9122 = vst [vmem:[%s6 + $0x170] sm:$0xf] %v8730
  %9123 = vst [vmem:[%s6 + $0x174] sm:$0xf] %v8731
  %9124 = vst [vmem:[%s6 + $0x178] sm:$0xf] %v8732
  %9125 = vst [vmem:[%s6 + $0x17c] sm:$0xf] %v8733
  %9126 = vst [vmem:[%s6 + $0x180] sm:$0xf] %v8734
  %9127 = vst [vmem:[%s6 + $0x184] sm:$0xf] %v8735
  %9128 = vst [vmem:[%s6 + $0x188] sm:$0xf] %v8736
  %9129 = vst [vmem:[%s6 + $0x18c] sm:$0xf] %v8737
  %9130 = vst [vmem:[%s6 + $0x190] sm:$0xf] %v8738
  %9131 = vst [vmem:[%s6 + $0x194] sm:$0xf] %v8739
  %9132 = vst [vmem:[%s6 + $0x198] sm:$0xf] %v8740
  %9133 = vst [vmem:[%s6 + $0x19c] sm:$0xf] %v8741
  %9134 = vst [vmem:[%s6 + $0x1a0] sm:$0xf] %v8742
  %9135 = vst [vmem:[%s6 + $0x1a4] sm:$0xf] %v8743
  %9136 = vst [vmem:[%s6 + $0x1a8] sm:$0xf] %v8744
  %9137 = vst [vmem:[%s6 + $0x1ac] sm:$0xf] %v8745
  %9138 = vst [vmem:[%s6 + $0x1b0] sm:$0xf] %v8746
  %9139 = vst [vmem:[%s6 + $0x1b4] sm:$0xf] %v8747
  %9140 = vst [vmem:[%s6 + $0x1b8] sm:$0xf] %v8748
  %9141 = vst [vmem:[%s6 + $0x1bc] sm:$0xf] %v8749
  %9142 = vst [vmem:[%s6 + $0x1c0] sm:$0xf] %v8750
  %9143 = vst [vmem:[%s6 + $0x1c4] sm:$0xf] %v8751
  %9144 = vst [vmem:[%s6 + $0x1c8] sm:$0xf] %v8752
  %9145 = vst [vmem:[%s6 + $0x1cc] sm:$0xf] %v8753
  %9146 = vst [vmem:[%s6 + $0x1d0] sm:$0xf] %v8754
  %9147 = vst [vmem:[%s6 + $0x1d4] sm:$0xf] %v8755
  %9148 = vst [vmem:[%s6 + $0x1d8] sm:$0xf] %v8756
  %9149 = vst [vmem:[%s6 + $0x1dc] sm:$0xf] %v8757
  %9150 = vst [vmem:[%s6 + $0x1e0] sm:$0xf] %v8758
  %9151 = vst [vmem:[%s6 + $0x1e4] sm:$0xf] %v8759
  %9152 = vst [vmem:[%s6 + $0x1e8] sm:$0xf] %v8760
  %9153 = vst [vmem:[%s6 + $0x1ec] sm:$0xf] %v8761
  %9154 = vst [vmem:[%s6 + $0x1f0] sm:$0xf] %v8762
  %9155 = vst [vmem:[%s6 + $0x1f4] sm:$0xf] %v8763
  %9156 = vst [vmem:[%s6 + $0x1f8] sm:$0xf] %v8764
  %9157 = vst [vmem:[%s6 + $0x1fc] sm:$0xf] %v8765
  %9158 = vst [vmem:[%s6 + $0x200] sm:$0xf] %v8766
  %9159 = vst [vmem:[%s6 + $0x204] sm:$0xf] %v8767
  %9160 = vst [vmem:[%s6 + $0x208] sm:$0xf] %v8768
  %9161 = vst [vmem:[%s6 + $0x20c] sm:$0xf] %v8769
  %9162 = vst [vmem:[%s6 + $0x210] sm:$0xf] %v8770
  %9163 = vst [vmem:[%s6 + $0x214] sm:$0xf] %v8771
  %9164 = vst [vmem:[%s6 + $0x218] sm:$0xf] %v8772
  %9165 = vst [vmem:[%s6 + $0x21c] sm:$0xf] %v8773
  %9166 = vst [vmem:[%s6 + $0x220] sm:$0xf] %v8774
  %9167 = vst [vmem:[%s6 + $0x224] sm:$0xf] %v8775
  %9168 = vst [vmem:[%s6 + $0x228] sm:$0xf] %v8776
  %9169 = vst [vmem:[%s6 + $0x22c] sm:$0xf] %v8777
  %9170 = vst [vmem:[%s6 + $0x230] sm:$0xf] %v8778
  %9171 = vst [vmem:[%s6 + $0x234] sm:$0xf] %v8779
  %9172 = vst [vmem:[%s6 + $0x238] sm:$0xf] %v8780
  %9173 = vst [vmem:[%s6 + $0x23c] sm:$0xf] %v8781
  %9174 = vst [vmem:[%s6 + $0x240] sm:$0xf] %v8782
  %9175 = vst [vmem:[%s6 + $0x244] sm:$0xf] %v8783
  %9176 = vst [vmem:[%s6 + $0x248] sm:$0xf] %v8784
  %9177 = vst [vmem:[%s6 + $0x24c] sm:$0xf] %v8785
  %9178 = vst [vmem:[%s6 + $0x250] sm:$0xf] %v8786
  %9179 = vst [vmem:[%s6 + $0x254] sm:$0xf] %v8787
  %9180 = vst [vmem:[%s6 + $0x258] sm:$0xf] %v8788
  %9181 = vst [vmem:[%s6 + $0x25c] sm:$0xf] %v8789
  %9182 = vst [vmem:[%s6 + $0x260] sm:$0xf] %v8790
  %9183 = vst [vmem:[%s6 + $0x264] sm:$0xf] %v8791
  %9184 = vst [vmem:[%s6 + $0x268] sm:$0xf] %v8792
  %9185 = vst [vmem:[%s6 + $0x26c] sm:$0xf] %v8793
  %9186 = vst [vmem:[%s6 + $0x270] sm:$0xf] %v8794
  %9187 = vst [vmem:[%s6 + $0x274] sm:$0xf] %v8795
  %9188 = vst [vmem:[%s6 + $0x278] sm:$0xf] %v8796
  %9189 = vst [vmem:[%s6 + $0x27c] sm:$0xf] %v8797
  %9190 = vst [vmem:[%s6 + $0x280] sm:$0xf] %v8798
  %9191 = vst [vmem:[%s6 + $0x284] sm:$0xf] %v8799
  %9192 = vst [vmem:[%s6 + $0x288] sm:$0xf] %v8800
  %9193 = vst [vmem:[%s6 + $0x28c] sm:$0xf] %v8801
  %9194 = vst [vmem:[%s6 + $0x290] sm:$0xf] %v8802
  %9195 = vst [vmem:[%s6 + $0x294] sm:$0xf] %v8803
  %9196 = vst [vmem:[%s6 + $0x298] sm:$0xf] %v8804
  %9197 = vst [vmem:[%s6 + $0x29c] sm:$0xf] %v8805
  %9198 = vst [vmem:[%s6 + $0x2a0] sm:$0xf] %v8806
  %9199 = vst [vmem:[%s6 + $0x2a4] sm:$0xf] %v8807
  %9200 = vst [vmem:[%s6 + $0x2a8] sm:$0xf] %v8808
  %9201 = vst [vmem:[%s6 + $0x2ac] sm:$0xf] %v8809
  %9202 = vst [vmem:[%s6 + $0x2b0] sm:$0xf] %v8810
  %9203 = vst [vmem:[%s6 + $0x2b4] sm:$0xf] %v8811
  %9204 = vst [vmem:[%s6 + $0x2b8] sm:$0xf] %v8812
  %9205 = vst [vmem:[%s6 + $0x2bc] sm:$0xf] %v8813
  %9206 = vst [vmem:[%s6 + $0x2c0] sm:$0xf] %v8814
  %9207 = vst [vmem:[%s6 + $0x2c4] sm:$0xf] %v8815
  %9208 = vst [vmem:[%s6 + $0x2c8] sm:$0xf] %v8816
  %9209 = vst [vmem:[%s6 + $0x2cc] sm:$0xf] %v8817
  %9210 = vst [vmem:[%s6 + $0x2d0] sm:$0xf] %v8818
  %9211 = vst [vmem:[%s6 + $0x2d4] sm:$0xf] %v8819
  %9212 = vst [vmem:[%s6 + $0x2d8] sm:$0xf] %v8820
  %9213 = vst [vmem:[%s6 + $0x2dc] sm:$0xf] %v8821
  %9214 = vst [vmem:[%s6 + $0x2e0] sm:$0xf] %v8822
  %9215 = vst [vmem:[%s6 + $0x2e4] sm:$0xf] %v8823
  %9216 = vst [vmem:[%s6 + $0x2e8] sm:$0xf] %v8824
  %9217 = vst [vmem:[%s6 + $0x2ec] sm:$0xf] %v8825
  %9218 = vst [vmem:[%s6 + $0x2f0] sm:$0xf] %v8826
  %9219 = vst [vmem:[%s6 + $0x2f4] sm:$0xf] %v8827
  %9220 = vst [vmem:[%s6 + $0x2f8] sm:$0xf] %v8828
  %9221 = vst [vmem:[%s6 + $0x2fc] sm:$0xf] %v8829
  %9222 = vst [vmem:[%s6 + $0x300] sm:$0xf] %v8830
  %9223 = vst [vmem:[%s6 + $0x304] sm:$0xf] %v8831
  %9224 = vst [vmem:[%s6 + $0x308] sm:$0xf] %v8832
  %9225 = vst [vmem:[%s6 + $0x30c] sm:$0xf] %v8833
  // Predicated region
  $region26: #{cnn_cifar_forward.3} parent=0 // pred_check
    _
  $region27: #{cnn_cifar_forward.3} parent=0 // pred_check_branch
    %9227 = sbr.rel (0) target = $region29
  $region28: #{cnn_cifar_forward.3} parent=0 // pred_region
    _
  $region29: #{cnn_cifar_forward.3} parent=0 // pred_fallthru
    _
  // Predicated region
  $region30: #{cnn_cifar_forward.3} parent=0 // pred_check
    _
  $region31: #{cnn_cifar_forward.3} parent=0 // pred_check_branch
    %9229 = sbr.rel (0) target = $region33
  $region32: #{cnn_cifar_forward.3} parent=0 // pred_region
    _
  $region33: #{cnn_cifar_forward.3} parent=0 // pred_fallthru
    _

// kernel: cnn_cifar_forward.4
$region0: #{cnn_cifar_forward.4}
  #allocation0 [shape = 'u32[]', space=smem, size = 0x4, offset = 0x4, fixed_abs, tag = 'smem constant byte address 0x4 - core index']
  #allocation1 [shape = 'u32[144,128]{1,0:T(1,128)}', space=vmem, size = 0x12000, scoped, tag = 'internal scratch']
  %s0 = inlined_call_operand.vmem [shape: bf16[200,150], index: 0, kind: input, shape index: {}]
  %s1 = inlined_call_operand.vmem [shape: bf16[200,150], index: 1, kind: input, shape index: {}]
  %s2 = inlined_call_operand.vmem [shape: bf16[200,150], index: 2, kind: input, shape index: {}]
  %s3 = inlined_call_operand.vmem [shape: bf16[200,150], index: 3, kind: input, shape index: {}]
  %s4 = inlined_call_operand.vmem [shape: bf16[150,128], index: 4, kind: input, shape index: {}]
  %s5 = inlined_call_operand.vmem [shape: f32[1,128], index: 5, kind: input, shape index: {}]
  %s6 = inlined_call_operand.vmem [shape: bf16[200,128], index: 6, kind: output, shape index: {}]
  %s7 = sld [smem:[#allocation0]]
  $region34: #{cnn_cifar_forward.4} parent=0
    _
  %s9 = ssub.s32 1, %s7
  %s10 = scalar_select 0, %s9, %s7
  // Predicated region
  $region2: #{cnn_cifar_forward.4} parent=0 // pred_check
    _
  $region3: #{cnn_cifar_forward.4} parent=0 // pred_check_branch
    %12 = sbr.rel (0) target = $region5
  $region4: #{cnn_cifar_forward.4} parent=0 // pred_region
    _
  $region5: #{cnn_cifar_forward.4} parent=0 // pred_fallthru
    _
  // Predicated region
  $region6: #{cnn_cifar_forward.4} parent=0 // pred_check
    _
  $region7: #{cnn_cifar_forward.4} parent=0 // pred_check_branch
    %14 = sbr.rel (0) target = $region9
  $region8: #{cnn_cifar_forward.4} parent=0 // pred_region
    _
  $region9: #{cnn_cifar_forward.4} parent=0 // pred_fallthru
    _
  // Predicated region
  $region10: #{cnn_cifar_forward.4} parent=0 // pred_check
    _
  $region11: #{cnn_cifar_forward.4} parent=0 // pred_check_branch
    %16 = sbr.rel (0) target = $region13
  $region12: #{cnn_cifar_forward.4} parent=0 // pred_region
    _
  $region13: #{cnn_cifar_forward.4} parent=0 // pred_fallthru
    _
  // Predicated region
  $region14: #{cnn_cifar_forward.4} parent=0 // pred_check
    _
  $region15: #{cnn_cifar_forward.4} parent=0 // pred_check_branch
    %18 = sbr.rel (0) target = $region17
  $region16: #{cnn_cifar_forward.4} parent=0 // pred_region
    _
  $region17: #{cnn_cifar_forward.4} parent=0 // pred_fallthru
    _
  // Predicated region
  $region18: #{cnn_cifar_forward.4} parent=0 // pred_check
    _
  $region19: #{cnn_cifar_forward.4} parent=0 // pred_check_branch
    %20 = sbr.rel (0) target = $region21
  $region20: #{cnn_cifar_forward.4} parent=0 // pred_region
    _
  $region21: #{cnn_cifar_forward.4} parent=0 // pred_fallthru
    _
  // Predicated region
  $region22: #{cnn_cifar_forward.4} parent=0 // pred_check
    _
  $region23: #{cnn_cifar_forward.4} parent=0 // pred_check_branch
    %22 = sbr.rel (0) target = $region25
  $region24: #{cnn_cifar_forward.4} parent=0 // pred_region
    _
  $region25: #{cnn_cifar_forward.4} parent=0 // pred_fallthru
    _
  %v24 = vld [vmem:[%s4] sm:$0xf]
  %v25 = vld [vmem:[%s4 + $0x4] sm:$0xf]
  %v26 = vld [vmem:[%s4 + $0x8] sm:$0xf]
  %v27 = vld [vmem:[%s4 + $0xc] sm:$0xf]
  %v28 = vld [vmem:[%s4 + $0x10] sm:$0xf]
  %v29 = vld [vmem:[%s4 + $0x14] sm:$0xf]
  %v30 = vld [vmem:[%s4 + $0x18] sm:$0xf]
  %v31 = vld [vmem:[%s4 + $0x1c] sm:$0xf]
  %v32 = vld [vmem:[%s4 + $0x20] sm:$0xf]
  %v33 = vld [vmem:[%s4 + $0x24] sm:$0xf]
  %v34 = vld [vmem:[%s4 + $0x28] sm:$0xf]
  %v35 = vld [vmem:[%s4 + $0x2c] sm:$0xf]
  %v36 = vld [vmem:[%s4 + $0x30] sm:$0xf]
  %v37 = vld [vmem:[%s4 + $0x34] sm:$0xf]
  %v38 = vld [vmem:[%s4 + $0x38] sm:$0xf]
  %v39 = vld [vmem:[%s4 + $0x3c] sm:$0xf]
  %v40 = vld [vmem:[%s4 + $0x40] sm:$0xf]
  %v41 = vld [vmem:[%s4 + $0x44] sm:$0xf]
  %v42 = vld [vmem:[%s4 + $0x48] sm:$0x7]
  %v43 = vld [vmem:[%s0] sm:$0xff]
  %v44 = vld [vmem:[%s0 + $0x8] sm:$0xff]
  %v45 = vld [vmem:[%s0 + $0x10] sm:$0xff]
  %v46 = vld [vmem:[%s0 + $0x18] sm:$0xff]
  %v47 = vld [vmem:[%s0 + $0x20] sm:$0xff]
  %v48 = vld [vmem:[%s0 + $0x28] sm:$0xff]
  %v49 = vld [vmem:[%s0 + $0x30] sm:$0xff]
  %v50 = vld [vmem:[%s0 + $0x38] sm:$0xff]
  %v51 = vld [vmem:[%s0 + $0x40] sm:$0xff]
  %v52 = vld [vmem:[%s0 + $0x48] sm:$0xff]
  %v53 = vld [vmem:[%s0 + $0x50] sm:$0xff]
  %v54 = vld [vmem:[%s0 + $0x58] sm:$0xff]
  %v55 = vld [vmem:[%s0 + $0x60] sm:$0xff]
  %v56 = vld [vmem:[%s0 + $0x68] sm:$0xff]
  %v57 = vld [vmem:[%s0 + $0x70] sm:$0xff]
  %v58 = vld [vmem:[%s0 + $0x78] sm:$0xff]
  %v59 = vld [vmem:[%s0 + $0x80] sm:$0xff]
  %v60 = vld [vmem:[%s0 + $0x88] sm:$0xff]
  %v61 = vld [vmem:[%s0 + $0x90] sm:$0xff]
  %v62 = vld [vmem:[%s0 + $0x98] sm:$0xff]
  %v63 = vld [vmem:[%s0 + $0xa0] sm:$0xff]
  %v64 = vld [vmem:[%s0 + $0xa8] sm:$0xff]
  %v65 = vld [vmem:[%s0 + $0xb0] sm:$0xff]
  %v66 = vld [vmem:[%s0 + $0xb8] sm:$0xff]
  %v67 = vld [vmem:[%s0 + $0xc0] sm:$0xff]
  %v93 = vunpack.c.l.b16 %v43
  %v94 = vunpack.c.h.b16 %v43
  %v95 = vunpack.c.l.b16 %v44
  %v96 = vunpack.c.h.b16 %v44
  %v97 = vunpack.c.l.b16 %v45
  %v98 = vunpack.c.h.b16 %v45
  %v99 = vunpack.c.l.b16 %v46
  %v100 = vunpack.c.h.b16 %v46
  %v101 = vunpack.c.l.b16 %v47
  %v102 = vunpack.c.h.b16 %v47
  %v103 = vunpack.c.l.b16 %v48
  %v104 = vunpack.c.h.b16 %v48
  %v105 = vunpack.c.l.b16 %v49
  %v106 = vunpack.c.h.b16 %v49
  %v107 = vunpack.c.l.b16 %v50
  %v108 = vunpack.c.h.b16 %v50
  %v109 = vunpack.c.l.b16 %v51
  %v110 = vunpack.c.h.b16 %v51
  %v111 = vunpack.c.l.b16 %v52
  %v112 = vunpack.c.h.b16 %v52
  %v113 = vunpack.c.l.b16 %v53
  %v114 = vunpack.c.h.b16 %v53
  %v115 = vunpack.c.l.b16 %v54
  %v116 = vunpack.c.h.b16 %v54
  %v117 = vunpack.c.l.b16 %v55
  %v118 = vunpack.c.h.b16 %v55
  %v119 = vunpack.c.l.b16 %v56
  %v120 = vunpack.c.h.b16 %v56
  %v121 = vunpack.c.l.b16 %v57
  %v122 = vunpack.c.h.b16 %v57
  %v123 = vunpack.c.l.b16 %v58
  %v124 = vunpack.c.h.b16 %v58
  %v125 = vunpack.c.l.b16 %v59
  %v126 = vunpack.c.h.b16 %v59
  %v127 = vunpack.c.l.b16 %v60
  %v128 = vunpack.c.h.b16 %v60
  %v129 = vunpack.c.l.b16 %v61
  %v130 = vunpack.c.h.b16 %v61
  %v131 = vunpack.c.l.b16 %v62
  %v132 = vunpack.c.h.b16 %v62
  %v133 = vunpack.c.l.b16 %v63
  %v134 = vunpack.c.h.b16 %v63
  %v135 = vunpack.c.l.b16 %v64
  %v136 = vunpack.c.h.b16 %v64
  %v137 = vunpack.c.l.b16 %v65
  %v138 = vunpack.c.h.b16 %v65
  %v139 = vunpack.c.l.b16 %v66
  %v140 = vunpack.c.h.b16 %v66
  %v141 = vunpack.c.l.b16 %v67
  %v142 = vunpack.c.h.b16 %v67
  %v143 = vpack.c.b16 %v95, %v93
  %v144 = vpack.c.b16 %v96, %v94
  %v145 = vpack.c.b16 %v99, %v97
  %v146 = vpack.c.b16 %v100, %v98
  %v147 = vpack.c.b16 %v103, %v101
  %v148 = vpack.c.b16 %v104, %v102
  %v149 = vpack.c.b16 %v107, %v105
  %v150 = vpack.c.b16 %v108, %v106
  %v151 = vpack.c.b16 %v111, %v109
  %v152 = vpack.c.b16 %v112, %v110
  %v153 = vpack.c.b16 %v115, %v113
  %v154 = vpack.c.b16 %v116, %v114
  %v155 = vpack.c.b16 %v119, %v117
  %v156 = vpack.c.b16 %v120, %v118
  %v157 = vpack.c.b16 %v123, %v121
  %v158 = vpack.c.b16 %v124, %v122
  %v159 = vpack.c.b16 %v127, %v125
  %v160 = vpack.c.b16 %v128, %v126
  %v161 = vpack.c.b16 %v131, %v129
  %v162 = vpack.c.b16 %v132, %v130
  %v163 = vpack.c.b16 %v135, %v133
  %v164 = vpack.c.b16 %v136, %v134
  %v165 = vpack.c.b16 %v139, %v137
  %v166 = vpack.c.b16 %v140, %v138
  %v167 = vpack.c.b16 %v141, %v141
  %v168 = vpack.c.b16 %v142, %v142
  %v201 = vunpack.c.l.b16 %v24
  %v202 = vunpack.c.l.b16 %v25
  %v203 = vunpack.c.l.b16 %v26
  %v204 = vunpack.c.l.b16 %v27
  %v205 = vunpack.c.l.b16 %v28
  %v206 = vunpack.c.l.b16 %v29
  %v207 = vunpack.c.l.b16 %v30
  %v208 = vunpack.c.l.b16 %v31
  %v209 = vunpack.c.l.b16 %v32
  %v210 = vunpack.c.l.b16 %v33
  %v211 = vunpack.c.l.b16 %v34
  %v212 = vunpack.c.l.b16 %v35
  %v213 = vunpack.c.l.b16 %v36
  %v214 = vunpack.c.l.b16 %v37
  %v215 = vunpack.c.l.b16 %v38
  %v216 = vunpack.c.l.b16 %v39
  %v217 = vunpack.c.l.b16 %v40
  %v218 = vunpack.c.l.b16 %v41
  %v219 = vunpack.c.l.b16 %v42
  %v220 = vpack.c.b16 %v202, %v201
  %v221 = vpack.c.b16 %v204, %v203
  %v222 = vpack.c.b16 %v206, %v205
  %v223 = vpack.c.b16 %v208, %v207
  %v224 = vpack.c.b16 %v210, %v209
  %v225 = vpack.c.b16 %v212, %v211
  %v226 = vpack.c.b16 %v214, %v213
  %v227 = vpack.c.b16 %v216, %v215
  %v228 = vpack.c.b16 %v218, %v217
  %v229 = vpack.c.b16 %v219, %v219
  %vm239 = vcmask 179200
  %v241 = vsel %vm239, %v144, 0
  %v244 = vsel %vm239, %v146, 0
  %v247 = vsel %vm239, %v148, 0
  %v250 = vsel %vm239, %v150, 0
  %v253 = vsel %vm239, %v152, 0
  %v256 = vsel %vm239, %v154, 0
  %v259 = vsel %vm239, %v156, 0
  %v262 = vsel %vm239, %v158, 0
  %v265 = vsel %vm239, %v160, 0
  %v268 = vsel %vm239, %v162, 0
  %v271 = vsel %vm239, %v164, 0
  %v274 = vsel %vm239, %v166, 0
  %v277 = vsel %vm239, %v168, 0
  %vm279 = vcmask 1042432
  %v281 = vsel %vm279, %v229, 0
  %283 = vmatprep.subr.bf16.mxu0 0
  %284 = vmatpush1.bf16.msra.mxu0 %v220
  %285 = vmatprep.subr.bf16.mxu0 0
  %286 = vmatpush1.bf16.msra.mxu0 %v221
  %287 = vmatprep.subr.bf16.mxu0 0
  %288 = vmatpush1.bf16.msra.mxu0 %v222
  %289 = vmatprep.subr.bf16.mxu0 0
  %290 = vmatpush1.bf16.msra.mxu0 %v223
  %291 = vmatprep.subr.bf16.mxu0 0
  %292 = vmatpush1.bf16.msra.mxu0 %v224
  %293 = vmatprep.subr.bf16.mxu0 0
  %294 = vmatpush1.bf16.msra.mxu0 %v225
  %295 = vmatprep.subr.bf16.mxu0 0
  %296 = vmatpush1.bf16.msra.mxu0 %v226
  %297 = vmatprep.subr.bf16.mxu0 0
  %298 = vmatpush1.bf16.msra.mxu0 %v227
  %299 = vmatprep.subr.bf16.mxu0 0
  %300 = vmatpush1.bf16.msra.mxu0 %v228
  %301 = vmatprep.subr.bf16.mxu0 0
  %302 = vmatpush1.bf16.msra.mxu0 %v281
  %303 = vmatprep.subr.bf16.mxu0 0
  %304 = vmatpush1.bf16.msra.mxu0 0
  %305 = vmatprep.subr.bf16.mxu0 0
  %306 = vmatpush1.bf16.msra.mxu0 0
  %307 = vmatprep.subr.bf16.mxu0 0
  %308 = vmatpush1.bf16.msra.mxu0 0
  %309 = vmatprep.subr.bf16.mxu0 0
  %310 = vmatpush1.bf16.msra.mxu0 0
  %311 = vmatprep.subr.bf16.mxu0 0
  %312 = vmatpush1.bf16.msra.mxu0 0
  %313 = vmatprep.subr.bf16.mxu0 0
  %314 = vmatpush1.bf16.msra.mxu0 0
  %315 = vmatprep.mubr.bf16.mxu0 %v241
  %316 = vmatmul.mubr.bf16.gmra.mrb[0].mxu0 %v143
  %v317 = vpop.f32.mrb[0].mxu0
  %v318 = vadd.f32 0.0, %v317
  %v319 = vpop.f32.mrb[0].mxu0
  %v320 = vpop.f32.mrb[0].mxu0
  %v321 = vadd.f32 0.0, %v320
  %v322 = vpop.f32.mrb[0].mxu0
  %323 = vmatprep.mubr.bf16.mxu0 %v244
  %324 = vmatmul.mubr.bf16.gmra.mrb[0].mxu0 %v145
  %v325 = vpop.f32.mrb[0].mxu0
  %v326 = vadd.f32 0.0, %v325
  %v327 = vpop.f32.mrb[0].mxu0
  %v328 = vpop.f32.mrb[0].mxu0
  %v329 = vadd.f32 0.0, %v328
  %v330 = vpop.f32.mrb[0].mxu0
  %331 = vmatprep.mubr.bf16.mxu0 %v247
  %332 = vmatmul.mubr.bf16.gmra.mrb[0].mxu0 %v147
  %v333 = vpop.f32.mrb[0].mxu0
  %v334 = vadd.f32 0.0, %v333
  %v335 = vpop.f32.mrb[0].mxu0
  %v336 = vpop.f32.mrb[0].mxu0
  %v337 = vadd.f32 0.0, %v336
  %v338 = vpop.f32.mrb[0].mxu0
  %339 = vmatprep.mubr.bf16.mxu0 %v250
  %340 = vmatmul.mubr.bf16.gmra.mrb[0].mxu0 %v149
  %v341 = vpop.f32.mrb[0].mxu0
  %v342 = vadd.f32 0.0, %v341
  %v343 = vpop.f32.mrb[0].mxu0
  %v344 = vpop.f32.mrb[0].mxu0
  %v345 = vadd.f32 0.0, %v344
  %v346 = vpop.f32.mrb[0].mxu0
  %347 = vmatprep.mubr.bf16.mxu0 %v253
  %348 = vmatmul.mubr.bf16.gmra.mrb[0].mxu0 %v151
  %v349 = vpop.f32.mrb[0].mxu0
  %v350 = vadd.f32 0.0, %v349
  %v351 = vpop.f32.mrb[0].mxu0
  %v352 = vpop.f32.mrb[0].mxu0
  %v353 = vadd.f32 0.0, %v352
  %v354 = vpop.f32.mrb[0].mxu0
  %355 = vmatprep.mubr.bf16.mxu0 %v256
  %356 = vmatmul.mubr.bf16.gmra.mrb[0].mxu0 %v153
  %v357 = vpop.f32.mrb[0].mxu0
  %v358 = vadd.f32 0.0, %v357
  %v359 = vpop.f32.mrb[0].mxu0
  %v360 = vpop.f32.mrb[0].mxu0
  %v361 = vadd.f32 0.0, %v360
  %v362 = vpop.f32.mrb[0].mxu0
  %363 = vmatprep.mubr.bf16.mxu0 %v259
  %364 = vmatmul.mubr.bf16.gmra.mrb[0].mxu0 %v155
  %v365 = vpop.f32.mrb[0].mxu0
  %v366 = vadd.f32 0.0, %v365
  %v367 = vpop.f32.mrb[0].mxu0
  %v368 = vpop.f32.mrb[0].mxu0
  %v369 = vadd.f32 0.0, %v368
  %v370 = vpop.f32.mrb[0].mxu0
  %371 = vmatprep.mubr.bf16.mxu0 %v262
  %372 = vmatmul.mubr.bf16.gmra.mrb[0].mxu0 %v157
  %v373 = vpop.f32.mrb[0].mxu0
  %v374 = vadd.f32 0.0, %v373
  %v375 = vpop.f32.mrb[0].mxu0
  %v376 = vpop.f32.mrb[0].mxu0
  %v377 = vadd.f32 0.0, %v376
  %v378 = vpop.f32.mrb[0].mxu0
  %379 = vmatprep.mubr.bf16.mxu0 %v265
  %380 = vmatmul.mubr.bf16.gmra.mrb[0].mxu0 %v159
  %v381 = vpop.f32.mrb[0].mxu0
  %v382 = vadd.f32 0.0, %v381
  %v383 = vpop.f32.mrb[0].mxu0
  %v384 = vpop.f32.mrb[0].mxu0
  %v385 = vadd.f32 0.0, %v384
  %v386 = vpop.f32.mrb[0].mxu0
  %387 = vmatprep.mubr.bf16.mxu0 %v268
  %388 = vmatmul.mubr.bf16.gmra.mrb[0].mxu0 %v161
  %v389 = vpop.f32.mrb[0].mxu0
  %v390 = vadd.f32 0.0, %v389
  %v391 = vpop.f32.mrb[0].mxu0
  %v392 = vpop.f32.mrb[0].mxu0
  %v393 = vadd.f32 0.0, %v392
  %v394 = vpop.f32.mrb[0].mxu0
  %395 = vmatprep.mubr.bf16.mxu0 %v271
  %396 = vmatmul.mubr.bf16.gmra.mrb[0].mxu0 %v163
  %v397 = vpop.f32.mrb[0].mxu0
  %v398 = vadd.f32 0.0, %v397
  %v399 = vpop.f32.mrb[0].mxu0
  %v400 = vpop.f32.mrb[0].mxu0
  %v401 = vadd.f32 0.0, %v400
  %v402 = vpop.f32.mrb[0].mxu0
  %403 = vmatprep.mubr.bf16.mxu0 %v274
  %404 = vmatmul.mubr.bf16.gmra.mrb[0].mxu0 %v165
  %v405 = vpop.f32.mrb[0].mxu0
  %v406 = vadd.f32 0.0, %v405
  %v407 = vpop.f32.mrb[0].mxu0
  %v408 = vpop.f32.mrb[0].mxu0
  %v409 = vadd.f32 0.0, %v408
  %v410 = vpop.f32.mrb[0].mxu0
  %411 = vmatprep.mubr.bf16.mxu0 %v277
  %412 = vmatmul.mubr.bf16.gmra.mrb[0].mxu0 %v167
  %v413 = vpop.f32.mrb[0].mxu0
  %v414 = vadd.f32 0.0, %v413
  %v415 = vpop.f32.mrb[0].mxu0
  %v416 = vpop.f32.mrb[0].mxu0
  %v417 = vpop.f32.mrb[0].mxu0
  %418 = vdwg.mxu0
  %v419 = vld [vmem:[%s1] sm:$0xff]
  %v420 = vld [vmem:[%s1 + $0x8] sm:$0xff]
  %v421 = vld [vmem:[%s1 + $0x10] sm:$0xff]
  %v422 = vld [vmem:[%s1 + $0x18] sm:$0xff]
  %v423 = vld [vmem:[%s1 + $0x20] sm:$0xff]
  %v424 = vld [vmem:[%s1 + $0x28] sm:$0xff]
  %v425 = vld [vmem:[%s1 + $0x30] sm:$0xff]
  %v426 = vld [vmem:[%s1 + $0x38] sm:$0xff]
  %v427 = vld [vmem:[%s1 + $0x40] sm:$0xff]
  %v428 = vld [vmem:[%s1 + $0x48] sm:$0xff]
  %v429 = vld [vmem:[%s1 + $0x50] sm:$0xff]
  %v430 = vld [vmem:[%s1 + $0x58] sm:$0xff]
  %v431 = vld [vmem:[%s1 + $0x60] sm:$0xff]
  %v432 = vld [vmem:[%s1 + $0x68] sm:$0xff]
  %v433 = vld [vmem:[%s1 + $0x70] sm:$0xff]
  %v434 = vld [vmem:[%s1 + $0x78] sm:$0xff]
  %v435 = vld [vmem:[%s1 + $0x80] sm:$0xff]
  %v436 = vld [vmem:[%s1 + $0x88] sm:$0xff]
  %v437 = vld [vmem:[%s1 + $0x90] sm:$0xff]
  %v438 = vld [vmem:[%s1 + $0x98] sm:$0xff]
  %v439 = vld [vmem:[%s1 + $0xa0] sm:$0xff]
  %v440 = vld [vmem:[%s1 + $0xa8] sm:$0xff]
  %v441 = vld [vmem:[%s1 + $0xb0] sm:$0xff]
  %v442 = vld [vmem:[%s1 + $0xb8] sm:$0xff]
  %v443 = vld [vmem:[%s1 + $0xc0] sm:$0xff]
  %v469 = vunpack.c.l.b16 %v419
  %v470 = vunpack.c.h.b16 %v419
  %v471 = vunpack.c.l.b16 %v420
  %v472 = vunpack.c.h.b16 %v420
  %v473 = vunpack.c.l.b16 %v421
  %v474 = vunpack.c.h.b16 %v421
  %v475 = vunpack.c.l.b16 %v422
  %v476 = vunpack.c.h.b16 %v422
  %v477 = vunpack.c.l.b16 %v423
  %v478 = vunpack.c.h.b16 %v423
  %v479 = vunpack.c.l.b16 %v424
  %v480 = vunpack.c.h.b16 %v424
  %v481 = vunpack.c.l.b16 %v425
  %v482 = vunpack.c.h.b16 %v425
  %v483 = vunpack.c.l.b16 %v426
  %v484 = vunpack.c.h.b16 %v426
  %v485 = vunpack.c.l.b16 %v427
  %v486 = vunpack.c.h.b16 %v427
  %v487 = vunpack.c.l.b16 %v428
  %v488 = vunpack.c.h.b16 %v428
  %v489 = vunpack.c.l.b16 %v429
  %v490 = vunpack.c.h.b16 %v429
  %v491 = vunpack.c.l.b16 %v430
  %v492 = vunpack.c.h.b16 %v430
  %v493 = vunpack.c.l.b16 %v431
  %v494 = vunpack.c.h.b16 %v431
  %v495 = vunpack.c.l.b16 %v432
  %v496 = vunpack.c.h.b16 %v432
  %v497 = vunpack.c.l.b16 %v433
  %v498 = vunpack.c.h.b16 %v433
  %v499 = vunpack.c.l.b16 %v434
  %v500 = vunpack.c.h.b16 %v434
  %v501 = vunpack.c.l.b16 %v435
  %v502 = vunpack.c.h.b16 %v435
  %v503 = vunpack.c.l.b16 %v436
  %v504 = vunpack.c.h.b16 %v436
  %v505 = vunpack.c.l.b16 %v437
  %v506 = vunpack.c.h.b16 %v437
  %v507 = vunpack.c.l.b16 %v438
  %v508 = vunpack.c.h.b16 %v438
  %v509 = vunpack.c.l.b16 %v439
  %v510 = vunpack.c.h.b16 %v439
  %v511 = vunpack.c.l.b16 %v440
  %v512 = vunpack.c.h.b16 %v440
  %v513 = vunpack.c.l.b16 %v441
  %v514 = vunpack.c.h.b16 %v441
  %v515 = vunpack.c.l.b16 %v442
  %v516 = vunpack.c.h.b16 %v442
  %v517 = vunpack.c.l.b16 %v443
  %v518 = vunpack.c.h.b16 %v443
  %v519 = vpack.c.b16 %v471, %v469
  %v520 = vpack.c.b16 %v472, %v470
  %v521 = vpack.c.b16 %v475, %v473
  %v522 = vpack.c.b16 %v476, %v474
  %v523 = vpack.c.b16 %v479, %v477
  %v524 = vpack.c.b16 %v480, %v478
  %v525 = vpack.c.b16 %v483, %v481
  %v526 = vpack.c.b16 %v484, %v482
  %v527 = vpack.c.b16 %v487, %v485
  %v528 = vpack.c.b16 %v488, %v486
  %v529 = vpack.c.b16 %v491, %v489
  %v530 = vpack.c.b16 %v492, %v490
  %v531 = vpack.c.b16 %v495, %v493
  %v532 = vpack.c.b16 %v496, %v494
  %v533 = vpack.c.b16 %v499, %v497
  %v534 = vpack.c.b16 %v500, %v498
  %v535 = vpack.c.b16 %v503, %v501
  %v536 = vpack.c.b16 %v504, %v502
  %v537 = vpack.c.b16 %v507, %v505
  %v538 = vpack.c.b16 %v508, %v506
  %v539 = vpack.c.b16 %v511, %v509
  %v540 = vpack.c.b16 %v512, %v510
  %v541 = vpack.c.b16 %v515, %v513
  %v542 = vpack.c.b16 %v516, %v514
  %v543 = vpack.c.b16 %v517, %v517
  %v544 = vpack.c.b16 %v518, %v518
  %v559 = vsel %vm239, %v520, 0
  %v562 = vsel %vm239, %v522, 0
  %v565 = vsel %vm239, %v524, 0
  %v568 = vsel %vm239, %v526, 0
  %v571 = vsel %vm239, %v528, 0
  %v574 = vsel %vm239, %v530, 0
  %v577 = vsel %vm239, %v532, 0
  %v580 = vsel %vm239, %v534, 0
  %v583 = vsel %vm239, %v536, 0
  %v586 = vsel %vm239, %v538, 0
  %v589 = vsel %vm239, %v540, 0
  %v592 = vsel %vm239, %v542, 0
  %v595 = vsel %vm239, %v544, 0
  %597 = vmatprep.subr.bf16.mxu0 0
  %598 = vmatpush1.bf16.msra.mxu0 %v220
  %599 = vmatprep.subr.bf16.mxu0 0
  %600 = vmatpush1.bf16.msra.mxu0 %v221
  %601 = vmatprep.subr.bf16.mxu0 0
  %602 = vmatpush1.bf16.msra.mxu0 %v222
  %603 = vmatprep.subr.bf16.mxu0 0
  %604 = vmatpush1.bf16.msra.mxu0 %v223
  %605 = vmatprep.subr.bf16.mxu0 0
  %606 = vmatpush1.bf16.msra.mxu0 %v224
  %607 = vmatprep.subr.bf16.mxu0 0
  %608 = vmatpush1.bf16.msra.mxu0 %v225
  %609 = vmatprep.subr.bf16.mxu0 0
  %610 = vmatpush1.bf16.msra.mxu0 %v226
  %611 = vmatprep.subr.bf16.mxu0 0
  %612 = vmatpush1.bf16.msra.mxu0 %v227
  %613 = vmatprep.subr.bf16.mxu0 0
  %614 = vmatpush1.bf16.msra.mxu0 %v228
  %615 = vmatprep.subr.bf16.mxu0 0
  %616 = vmatpush1.bf16.msra.mxu0 %v281
  %617 = vmatprep.subr.bf16.mxu0 0
  %618 = vmatpush1.bf16.msra.mxu0 0
  %619 = vmatprep.subr.bf16.mxu0 0
  %620 = vmatpush1.bf16.msra.mxu0 0
  %621 = vmatprep.subr.bf16.mxu0 0
  %622 = vmatpush1.bf16.msra.mxu0 0
  %623 = vmatprep.subr.bf16.mxu0 0
  %624 = vmatpush1.bf16.msra.mxu0 0
  %625 = vmatprep.subr.bf16.mxu0 0
  %626 = vmatpush1.bf16.msra.mxu0 0
  %627 = vmatprep.subr.bf16.mxu0 0
  %628 = vmatpush1.bf16.msra.mxu0 0
  %629 = vmatprep.mubr.bf16.mxu0 %v559
  %630 = vmatmul.mubr.bf16.gmra.mrb[0].mxu0 %v519
  %v631 = vpop.f32.mrb[0].mxu0
  %v632 = vadd.f32 0.0, %v631
  %v633 = vpop.f32.mrb[0].mxu0
  %v634 = vpop.f32.mrb[0].mxu0
  %v635 = vadd.f32 0.0, %v634
  %v636 = vpop.f32.mrb[0].mxu0
  %637 = vmatprep.mubr.bf16.mxu0 %v562
  %638 = vmatmul.mubr.bf16.gmra.mrb[0].mxu0 %v521
  %v639 = vpop.f32.mrb[0].mxu0
  %v640 = vadd.f32 0.0, %v639
  %v641 = vpop.f32.mrb[0].mxu0
  %v642 = vpop.f32.mrb[0].mxu0
  %v643 = vadd.f32 0.0, %v642
  %v644 = vpop.f32.mrb[0].mxu0
  %645 = vmatprep.mubr.bf16.mxu0 %v565
  %646 = vmatmul.mubr.bf16.gmra.mrb[0].mxu0 %v523
  %v647 = vpop.f32.mrb[0].mxu0
  %v648 = vadd.f32 0.0, %v647
  %v649 = vpop.f32.mrb[0].mxu0
  %v650 = vpop.f32.mrb[0].mxu0
  %v651 = vadd.f32 0.0, %v650
  %v652 = vpop.f32.mrb[0].mxu0
  %653 = vmatprep.mubr.bf16.mxu0 %v568
  %654 = vmatmul.mubr.bf16.gmra.mrb[0].mxu0 %v525
  %v655 = vpop.f32.mrb[0].mxu0
  %v656 = vadd.f32 0.0, %v655
  %v657 = vpop.f32.mrb[0].mxu0
  %v658 = vpop.f32.mrb[0].mxu0
  %v659 = vadd.f32 0.0, %v658
  %v660 = vpop.f32.mrb[0].mxu0
  %661 = vmatprep.mubr.bf16.mxu0 %v571
  %662 = vmatmul.mubr.bf16.gmra.mrb[0].mxu0 %v527
  %v663 = vpop.f32.mrb[0].mxu0
  %v664 = vadd.f32 0.0, %v663
  %v665 = vpop.f32.mrb[0].mxu0
  %v666 = vpop.f32.mrb[0].mxu0
  %v667 = vadd.f32 0.0, %v666
  %v668 = vpop.f32.mrb[0].mxu0
  %669 = vmatprep.mubr.bf16.mxu0 %v574
  %670 = vmatmul.mubr.bf16.gmra.mrb[0].mxu0 %v529
  %v671 = vpop.f32.mrb[0].mxu0
  %v672 = vadd.f32 0.0, %v671
  %v673 = vpop.f32.mrb[0].mxu0
  %v674 = vpop.f32.mrb[0].mxu0
  %v675 = vadd.f32 0.0, %v674
  %v676 = vpop.f32.mrb[0].mxu0
  %677 = vmatprep.mubr.bf16.mxu0 %v577
  %678 = vmatmul.mubr.bf16.gmra.mrb[0].mxu0 %v531
  %v679 = vpop.f32.mrb[0].mxu0
  %v680 = vadd.f32 0.0, %v679
  %v681 = vpop.f32.mrb[0].mxu0
  %v682 = vpop.f32.mrb[0].mxu0
  %v683 = vadd.f32 0.0, %v682
  %v684 = vpop.f32.mrb[0].mxu0
  %685 = vmatprep.mubr.bf16.mxu0 %v580
  %686 = vmatmul.mubr.bf16.gmra.mrb[0].mxu0 %v533
  %v687 = vpop.f32.mrb[0].mxu0
  %v688 = vadd.f32 0.0, %v687
  %v689 = vpop.f32.mrb[0].mxu0
  %v690 = vpop.f32.mrb[0].mxu0
  %v691 = vadd.f32 0.0, %v690
  %v692 = vpop.f32.mrb[0].mxu0
  %693 = vmatprep.mubr.bf16.mxu0 %v583
  %694 = vmatmul.mubr.bf16.gmra.mrb[0].mxu0 %v535
  %v695 = vpop.f32.mrb[0].mxu0
  %v696 = vadd.f32 0.0, %v695
  %v697 = vpop.f32.mrb[0].mxu0
  %v698 = vpop.f32.mrb[0].mxu0
  %v699 = vadd.f32 0.0, %v698
  %v700 = vpop.f32.mrb[0].mxu0
  %701 = vmatprep.mubr.bf16.mxu0 %v586
  %702 = vmatmul.mubr.bf16.gmra.mrb[0].mxu0 %v537
  %v703 = vpop.f32.mrb[0].mxu0
  %v704 = vadd.f32 0.0, %v703
  %v705 = vpop.f32.mrb[0].mxu0
  %v706 = vpop.f32.mrb[0].mxu0
  %v707 = vadd.f32 0.0, %v706
  %v708 = vpop.f32.mrb[0].mxu0
  %709 = vmatprep.mubr.bf16.mxu0 %v589
  %710 = vmatmul.mubr.bf16.gmra.mrb[0].mxu0 %v539
  %v711 = vpop.f32.mrb[0].mxu0
  %v712 = vadd.f32 0.0, %v711
  %v713 = vpop.f32.mrb[0].mxu0
  %v714 = vpop.f32.mrb[0].mxu0
  %v715 = vadd.f32 0.0, %v714
  %v716 = vpop.f32.mrb[0].mxu0
  %717 = vmatprep.mubr.bf16.mxu0 %v592
  %718 = vmatmul.mubr.bf16.gmra.mrb[0].mxu0 %v541
  %v719 = vpop.f32.mrb[0].mxu0
  %v720 = vadd.f32 0.0, %v719
  %v721 = vpop.f32.mrb[0].mxu0
  %v722 = vpop.f32.mrb[0].mxu0
  %v723 = vadd.f32 0.0, %v722
  %v724 = vpop.f32.mrb[0].mxu0
  %725 = vmatprep.mubr.bf16.mxu0 %v595
  %726 = vmatmul.mubr.bf16.gmra.mrb[0].mxu0 %v543
  %v727 = vpop.f32.mrb[0].mxu0
  %v728 = vadd.f32 0.0, %v727
  %v729 = vpop.f32.mrb[0].mxu0
  %v730 = vpop.f32.mrb[0].mxu0
  %v731 = vpop.f32.mrb[0].mxu0
  %732 = vdwg.mxu0
  %v733 = vmax.f32 %v318, %v632
  %v734 = vmax.f32 %v321, %v635
  %v735 = vmax.f32 %v326, %v640
  %v736 = vmax.f32 %v329, %v643
  %v737 = vmax.f32 %v334, %v648
  %v738 = vmax.f32 %v337, %v651
  %v739 = vmax.f32 %v342, %v656
  %v740 = vmax.f32 %v345, %v659
  %v741 = vmax.f32 %v350, %v664
  %v742 = vmax.f32 %v353, %v667
  %v743 = vmax.f32 %v358, %v672
  %v744 = vmax.f32 %v361, %v675
  %v745 = vmax.f32 %v366, %v680
  %v746 = vmax.f32 %v369, %v683
  %v747 = vmax.f32 %v374, %v688
  %v748 = vmax.f32 %v377, %v691
  %v749 = vmax.f32 %v382, %v696
  %v750 = vmax.f32 %v385, %v699
  %v751 = vmax.f32 %v390, %v704
  %v752 = vmax.f32 %v393, %v707
  %v753 = vmax.f32 %v398, %v712
  %v754 = vmax.f32 %v401, %v715
  %v755 = vmax.f32 %v406, %v720
  %v756 = vmax.f32 %v409, %v723
  %v757 = vmax.f32 %v414, %v728
  %v758 = vld [vmem:[%s2] sm:$0xff]
  %v759 = vld [vmem:[%s2 + $0x8] sm:$0xff]
  %v760 = vld [vmem:[%s2 + $0x10] sm:$0xff]
  %v761 = vld [vmem:[%s2 + $0x18] sm:$0xff]
  %v762 = vld [vmem:[%s2 + $0x20] sm:$0xff]
  %v763 = vld [vmem:[%s2 + $0x28] sm:$0xff]
  %v764 = vld [vmem:[%s2 + $0x30] sm:$0xff]
  %v765 = vld [vmem:[%s2 + $0x38] sm:$0xff]
  %v766 = vld [vmem:[%s2 + $0x40] sm:$0xff]
  %v767 = vld [vmem:[%s2 + $0x48] sm:$0xff]
  %v768 = vld [vmem:[%s2 + $0x50] sm:$0xff]
  %v769 = vld [vmem:[%s2 + $0x58] sm:$0xff]
  %v770 = vld [vmem:[%s2 + $0x60] sm:$0xff]
  %v771 = vld [vmem:[%s2 + $0x68] sm:$0xff]
  %v772 = vld [vmem:[%s2 + $0x70] sm:$0xff]
  %v773 = vld [vmem:[%s2 + $0x78] sm:$0xff]
  %v774 = vld [vmem:[%s2 + $0x80] sm:$0xff]
  %v775 = vld [vmem:[%s2 + $0x88] sm:$0xff]
  %v776 = vld [vmem:[%s2 + $0x90] sm:$0xff]
  %v777 = vld [vmem:[%s2 + $0x98] sm:$0xff]
  %v778 = vld [vmem:[%s2 + $0xa0] sm:$0xff]
  %v779 = vld [vmem:[%s2 + $0xa8] sm:$0xff]
  %v780 = vld [vmem:[%s2 + $0xb0] sm:$0xff]
  %v781 = vld [vmem:[%s2 + $0xb8] sm:$0xff]
  %v782 = vld [vmem:[%s2 + $0xc0] sm:$0xff]
  %v808 = vunpack.c.l.b16 %v758
  %v809 = vunpack.c.h.b16 %v758
  %v810 = vunpack.c.l.b16 %v759
  %v811 = vunpack.c.h.b16 %v759
  %v812 = vunpack.c.l.b16 %v760
  %v813 = vunpack.c.h.b16 %v760
  %v814 = vunpack.c.l.b16 %v761
  %v815 = vunpack.c.h.b16 %v761
  %v816 = vunpack.c.l.b16 %v762
  %v817 = vunpack.c.h.b16 %v762
  %v818 = vunpack.c.l.b16 %v763
  %v819 = vunpack.c.h.b16 %v763
  %v820 = vunpack.c.l.b16 %v764
  %v821 = vunpack.c.h.b16 %v764
  %v822 = vunpack.c.l.b16 %v765
  %v823 = vunpack.c.h.b16 %v765
  %v824 = vunpack.c.l.b16 %v766
  %v825 = vunpack.c.h.b16 %v766
  %v826 = vunpack.c.l.b16 %v767
  %v827 = vunpack.c.h.b16 %v767
  %v828 = vunpack.c.l.b16 %v768
  %v829 = vunpack.c.h.b16 %v768
  %v830 = vunpack.c.l.b16 %v769
  %v831 = vunpack.c.h.b16 %v769
  %v832 = vunpack.c.l.b16 %v770
  %v833 = vunpack.c.h.b16 %v770
  %v834 = vunpack.c.l.b16 %v771
  %v835 = vunpack.c.h.b16 %v771
  %v836 = vunpack.c.l.b16 %v772
  %v837 = vunpack.c.h.b16 %v772
  %v838 = vunpack.c.l.b16 %v773
  %v839 = vunpack.c.h.b16 %v773
  %v840 = vunpack.c.l.b16 %v774
  %v841 = vunpack.c.h.b16 %v774
  %v842 = vunpack.c.l.b16 %v775
  %v843 = vunpack.c.h.b16 %v775
  %v844 = vunpack.c.l.b16 %v776
  %v845 = vunpack.c.h.b16 %v776
  %v846 = vunpack.c.l.b16 %v777
  %v847 = vunpack.c.h.b16 %v777
  %v848 = vunpack.c.l.b16 %v778
  %v849 = vunpack.c.h.b16 %v778
  %v850 = vunpack.c.l.b16 %v779
  %v851 = vunpack.c.h.b16 %v779
  %v852 = vunpack.c.l.b16 %v780
  %v853 = vunpack.c.h.b16 %v780
  %v854 = vunpack.c.l.b16 %v781
  %v855 = vunpack.c.h.b16 %v781
  %v856 = vunpack.c.l.b16 %v782
  %v857 = vunpack.c.h.b16 %v782
  %v858 = vpack.c.b16 %v810, %v808
  %v859 = vpack.c.b16 %v811, %v809
  %v860 = vpack.c.b16 %v814, %v812
  %v861 = vpack.c.b16 %v815, %v813
  %v862 = vpack.c.b16 %v818, %v816
  %v863 = vpack.c.b16 %v819, %v817
  %v864 = vpack.c.b16 %v822, %v820
  %v865 = vpack.c.b16 %v823, %v821
  %v866 = vpack.c.b16 %v826, %v824
  %v867 = vpack.c.b16 %v827, %v825
  %v868 = vpack.c.b16 %v830, %v828
  %v869 = vpack.c.b16 %v831, %v829
  %v870 = vpack.c.b16 %v834, %v832
  %v871 = vpack.c.b16 %v835, %v833
  %v872 = vpack.c.b16 %v838, %v836
  %v873 = vpack.c.b16 %v839, %v837
  %v874 = vpack.c.b16 %v842, %v840
  %v875 = vpack.c.b16 %v843, %v841
  %v876 = vpack.c.b16 %v846, %v844
  %v877 = vpack.c.b16 %v847, %v845
  %v878 = vpack.c.b16 %v850, %v848
  %v879 = vpack.c.b16 %v851, %v849
  %v880 = vpack.c.b16 %v854, %v852
  %v881 = vpack.c.b16 %v855, %v853
  %v882 = vpack.c.b16 %v856, %v856
  %v883 = vpack.c.b16 %v857, %v857
  %v898 = vsel %vm239, %v859, 0
  %v901 = vsel %vm239, %v861, 0
  %v904 = vsel %vm239, %v863, 0
  %v907 = vsel %vm239, %v865, 0
  %v910 = vsel %vm239, %v867, 0
  %v913 = vsel %vm239, %v869, 0
  %v916 = vsel %vm239, %v871, 0
  %v919 = vsel %vm239, %v873, 0
  %v922 = vsel %vm239, %v875, 0
  %v925 = vsel %vm239, %v877, 0
  %v928 = vsel %vm239, %v879, 0
  %v931 = vsel %vm239, %v881, 0
  %v934 = vsel %vm239, %v883, 0
  %936 = vmatprep.subr.bf16.mxu0 0
  %937 = vmatpush1.bf16.msra.mxu0 %v220
  %938 = vmatprep.subr.bf16.mxu0 0
  %939 = vmatpush1.bf16.msra.mxu0 %v221
  %940 = vmatprep.subr.bf16.mxu0 0
  %941 = vmatpush1.bf16.msra.mxu0 %v222
  %942 = vmatprep.subr.bf16.mxu0 0
  %943 = vmatpush1.bf16.msra.mxu0 %v223
  %944 = vmatprep.subr.bf16.mxu0 0
  %945 = vmatpush1.bf16.msra.mxu0 %v224
  %946 = vmatprep.subr.bf16.mxu0 0
  %947 = vmatpush1.bf16.msra.mxu0 %v225
  %948 = vmatprep.subr.bf16.mxu0 0
  %949 = vmatpush1.bf16.msra.mxu0 %v226
  %950 = vmatprep.subr.bf16.mxu0 0
  %951 = vmatpush1.bf16.msra.mxu0 %v227
  %952 = vmatprep.subr.bf16.mxu0 0
  %953 = vmatpush1.bf16.msra.mxu0 %v228
  %954 = vmatprep.subr.bf16.mxu0 0
  %955 = vmatpush1.bf16.msra.mxu0 %v281
  %956 = vmatprep.subr.bf16.mxu0 0
  %957 = vmatpush1.bf16.msra.mxu0 0
  %958 = vmatprep.subr.bf16.mxu0 0
  %959 = vmatpush1.bf16.msra.mxu0 0
  %960 = vmatprep.subr.bf16.mxu0 0
  %961 = vmatpush1.bf16.msra.mxu0 0
  %962 = vmatprep.subr.bf16.mxu0 0
  %963 = vmatpush1.bf16.msra.mxu0 0
  %964 = vmatprep.subr.bf16.mxu0 0
  %965 = vmatpush1.bf16.msra.mxu0 0
  %966 = vmatprep.subr.bf16.mxu0 0
  %967 = vmatpush1.bf16.msra.mxu0 0
  %968 = vmatprep.mubr.bf16.mxu0 %v898
  %969 = vmatmul.mubr.bf16.gmra.mrb[0].mxu0 %v858
  %v970 = vpop.f32.mrb[0].mxu0
  %v971 = vadd.f32 0.0, %v970
  %v972 = vpop.f32.mrb[0].mxu0
  %v973 = vpop.f32.mrb[0].mxu0
  %v974 = vadd.f32 0.0, %v973
  %v975 = vpop.f32.mrb[0].mxu0
  %976 = vmatprep.mubr.bf16.mxu0 %v901
  %977 = vmatmul.mubr.bf16.gmra.mrb[0].mxu0 %v860
  %v978 = vpop.f32.mrb[0].mxu0
  %v979 = vadd.f32 0.0, %v978
  %v980 = vpop.f32.mrb[0].mxu0
  %v981 = vpop.f32.mrb[0].mxu0
  %v982 = vadd.f32 0.0, %v981
  %v983 = vpop.f32.mrb[0].mxu0
  %984 = vmatprep.mubr.bf16.mxu0 %v904
  %985 = vmatmul.mubr.bf16.gmra.mrb[0].mxu0 %v862
  %v986 = vpop.f32.mrb[0].mxu0
  %v987 = vadd.f32 0.0, %v986
  %v988 = vpop.f32.mrb[0].mxu0
  %v989 = vpop.f32.mrb[0].mxu0
  %v990 = vadd.f32 0.0, %v989
  %v991 = vpop.f32.mrb[0].mxu0
  %992 = vmatprep.mubr.bf16.mxu0 %v907
  %993 = vmatmul.mubr.bf16.gmra.mrb[0].mxu0 %v864
  %v994 = vpop.f32.mrb[0].mxu0
  %v995 = vadd.f32 0.0, %v994
  %v996 = vpop.f32.mrb[0].mxu0
  %v997 = vpop.f32.mrb[0].mxu0
  %v998 = vadd.f32 0.0, %v997
  %v999 = vpop.f32.mrb[0].mxu0
  %1000 = vmatprep.mubr.bf16.mxu0 %v910
  %1001 = vmatmul.mubr.bf16.gmra.mrb[0].mxu0 %v866
  %v1002 = vpop.f32.mrb[0].mxu0
  %v1003 = vadd.f32 0.0, %v1002
  %v1004 = vpop.f32.mrb[0].mxu0
  %v1005 = vpop.f32.mrb[0].mxu0
  %v1006 = vadd.f32 0.0, %v1005
  %v1007 = vpop.f32.mrb[0].mxu0
  %1008 = vmatprep.mubr.bf16.mxu0 %v913
  %1009 = vmatmul.mubr.bf16.gmra.mrb[0].mxu0 %v868
  %v1010 = vpop.f32.mrb[0].mxu0
  %v1011 = vadd.f32 0.0, %v1010
  %v1012 = vpop.f32.mrb[0].mxu0
  %v1013 = vpop.f32.mrb[0].mxu0
  %v1014 = vadd.f32 0.0, %v1013
  %v1015 = vpop.f32.mrb[0].mxu0
  %1016 = vmatprep.mubr.bf16.mxu0 %v916
  %1017 = vmatmul.mubr.bf16.gmra.mrb[0].mxu0 %v870
  %v1018 = vpop.f32.mrb[0].mxu0
  %v1019 = vadd.f32 0.0, %v1018
  %v1020 = vpop.f32.mrb[0].mxu0
  %v1021 = vpop.f32.mrb[0].mxu0
  %v1022 = vadd.f32 0.0, %v1021
  %v1023 = vpop.f32.mrb[0].mxu0
  %1024 = vmatprep.mubr.bf16.mxu0 %v919
  %1025 = vmatmul.mubr.bf16.gmra.mrb[0].mxu0 %v872
  %v1026 = vpop.f32.mrb[0].mxu0
  %v1027 = vadd.f32 0.0, %v1026
  %v1028 = vpop.f32.mrb[0].mxu0
  %v1029 = vpop.f32.mrb[0].mxu0
  %v1030 = vadd.f32 0.0, %v1029
  %v1031 = vpop.f32.mrb[0].mxu0
  %1032 = vmatprep.mubr.bf16.mxu0 %v922
  %1033 = vmatmul.mubr.bf16.gmra.mrb[0].mxu0 %v874
  %v1034 = vpop.f32.mrb[0].mxu0
  %v1035 = vadd.f32 0.0, %v1034
  %v1036 = vpop.f32.mrb[0].mxu0
  %v1037 = vpop.f32.mrb[0].mxu0
  %v1038 = vadd.f32 0.0, %v1037
  %v1039 = vpop.f32.mrb[0].mxu0
  %1040 = vmatprep.mubr.bf16.mxu0 %v925
  %1041 = vmatmul.mubr.bf16.gmra.mrb[0].mxu0 %v876
  %v1042 = vpop.f32.mrb[0].mxu0
  %v1043 = vadd.f32 0.0, %v1042
  %v1044 = vpop.f32.mrb[0].mxu0
  %v1045 = vpop.f32.mrb[0].mxu0
  %v1046 = vadd.f32 0.0, %v1045
  %v1047 = vpop.f32.mrb[0].mxu0
  %1048 = vmatprep.mubr.bf16.mxu0 %v928
  %1049 = vmatmul.mubr.bf16.gmra.mrb[0].mxu0 %v878
  %v1050 = vpop.f32.mrb[0].mxu0
  %v1051 = vadd.f32 0.0, %v1050
  %v1052 = vpop.f32.mrb[0].mxu0
  %v1053 = vpop.f32.mrb[0].mxu0
  %v1054 = vadd.f32 0.0, %v1053
  %v1055 = vpop.f32.mrb[0].mxu0
  %1056 = vmatprep.mubr.bf16.mxu0 %v931
  %1057 = vmatmul.mubr.bf16.gmra.mrb[0].mxu0 %v880
  %v1058 = vpop.f32.mrb[0].mxu0
  %v1059 = vadd.f32 0.0, %v1058
  %v1060 = vpop.f32.mrb[0].mxu0
  %v1061 = vpop.f32.mrb[0].mxu0
  %v1062 = vadd.f32 0.0, %v1061
  %v1063 = vpop.f32.mrb[0].mxu0
  %1064 = vmatprep.mubr.bf16.mxu0 %v934
  %1065 = vmatmul.mubr.bf16.gmra.mrb[0].mxu0 %v882
  %v1066 = vpop.f32.mrb[0].mxu0
  %v1067 = vadd.f32 0.0, %v1066
  %v1068 = vpop.f32.mrb[0].mxu0
  %v1069 = vpop.f32.mrb[0].mxu0
  %v1070 = vpop.f32.mrb[0].mxu0
  %1071 = vdwg.mxu0
  %v1072 = vmax.f32 %v733, %v971
  %v1073 = vmax.f32 %v734, %v974
  %v1074 = vmax.f32 %v735, %v979
  %v1075 = vmax.f32 %v736, %v982
  %v1076 = vmax.f32 %v737, %v987
  %v1077 = vmax.f32 %v738, %v990
  %v1078 = vmax.f32 %v739, %v995
  %v1079 = vmax.f32 %v740, %v998
  %v1080 = vmax.f32 %v741, %v1003
  %v1081 = vmax.f32 %v742, %v1006
  %v1082 = vmax.f32 %v743, %v1011
  %v1083 = vmax.f32 %v744, %v1014
  %v1084 = vmax.f32 %v745, %v1019
  %v1085 = vmax.f32 %v746, %v1022
  %v1086 = vmax.f32 %v747, %v1027
  %v1087 = vmax.f32 %v748, %v1030
  %v1088 = vmax.f32 %v749, %v1035
  %v1089 = vmax.f32 %v750, %v1038
  %v1090 = vmax.f32 %v751, %v1043
  %v1091 = vmax.f32 %v752, %v1046
  %v1092 = vmax.f32 %v753, %v1051
  %v1093 = vmax.f32 %v754, %v1054
  %v1094 = vmax.f32 %v755, %v1059
  %v1095 = vmax.f32 %v756, %v1062
  %v1096 = vmax.f32 %v757, %v1067
  %v1097 = vld [vmem:[%s3] sm:$0xff]
  %v1098 = vld [vmem:[%s3 + $0x8] sm:$0xff]
  %v1099 = vld [vmem:[%s3 + $0x10] sm:$0xff]
  %v1100 = vld [vmem:[%s3 + $0x18] sm:$0xff]
  %v1101 = vld [vmem:[%s3 + $0x20] sm:$0xff]
  %v1102 = vld [vmem:[%s3 + $0x28] sm:$0xff]
  %v1103 = vld [vmem:[%s3 + $0x30] sm:$0xff]
  %v1104 = vld [vmem:[%s3 + $0x38] sm:$0xff]
  %v1105 = vld [vmem:[%s3 + $0x40] sm:$0xff]
  %v1106 = vld [vmem:[%s3 + $0x48] sm:$0xff]
  %v1107 = vld [vmem:[%s3 + $0x50] sm:$0xff]
  %v1108 = vld [vmem:[%s3 + $0x58] sm:$0xff]
  %v1109 = vld [vmem:[%s3 + $0x60] sm:$0xff]
  %v1110 = vld [vmem:[%s3 + $0x68] sm:$0xff]
  %v1111 = vld [vmem:[%s3 + $0x70] sm:$0xff]
  %v1112 = vld [vmem:[%s3 + $0x78] sm:$0xff]
  %v1113 = vld [vmem:[%s3 + $0x80] sm:$0xff]
  %v1114 = vld [vmem:[%s3 + $0x88] sm:$0xff]
  %v1115 = vld [vmem:[%s3 + $0x90] sm:$0xff]
  %v1116 = vld [vmem:[%s3 + $0x98] sm:$0xff]
  %v1117 = vld [vmem:[%s3 + $0xa0] sm:$0xff]
  %v1118 = vld [vmem:[%s3 + $0xa8] sm:$0xff]
  %v1119 = vld [vmem:[%s3 + $0xb0] sm:$0xff]
  %v1120 = vld [vmem:[%s3 + $0xb8] sm:$0xff]
  %v1121 = vld [vmem:[%s3 + $0xc0] sm:$0xff]
  %v1147 = vunpack.c.l.b16 %v1097
  %v1148 = vunpack.c.h.b16 %v1097
  %v1149 = vunpack.c.l.b16 %v1098
  %v1150 = vunpack.c.h.b16 %v1098
  %v1151 = vunpack.c.l.b16 %v1099
  %v1152 = vunpack.c.h.b16 %v1099
  %v1153 = vunpack.c.l.b16 %v1100
  %v1154 = vunpack.c.h.b16 %v1100
  %v1155 = vunpack.c.l.b16 %v1101
  %v1156 = vunpack.c.h.b16 %v1101
  %v1157 = vunpack.c.l.b16 %v1102
  %v1158 = vunpack.c.h.b16 %v1102
  %v1159 = vunpack.c.l.b16 %v1103
  %v1160 = vunpack.c.h.b16 %v1103
  %v1161 = vunpack.c.l.b16 %v1104
  %v1162 = vunpack.c.h.b16 %v1104
  %v1163 = vunpack.c.l.b16 %v1105
  %v1164 = vunpack.c.h.b16 %v1105
  %v1165 = vunpack.c.l.b16 %v1106
  %v1166 = vunpack.c.h.b16 %v1106
  %v1167 = vunpack.c.l.b16 %v1107
  %v1168 = vunpack.c.h.b16 %v1107
  %v1169 = vunpack.c.l.b16 %v1108
  %v1170 = vunpack.c.h.b16 %v1108
  %v1171 = vunpack.c.l.b16 %v1109
  %v1172 = vunpack.c.h.b16 %v1109
  %v1173 = vunpack.c.l.b16 %v1110
  %v1174 = vunpack.c.h.b16 %v1110
  %v1175 = vunpack.c.l.b16 %v1111
  %v1176 = vunpack.c.h.b16 %v1111
  %v1177 = vunpack.c.l.b16 %v1112
  %v1178 = vunpack.c.h.b16 %v1112
  %v1179 = vunpack.c.l.b16 %v1113
  %v1180 = vunpack.c.h.b16 %v1113
  %v1181 = vunpack.c.l.b16 %v1114
  %v1182 = vunpack.c.h.b16 %v1114
  %v1183 = vunpack.c.l.b16 %v1115
  %v1184 = vunpack.c.h.b16 %v1115
  %v1185 = vunpack.c.l.b16 %v1116
  %v1186 = vunpack.c.h.b16 %v1116
  %v1187 = vunpack.c.l.b16 %v1117
  %v1188 = vunpack.c.h.b16 %v1117
  %v1189 = vunpack.c.l.b16 %v1118
  %v1190 = vunpack.c.h.b16 %v1118
  %v1191 = vunpack.c.l.b16 %v1119
  %v1192 = vunpack.c.h.b16 %v1119
  %v1193 = vunpack.c.l.b16 %v1120
  %v1194 = vunpack.c.h.b16 %v1120
  %v1195 = vunpack.c.l.b16 %v1121
  %v1196 = vunpack.c.h.b16 %v1121
  %v1197 = vpack.c.b16 %v1149, %v1147
  %v1198 = vpack.c.b16 %v1150, %v1148
  %v1199 = vpack.c.b16 %v1153, %v1151
  %v1200 = vpack.c.b16 %v1154, %v1152
  %v1201 = vpack.c.b16 %v1157, %v1155
  %v1202 = vpack.c.b16 %v1158, %v1156
  %v1203 = vpack.c.b16 %v1161, %v1159
  %v1204 = vpack.c.b16 %v1162, %v1160
  %v1205 = vpack.c.b16 %v1165, %v1163
  %v1206 = vpack.c.b16 %v1166, %v1164
  %v1207 = vpack.c.b16 %v1169, %v1167
  %v1208 = vpack.c.b16 %v1170, %v1168
  %v1209 = vpack.c.b16 %v1173, %v1171
  %v1210 = vpack.c.b16 %v1174, %v1172
  %v1211 = vpack.c.b16 %v1177, %v1175
  %v1212 = vpack.c.b16 %v1178, %v1176
  %v1213 = vpack.c.b16 %v1181, %v1179
  %v1214 = vpack.c.b16 %v1182, %v1180
  %v1215 = vpack.c.b16 %v1185, %v1183
  %v1216 = vpack.c.b16 %v1186, %v1184
  %v1217 = vpack.c.b16 %v1189, %v1187
  %v1218 = vpack.c.b16 %v1190, %v1188
  %v1219 = vpack.c.b16 %v1193, %v1191
  %v1220 = vpack.c.b16 %v1194, %v1192
  %v1221 = vpack.c.b16 %v1195, %v1195
  %v1222 = vpack.c.b16 %v1196, %v1196
  %v1237 = vsel %vm239, %v1198, 0
  %v1240 = vsel %vm239, %v1200, 0
  %v1243 = vsel %vm239, %v1202, 0
  %v1246 = vsel %vm239, %v1204, 0
  %v1249 = vsel %vm239, %v1206, 0
  %v1252 = vsel %vm239, %v1208, 0
  %v1255 = vsel %vm239, %v1210, 0
  %v1258 = vsel %vm239, %v1212, 0
  %v1261 = vsel %vm239, %v1214, 0
  %v1264 = vsel %vm239, %v1216, 0
  %v1267 = vsel %vm239, %v1218, 0
  %v1270 = vsel %vm239, %v1220, 0
  %v1273 = vsel %vm239, %v1222, 0
  %1275 = vmatprep.subr.bf16.mxu0 0
  %1276 = vmatpush1.bf16.msra.mxu0 %v220
  %1277 = vmatprep.subr.bf16.mxu0 0
  %1278 = vmatpush1.bf16.msra.mxu0 %v221
  %1279 = vmatprep.subr.bf16.mxu0 0
  %1280 = vmatpush1.bf16.msra.mxu0 %v222
  %1281 = vmatprep.subr.bf16.mxu0 0
  %1282 = vmatpush1.bf16.msra.mxu0 %v223
  %1283 = vmatprep.subr.bf16.mxu0 0
  %1284 = vmatpush1.bf16.msra.mxu0 %v224
  %1285 = vmatprep.subr.bf16.mxu0 0
  %1286 = vmatpush1.bf16.msra.mxu0 %v225
  %1287 = vmatprep.subr.bf16.mxu0 0
  %1288 = vmatpush1.bf16.msra.mxu0 %v226
  %1289 = vmatprep.subr.bf16.mxu0 0
  %1290 = vmatpush1.bf16.msra.mxu0 %v227
  %1291 = vmatprep.subr.bf16.mxu0 0
  %1292 = vmatpush1.bf16.msra.mxu0 %v228
  %1293 = vmatprep.subr.bf16.mxu0 0
  %1294 = vmatpush1.bf16.msra.mxu0 %v281
  %1295 = vmatprep.subr.bf16.mxu0 0
  %1296 = vmatpush1.bf16.msra.mxu0 0
  %1297 = vmatprep.subr.bf16.mxu0 0
  %1298 = vmatpush1.bf16.msra.mxu0 0
  %1299 = vmatprep.subr.bf16.mxu0 0
  %1300 = vmatpush1.bf16.msra.mxu0 0
  %1301 = vmatprep.subr.bf16.mxu0 0
  %1302 = vmatpush1.bf16.msra.mxu0 0
  %1303 = vmatprep.subr.bf16.mxu0 0
  %1304 = vmatpush1.bf16.msra.mxu0 0
  %1305 = vmatprep.subr.bf16.mxu0 0
  %1306 = vmatpush1.bf16.msra.mxu0 0
  %1307 = vmatprep.mubr.bf16.mxu0 %v1237
  %1308 = vmatmul.mubr.bf16.gmra.mrb[0].mxu0 %v1197
  %v1309 = vpop.f32.mrb[0].mxu0
  %v1310 = vadd.f32 0.0, %v1309
  %v1311 = vpop.f32.mrb[0].mxu0
  %v1312 = vpop.f32.mrb[0].mxu0
  %v1313 = vadd.f32 0.0, %v1312
  %v1314 = vpop.f32.mrb[0].mxu0
  %1315 = vmatprep.mubr.bf16.mxu0 %v1240
  %1316 = vmatmul.mubr.bf16.gmra.mrb[0].mxu0 %v1199
  %v1317 = vpop.f32.mrb[0].mxu0
  %v1318 = vadd.f32 0.0, %v1317
  %v1319 = vpop.f32.mrb[0].mxu0
  %v1320 = vpop.f32.mrb[0].mxu0
  %v1321 = vadd.f32 0.0, %v1320
  %v1322 = vpop.f32.mrb[0].mxu0
  %1323 = vmatprep.mubr.bf16.mxu0 %v1243
  %1324 = vmatmul.mubr.bf16.gmra.mrb[0].mxu0 %v1201
  %v1325 = vpop.f32.mrb[0].mxu0
  %v1326 = vadd.f32 0.0, %v1325
  %v1327 = vpop.f32.mrb[0].mxu0
  %v1328 = vpop.f32.mrb[0].mxu0
  %v1329 = vadd.f32 0.0, %v1328
  %v1330 = vpop.f32.mrb[0].mxu0
  %1331 = vmatprep.mubr.bf16.mxu0 %v1246
  %1332 = vmatmul.mubr.bf16.gmra.mrb[0].mxu0 %v1203
  %v1333 = vpop.f32.mrb[0].mxu0
  %v1334 = vadd.f32 0.0, %v1333
  %v1335 = vpop.f32.mrb[0].mxu0
  %v1336 = vpop.f32.mrb[0].mxu0
  %v1337 = vadd.f32 0.0, %v1336
  %v1338 = vpop.f32.mrb[0].mxu0
  %1339 = vmatprep.mubr.bf16.mxu0 %v1249
  %1340 = vmatmul.mubr.bf16.gmra.mrb[0].mxu0 %v1205
  %v1341 = vpop.f32.mrb[0].mxu0
  %v1342 = vadd.f32 0.0, %v1341
  %v1343 = vpop.f32.mrb[0].mxu0
  %v1344 = vpop.f32.mrb[0].mxu0
  %v1345 = vadd.f32 0.0, %v1344
  %v1346 = vpop.f32.mrb[0].mxu0
  %1347 = vmatprep.mubr.bf16.mxu0 %v1252
  %1348 = vmatmul.mubr.bf16.gmra.mrb[0].mxu0 %v1207
  %v1349 = vpop.f32.mrb[0].mxu0
  %v1350 = vadd.f32 0.0, %v1349
  %v1351 = vpop.f32.mrb[0].mxu0
  %v1352 = vpop.f32.mrb[0].mxu0
  %v1353 = vadd.f32 0.0, %v1352
  %v1354 = vpop.f32.mrb[0].mxu0
  %1355 = vmatprep.mubr.bf16.mxu0 %v1255
  %1356 = vmatmul.mubr.bf16.gmra.mrb[0].mxu0 %v1209
  %v1357 = vpop.f32.mrb[0].mxu0
  %v1358 = vadd.f32 0.0, %v1357
  %v1359 = vpop.f32.mrb[0].mxu0
  %v1360 = vpop.f32.mrb[0].mxu0
  %v1361 = vadd.f32 0.0, %v1360
  %v1362 = vpop.f32.mrb[0].mxu0
  %1363 = vmatprep.mubr.bf16.mxu0 %v1258
  %1364 = vmatmul.mubr.bf16.gmra.mrb[0].mxu0 %v1211
  %v1365 = vpop.f32.mrb[0].mxu0
  %v1366 = vadd.f32 0.0, %v1365
  %v1367 = vpop.f32.mrb[0].mxu0
  %v1368 = vpop.f32.mrb[0].mxu0
  %v1369 = vadd.f32 0.0, %v1368
  %v1370 = vpop.f32.mrb[0].mxu0
  %1371 = vmatprep.mubr.bf16.mxu0 %v1261
  %1372 = vmatmul.mubr.bf16.gmra.mrb[0].mxu0 %v1213
  %v1373 = vpop.f32.mrb[0].mxu0
  %v1374 = vadd.f32 0.0, %v1373
  %v1375 = vpop.f32.mrb[0].mxu0
  %v1376 = vpop.f32.mrb[0].mxu0
  %v1377 = vadd.f32 0.0, %v1376
  %v1378 = vpop.f32.mrb[0].mxu0
  %1379 = vmatprep.mubr.bf16.mxu0 %v1264
  %1380 = vmatmul.mubr.bf16.gmra.mrb[0].mxu0 %v1215
  %v1381 = vpop.f32.mrb[0].mxu0
  %v1382 = vadd.f32 0.0, %v1381
  %v1383 = vpop.f32.mrb[0].mxu0
  %v1384 = vpop.f32.mrb[0].mxu0
  %v1385 = vadd.f32 0.0, %v1384
  %v1386 = vpop.f32.mrb[0].mxu0
  %1387 = vmatprep.mubr.bf16.mxu0 %v1267
  %1388 = vmatmul.mubr.bf16.gmra.mrb[0].mxu0 %v1217
  %v1389 = vpop.f32.mrb[0].mxu0
  %v1390 = vadd.f32 0.0, %v1389
  %v1391 = vpop.f32.mrb[0].mxu0
  %v1392 = vpop.f32.mrb[0].mxu0
  %v1393 = vadd.f32 0.0, %v1392
  %v1394 = vpop.f32.mrb[0].mxu0
  %1395 = vmatprep.mubr.bf16.mxu0 %v1270
  %1396 = vmatmul.mubr.bf16.gmra.mrb[0].mxu0 %v1219
  %v1397 = vpop.f32.mrb[0].mxu0
  %v1398 = vadd.f32 0.0, %v1397
  %v1399 = vpop.f32.mrb[0].mxu0
  %v1400 = vpop.f32.mrb[0].mxu0
  %v1401 = vadd.f32 0.0, %v1400
  %v1402 = vpop.f32.mrb[0].mxu0
  %1403 = vmatprep.mubr.bf16.mxu0 %v1273
  %1404 = vmatmul.mubr.bf16.gmra.mrb[0].mxu0 %v1221
  %v1405 = vpop.f32.mrb[0].mxu0
  %v1406 = vadd.f32 0.0, %v1405
  %v1407 = vpop.f32.mrb[0].mxu0
  %v1408 = vpop.f32.mrb[0].mxu0
  %v1409 = vpop.f32.mrb[0].mxu0
  %1410 = vdwg.mxu0
  %v1411 = vmax.f32 %v1072, %v1310
  %v1412 = vmax.f32 %v1073, %v1313
  %v1413 = vmax.f32 %v1074, %v1318
  %v1414 = vmax.f32 %v1075, %v1321
  %v1415 = vmax.f32 %v1076, %v1326
  %v1416 = vmax.f32 %v1077, %v1329
  %v1417 = vmax.f32 %v1078, %v1334
  %v1418 = vmax.f32 %v1079, %v1337
  %v1419 = vmax.f32 %v1080, %v1342
  %v1420 = vmax.f32 %v1081, %v1345
  %v1421 = vmax.f32 %v1082, %v1350
  %v1422 = vmax.f32 %v1083, %v1353
  %v1423 = vmax.f32 %v1084, %v1358
  %v1424 = vmax.f32 %v1085, %v1361
  %v1425 = vmax.f32 %v1086, %v1366
  %v1426 = vmax.f32 %v1087, %v1369
  %v1427 = vmax.f32 %v1088, %v1374
  %v1428 = vmax.f32 %v1089, %v1377
  %v1429 = vmax.f32 %v1090, %v1382
  %v1430 = vmax.f32 %v1091, %v1385
  %v1431 = vmax.f32 %v1092, %v1390
  %v1432 = vmax.f32 %v1093, %v1393
  %v1433 = vmax.f32 %v1094, %v1398
  %v1434 = vmax.f32 %v1095, %v1401
  %v1435 = vmax.f32 %v1096, %v1406
  %v1436 = vld [vmem:[%s5] sm:$0x1]
  %v1438 = vlaneseq
  %v1439 = vshrl.u32 %v1438, 7
  %v1440 = vsub.s32 0, %v1439
  %v1441 = vrot.slane %v1436, %v1440
  %v1443 = vadd.f32 %v1411, %v1441
  %v1444 = vadd.f32 %v1412, %v1441
  %v1445 = vadd.f32 %v1413, %v1441
  %v1446 = vadd.f32 %v1414, %v1441
  %v1447 = vadd.f32 %v1415, %v1441
  %v1448 = vadd.f32 %v1416, %v1441
  %v1449 = vadd.f32 %v1417, %v1441
  %v1450 = vadd.f32 %v1418, %v1441
  %v1451 = vadd.f32 %v1419, %v1441
  %v1452 = vadd.f32 %v1420, %v1441
  %v1453 = vadd.f32 %v1421, %v1441
  %v1454 = vadd.f32 %v1422, %v1441
  %v1455 = vadd.f32 %v1423, %v1441
  %v1456 = vadd.f32 %v1424, %v1441
  %v1457 = vadd.f32 %v1425, %v1441
  %v1458 = vadd.f32 %v1426, %v1441
  %v1459 = vadd.f32 %v1427, %v1441
  %v1460 = vadd.f32 %v1428, %v1441
  %v1461 = vadd.f32 %v1429, %v1441
  %v1462 = vadd.f32 %v1430, %v1441
  %v1463 = vadd.f32 %v1431, %v1441
  %v1464 = vadd.f32 %v1432, %v1441
  %v1465 = vadd.f32 %v1433, %v1441
  %v1466 = vadd.f32 %v1434, %v1441
  %v1467 = vadd.f32 %v1435, %v1441
  %v1468 = vmax.f32 %v1443, 0.0
  %v1469 = vmax.f32 %v1444, 0.0
  %v1470 = vmax.f32 %v1445, 0.0
  %v1471 = vmax.f32 %v1446, 0.0
  %v1472 = vmax.f32 %v1447, 0.0
  %v1473 = vmax.f32 %v1448, 0.0
  %v1474 = vmax.f32 %v1449, 0.0
  %v1475 = vmax.f32 %v1450, 0.0
  %v1476 = vmax.f32 %v1451, 0.0
  %v1477 = vmax.f32 %v1452, 0.0
  %v1478 = vmax.f32 %v1453, 0.0
  %v1479 = vmax.f32 %v1454, 0.0
  %v1480 = vmax.f32 %v1455, 0.0
  %v1481 = vmax.f32 %v1456, 0.0
  %v1482 = vmax.f32 %v1457, 0.0
  %v1483 = vmax.f32 %v1458, 0.0
  %v1484 = vmax.f32 %v1459, 0.0
  %v1485 = vmax.f32 %v1460, 0.0
  %v1486 = vmax.f32 %v1461, 0.0
  %v1487 = vmax.f32 %v1462, 0.0
  %v1488 = vmax.f32 %v1463, 0.0
  %v1489 = vmax.f32 %v1464, 0.0
  %v1490 = vmax.f32 %v1465, 0.0
  %v1491 = vmax.f32 %v1466, 0.0
  %v1492 = vmax.f32 %v1467, 0.0
  %v1493 = vpack.c.bf16 %v1469, %v1468
  %v1494 = vpack.c.bf16 %v1471, %v1470
  %v1495 = vpack.c.bf16 %v1473, %v1472
  %v1496 = vpack.c.bf16 %v1475, %v1474
  %v1497 = vpack.c.bf16 %v1477, %v1476
  %v1498 = vpack.c.bf16 %v1479, %v1478
  %v1499 = vpack.c.bf16 %v1481, %v1480
  %v1500 = vpack.c.bf16 %v1483, %v1482
  %v1501 = vpack.c.bf16 %v1485, %v1484
  %v1502 = vpack.c.bf16 %v1487, %v1486
  %v1503 = vpack.c.bf16 %v1489, %v1488
  %v1504 = vpack.c.bf16 %v1491, %v1490
  %v1505 = vpack.c.bf16 %v1492, %v1492
  %v1519 = vunpack.c.l.b16 %v1493
  %v1520 = vunpack.c.h.b16 %v1493
  %v1521 = vunpack.c.l.b16 %v1494
  %v1522 = vunpack.c.h.b16 %v1494
  %v1523 = vunpack.c.l.b16 %v1495
  %v1524 = vunpack.c.h.b16 %v1495
  %v1525 = vunpack.c.l.b16 %v1496
  %v1526 = vunpack.c.h.b16 %v1496
  %v1527 = vunpack.c.l.b16 %v1497
  %v1528 = vunpack.c.h.b16 %v1497
  %v1529 = vunpack.c.l.b16 %v1498
  %v1530 = vunpack.c.h.b16 %v1498
  %v1531 = vunpack.c.l.b16 %v1499
  %v1532 = vunpack.c.h.b16 %v1499
  %v1533 = vunpack.c.l.b16 %v1500
  %v1534 = vunpack.c.h.b16 %v1500
  %v1535 = vunpack.c.l.b16 %v1501
  %v1536 = vunpack.c.h.b16 %v1501
  %v1537 = vunpack.c.l.b16 %v1502
  %v1538 = vunpack.c.h.b16 %v1502
  %v1539 = vunpack.c.l.b16 %v1503
  %v1540 = vunpack.c.h.b16 %v1503
  %v1541 = vunpack.c.l.b16 %v1504
  %v1542 = vunpack.c.h.b16 %v1504
  %v1543 = vunpack.c.l.b16 %v1505
  %v1544 = vpack.c.b16 %v1519, %v1519
  %v1545 = vpack.c.b16 %v1520, %v1520
  %v1546 = vpack.c.b16 %v1521, %v1521
  %v1547 = vpack.c.b16 %v1522, %v1522
  %v1548 = vpack.c.b16 %v1523, %v1523
  %v1549 = vpack.c.b16 %v1524, %v1524
  %v1550 = vpack.c.b16 %v1525, %v1525
  %v1551 = vpack.c.b16 %v1526, %v1526
  %v1552 = vpack.c.b16 %v1527, %v1527
  %v1553 = vpack.c.b16 %v1528, %v1528
  %v1554 = vpack.c.b16 %v1529, %v1529
  %v1555 = vpack.c.b16 %v1530, %v1530
  %v1556 = vpack.c.b16 %v1531, %v1531
  %v1557 = vpack.c.b16 %v1532, %v1532
  %v1558 = vpack.c.b16 %v1533, %v1533
  %v1559 = vpack.c.b16 %v1534, %v1534
  %v1560 = vpack.c.b16 %v1535, %v1535
  %v1561 = vpack.c.b16 %v1536, %v1536
  %v1562 = vpack.c.b16 %v1537, %v1537
  %v1563 = vpack.c.b16 %v1538, %v1538
  %v1564 = vpack.c.b16 %v1539, %v1539
  %v1565 = vpack.c.b16 %v1540, %v1540
  %v1566 = vpack.c.b16 %v1541, %v1541
  %v1567 = vpack.c.b16 %v1542, %v1542
  %v1568 = vpack.c.b16 %v1543, %v1543
  %1594 = vst [vmem:[%s6] sm:$0xf] %v1544
  %1595 = vst [vmem:[%s6 + $0x4] sm:$0xf] %v1545
  %1596 = vst [vmem:[%s6 + $0x8] sm:$0xf] %v1546
  %1597 = vst [vmem:[%s6 + $0xc] sm:$0xf] %v1547
  %1598 = vst [vmem:[%s6 + $0x10] sm:$0xf] %v1548
  %1599 = vst [vmem:[%s6 + $0x14] sm:$0xf] %v1549
  %1600 = vst [vmem:[%s6 + $0x18] sm:$0xf] %v1550
  %1601 = vst [vmem:[%s6 + $0x1c] sm:$0xf] %v1551
  %1602 = vst [vmem:[%s6 + $0x20] sm:$0xf] %v1552
  %1603 = vst [vmem:[%s6 + $0x24] sm:$0xf] %v1553
  %1604 = vst [vmem:[%s6 + $0x28] sm:$0xf] %v1554
  %1605 = vst [vmem:[%s6 + $0x2c] sm:$0xf] %v1555
  %1606 = vst [vmem:[%s6 + $0x30] sm:$0xf] %v1556
  %1607 = vst [vmem:[%s6 + $0x34] sm:$0xf] %v1557
  %1608 = vst [vmem:[%s6 + $0x38] sm:$0xf] %v1558
  %1609 = vst [vmem:[%s6 + $0x3c] sm:$0xf] %v1559
  %1610 = vst [vmem:[%s6 + $0x40] sm:$0xf] %v1560
  %1611 = vst [vmem:[%s6 + $0x44] sm:$0xf] %v1561
  %1612 = vst [vmem:[%s6 + $0x48] sm:$0xf] %v1562
  %1613 = vst [vmem:[%s6 + $0x4c] sm:$0xf] %v1563
  %1614 = vst [vmem:[%s6 + $0x50] sm:$0xf] %v1564
  %1615 = vst [vmem:[%s6 + $0x54] sm:$0xf] %v1565
  %1616 = vst [vmem:[%s6 + $0x58] sm:$0xf] %v1566
  %1617 = vst [vmem:[%s6 + $0x5c] sm:$0xf] %v1567
  %1618 = vst [vmem:[%s6 + $0x60] sm:$0xf] %v1568
  // Predicated region
  $region26: #{cnn_cifar_forward.4} parent=0 // pred_check
    _
  $region27: #{cnn_cifar_forward.4} parent=0 // pred_check_branch
    %1620 = sbr.rel (0) target = $region29
  $region28: #{cnn_cifar_forward.4} parent=0 // pred_region
    _
  $region29: #{cnn_cifar_forward.4} parent=0 // pred_fallthru
    _
  // Predicated region
  $region30: #{cnn_cifar_forward.4} parent=0 // pred_check
    _
  $region31: #{cnn_cifar_forward.4} parent=0 // pred_check_branch
    %1622 = sbr.rel (0) target = $region33
  $region32: #{cnn_cifar_forward.4} parent=0 // pred_region
    _
  $region33: #{cnn_cifar_forward.4} parent=0 // pred_fallthru
    _

// kernel: cnn_cifar_forward.5
$region0: #{cnn_cifar_forward.5}
  #allocation0 [shape = 'u32[]', space=smem, size = 0x4, offset = 0x4, fixed_abs, tag = 'smem constant byte address 0x4 - core index']
  #allocation1 [shape = 'u32[144,128]{1,0:T(1,128)}', space=vmem, size = 0x12000, scoped, tag = 'internal scratch']
  %s0 = inlined_call_operand.vmem [shape: bf16[9,8,144], index: 0, kind: input, shape index: {}]
  %s1 = inlined_call_operand.vmem [shape: bf16[144,128], index: 1, kind: input, shape index: {}]
  %s2 = inlined_call_operand.vmem [shape: f32[1,128], index: 2, kind: input, shape index: {}]
  %s3 = inlined_call_operand.vmem [shape: bf16[9,128,128], index: 3, kind: input, shape index: {}]
  %s4 = inlined_call_operand.vmem [shape: f32[1,128], index: 4, kind: input, shape index: {}]
  %s5 = inlined_call_operand.vmem [shape: bf16[128,128], index: 5, kind: input, shape index: {}]
  %s6 = inlined_call_operand.vmem [shape: f32[1,128], index: 6, kind: input, shape index: {}]
  %s7 = inlined_call_operand.vmem [shape: bf16[128,128], index: 7, kind: input, shape index: {}]
  %s8 = inlined_call_operand.vmem [shape: f32[1,128], index: 8, kind: input, shape index: {}]
  %s9 = inlined_call_operand.vmem [shape: f32[8,128], index: 9, kind: output, shape index: {}]
  %s10 = sld [smem:[#allocation0]]
  $region46: #{cnn_cifar_forward.5} parent=0
    _
  %s12 = ssub.s32 1, %s10
  %s13 = scalar_select 0, %s12, %s10
  // Predicated region
  $region2: #{cnn_cifar_forward.5} parent=0 // pred_check
    _
  $region3: #{cnn_cifar_forward.5} parent=0 // pred_check_branch
    %15 = sbr.rel (0) target = $region5
  $region4: #{cnn_cifar_forward.5} parent=0 // pred_region
    _
  $region5: #{cnn_cifar_forward.5} parent=0 // pred_fallthru
    _
  // Predicated region
  $region6: #{cnn_cifar_forward.5} parent=0 // pred_check
    _
  $region7: #{cnn_cifar_forward.5} parent=0 // pred_check_branch
    %17 = sbr.rel (0) target = $region9
  $region8: #{cnn_cifar_forward.5} parent=0 // pred_region
    _
  $region9: #{cnn_cifar_forward.5} parent=0 // pred_fallthru
    _
  // Predicated region
  $region10: #{cnn_cifar_forward.5} parent=0 // pred_check
    _
  $region11: #{cnn_cifar_forward.5} parent=0 // pred_check_branch
    %19 = sbr.rel (0) target = $region13
  $region12: #{cnn_cifar_forward.5} parent=0 // pred_region
    _
  $region13: #{cnn_cifar_forward.5} parent=0 // pred_fallthru
    _
  // Predicated region
  $region14: #{cnn_cifar_forward.5} parent=0 // pred_check
    _
  $region15: #{cnn_cifar_forward.5} parent=0 // pred_check_branch
    %21 = sbr.rel (0) target = $region17
  $region16: #{cnn_cifar_forward.5} parent=0 // pred_region
    _
  $region17: #{cnn_cifar_forward.5} parent=0 // pred_fallthru
    _
  // Predicated region
  $region18: #{cnn_cifar_forward.5} parent=0 // pred_check
    _
  $region19: #{cnn_cifar_forward.5} parent=0 // pred_check_branch
    %23 = sbr.rel (0) target = $region21
  $region20: #{cnn_cifar_forward.5} parent=0 // pred_region
    _
  $region21: #{cnn_cifar_forward.5} parent=0 // pred_fallthru
    _
  // Predicated region
  $region22: #{cnn_cifar_forward.5} parent=0 // pred_check
    _
  $region23: #{cnn_cifar_forward.5} parent=0 // pred_check_branch
    %25 = sbr.rel (0) target = $region25
  $region24: #{cnn_cifar_forward.5} parent=0 // pred_region
    _
  $region25: #{cnn_cifar_forward.5} parent=0 // pred_fallthru
    _
  // Predicated region
  $region26: #{cnn_cifar_forward.5} parent=0 // pred_check
    _
  $region27: #{cnn_cifar_forward.5} parent=0 // pred_check_branch
    %27 = sbr.rel (0) target = $region29
  $region28: #{cnn_cifar_forward.5} parent=0 // pred_region
    _
  $region29: #{cnn_cifar_forward.5} parent=0 // pred_fallthru
    _
  // Predicated region
  $region30: #{cnn_cifar_forward.5} parent=0 // pred_check
    _
  $region31: #{cnn_cifar_forward.5} parent=0 // pred_check_branch
    %29 = sbr.rel (0) target = $region33
  $region32: #{cnn_cifar_forward.5} parent=0 // pred_region
    _
  $region33: #{cnn_cifar_forward.5} parent=0 // pred_fallthru
    _
  // Predicated region
  $region34: #{cnn_cifar_forward.5} parent=0 // pred_check
    _
  $region35: #{cnn_cifar_forward.5} parent=0 // pred_check_branch
    %31 = sbr.rel (0) target = $region37
  $region36: #{cnn_cifar_forward.5} parent=0 // pred_region
    _
  $region37: #{cnn_cifar_forward.5} parent=0 // pred_fallthru
    _
  %v33 = vld [vmem:[%s1] sm:$0xf]
  %v34 = vld [vmem:[%s1 + $0x4] sm:$0xf]
  %v35 = vld [vmem:[%s1 + $0x8] sm:$0xf]
  %v36 = vld [vmem:[%s1 + $0xc] sm:$0xf]
  %v37 = vld [vmem:[%s1 + $0x10] sm:$0xf]
  %v38 = vld [vmem:[%s1 + $0x14] sm:$0xf]
  %v39 = vld [vmem:[%s1 + $0x18] sm:$0xf]
  %v40 = vld [vmem:[%s1 + $0x1c] sm:$0xf]
  %v41 = vld [vmem:[%s1 + $0x20] sm:$0xf]
  %v42 = vld [vmem:[%s1 + $0x24] sm:$0xf]
  %v43 = vld [vmem:[%s1 + $0x28] sm:$0xf]
  %v44 = vld [vmem:[%s1 + $0x2c] sm:$0xf]
  %v45 = vld [vmem:[%s1 + $0x30] sm:$0xf]
  %v46 = vld [vmem:[%s1 + $0x34] sm:$0xf]
  %v47 = vld [vmem:[%s1 + $0x38] sm:$0xf]
  %v48 = vld [vmem:[%s1 + $0x3c] sm:$0xf]
  %v49 = vld [vmem:[%s1 + $0x40] sm:$0xf]
  %v50 = vld [vmem:[%s1 + $0x44] sm:$0xf]
  %v51 = vld [vmem:[%s2] sm:$0x1]
  %v52 = vld [vmem:[%s0] sm:$0xff]
  %v54 = vlaneseq
  %v55 = vshrl.u32 %v54, 7
  %v56 = vsub.s32 0, %v55
  %v57 = vrot.slane %v51, %v56
  %v60 = vunpack.c.l.b16 %v52
  %v61 = vunpack.c.h.b16 %v52
  %v62 = vpack.c.b16 %v60, %v60
  %v63 = vpack.c.b16 %v61, %v61
  %v83 = vunpack.c.l.b16 %v33
  %v84 = vunpack.c.l.b16 %v34
  %v85 = vunpack.c.l.b16 %v35
  %v86 = vunpack.c.l.b16 %v36
  %v87 = vunpack.c.l.b16 %v37
  %v88 = vunpack.c.l.b16 %v38
  %v89 = vunpack.c.l.b16 %v39
  %v90 = vunpack.c.l.b16 %v40
  %v91 = vunpack.c.l.b16 %v41
  %v92 = vunpack.c.l.b16 %v42
  %v93 = vunpack.c.l.b16 %v43
  %v94 = vunpack.c.l.b16 %v44
  %v95 = vunpack.c.l.b16 %v45
  %v96 = vunpack.c.l.b16 %v46
  %v97 = vunpack.c.l.b16 %v47
  %v98 = vunpack.c.l.b16 %v48
  %v99 = vunpack.c.l.b16 %v49
  %v100 = vunpack.c.l.b16 %v50
  %v101 = vpack.c.b16 %v84, %v83
  %v102 = vpack.c.b16 %v86, %v85
  %v103 = vpack.c.b16 %v88, %v87
  %v104 = vpack.c.b16 %v90, %v89
  %v105 = vpack.c.b16 %v92, %v91
  %v106 = vpack.c.b16 %v94, %v93
  %v107 = vpack.c.b16 %v96, %v95
  %v108 = vpack.c.b16 %v98, %v97
  %v109 = vpack.c.b16 %v100, %v99
  %vm119 = vcmask 130048
  %v121 = vsel %vm119, %v63, 0
  %123 = vmatprep.subr.bf16.mxu0 0
  %124 = vmatpush1.bf16.msra.mxu0 %v101
  %125 = vmatprep.subr.bf16.mxu0 0
  %126 = vmatpush1.bf16.msra.mxu0 %v102
  %127 = vmatprep.subr.bf16.mxu0 0
  %128 = vmatpush1.bf16.msra.mxu0 %v103
  %129 = vmatprep.subr.bf16.mxu0 0
  %130 = vmatpush1.bf16.msra.mxu0 %v104
  %131 = vmatprep.subr.bf16.mxu0 0
  %132 = vmatpush1.bf16.msra.mxu0 %v105
  %133 = vmatprep.subr.bf16.mxu0 0
  %134 = vmatpush1.bf16.msra.mxu0 %v106
  %135 = vmatprep.subr.bf16.mxu0 0
  %136 = vmatpush1.bf16.msra.mxu0 %v107
  %137 = vmatprep.subr.bf16.mxu0 0
  %138 = vmatpush1.bf16.msra.mxu0 %v108
  %139 = vmatprep.subr.bf16.mxu0 0
  %140 = vmatpush1.bf16.msra.mxu0 %v109
  %141 = vmatprep.subr.bf16.mxu0 0
  %142 = vmatpush1.bf16.msra.mxu0 0
  %143 = vmatprep.subr.bf16.mxu0 0
  %144 = vmatpush1.bf16.msra.mxu0 0
  %145 = vmatprep.subr.bf16.mxu0 0
  %146 = vmatpush1.bf16.msra.mxu0 0
  %147 = vmatprep.subr.bf16.mxu0 0
  %148 = vmatpush1.bf16.msra.mxu0 0
  %149 = vmatprep.subr.bf16.mxu0 0
  %150 = vmatpush1.bf16.msra.mxu0 0
  %151 = vmatprep.subr.bf16.mxu0 0
  %152 = vmatpush1.bf16.msra.mxu0 0
  %153 = vmatprep.subr.bf16.mxu0 0
  %154 = vmatpush1.bf16.msra.mxu0 0
  %155 = vmatprep.mubr.bf16.mxu0 %v121
  %156 = vmatmul.mubr.bf16.gmra.mrb[0].mxu0 %v62
  %v157 = vpop.f32.mrb[0].mxu0
  %v158 = vadd.f32 %v57, %v157
  %v159 = vpop.f32.mrb[0].mxu0
  %v160 = vpop.f32.mrb[0].mxu0
  %v161 = vpop.f32.mrb[0].mxu0
  %162 = vdwg.mxu0
  %v163 = vmax.f32 %v158, 0.0
  %v164 = vpack.c.bf16 %v163, %v163
  %v165 = vld [vmem:[%s3] sm:$0xf]
  %v166 = vld [vmem:[%s3 + $0x4] sm:$0xf]
  %v167 = vld [vmem:[%s3 + $0x8] sm:$0xf]
  %v168 = vld [vmem:[%s3 + $0xc] sm:$0xf]
  %v169 = vld [vmem:[%s3 + $0x10] sm:$0xf]
  %v170 = vld [vmem:[%s3 + $0x14] sm:$0xf]
  %v171 = vld [vmem:[%s3 + $0x18] sm:$0xf]
  %v172 = vld [vmem:[%s3 + $0x1c] sm:$0xf]
  %v173 = vld [vmem:[%s3 + $0x20] sm:$0xf]
  %v174 = vld [vmem:[%s3 + $0x24] sm:$0xf]
  %v175 = vld [vmem:[%s3 + $0x28] sm:$0xf]
  %v176 = vld [vmem:[%s3 + $0x2c] sm:$0xf]
  %v177 = vld [vmem:[%s3 + $0x30] sm:$0xf]
  %v178 = vld [vmem:[%s3 + $0x34] sm:$0xf]
  %v179 = vld [vmem:[%s3 + $0x38] sm:$0xf]
  %v180 = vld [vmem:[%s3 + $0x3c] sm:$0xf]
  %s181 = scalar_lea.vmem %s0, 8
  %v182 = vld [vmem:[%s181] sm:$0xff]
  %v184 = vunpack.c.l.b16 %v182
  %v185 = vunpack.c.h.b16 %v182
  %v186 = vpack.c.b16 %v184, %v184
  %v187 = vpack.c.b16 %v185, %v185
  %v190 = vsel %vm119, %v187, 0
  %192 = vmatprep.subr.bf16.mxu0 0
  %193 = vmatpush1.bf16.msra.mxu0 %v101
  %194 = vmatprep.subr.bf16.mxu0 0
  %195 = vmatpush1.bf16.msra.mxu0 %v102
  %196 = vmatprep.subr.bf16.mxu0 0
  %197 = vmatpush1.bf16.msra.mxu0 %v103
  %198 = vmatprep.subr.bf16.mxu0 0
  %199 = vmatpush1.bf16.msra.mxu0 %v104
  %200 = vmatprep.subr.bf16.mxu0 0
  %201 = vmatpush1.bf16.msra.mxu0 %v105
  %202 = vmatprep.subr.bf16.mxu0 0
  %203 = vmatpush1.bf16.msra.mxu0 %v106
  %204 = vmatprep.subr.bf16.mxu0 0
  %205 = vmatpush1.bf16.msra.mxu0 %v107
  %206 = vmatprep.subr.bf16.mxu0 0
  %207 = vmatpush1.bf16.msra.mxu0 %v108
  %208 = vmatprep.subr.bf16.mxu0 0
  %209 = vmatpush1.bf16.msra.mxu0 %v109
  %210 = vmatprep.subr.bf16.mxu0 0
  %211 = vmatpush1.bf16.msra.mxu0 0
  %212 = vmatprep.subr.bf16.mxu0 0
  %213 = vmatpush1.bf16.msra.mxu0 0
  %214 = vmatprep.subr.bf16.mxu0 0
  %215 = vmatpush1.bf16.msra.mxu0 0
  %216 = vmatprep.subr.bf16.mxu0 0
  %217 = vmatpush1.bf16.msra.mxu0 0
  %218 = vmatprep.subr.bf16.mxu0 0
  %219 = vmatpush1.bf16.msra.mxu0 0
  %220 = vmatprep.subr.bf16.mxu0 0
  %221 = vmatpush1.bf16.msra.mxu0 0
  %222 = vmatprep.subr.bf16.mxu0 0
  %223 = vmatpush1.bf16.msra.mxu0 0
  %224 = vmatprep.mubr.bf16.mxu0 %v190
  %225 = vmatmul.mubr.bf16.gmra.mrb[0].mxu0 %v186
  %v226 = vpop.f32.mrb[0].mxu0
  %v227 = vadd.f32 %v57, %v226
  %v228 = vpop.f32.mrb[0].mxu0
  %v229 = vpop.f32.mrb[0].mxu0
  %v230 = vpop.f32.mrb[0].mxu0
  %231 = vdwg.mxu0
  %v232 = vmax.f32 %v227, 0.0
  %v233 = vpack.c.bf16 %v232, %v232
  %s234 = scalar_lea.vmem %s3, 64
  %v235 = vld [vmem:[%s234] sm:$0xf]
  %v236 = vld [vmem:[%s234 + $0x4] sm:$0xf]
  %v237 = vld [vmem:[%s234 + $0x8] sm:$0xf]
  %v238 = vld [vmem:[%s234 + $0xc] sm:$0xf]
  %v239 = vld [vmem:[%s234 + $0x10] sm:$0xf]
  %v240 = vld [vmem:[%s234 + $0x14] sm:$0xf]
  %v241 = vld [vmem:[%s234 + $0x18] sm:$0xf]
  %v242 = vld [vmem:[%s234 + $0x1c] sm:$0xf]
  %v243 = vld [vmem:[%s234 + $0x20] sm:$0xf]
  %v244 = vld [vmem:[%s234 + $0x24] sm:$0xf]
  %v245 = vld [vmem:[%s234 + $0x28] sm:$0xf]
  %v246 = vld [vmem:[%s234 + $0x2c] sm:$0xf]
  %v247 = vld [vmem:[%s234 + $0x30] sm:$0xf]
  %v248 = vld [vmem:[%s234 + $0x34] sm:$0xf]
  %v249 = vld [vmem:[%s234 + $0x38] sm:$0xf]
  %v250 = vld [vmem:[%s234 + $0x3c] sm:$0xf]
  %v267 = vunpack.c.l.b16 %v235
  %v268 = vunpack.c.l.b16 %v236
  %v269 = vunpack.c.l.b16 %v237
  %v270 = vunpack.c.l.b16 %v238
  %v271 = vunpack.c.l.b16 %v239
  %v272 = vunpack.c.l.b16 %v240
  %v273 = vunpack.c.l.b16 %v241
  %v274 = vunpack.c.l.b16 %v242
  %v275 = vunpack.c.l.b16 %v243
  %v276 = vunpack.c.l.b16 %v244
  %v277 = vunpack.c.l.b16 %v245
  %v278 = vunpack.c.l.b16 %v246
  %v279 = vunpack.c.l.b16 %v247
  %v280 = vunpack.c.l.b16 %v248
  %v281 = vunpack.c.l.b16 %v249
  %v282 = vunpack.c.l.b16 %v250
  %v283 = vpack.c.b16 %v268, %v267
  %v284 = vpack.c.b16 %v270, %v269
  %v285 = vpack.c.b16 %v272, %v271
  %v286 = vpack.c.b16 %v274, %v273
  %v287 = vpack.c.b16 %v276, %v275
  %v288 = vpack.c.b16 %v278, %v277
  %v289 = vpack.c.b16 %v280, %v279
  %v290 = vpack.c.b16 %v282, %v281
  %299 = vmatprep.subr.bf16.mxu0 0
  %300 = vmatpush1.bf16.msra.mxu0 %v283
  %301 = vmatprep.subr.bf16.mxu0 0
  %302 = vmatpush1.bf16.msra.mxu0 %v284
  %303 = vmatprep.subr.bf16.mxu0 0
  %304 = vmatpush1.bf16.msra.mxu0 %v285
  %305 = vmatprep.subr.bf16.mxu0 0
  %306 = vmatpush1.bf16.msra.mxu0 %v286
  %307 = vmatprep.subr.bf16.mxu0 0
  %308 = vmatpush1.bf16.msra.mxu0 %v287
  %309 = vmatprep.subr.bf16.mxu0 0
  %310 = vmatpush1.bf16.msra.mxu0 %v288
  %311 = vmatprep.subr.bf16.mxu0 0
  %312 = vmatpush1.bf16.msra.mxu0 %v289
  %313 = vmatprep.subr.bf16.mxu0 0
  %314 = vmatpush1.bf16.msra.mxu0 %v290
  %315 = vmatprep.subr.bf16.mxu0 0
  %316 = vmatpush1.bf16.msra.mxu0 0
  %317 = vmatprep.subr.bf16.mxu0 0
  %318 = vmatpush1.bf16.msra.mxu0 0
  %319 = vmatprep.subr.bf16.mxu0 0
  %320 = vmatpush1.bf16.msra.mxu0 0
  %321 = vmatprep.subr.bf16.mxu0 0
  %322 = vmatpush1.bf16.msra.mxu0 0
  %323 = vmatprep.subr.bf16.mxu0 0
  %324 = vmatpush1.bf16.msra.mxu0 0
  %325 = vmatprep.subr.bf16.mxu0 0
  %326 = vmatpush1.bf16.msra.mxu0 0
  %327 = vmatprep.subr.bf16.mxu0 0
  %328 = vmatpush1.bf16.msra.mxu0 0
  %329 = vmatprep.subr.bf16.mxu0 0
  %330 = vmatpush1.bf16.msra.mxu0 0
  %331 = vmatprep.mubr.bf16.mxu0 0
  %332 = vmatmul.mubr.bf16.gmra.mrb[0].mxu0 %v233
  %v333 = vpop.f32.mrb[0].mxu0
  %v334 = vadd.f32 0.0, %v333
  %v335 = vpop.f32.mrb[0].mxu0
  %v336 = vpop.f32.mrb[0].mxu0
  %v337 = vpop.f32.mrb[0].mxu0
  %338 = vdwg.mxu0
  %v355 = vunpack.c.l.b16 %v165
  %v356 = vunpack.c.l.b16 %v166
  %v357 = vunpack.c.l.b16 %v167
  %v358 = vunpack.c.l.b16 %v168
  %v359 = vunpack.c.l.b16 %v169
  %v360 = vunpack.c.l.b16 %v170
  %v361 = vunpack.c.l.b16 %v171
  %v362 = vunpack.c.l.b16 %v172
  %v363 = vunpack.c.l.b16 %v173
  %v364 = vunpack.c.l.b16 %v174
  %v365 = vunpack.c.l.b16 %v175
  %v366 = vunpack.c.l.b16 %v176
  %v367 = vunpack.c.l.b16 %v177
  %v368 = vunpack.c.l.b16 %v178
  %v369 = vunpack.c.l.b16 %v179
  %v370 = vunpack.c.l.b16 %v180
  %v371 = vpack.c.b16 %v356, %v355
  %v372 = vpack.c.b16 %v358, %v357
  %v373 = vpack.c.b16 %v360, %v359
  %v374 = vpack.c.b16 %v362, %v361
  %v375 = vpack.c.b16 %v364, %v363
  %v376 = vpack.c.b16 %v366, %v365
  %v377 = vpack.c.b16 %v368, %v367
  %v378 = vpack.c.b16 %v370, %v369
  %387 = vmatprep.subr.bf16.mxu0 0
  %388 = vmatpush1.bf16.msra.mxu0 %v371
  %389 = vmatprep.subr.bf16.mxu0 0
  %390 = vmatpush1.bf16.msra.mxu0 %v372
  %391 = vmatprep.subr.bf16.mxu0 0
  %392 = vmatpush1.bf16.msra.mxu0 %v373
  %393 = vmatprep.subr.bf16.mxu0 0
  %394 = vmatpush1.bf16.msra.mxu0 %v374
  %395 = vmatprep.subr.bf16.mxu0 0
  %396 = vmatpush1.bf16.msra.mxu0 %v375
  %397 = vmatprep.subr.bf16.mxu0 0
  %398 = vmatpush1.bf16.msra.mxu0 %v376
  %399 = vmatprep.subr.bf16.mxu0 0
  %400 = vmatpush1.bf16.msra.mxu0 %v377
  %401 = vmatprep.subr.bf16.mxu0 0
  %402 = vmatpush1.bf16.msra.mxu0 %v378
  %403 = vmatprep.subr.bf16.mxu0 0
  %404 = vmatpush1.bf16.msra.mxu0 0
  %405 = vmatprep.subr.bf16.mxu0 0
  %406 = vmatpush1.bf16.msra.mxu0 0
  %407 = vmatprep.subr.bf16.mxu0 0
  %408 = vmatpush1.bf16.msra.mxu0 0
  %409 = vmatprep.subr.bf16.mxu0 0
  %410 = vmatpush1.bf16.msra.mxu0 0
  %411 = vmatprep.subr.bf16.mxu0 0
  %412 = vmatpush1.bf16.msra.mxu0 0
  %413 = vmatprep.subr.bf16.mxu0 0
  %414 = vmatpush1.bf16.msra.mxu0 0
  %415 = vmatprep.subr.bf16.mxu0 0
  %416 = vmatpush1.bf16.msra.mxu0 0
  %417 = vmatprep.subr.bf16.mxu0 0
  %418 = vmatpush1.bf16.msra.mxu0 0
  %419 = vmatprep.mubr.bf16.mxu0 0
  %420 = vmatmul.mubr.bf16.gmra.mrb[0].mxu0 %v164
  %v421 = vpop.f32.mrb[0].mxu0
  %v422 = vadd.f32 %v334, %v421
  %v423 = vpop.f32.mrb[0].mxu0
  %v424 = vpop.f32.mrb[0].mxu0
  %v425 = vpop.f32.mrb[0].mxu0
  %426 = vdwg.mxu0
  %s427 = scalar_lea.vmem %s0, 16
  %v428 = vld [vmem:[%s427] sm:$0xff]
  %v430 = vunpack.c.l.b16 %v428
  %v431 = vunpack.c.h.b16 %v428
  %v432 = vpack.c.b16 %v430, %v430
  %v433 = vpack.c.b16 %v431, %v431
  %v436 = vsel %vm119, %v433, 0
  %438 = vmatprep.subr.bf16.mxu0 0
  %439 = vmatpush1.bf16.msra.mxu0 %v101
  %440 = vmatprep.subr.bf16.mxu0 0
  %441 = vmatpush1.bf16.msra.mxu0 %v102
  %442 = vmatprep.subr.bf16.mxu0 0
  %443 = vmatpush1.bf16.msra.mxu0 %v103
  %444 = vmatprep.subr.bf16.mxu0 0
  %445 = vmatpush1.bf16.msra.mxu0 %v104
  %446 = vmatprep.subr.bf16.mxu0 0
  %447 = vmatpush1.bf16.msra.mxu0 %v105
  %448 = vmatprep.subr.bf16.mxu0 0
  %449 = vmatpush1.bf16.msra.mxu0 %v106
  %450 = vmatprep.subr.bf16.mxu0 0
  %451 = vmatpush1.bf16.msra.mxu0 %v107
  %452 = vmatprep.subr.bf16.mxu0 0
  %453 = vmatpush1.bf16.msra.mxu0 %v108
  %454 = vmatprep.subr.bf16.mxu0 0
  %455 = vmatpush1.bf16.msra.mxu0 %v109
  %456 = vmatprep.subr.bf16.mxu0 0
  %457 = vmatpush1.bf16.msra.mxu0 0
  %458 = vmatprep.subr.bf16.mxu0 0
  %459 = vmatpush1.bf16.msra.mxu0 0
  %460 = vmatprep.subr.bf16.mxu0 0
  %461 = vmatpush1.bf16.msra.mxu0 0
  %462 = vmatprep.subr.bf16.mxu0 0
  %463 = vmatpush1.bf16.msra.mxu0 0
  %464 = vmatprep.subr.bf16.mxu0 0
  %465 = vmatpush1.bf16.msra.mxu0 0
  %466 = vmatprep.subr.bf16.mxu0 0
  %467 = vmatpush1.bf16.msra.mxu0 0
  %468 = vmatprep.subr.bf16.mxu0 0
  %469 = vmatpush1.bf16.msra.mxu0 0
  %470 = vmatprep.mubr.bf16.mxu0 %v436
  %471 = vmatmul.mubr.bf16.gmra.mrb[0].mxu0 %v432
  %v472 = vpop.f32.mrb[0].mxu0
  %v473 = vadd.f32 %v57, %v472
  %v474 = vpop.f32.mrb[0].mxu0
  %v475 = vpop.f32.mrb[0].mxu0
  %v476 = vpop.f32.mrb[0].mxu0
  %477 = vdwg.mxu0
  %v478 = vmax.f32 %v473, 0.0
  %v479 = vpack.c.bf16 %v478, %v478
  %s480 = scalar_lea.vmem %s3, 128
  %v481 = vld [vmem:[%s480] sm:$0xf]
  %v482 = vld [vmem:[%s480 + $0x4] sm:$0xf]
  %v483 = vld [vmem:[%s480 + $0x8] sm:$0xf]
  %v484 = vld [vmem:[%s480 + $0xc] sm:$0xf]
  %v485 = vld [vmem:[%s480 + $0x10] sm:$0xf]
  %v486 = vld [vmem:[%s480 + $0x14] sm:$0xf]
  %v487 = vld [vmem:[%s480 + $0x18] sm:$0xf]
  %v488 = vld [vmem:[%s480 + $0x1c] sm:$0xf]
  %v489 = vld [vmem:[%s480 + $0x20] sm:$0xf]
  %v490 = vld [vmem:[%s480 + $0x24] sm:$0xf]
  %v491 = vld [vmem:[%s480 + $0x28] sm:$0xf]
  %v492 = vld [vmem:[%s480 + $0x2c] sm:$0xf]
  %v493 = vld [vmem:[%s480 + $0x30] sm:$0xf]
  %v494 = vld [vmem:[%s480 + $0x34] sm:$0xf]
  %v495 = vld [vmem:[%s480 + $0x38] sm:$0xf]
  %v496 = vld [vmem:[%s480 + $0x3c] sm:$0xf]
  %v513 = vunpack.c.l.b16 %v481
  %v514 = vunpack.c.l.b16 %v482
  %v515 = vunpack.c.l.b16 %v483
  %v516 = vunpack.c.l.b16 %v484
  %v517 = vunpack.c.l.b16 %v485
  %v518 = vunpack.c.l.b16 %v486
  %v519 = vunpack.c.l.b16 %v487
  %v520 = vunpack.c.l.b16 %v488
  %v521 = vunpack.c.l.b16 %v489
  %v522 = vunpack.c.l.b16 %v490
  %v523 = vunpack.c.l.b16 %v491
  %v524 = vunpack.c.l.b16 %v492
  %v525 = vunpack.c.l.b16 %v493
  %v526 = vunpack.c.l.b16 %v494
  %v527 = vunpack.c.l.b16 %v495
  %v528 = vunpack.c.l.b16 %v496
  %v529 = vpack.c.b16 %v514, %v513
  %v530 = vpack.c.b16 %v516, %v515
  %v531 = vpack.c.b16 %v518, %v517
  %v532 = vpack.c.b16 %v520, %v519
  %v533 = vpack.c.b16 %v522, %v521
  %v534 = vpack.c.b16 %v524, %v523
  %v535 = vpack.c.b16 %v526, %v525
  %v536 = vpack.c.b16 %v528, %v527
  %545 = vmatprep.subr.bf16.mxu0 0
  %546 = vmatpush1.bf16.msra.mxu0 %v529
  %547 = vmatprep.subr.bf16.mxu0 0
  %548 = vmatpush1.bf16.msra.mxu0 %v530
  %549 = vmatprep.subr.bf16.mxu0 0
  %550 = vmatpush1.bf16.msra.mxu0 %v531
  %551 = vmatprep.subr.bf16.mxu0 0
  %552 = vmatpush1.bf16.msra.mxu0 %v532
  %553 = vmatprep.subr.bf16.mxu0 0
  %554 = vmatpush1.bf16.msra.mxu0 %v533
  %555 = vmatprep.subr.bf16.mxu0 0
  %556 = vmatpush1.bf16.msra.mxu0 %v534
  %557 = vmatprep.subr.bf16.mxu0 0
  %558 = vmatpush1.bf16.msra.mxu0 %v535
  %559 = vmatprep.subr.bf16.mxu0 0
  %560 = vmatpush1.bf16.msra.mxu0 %v536
  %561 = vmatprep.subr.bf16.mxu0 0
  %562 = vmatpush1.bf16.msra.mxu0 0
  %563 = vmatprep.subr.bf16.mxu0 0
  %564 = vmatpush1.bf16.msra.mxu0 0
  %565 = vmatprep.subr.bf16.mxu0 0
  %566 = vmatpush1.bf16.msra.mxu0 0
  %567 = vmatprep.subr.bf16.mxu0 0
  %568 = vmatpush1.bf16.msra.mxu0 0
  %569 = vmatprep.subr.bf16.mxu0 0
  %570 = vmatpush1.bf16.msra.mxu0 0
  %571 = vmatprep.subr.bf16.mxu0 0
  %572 = vmatpush1.bf16.msra.mxu0 0
  %573 = vmatprep.subr.bf16.mxu0 0
  %574 = vmatpush1.bf16.msra.mxu0 0
  %575 = vmatprep.subr.bf16.mxu0 0
  %576 = vmatpush1.bf16.msra.mxu0 0
  %577 = vmatprep.mubr.bf16.mxu0 0
  %578 = vmatmul.mubr.bf16.gmra.mrb[0].mxu0 %v479
  %v579 = vpop.f32.mrb[0].mxu0
  %v580 = vadd.f32 0.0, %v579
  %v581 = vpop.f32.mrb[0].mxu0
  %v582 = vpop.f32.mrb[0].mxu0
  %v583 = vpop.f32.mrb[0].mxu0
  %584 = vdwg.mxu0
  %v585 = vadd.f32 %v422, %v580
  %s586 = scalar_lea.vmem %s0, 24
  %v587 = vld [vmem:[%s586] sm:$0xff]
  %v589 = vunpack.c.l.b16 %v587
  %v590 = vunpack.c.h.b16 %v587
  %v591 = vpack.c.b16 %v589, %v589
  %v592 = vpack.c.b16 %v590, %v590
  %v595 = vsel %vm119, %v592, 0
  %597 = vmatprep.subr.bf16.mxu0 0
  %598 = vmatpush1.bf16.msra.mxu0 %v101
  %599 = vmatprep.subr.bf16.mxu0 0
  %600 = vmatpush1.bf16.msra.mxu0 %v102
  %601 = vmatprep.subr.bf16.mxu0 0
  %602 = vmatpush1.bf16.msra.mxu0 %v103
  %603 = vmatprep.subr.bf16.mxu0 0
  %604 = vmatpush1.bf16.msra.mxu0 %v104
  %605 = vmatprep.subr.bf16.mxu0 0
  %606 = vmatpush1.bf16.msra.mxu0 %v105
  %607 = vmatprep.subr.bf16.mxu0 0
  %608 = vmatpush1.bf16.msra.mxu0 %v106
  %609 = vmatprep.subr.bf16.mxu0 0
  %610 = vmatpush1.bf16.msra.mxu0 %v107
  %611 = vmatprep.subr.bf16.mxu0 0
  %612 = vmatpush1.bf16.msra.mxu0 %v108
  %613 = vmatprep.subr.bf16.mxu0 0
  %614 = vmatpush1.bf16.msra.mxu0 %v109
  %615 = vmatprep.subr.bf16.mxu0 0
  %616 = vmatpush1.bf16.msra.mxu0 0
  %617 = vmatprep.subr.bf16.mxu0 0
  %618 = vmatpush1.bf16.msra.mxu0 0
  %619 = vmatprep.subr.bf16.mxu0 0
  %620 = vmatpush1.bf16.msra.mxu0 0
  %621 = vmatprep.subr.bf16.mxu0 0
  %622 = vmatpush1.bf16.msra.mxu0 0
  %623 = vmatprep.subr.bf16.mxu0 0
  %624 = vmatpush1.bf16.msra.mxu0 0
  %625 = vmatprep.subr.bf16.mxu0 0
  %626 = vmatpush1.bf16.msra.mxu0 0
  %627 = vmatprep.subr.bf16.mxu0 0
  %628 = vmatpush1.bf16.msra.mxu0 0
  %629 = vmatprep.mubr.bf16.mxu0 %v595
  %630 = vmatmul.mubr.bf16.gmra.mrb[0].mxu0 %v591
  %v631 = vpop.f32.mrb[0].mxu0
  %v632 = vadd.f32 %v57, %v631
  %v633 = vpop.f32.mrb[0].mxu0
  %v634 = vpop.f32.mrb[0].mxu0
  %v635 = vpop.f32.mrb[0].mxu0
  %636 = vdwg.mxu0
  %v637 = vmax.f32 %v632, 0.0
  %v638 = vpack.c.bf16 %v637, %v637
  %s639 = scalar_lea.vmem %s3, 192
  %v640 = vld [vmem:[%s639] sm:$0xf]
  %v641 = vld [vmem:[%s639 + $0x4] sm:$0xf]
  %v642 = vld [vmem:[%s639 + $0x8] sm:$0xf]
  %v643 = vld [vmem:[%s639 + $0xc] sm:$0xf]
  %v644 = vld [vmem:[%s639 + $0x10] sm:$0xf]
  %v645 = vld [vmem:[%s639 + $0x14] sm:$0xf]
  %v646 = vld [vmem:[%s639 + $0x18] sm:$0xf]
  %v647 = vld [vmem:[%s639 + $0x1c] sm:$0xf]
  %v648 = vld [vmem:[%s639 + $0x20] sm:$0xf]
  %v649 = vld [vmem:[%s639 + $0x24] sm:$0xf]
  %v650 = vld [vmem:[%s639 + $0x28] sm:$0xf]
  %v651 = vld [vmem:[%s639 + $0x2c] sm:$0xf]
  %v652 = vld [vmem:[%s639 + $0x30] sm:$0xf]
  %v653 = vld [vmem:[%s639 + $0x34] sm:$0xf]
  %v654 = vld [vmem:[%s639 + $0x38] sm:$0xf]
  %v655 = vld [vmem:[%s639 + $0x3c] sm:$0xf]
  %v672 = vunpack.c.l.b16 %v640
  %v673 = vunpack.c.l.b16 %v641
  %v674 = vunpack.c.l.b16 %v642
  %v675 = vunpack.c.l.b16 %v643
  %v676 = vunpack.c.l.b16 %v644
  %v677 = vunpack.c.l.b16 %v645
  %v678 = vunpack.c.l.b16 %v646
  %v679 = vunpack.c.l.b16 %v647
  %v680 = vunpack.c.l.b16 %v648
  %v681 = vunpack.c.l.b16 %v649
  %v682 = vunpack.c.l.b16 %v650
  %v683 = vunpack.c.l.b16 %v651
  %v684 = vunpack.c.l.b16 %v652
  %v685 = vunpack.c.l.b16 %v653
  %v686 = vunpack.c.l.b16 %v654
  %v687 = vunpack.c.l.b16 %v655
  %v688 = vpack.c.b16 %v673, %v672
  %v689 = vpack.c.b16 %v675, %v674
  %v690 = vpack.c.b16 %v677, %v676
  %v691 = vpack.c.b16 %v679, %v678
  %v692 = vpack.c.b16 %v681, %v680
  %v693 = vpack.c.b16 %v683, %v682
  %v694 = vpack.c.b16 %v685, %v684
  %v695 = vpack.c.b16 %v687, %v686
  %704 = vmatprep.subr.bf16.mxu0 0
  %705 = vmatpush1.bf16.msra.mxu0 %v688
  %706 = vmatprep.subr.bf16.mxu0 0
  %707 = vmatpush1.bf16.msra.mxu0 %v689
  %708 = vmatprep.subr.bf16.mxu0 0
  %709 = vmatpush1.bf16.msra.mxu0 %v690
  %710 = vmatprep.subr.bf16.mxu0 0
  %711 = vmatpush1.bf16.msra.mxu0 %v691
  %712 = vmatprep.subr.bf16.mxu0 0
  %713 = vmatpush1.bf16.msra.mxu0 %v692
  %714 = vmatprep.subr.bf16.mxu0 0
  %715 = vmatpush1.bf16.msra.mxu0 %v693
  %716 = vmatprep.subr.bf16.mxu0 0
  %717 = vmatpush1.bf16.msra.mxu0 %v694
  %718 = vmatprep.subr.bf16.mxu0 0
  %719 = vmatpush1.bf16.msra.mxu0 %v695
  %720 = vmatprep.subr.bf16.mxu0 0
  %721 = vmatpush1.bf16.msra.mxu0 0
  %722 = vmatprep.subr.bf16.mxu0 0
  %723 = vmatpush1.bf16.msra.mxu0 0
  %724 = vmatprep.subr.bf16.mxu0 0
  %725 = vmatpush1.bf16.msra.mxu0 0
  %726 = vmatprep.subr.bf16.mxu0 0
  %727 = vmatpush1.bf16.msra.mxu0 0
  %728 = vmatprep.subr.bf16.mxu0 0
  %729 = vmatpush1.bf16.msra.mxu0 0
  %730 = vmatprep.subr.bf16.mxu0 0
  %731 = vmatpush1.bf16.msra.mxu0 0
  %732 = vmatprep.subr.bf16.mxu0 0
  %733 = vmatpush1.bf16.msra.mxu0 0
  %734 = vmatprep.subr.bf16.mxu0 0
  %735 = vmatpush1.bf16.msra.mxu0 0
  %736 = vmatprep.mubr.bf16.mxu0 0
  %737 = vmatmul.mubr.bf16.gmra.mrb[0].mxu0 %v638
  %v738 = vpop.f32.mrb[0].mxu0
  %v739 = vadd.f32 0.0, %v738
  %v740 = vpop.f32.mrb[0].mxu0
  %v741 = vpop.f32.mrb[0].mxu0
  %v742 = vpop.f32.mrb[0].mxu0
  %743 = vdwg.mxu0
  %v744 = vadd.f32 %v585, %v739
  %s745 = scalar_lea.vmem %s0, 32
  %v746 = vld [vmem:[%s745] sm:$0xff]
  %v748 = vunpack.c.l.b16 %v746
  %v749 = vunpack.c.h.b16 %v746
  %v750 = vpack.c.b16 %v748, %v748
  %v751 = vpack.c.b16 %v749, %v749
  %v754 = vsel %vm119, %v751, 0
  %756 = vmatprep.subr.bf16.mxu0 0
  %757 = vmatpush1.bf16.msra.mxu0 %v101
  %758 = vmatprep.subr.bf16.mxu0 0
  %759 = vmatpush1.bf16.msra.mxu0 %v102
  %760 = vmatprep.subr.bf16.mxu0 0
  %761 = vmatpush1.bf16.msra.mxu0 %v103
  %762 = vmatprep.subr.bf16.mxu0 0
  %763 = vmatpush1.bf16.msra.mxu0 %v104
  %764 = vmatprep.subr.bf16.mxu0 0
  %765 = vmatpush1.bf16.msra.mxu0 %v105
  %766 = vmatprep.subr.bf16.mxu0 0
  %767 = vmatpush1.bf16.msra.mxu0 %v106
  %768 = vmatprep.subr.bf16.mxu0 0
  %769 = vmatpush1.bf16.msra.mxu0 %v107
  %770 = vmatprep.subr.bf16.mxu0 0
  %771 = vmatpush1.bf16.msra.mxu0 %v108
  %772 = vmatprep.subr.bf16.mxu0 0
  %773 = vmatpush1.bf16.msra.mxu0 %v109
  %774 = vmatprep.subr.bf16.mxu0 0
  %775 = vmatpush1.bf16.msra.mxu0 0
  %776 = vmatprep.subr.bf16.mxu0 0
  %777 = vmatpush1.bf16.msra.mxu0 0
  %778 = vmatprep.subr.bf16.mxu0 0
  %779 = vmatpush1.bf16.msra.mxu0 0
  %780 = vmatprep.subr.bf16.mxu0 0
  %781 = vmatpush1.bf16.msra.mxu0 0
  %782 = vmatprep.subr.bf16.mxu0 0
  %783 = vmatpush1.bf16.msra.mxu0 0
  %784 = vmatprep.subr.bf16.mxu0 0
  %785 = vmatpush1.bf16.msra.mxu0 0
  %786 = vmatprep.subr.bf16.mxu0 0
  %787 = vmatpush1.bf16.msra.mxu0 0
  %788 = vmatprep.mubr.bf16.mxu0 %v754
  %789 = vmatmul.mubr.bf16.gmra.mrb[0].mxu0 %v750
  %v790 = vpop.f32.mrb[0].mxu0
  %v791 = vadd.f32 %v57, %v790
  %v792 = vpop.f32.mrb[0].mxu0
  %v793 = vpop.f32.mrb[0].mxu0
  %v794 = vpop.f32.mrb[0].mxu0
  %795 = vdwg.mxu0
  %v796 = vmax.f32 %v791, 0.0
  %v797 = vpack.c.bf16 %v796, %v796
  %s798 = scalar_lea.vmem %s3, 256
  %v799 = vld [vmem:[%s798] sm:$0xf]
  %v800 = vld [vmem:[%s798 + $0x4] sm:$0xf]
  %v801 = vld [vmem:[%s798 + $0x8] sm:$0xf]
  %v802 = vld [vmem:[%s798 + $0xc] sm:$0xf]
  %v803 = vld [vmem:[%s798 + $0x10] sm:$0xf]
  %v804 = vld [vmem:[%s798 + $0x14] sm:$0xf]
  %v805 = vld [vmem:[%s798 + $0x18] sm:$0xf]
  %v806 = vld [vmem:[%s798 + $0x1c] sm:$0xf]
  %v807 = vld [vmem:[%s798 + $0x20] sm:$0xf]
  %v808 = vld [vmem:[%s798 + $0x24] sm:$0xf]
  %v809 = vld [vmem:[%s798 + $0x28] sm:$0xf]
  %v810 = vld [vmem:[%s798 + $0x2c] sm:$0xf]
  %v811 = vld [vmem:[%s798 + $0x30] sm:$0xf]
  %v812 = vld [vmem:[%s798 + $0x34] sm:$0xf]
  %v813 = vld [vmem:[%s798 + $0x38] sm:$0xf]
  %v814 = vld [vmem:[%s798 + $0x3c] sm:$0xf]
  %v831 = vunpack.c.l.b16 %v799
  %v832 = vunpack.c.l.b16 %v800
  %v833 = vunpack.c.l.b16 %v801
  %v834 = vunpack.c.l.b16 %v802
  %v835 = vunpack.c.l.b16 %v803
  %v836 = vunpack.c.l.b16 %v804
  %v837 = vunpack.c.l.b16 %v805
  %v838 = vunpack.c.l.b16 %v806
  %v839 = vunpack.c.l.b16 %v807
  %v840 = vunpack.c.l.b16 %v808
  %v841 = vunpack.c.l.b16 %v809
  %v842 = vunpack.c.l.b16 %v810
  %v843 = vunpack.c.l.b16 %v811
  %v844 = vunpack.c.l.b16 %v812
  %v845 = vunpack.c.l.b16 %v813
  %v846 = vunpack.c.l.b16 %v814
  %v847 = vpack.c.b16 %v832, %v831
  %v848 = vpack.c.b16 %v834, %v833
  %v849 = vpack.c.b16 %v836, %v835
  %v850 = vpack.c.b16 %v838, %v837
  %v851 = vpack.c.b16 %v840, %v839
  %v852 = vpack.c.b16 %v842, %v841
  %v853 = vpack.c.b16 %v844, %v843
  %v854 = vpack.c.b16 %v846, %v845
  %863 = vmatprep.subr.bf16.mxu0 0
  %864 = vmatpush1.bf16.msra.mxu0 %v847
  %865 = vmatprep.subr.bf16.mxu0 0
  %866 = vmatpush1.bf16.msra.mxu0 %v848
  %867 = vmatprep.subr.bf16.mxu0 0
  %868 = vmatpush1.bf16.msra.mxu0 %v849
  %869 = vmatprep.subr.bf16.mxu0 0
  %870 = vmatpush1.bf16.msra.mxu0 %v850
  %871 = vmatprep.subr.bf16.mxu0 0
  %872 = vmatpush1.bf16.msra.mxu0 %v851
  %873 = vmatprep.subr.bf16.mxu0 0
  %874 = vmatpush1.bf16.msra.mxu0 %v852
  %875 = vmatprep.subr.bf16.mxu0 0
  %876 = vmatpush1.bf16.msra.mxu0 %v853
  %877 = vmatprep.subr.bf16.mxu0 0
  %878 = vmatpush1.bf16.msra.mxu0 %v854
  %879 = vmatprep.subr.bf16.mxu0 0
  %880 = vmatpush1.bf16.msra.mxu0 0
  %881 = vmatprep.subr.bf16.mxu0 0
  %882 = vmatpush1.bf16.msra.mxu0 0
  %883 = vmatprep.subr.bf16.mxu0 0
  %884 = vmatpush1.bf16.msra.mxu0 0
  %885 = vmatprep.subr.bf16.mxu0 0
  %886 = vmatpush1.bf16.msra.mxu0 0
  %887 = vmatprep.subr.bf16.mxu0 0
  %888 = vmatpush1.bf16.msra.mxu0 0
  %889 = vmatprep.subr.bf16.mxu0 0
  %890 = vmatpush1.bf16.msra.mxu0 0
  %891 = vmatprep.subr.bf16.mxu0 0
  %892 = vmatpush1.bf16.msra.mxu0 0
  %893 = vmatprep.subr.bf16.mxu0 0
  %894 = vmatpush1.bf16.msra.mxu0 0
  %895 = vmatprep.mubr.bf16.mxu0 0
  %896 = vmatmul.mubr.bf16.gmra.mrb[0].mxu0 %v797
  %v897 = vpop.f32.mrb[0].mxu0
  %v898 = vadd.f32 0.0, %v897
  %v899 = vpop.f32.mrb[0].mxu0
  %v900 = vpop.f32.mrb[0].mxu0
  %v901 = vpop.f32.mrb[0].mxu0
  %902 = vdwg.mxu0
  %v903 = vadd.f32 %v744, %v898
  %s904 = scalar_lea.vmem %s0, 40
  %v905 = vld [vmem:[%s904] sm:$0xff]
  %v907 = vunpack.c.l.b16 %v905
  %v908 = vunpack.c.h.b16 %v905
  %v909 = vpack.c.b16 %v907, %v907
  %v910 = vpack.c.b16 %v908, %v908
  %v913 = vsel %vm119, %v910, 0
  %915 = vmatprep.subr.bf16.mxu0 0
  %916 = vmatpush1.bf16.msra.mxu0 %v101
  %917 = vmatprep.subr.bf16.mxu0 0
  %918 = vmatpush1.bf16.msra.mxu0 %v102
  %919 = vmatprep.subr.bf16.mxu0 0
  %920 = vmatpush1.bf16.msra.mxu0 %v103
  %921 = vmatprep.subr.bf16.mxu0 0
  %922 = vmatpush1.bf16.msra.mxu0 %v104
  %923 = vmatprep.subr.bf16.mxu0 0
  %924 = vmatpush1.bf16.msra.mxu0 %v105
  %925 = vmatprep.subr.bf16.mxu0 0
  %926 = vmatpush1.bf16.msra.mxu0 %v106
  %927 = vmatprep.subr.bf16.mxu0 0
  %928 = vmatpush1.bf16.msra.mxu0 %v107
  %929 = vmatprep.subr.bf16.mxu0 0
  %930 = vmatpush1.bf16.msra.mxu0 %v108
  %931 = vmatprep.subr.bf16.mxu0 0
  %932 = vmatpush1.bf16.msra.mxu0 %v109
  %933 = vmatprep.subr.bf16.mxu0 0
  %934 = vmatpush1.bf16.msra.mxu0 0
  %935 = vmatprep.subr.bf16.mxu0 0
  %936 = vmatpush1.bf16.msra.mxu0 0
  %937 = vmatprep.subr.bf16.mxu0 0
  %938 = vmatpush1.bf16.msra.mxu0 0
  %939 = vmatprep.subr.bf16.mxu0 0
  %940 = vmatpush1.bf16.msra.mxu0 0
  %941 = vmatprep.subr.bf16.mxu0 0
  %942 = vmatpush1.bf16.msra.mxu0 0
  %943 = vmatprep.subr.bf16.mxu0 0
  %944 = vmatpush1.bf16.msra.mxu0 0
  %945 = vmatprep.subr.bf16.mxu0 0
  %946 = vmatpush1.bf16.msra.mxu0 0
  %947 = vmatprep.mubr.bf16.mxu0 %v913
  %948 = vmatmul.mubr.bf16.gmra.mrb[0].mxu0 %v909
  %v949 = vpop.f32.mrb[0].mxu0
  %v950 = vadd.f32 %v57, %v949
  %v951 = vpop.f32.mrb[0].mxu0
  %v952 = vpop.f32.mrb[0].mxu0
  %v953 = vpop.f32.mrb[0].mxu0
  %954 = vdwg.mxu0
  %v955 = vmax.f32 %v950, 0.0
  %v956 = vpack.c.bf16 %v955, %v955
  %s957 = scalar_lea.vmem %s3, 320
  %v958 = vld [vmem:[%s957] sm:$0xf]
  %v959 = vld [vmem:[%s957 + $0x4] sm:$0xf]
  %v960 = vld [vmem:[%s957 + $0x8] sm:$0xf]
  %v961 = vld [vmem:[%s957 + $0xc] sm:$0xf]
  %v962 = vld [vmem:[%s957 + $0x10] sm:$0xf]
  %v963 = vld [vmem:[%s957 + $0x14] sm:$0xf]
  %v964 = vld [vmem:[%s957 + $0x18] sm:$0xf]
  %v965 = vld [vmem:[%s957 + $0x1c] sm:$0xf]
  %v966 = vld [vmem:[%s957 + $0x20] sm:$0xf]
  %v967 = vld [vmem:[%s957 + $0x24] sm:$0xf]
  %v968 = vld [vmem:[%s957 + $0x28] sm:$0xf]
  %v969 = vld [vmem:[%s957 + $0x2c] sm:$0xf]
  %v970 = vld [vmem:[%s957 + $0x30] sm:$0xf]
  %v971 = vld [vmem:[%s957 + $0x34] sm:$0xf]
  %v972 = vld [vmem:[%s957 + $0x38] sm:$0xf]
  %v973 = vld [vmem:[%s957 + $0x3c] sm:$0xf]
  %v990 = vunpack.c.l.b16 %v958
  %v991 = vunpack.c.l.b16 %v959
  %v992 = vunpack.c.l.b16 %v960
  %v993 = vunpack.c.l.b16 %v961
  %v994 = vunpack.c.l.b16 %v962
  %v995 = vunpack.c.l.b16 %v963
  %v996 = vunpack.c.l.b16 %v964
  %v997 = vunpack.c.l.b16 %v965
  %v998 = vunpack.c.l.b16 %v966
  %v999 = vunpack.c.l.b16 %v967
  %v1000 = vunpack.c.l.b16 %v968
  %v1001 = vunpack.c.l.b16 %v969
  %v1002 = vunpack.c.l.b16 %v970
  %v1003 = vunpack.c.l.b16 %v971
  %v1004 = vunpack.c.l.b16 %v972
  %v1005 = vunpack.c.l.b16 %v973
  %v1006 = vpack.c.b16 %v991, %v990
  %v1007 = vpack.c.b16 %v993, %v992
  %v1008 = vpack.c.b16 %v995, %v994
  %v1009 = vpack.c.b16 %v997, %v996
  %v1010 = vpack.c.b16 %v999, %v998
  %v1011 = vpack.c.b16 %v1001, %v1000
  %v1012 = vpack.c.b16 %v1003, %v1002
  %v1013 = vpack.c.b16 %v1005, %v1004
  %1022 = vmatprep.subr.bf16.mxu0 0
  %1023 = vmatpush1.bf16.msra.mxu0 %v1006
  %1024 = vmatprep.subr.bf16.mxu0 0
  %1025 = vmatpush1.bf16.msra.mxu0 %v1007
  %1026 = vmatprep.subr.bf16.mxu0 0
  %1027 = vmatpush1.bf16.msra.mxu0 %v1008
  %1028 = vmatprep.subr.bf16.mxu0 0
  %1029 = vmatpush1.bf16.msra.mxu0 %v1009
  %1030 = vmatprep.subr.bf16.mxu0 0
  %1031 = vmatpush1.bf16.msra.mxu0 %v1010
  %1032 = vmatprep.subr.bf16.mxu0 0
  %1033 = vmatpush1.bf16.msra.mxu0 %v1011
  %1034 = vmatprep.subr.bf16.mxu0 0
  %1035 = vmatpush1.bf16.msra.mxu0 %v1012
  %1036 = vmatprep.subr.bf16.mxu0 0
  %1037 = vmatpush1.bf16.msra.mxu0 %v1013
  %1038 = vmatprep.subr.bf16.mxu0 0
  %1039 = vmatpush1.bf16.msra.mxu0 0
  %1040 = vmatprep.subr.bf16.mxu0 0
  %1041 = vmatpush1.bf16.msra.mxu0 0
  %1042 = vmatprep.subr.bf16.mxu0 0
  %1043 = vmatpush1.bf16.msra.mxu0 0
  %1044 = vmatprep.subr.bf16.mxu0 0
  %1045 = vmatpush1.bf16.msra.mxu0 0
  %1046 = vmatprep.subr.bf16.mxu0 0
  %1047 = vmatpush1.bf16.msra.mxu0 0
  %1048 = vmatprep.subr.bf16.mxu0 0
  %1049 = vmatpush1.bf16.msra.mxu0 0
  %1050 = vmatprep.subr.bf16.mxu0 0
  %1051 = vmatpush1.bf16.msra.mxu0 0
  %1052 = vmatprep.subr.bf16.mxu0 0
  %1053 = vmatpush1.bf16.msra.mxu0 0
  %1054 = vmatprep.mubr.bf16.mxu0 0
  %1055 = vmatmul.mubr.bf16.gmra.mrb[0].mxu0 %v956
  %v1056 = vpop.f32.mrb[0].mxu0
  %v1057 = vadd.f32 0.0, %v1056
  %v1058 = vpop.f32.mrb[0].mxu0
  %v1059 = vpop.f32.mrb[0].mxu0
  %v1060 = vpop.f32.mrb[0].mxu0
  %1061 = vdwg.mxu0
  %v1062 = vadd.f32 %v903, %v1057
  %s1063 = scalar_lea.vmem %s0, 48
  %v1064 = vld [vmem:[%s1063] sm:$0xff]
  %v1066 = vunpack.c.l.b16 %v1064
  %v1067 = vunpack.c.h.b16 %v1064
  %v1068 = vpack.c.b16 %v1066, %v1066
  %v1069 = vpack.c.b16 %v1067, %v1067
  %v1072 = vsel %vm119, %v1069, 0
  %1074 = vmatprep.subr.bf16.mxu0 0
  %1075 = vmatpush1.bf16.msra.mxu0 %v101
  %1076 = vmatprep.subr.bf16.mxu0 0
  %1077 = vmatpush1.bf16.msra.mxu0 %v102
  %1078 = vmatprep.subr.bf16.mxu0 0
  %1079 = vmatpush1.bf16.msra.mxu0 %v103
  %1080 = vmatprep.subr.bf16.mxu0 0
  %1081 = vmatpush1.bf16.msra.mxu0 %v104
  %1082 = vmatprep.subr.bf16.mxu0 0
  %1083 = vmatpush1.bf16.msra.mxu0 %v105
  %1084 = vmatprep.subr.bf16.mxu0 0
  %1085 = vmatpush1.bf16.msra.mxu0 %v106
  %1086 = vmatprep.subr.bf16.mxu0 0
  %1087 = vmatpush1.bf16.msra.mxu0 %v107
  %1088 = vmatprep.subr.bf16.mxu0 0
  %1089 = vmatpush1.bf16.msra.mxu0 %v108
  %1090 = vmatprep.subr.bf16.mxu0 0
  %1091 = vmatpush1.bf16.msra.mxu0 %v109
  %1092 = vmatprep.subr.bf16.mxu0 0
  %1093 = vmatpush1.bf16.msra.mxu0 0
  %1094 = vmatprep.subr.bf16.mxu0 0
  %1095 = vmatpush1.bf16.msra.mxu0 0
  %1096 = vmatprep.subr.bf16.mxu0 0
  %1097 = vmatpush1.bf16.msra.mxu0 0
  %1098 = vmatprep.subr.bf16.mxu0 0
  %1099 = vmatpush1.bf16.msra.mxu0 0
  %1100 = vmatprep.subr.bf16.mxu0 0
  %1101 = vmatpush1.bf16.msra.mxu0 0
  %1102 = vmatprep.subr.bf16.mxu0 0
  %1103 = vmatpush1.bf16.msra.mxu0 0
  %1104 = vmatprep.subr.bf16.mxu0 0
  %1105 = vmatpush1.bf16.msra.mxu0 0
  %1106 = vmatprep.mubr.bf16.mxu0 %v1072
  %1107 = vmatmul.mubr.bf16.gmra.mrb[0].mxu0 %v1068
  %v1108 = vpop.f32.mrb[0].mxu0
  %v1109 = vadd.f32 %v57, %v1108
  %v1110 = vpop.f32.mrb[0].mxu0
  %v1111 = vpop.f32.mrb[0].mxu0
  %v1112 = vpop.f32.mrb[0].mxu0
  %1113 = vdwg.mxu0
  %v1114 = vmax.f32 %v1109, 0.0
  %v1115 = vpack.c.bf16 %v1114, %v1114
  %s1116 = scalar_lea.vmem %s3, 384
  %v1117 = vld [vmem:[%s1116] sm:$0xf]
  %v1118 = vld [vmem:[%s1116 + $0x4] sm:$0xf]
  %v1119 = vld [vmem:[%s1116 + $0x8] sm:$0xf]
  %v1120 = vld [vmem:[%s1116 + $0xc] sm:$0xf]
  %v1121 = vld [vmem:[%s1116 + $0x10] sm:$0xf]
  %v1122 = vld [vmem:[%s1116 + $0x14] sm:$0xf]
  %v1123 = vld [vmem:[%s1116 + $0x18] sm:$0xf]
  %v1124 = vld [vmem:[%s1116 + $0x1c] sm:$0xf]
  %v1125 = vld [vmem:[%s1116 + $0x20] sm:$0xf]
  %v1126 = vld [vmem:[%s1116 + $0x24] sm:$0xf]
  %v1127 = vld [vmem:[%s1116 + $0x28] sm:$0xf]
  %v1128 = vld [vmem:[%s1116 + $0x2c] sm:$0xf]
  %v1129 = vld [vmem:[%s1116 + $0x30] sm:$0xf]
  %v1130 = vld [vmem:[%s1116 + $0x34] sm:$0xf]
  %v1131 = vld [vmem:[%s1116 + $0x38] sm:$0xf]
  %v1132 = vld [vmem:[%s1116 + $0x3c] sm:$0xf]
  %v1149 = vunpack.c.l.b16 %v1117
  %v1150 = vunpack.c.l.b16 %v1118
  %v1151 = vunpack.c.l.b16 %v1119
  %v1152 = vunpack.c.l.b16 %v1120
  %v1153 = vunpack.c.l.b16 %v1121
  %v1154 = vunpack.c.l.b16 %v1122
  %v1155 = vunpack.c.l.b16 %v1123
  %v1156 = vunpack.c.l.b16 %v1124
  %v1157 = vunpack.c.l.b16 %v1125
  %v1158 = vunpack.c.l.b16 %v1126
  %v1159 = vunpack.c.l.b16 %v1127
  %v1160 = vunpack.c.l.b16 %v1128
  %v1161 = vunpack.c.l.b16 %v1129
  %v1162 = vunpack.c.l.b16 %v1130
  %v1163 = vunpack.c.l.b16 %v1131
  %v1164 = vunpack.c.l.b16 %v1132
  %v1165 = vpack.c.b16 %v1150, %v1149
  %v1166 = vpack.c.b16 %v1152, %v1151
  %v1167 = vpack.c.b16 %v1154, %v1153
  %v1168 = vpack.c.b16 %v1156, %v1155
  %v1169 = vpack.c.b16 %v1158, %v1157
  %v1170 = vpack.c.b16 %v1160, %v1159
  %v1171 = vpack.c.b16 %v1162, %v1161
  %v1172 = vpack.c.b16 %v1164, %v1163
  %1181 = vmatprep.subr.bf16.mxu0 0
  %1182 = vmatpush1.bf16.msra.mxu0 %v1165
  %1183 = vmatprep.subr.bf16.mxu0 0
  %1184 = vmatpush1.bf16.msra.mxu0 %v1166
  %1185 = vmatprep.subr.bf16.mxu0 0
  %1186 = vmatpush1.bf16.msra.mxu0 %v1167
  %1187 = vmatprep.subr.bf16.mxu0 0
  %1188 = vmatpush1.bf16.msra.mxu0 %v1168
  %1189 = vmatprep.subr.bf16.mxu0 0
  %1190 = vmatpush1.bf16.msra.mxu0 %v1169
  %1191 = vmatprep.subr.bf16.mxu0 0
  %1192 = vmatpush1.bf16.msra.mxu0 %v1170
  %1193 = vmatprep.subr.bf16.mxu0 0
  %1194 = vmatpush1.bf16.msra.mxu0 %v1171
  %1195 = vmatprep.subr.bf16.mxu0 0
  %1196 = vmatpush1.bf16.msra.mxu0 %v1172
  %1197 = vmatprep.subr.bf16.mxu0 0
  %1198 = vmatpush1.bf16.msra.mxu0 0
  %1199 = vmatprep.subr.bf16.mxu0 0
  %1200 = vmatpush1.bf16.msra.mxu0 0
  %1201 = vmatprep.subr.bf16.mxu0 0
  %1202 = vmatpush1.bf16.msra.mxu0 0
  %1203 = vmatprep.subr.bf16.mxu0 0
  %1204 = vmatpush1.bf16.msra.mxu0 0
  %1205 = vmatprep.subr.bf16.mxu0 0
  %1206 = vmatpush1.bf16.msra.mxu0 0
  %1207 = vmatprep.subr.bf16.mxu0 0
  %1208 = vmatpush1.bf16.msra.mxu0 0
  %1209 = vmatprep.subr.bf16.mxu0 0
  %1210 = vmatpush1.bf16.msra.mxu0 0
  %1211 = vmatprep.subr.bf16.mxu0 0
  %1212 = vmatpush1.bf16.msra.mxu0 0
  %1213 = vmatprep.mubr.bf16.mxu0 0
  %1214 = vmatmul.mubr.bf16.gmra.mrb[0].mxu0 %v1115
  %v1215 = vpop.f32.mrb[0].mxu0
  %v1216 = vadd.f32 0.0, %v1215
  %v1217 = vpop.f32.mrb[0].mxu0
  %v1218 = vpop.f32.mrb[0].mxu0
  %v1219 = vpop.f32.mrb[0].mxu0
  %1220 = vdwg.mxu0
  %v1221 = vadd.f32 %v1062, %v1216
  %s1222 = scalar_lea.vmem %s0, 56
  %v1223 = vld [vmem:[%s1222] sm:$0xff]
  %v1225 = vunpack.c.l.b16 %v1223
  %v1226 = vunpack.c.h.b16 %v1223
  %v1227 = vpack.c.b16 %v1225, %v1225
  %v1228 = vpack.c.b16 %v1226, %v1226
  %v1231 = vsel %vm119, %v1228, 0
  %1233 = vmatprep.subr.bf16.mxu0 0
  %1234 = vmatpush1.bf16.msra.mxu0 %v101
  %1235 = vmatprep.subr.bf16.mxu0 0
  %1236 = vmatpush1.bf16.msra.mxu0 %v102
  %1237 = vmatprep.subr.bf16.mxu0 0
  %1238 = vmatpush1.bf16.msra.mxu0 %v103
  %1239 = vmatprep.subr.bf16.mxu0 0
  %1240 = vmatpush1.bf16.msra.mxu0 %v104
  %1241 = vmatprep.subr.bf16.mxu0 0
  %1242 = vmatpush1.bf16.msra.mxu0 %v105
  %1243 = vmatprep.subr.bf16.mxu0 0
  %1244 = vmatpush1.bf16.msra.mxu0 %v106
  %1245 = vmatprep.subr.bf16.mxu0 0
  %1246 = vmatpush1.bf16.msra.mxu0 %v107
  %1247 = vmatprep.subr.bf16.mxu0 0
  %1248 = vmatpush1.bf16.msra.mxu0 %v108
  %1249 = vmatprep.subr.bf16.mxu0 0
  %1250 = vmatpush1.bf16.msra.mxu0 %v109
  %1251 = vmatprep.subr.bf16.mxu0 0
  %1252 = vmatpush1.bf16.msra.mxu0 0
  %1253 = vmatprep.subr.bf16.mxu0 0
  %1254 = vmatpush1.bf16.msra.mxu0 0
  %1255 = vmatprep.subr.bf16.mxu0 0
  %1256 = vmatpush1.bf16.msra.mxu0 0
  %1257 = vmatprep.subr.bf16.mxu0 0
  %1258 = vmatpush1.bf16.msra.mxu0 0
  %1259 = vmatprep.subr.bf16.mxu0 0
  %1260 = vmatpush1.bf16.msra.mxu0 0
  %1261 = vmatprep.subr.bf16.mxu0 0
  %1262 = vmatpush1.bf16.msra.mxu0 0
  %1263 = vmatprep.subr.bf16.mxu0 0
  %1264 = vmatpush1.bf16.msra.mxu0 0
  %1265 = vmatprep.mubr.bf16.mxu0 %v1231
  %1266 = vmatmul.mubr.bf16.gmra.mrb[0].mxu0 %v1227
  %v1267 = vpop.f32.mrb[0].mxu0
  %v1268 = vadd.f32 %v57, %v1267
  %v1269 = vpop.f32.mrb[0].mxu0
  %v1270 = vpop.f32.mrb[0].mxu0
  %v1271 = vpop.f32.mrb[0].mxu0
  %1272 = vdwg.mxu0
  %v1273 = vmax.f32 %v1268, 0.0
  %v1274 = vpack.c.bf16 %v1273, %v1273
  %s1275 = scalar_lea.vmem %s3, 448
  %v1276 = vld [vmem:[%s1275] sm:$0xf]
  %v1277 = vld [vmem:[%s1275 + $0x4] sm:$0xf]
  %v1278 = vld [vmem:[%s1275 + $0x8] sm:$0xf]
  %v1279 = vld [vmem:[%s1275 + $0xc] sm:$0xf]
  %v1280 = vld [vmem:[%s1275 + $0x10] sm:$0xf]
  %v1281 = vld [vmem:[%s1275 + $0x14] sm:$0xf]
  %v1282 = vld [vmem:[%s1275 + $0x18] sm:$0xf]
  %v1283 = vld [vmem:[%s1275 + $0x1c] sm:$0xf]
  %v1284 = vld [vmem:[%s1275 + $0x20] sm:$0xf]
  %v1285 = vld [vmem:[%s1275 + $0x24] sm:$0xf]
  %v1286 = vld [vmem:[%s1275 + $0x28] sm:$0xf]
  %v1287 = vld [vmem:[%s1275 + $0x2c] sm:$0xf]
  %v1288 = vld [vmem:[%s1275 + $0x30] sm:$0xf]
  %v1289 = vld [vmem:[%s1275 + $0x34] sm:$0xf]
  %v1290 = vld [vmem:[%s1275 + $0x38] sm:$0xf]
  %v1291 = vld [vmem:[%s1275 + $0x3c] sm:$0xf]
  %v1308 = vunpack.c.l.b16 %v1276
  %v1309 = vunpack.c.l.b16 %v1277
  %v1310 = vunpack.c.l.b16 %v1278
  %v1311 = vunpack.c.l.b16 %v1279
  %v1312 = vunpack.c.l.b16 %v1280
  %v1313 = vunpack.c.l.b16 %v1281
  %v1314 = vunpack.c.l.b16 %v1282
  %v1315 = vunpack.c.l.b16 %v1283
  %v1316 = vunpack.c.l.b16 %v1284
  %v1317 = vunpack.c.l.b16 %v1285
  %v1318 = vunpack.c.l.b16 %v1286
  %v1319 = vunpack.c.l.b16 %v1287
  %v1320 = vunpack.c.l.b16 %v1288
  %v1321 = vunpack.c.l.b16 %v1289
  %v1322 = vunpack.c.l.b16 %v1290
  %v1323 = vunpack.c.l.b16 %v1291
  %v1324 = vpack.c.b16 %v1309, %v1308
  %v1325 = vpack.c.b16 %v1311, %v1310
  %v1326 = vpack.c.b16 %v1313, %v1312
  %v1327 = vpack.c.b16 %v1315, %v1314
  %v1328 = vpack.c.b16 %v1317, %v1316
  %v1329 = vpack.c.b16 %v1319, %v1318
  %v1330 = vpack.c.b16 %v1321, %v1320
  %v1331 = vpack.c.b16 %v1323, %v1322
  %1340 = vmatprep.subr.bf16.mxu0 0
  %1341 = vmatpush1.bf16.msra.mxu0 %v1324
  %1342 = vmatprep.subr.bf16.mxu0 0
  %1343 = vmatpush1.bf16.msra.mxu0 %v1325
  %1344 = vmatprep.subr.bf16.mxu0 0
  %1345 = vmatpush1.bf16.msra.mxu0 %v1326
  %1346 = vmatprep.subr.bf16.mxu0 0
  %1347 = vmatpush1.bf16.msra.mxu0 %v1327
  %1348 = vmatprep.subr.bf16.mxu0 0
  %1349 = vmatpush1.bf16.msra.mxu0 %v1328
  %1350 = vmatprep.subr.bf16.mxu0 0
  %1351 = vmatpush1.bf16.msra.mxu0 %v1329
  %1352 = vmatprep.subr.bf16.mxu0 0
  %1353 = vmatpush1.bf16.msra.mxu0 %v1330
  %1354 = vmatprep.subr.bf16.mxu0 0
  %1355 = vmatpush1.bf16.msra.mxu0 %v1331
  %1356 = vmatprep.subr.bf16.mxu0 0
  %1357 = vmatpush1.bf16.msra.mxu0 0
  %1358 = vmatprep.subr.bf16.mxu0 0
  %1359 = vmatpush1.bf16.msra.mxu0 0
  %1360 = vmatprep.subr.bf16.mxu0 0
  %1361 = vmatpush1.bf16.msra.mxu0 0
  %1362 = vmatprep.subr.bf16.mxu0 0
  %1363 = vmatpush1.bf16.msra.mxu0 0
  %1364 = vmatprep.subr.bf16.mxu0 0
  %1365 = vmatpush1.bf16.msra.mxu0 0
  %1366 = vmatprep.subr.bf16.mxu0 0
  %1367 = vmatpush1.bf16.msra.mxu0 0
  %1368 = vmatprep.subr.bf16.mxu0 0
  %1369 = vmatpush1.bf16.msra.mxu0 0
  %1370 = vmatprep.subr.bf16.mxu0 0
  %1371 = vmatpush1.bf16.msra.mxu0 0
  %1372 = vmatprep.mubr.bf16.mxu0 0
  %1373 = vmatmul.mubr.bf16.gmra.mrb[0].mxu0 %v1274
  %v1374 = vpop.f32.mrb[0].mxu0
  %v1375 = vadd.f32 0.0, %v1374
  %v1376 = vpop.f32.mrb[0].mxu0
  %v1377 = vpop.f32.mrb[0].mxu0
  %v1378 = vpop.f32.mrb[0].mxu0
  %1379 = vdwg.mxu0
  %v1380 = vadd.f32 %v1221, %v1375
  %s1381 = scalar_lea.vmem %s0, 64
  %v1382 = vld [vmem:[%s1381] sm:$0xff]
  %v1384 = vunpack.c.l.b16 %v1382
  %v1385 = vunpack.c.h.b16 %v1382
  %v1386 = vpack.c.b16 %v1384, %v1384
  %v1387 = vpack.c.b16 %v1385, %v1385
  %v1390 = vsel %vm119, %v1387, 0
  %1392 = vmatprep.subr.bf16.mxu0 0
  %1393 = vmatpush1.bf16.msra.mxu0 %v101
  %1394 = vmatprep.subr.bf16.mxu0 0
  %1395 = vmatpush1.bf16.msra.mxu0 %v102
  %1396 = vmatprep.subr.bf16.mxu0 0
  %1397 = vmatpush1.bf16.msra.mxu0 %v103
  %1398 = vmatprep.subr.bf16.mxu0 0
  %1399 = vmatpush1.bf16.msra.mxu0 %v104
  %1400 = vmatprep.subr.bf16.mxu0 0
  %1401 = vmatpush1.bf16.msra.mxu0 %v105
  %1402 = vmatprep.subr.bf16.mxu0 0
  %1403 = vmatpush1.bf16.msra.mxu0 %v106
  %1404 = vmatprep.subr.bf16.mxu0 0
  %1405 = vmatpush1.bf16.msra.mxu0 %v107
  %1406 = vmatprep.subr.bf16.mxu0 0
  %1407 = vmatpush1.bf16.msra.mxu0 %v108
  %1408 = vmatprep.subr.bf16.mxu0 0
  %1409 = vmatpush1.bf16.msra.mxu0 %v109
  %1410 = vmatprep.subr.bf16.mxu0 0
  %1411 = vmatpush1.bf16.msra.mxu0 0
  %1412 = vmatprep.subr.bf16.mxu0 0
  %1413 = vmatpush1.bf16.msra.mxu0 0
  %1414 = vmatprep.subr.bf16.mxu0 0
  %1415 = vmatpush1.bf16.msra.mxu0 0
  %1416 = vmatprep.subr.bf16.mxu0 0
  %1417 = vmatpush1.bf16.msra.mxu0 0
  %1418 = vmatprep.subr.bf16.mxu0 0
  %1419 = vmatpush1.bf16.msra.mxu0 0
  %1420 = vmatprep.subr.bf16.mxu0 0
  %1421 = vmatpush1.bf16.msra.mxu0 0
  %1422 = vmatprep.subr.bf16.mxu0 0
  %1423 = vmatpush1.bf16.msra.mxu0 0
  %1424 = vmatprep.mubr.bf16.mxu0 %v1390
  %1425 = vmatmul.mubr.bf16.gmra.mrb[0].mxu0 %v1386
  %v1426 = vpop.f32.mrb[0].mxu0
  %v1427 = vadd.f32 %v57, %v1426
  %v1428 = vpop.f32.mrb[0].mxu0
  %v1429 = vpop.f32.mrb[0].mxu0
  %v1430 = vpop.f32.mrb[0].mxu0
  %1431 = vdwg.mxu0
  %v1432 = vmax.f32 %v1427, 0.0
  %v1433 = vpack.c.bf16 %v1432, %v1432
  %s1434 = scalar_lea.vmem %s3, 512
  %v1435 = vld [vmem:[%s1434] sm:$0xf]
  %v1436 = vld [vmem:[%s1434 + $0x4] sm:$0xf]
  %v1437 = vld [vmem:[%s1434 + $0x8] sm:$0xf]
  %v1438 = vld [vmem:[%s1434 + $0xc] sm:$0xf]
  %v1439 = vld [vmem:[%s1434 + $0x10] sm:$0xf]
  %v1440 = vld [vmem:[%s1434 + $0x14] sm:$0xf]
  %v1441 = vld [vmem:[%s1434 + $0x18] sm:$0xf]
  %v1442 = vld [vmem:[%s1434 + $0x1c] sm:$0xf]
  %v1443 = vld [vmem:[%s1434 + $0x20] sm:$0xf]
  %v1444 = vld [vmem:[%s1434 + $0x24] sm:$0xf]
  %v1445 = vld [vmem:[%s1434 + $0x28] sm:$0xf]
  %v1446 = vld [vmem:[%s1434 + $0x2c] sm:$0xf]
  %v1447 = vld [vmem:[%s1434 + $0x30] sm:$0xf]
  %v1448 = vld [vmem:[%s1434 + $0x34] sm:$0xf]
  %v1449 = vld [vmem:[%s1434 + $0x38] sm:$0xf]
  %v1450 = vld [vmem:[%s1434 + $0x3c] sm:$0xf]
  %v1467 = vunpack.c.l.b16 %v1435
  %v1468 = vunpack.c.l.b16 %v1436
  %v1469 = vunpack.c.l.b16 %v1437
  %v1470 = vunpack.c.l.b16 %v1438
  %v1471 = vunpack.c.l.b16 %v1439
  %v1472 = vunpack.c.l.b16 %v1440
  %v1473 = vunpack.c.l.b16 %v1441
  %v1474 = vunpack.c.l.b16 %v1442
  %v1475 = vunpack.c.l.b16 %v1443
  %v1476 = vunpack.c.l.b16 %v1444
  %v1477 = vunpack.c.l.b16 %v1445
  %v1478 = vunpack.c.l.b16 %v1446
  %v1479 = vunpack.c.l.b16 %v1447
  %v1480 = vunpack.c.l.b16 %v1448
  %v1481 = vunpack.c.l.b16 %v1449
  %v1482 = vunpack.c.l.b16 %v1450
  %v1483 = vpack.c.b16 %v1468, %v1467
  %v1484 = vpack.c.b16 %v1470, %v1469
  %v1485 = vpack.c.b16 %v1472, %v1471
  %v1486 = vpack.c.b16 %v1474, %v1473
  %v1487 = vpack.c.b16 %v1476, %v1475
  %v1488 = vpack.c.b16 %v1478, %v1477
  %v1489 = vpack.c.b16 %v1480, %v1479
  %v1490 = vpack.c.b16 %v1482, %v1481
  %1499 = vmatprep.subr.bf16.mxu0 0
  %1500 = vmatpush1.bf16.msra.mxu0 %v1483
  %1501 = vmatprep.subr.bf16.mxu0 0
  %1502 = vmatpush1.bf16.msra.mxu0 %v1484
  %1503 = vmatprep.subr.bf16.mxu0 0
  %1504 = vmatpush1.bf16.msra.mxu0 %v1485
  %1505 = vmatprep.subr.bf16.mxu0 0
  %1506 = vmatpush1.bf16.msra.mxu0 %v1486
  %1507 = vmatprep.subr.bf16.mxu0 0
  %1508 = vmatpush1.bf16.msra.mxu0 %v1487
  %1509 = vmatprep.subr.bf16.mxu0 0
  %1510 = vmatpush1.bf16.msra.mxu0 %v1488
  %1511 = vmatprep.subr.bf16.mxu0 0
  %1512 = vmatpush1.bf16.msra.mxu0 %v1489
  %1513 = vmatprep.subr.bf16.mxu0 0
  %1514 = vmatpush1.bf16.msra.mxu0 %v1490
  %1515 = vmatprep.subr.bf16.mxu0 0
  %1516 = vmatpush1.bf16.msra.mxu0 0
  %1517 = vmatprep.subr.bf16.mxu0 0
  %1518 = vmatpush1.bf16.msra.mxu0 0
  %1519 = vmatprep.subr.bf16.mxu0 0
  %1520 = vmatpush1.bf16.msra.mxu0 0
  %1521 = vmatprep.subr.bf16.mxu0 0
  %1522 = vmatpush1.bf16.msra.mxu0 0
  %1523 = vmatprep.subr.bf16.mxu0 0
  %1524 = vmatpush1.bf16.msra.mxu0 0
  %1525 = vmatprep.subr.bf16.mxu0 0
  %1526 = vmatpush1.bf16.msra.mxu0 0
  %1527 = vmatprep.subr.bf16.mxu0 0
  %1528 = vmatpush1.bf16.msra.mxu0 0
  %1529 = vmatprep.subr.bf16.mxu0 0
  %1530 = vmatpush1.bf16.msra.mxu0 0
  %1531 = vmatprep.mubr.bf16.mxu0 0
  %1532 = vmatmul.mubr.bf16.gmra.mrb[0].mxu0 %v1433
  %v1533 = vpop.f32.mrb[0].mxu0
  %v1534 = vadd.f32 0.0, %v1533
  %v1535 = vpop.f32.mrb[0].mxu0
  %v1536 = vpop.f32.mrb[0].mxu0
  %v1537 = vpop.f32.mrb[0].mxu0
  %1538 = vdwg.mxu0
  %v1539 = vadd.f32 %v1380, %v1534
  %v1540 = vld [vmem:[%s4] sm:$0x1]
  %v1542 = vlaneseq
  %v1543 = vshrl.u32 %v1542, 7
  %v1544 = vsub.s32 0, %v1543
  %v1545 = vrot.slane %v1540, %v1544
  %v1547 = vadd.f32 %v1539, %v1545
  %v1548 = vmax.f32 %v1547, 0.0
  %v1549 = vpack.c.bf16 %v1548, %v1548
  %v1550 = vld [vmem:[%s5] sm:$0xf]
  %v1551 = vld [vmem:[%s5 + $0x4] sm:$0xf]
  %v1552 = vld [vmem:[%s5 + $0x8] sm:$0xf]
  %v1553 = vld [vmem:[%s5 + $0xc] sm:$0xf]
  %v1554 = vld [vmem:[%s5 + $0x10] sm:$0xf]
  %v1555 = vld [vmem:[%s5 + $0x14] sm:$0xf]
  %v1556 = vld [vmem:[%s5 + $0x18] sm:$0xf]
  %v1557 = vld [vmem:[%s5 + $0x1c] sm:$0xf]
  %v1558 = vld [vmem:[%s5 + $0x20] sm:$0xf]
  %v1559 = vld [vmem:[%s5 + $0x24] sm:$0xf]
  %v1560 = vld [vmem:[%s5 + $0x28] sm:$0xf]
  %v1561 = vld [vmem:[%s5 + $0x2c] sm:$0xf]
  %v1562 = vld [vmem:[%s5 + $0x30] sm:$0xf]
  %v1563 = vld [vmem:[%s5 + $0x34] sm:$0xf]
  %v1564 = vld [vmem:[%s5 + $0x38] sm:$0xf]
  %v1565 = vld [vmem:[%s5 + $0x3c] sm:$0xf]
  %v1566 = vld [vmem:[%s6] sm:$0x1]
  %v1568 = vlaneseq
  %v1569 = vshrl.u32 %v1568, 7
  %v1570 = vsub.s32 0, %v1569
  %v1571 = vrot.slane %v1566, %v1570
  %v1589 = vunpack.c.l.b16 %v1550
  %v1590 = vunpack.c.l.b16 %v1551
  %v1591 = vunpack.c.l.b16 %v1552
  %v1592 = vunpack.c.l.b16 %v1553
  %v1593 = vunpack.c.l.b16 %v1554
  %v1594 = vunpack.c.l.b16 %v1555
  %v1595 = vunpack.c.l.b16 %v1556
  %v1596 = vunpack.c.l.b16 %v1557
  %v1597 = vunpack.c.l.b16 %v1558
  %v1598 = vunpack.c.l.b16 %v1559
  %v1599 = vunpack.c.l.b16 %v1560
  %v1600 = vunpack.c.l.b16 %v1561
  %v1601 = vunpack.c.l.b16 %v1562
  %v1602 = vunpack.c.l.b16 %v1563
  %v1603 = vunpack.c.l.b16 %v1564
  %v1604 = vunpack.c.l.b16 %v1565
  %v1605 = vpack.c.b16 %v1590, %v1589
  %v1606 = vpack.c.b16 %v1592, %v1591
  %v1607 = vpack.c.b16 %v1594, %v1593
  %v1608 = vpack.c.b16 %v1596, %v1595
  %v1609 = vpack.c.b16 %v1598, %v1597
  %v1610 = vpack.c.b16 %v1600, %v1599
  %v1611 = vpack.c.b16 %v1602, %v1601
  %v1612 = vpack.c.b16 %v1604, %v1603
  %1621 = vmatprep.subr.bf16.mxu0 0
  %1622 = vmatpush1.bf16.msra.mxu0 %v1605
  %1623 = vmatprep.subr.bf16.mxu0 0
  %1624 = vmatpush1.bf16.msra.mxu0 %v1606
  %1625 = vmatprep.subr.bf16.mxu0 0
  %1626 = vmatpush1.bf16.msra.mxu0 %v1607
  %1627 = vmatprep.subr.bf16.mxu0 0
  %1628 = vmatpush1.bf16.msra.mxu0 %v1608
  %1629 = vmatprep.subr.bf16.mxu0 0
  %1630 = vmatpush1.bf16.msra.mxu0 %v1609
  %1631 = vmatprep.subr.bf16.mxu0 0
  %1632 = vmatpush1.bf16.msra.mxu0 %v1610
  %1633 = vmatprep.subr.bf16.mxu0 0
  %1634 = vmatpush1.bf16.msra.mxu0 %v1611
  %1635 = vmatprep.subr.bf16.mxu0 0
  %1636 = vmatpush1.bf16.msra.mxu0 %v1612
  %1637 = vmatprep.subr.bf16.mxu0 0
  %1638 = vmatpush1.bf16.msra.mxu0 0
  %1639 = vmatprep.subr.bf16.mxu0 0
  %1640 = vmatpush1.bf16.msra.mxu0 0
  %1641 = vmatprep.subr.bf16.mxu0 0
  %1642 = vmatpush1.bf16.msra.mxu0 0
  %1643 = vmatprep.subr.bf16.mxu0 0
  %1644 = vmatpush1.bf16.msra.mxu0 0
  %1645 = vmatprep.subr.bf16.mxu0 0
  %1646 = vmatpush1.bf16.msra.mxu0 0
  %1647 = vmatprep.subr.bf16.mxu0 0
  %1648 = vmatpush1.bf16.msra.mxu0 0
  %1649 = vmatprep.subr.bf16.mxu0 0
  %1650 = vmatpush1.bf16.msra.mxu0 0
  %1651 = vmatprep.subr.bf16.mxu0 0
  %1652 = vmatpush1.bf16.msra.mxu0 0
  %1653 = vmatprep.mubr.bf16.mxu0 0
  %1654 = vmatmul.mubr.bf16.gmra.mrb[0].mxu0 %v1549
  %v1655 = vpop.f32.mrb[0].mxu0
  %v1656 = vadd.f32 %v1571, %v1655
  %v1657 = vpop.f32.mrb[0].mxu0
  %v1658 = vpop.f32.mrb[0].mxu0
  %v1659 = vpop.f32.mrb[0].mxu0
  %1660 = vdwg.mxu0
  %v1661 = vmax.f32 %v1656, 0.0
  %v1662 = vpack.c.bf16 %v1661, %v1661
  %v1663 = vld [vmem:[%s7] sm:$0xf]
  %v1664 = vld [vmem:[%s7 + $0x4] sm:$0xf]
  %v1665 = vld [vmem:[%s7 + $0x8] sm:$0xf]
  %v1666 = vld [vmem:[%s7 + $0xc] sm:$0xf]
  %v1667 = vld [vmem:[%s7 + $0x10] sm:$0xf]
  %v1668 = vld [vmem:[%s7 + $0x14] sm:$0xf]
  %v1669 = vld [vmem:[%s7 + $0x18] sm:$0xf]
  %v1670 = vld [vmem:[%s7 + $0x1c] sm:$0xf]
  %v1671 = vld [vmem:[%s7 + $0x20] sm:$0xf]
  %v1672 = vld [vmem:[%s7 + $0x24] sm:$0xf]
  %v1673 = vld [vmem:[%s7 + $0x28] sm:$0xf]
  %v1674 = vld [vmem:[%s7 + $0x2c] sm:$0xf]
  %v1675 = vld [vmem:[%s7 + $0x30] sm:$0xf]
  %v1676 = vld [vmem:[%s7 + $0x34] sm:$0xf]
  %v1677 = vld [vmem:[%s7 + $0x38] sm:$0xf]
  %v1678 = vld [vmem:[%s7 + $0x3c] sm:$0xf]
  %v1679 = vld [vmem:[%s8] sm:$0x1]
  %v1681 = vlaneseq
  %v1682 = vshrl.u32 %v1681, 7
  %v1683 = vsub.s32 0, %v1682
  %v1684 = vrot.slane %v1679, %v1683
  %v1702 = vunpack.c.l.b16 %v1663
  %v1703 = vunpack.c.l.b16 %v1664
  %v1704 = vunpack.c.l.b16 %v1665
  %v1705 = vunpack.c.l.b16 %v1666
  %v1706 = vunpack.c.l.b16 %v1667
  %v1707 = vunpack.c.l.b16 %v1668
  %v1708 = vunpack.c.l.b16 %v1669
  %v1709 = vunpack.c.l.b16 %v1670
  %v1710 = vunpack.c.l.b16 %v1671
  %v1711 = vunpack.c.l.b16 %v1672
  %v1712 = vunpack.c.l.b16 %v1673
  %v1713 = vunpack.c.l.b16 %v1674
  %v1714 = vunpack.c.l.b16 %v1675
  %v1715 = vunpack.c.l.b16 %v1676
  %v1716 = vunpack.c.l.b16 %v1677
  %v1717 = vunpack.c.l.b16 %v1678
  %v1718 = vpack.c.b16 %v1703, %v1702
  %v1719 = vpack.c.b16 %v1705, %v1704
  %v1720 = vpack.c.b16 %v1707, %v1706
  %v1721 = vpack.c.b16 %v1709, %v1708
  %v1722 = vpack.c.b16 %v1711, %v1710
  %v1723 = vpack.c.b16 %v1713, %v1712
  %v1724 = vpack.c.b16 %v1715, %v1714
  %v1725 = vpack.c.b16 %v1717, %v1716
  %1734 = vmatprep.subr.bf16.mxu0 0
  %1735 = vmatpush1.bf16.msra.mxu0 %v1718
  %1736 = vmatprep.subr.bf16.mxu0 0
  %1737 = vmatpush1.bf16.msra.mxu0 %v1719
  %1738 = vmatprep.subr.bf16.mxu0 0
  %1739 = vmatpush1.bf16.msra.mxu0 %v1720
  %1740 = vmatprep.subr.bf16.mxu0 0
  %1741 = vmatpush1.bf16.msra.mxu0 %v1721
  %1742 = vmatprep.subr.bf16.mxu0 0
  %1743 = vmatpush1.bf16.msra.mxu0 %v1722
  %1744 = vmatprep.subr.bf16.mxu0 0
  %1745 = vmatpush1.bf16.msra.mxu0 %v1723
  %1746 = vmatprep.subr.bf16.mxu0 0
  %1747 = vmatpush1.bf16.msra.mxu0 %v1724
  %1748 = vmatprep.subr.bf16.mxu0 0
  %1749 = vmatpush1.bf16.msra.mxu0 %v1725
  %1750 = vmatprep.subr.bf16.mxu0 0
  %1751 = vmatpush1.bf16.msra.mxu0 0
  %1752 = vmatprep.subr.bf16.mxu0 0
  %1753 = vmatpush1.bf16.msra.mxu0 0
  %1754 = vmatprep.subr.bf16.mxu0 0
  %1755 = vmatpush1.bf16.msra.mxu0 0
  %1756 = vmatprep.subr.bf16.mxu0 0
  %1757 = vmatpush1.bf16.msra.mxu0 0
  %1758 = vmatprep.subr.bf16.mxu0 0
  %1759 = vmatpush1.bf16.msra.mxu0 0
  %1760 = vmatprep.subr.bf16.mxu0 0
  %1761 = vmatpush1.bf16.msra.mxu0 0
  %1762 = vmatprep.subr.bf16.mxu0 0
  %1763 = vmatpush1.bf16.msra.mxu0 0
  %1764 = vmatprep.subr.bf16.mxu0 0
  %1765 = vmatpush1.bf16.msra.mxu0 0
  %1766 = vmatprep.mubr.bf16.mxu0 0
  %1767 = vmatmul.mubr.bf16.gmra.mrb[0].mxu0 %v1662
  %v1768 = vpop.f32.mrb[0].mxu0
  %v1769 = vadd.f32 %v1684, %v1768
  %v1770 = vpop.f32.mrb[0].mxu0
  %v1771 = vpop.f32.mrb[0].mxu0
  %v1772 = vpop.f32.mrb[0].mxu0
  %1773 = vdwg.mxu0
  %v1774 = vlaneseq
  %v1775 = vand.u32 %v1774, 127
  %vm1776 = vcmp.lt.s32.totalorder %v1775, 10
  %v1777 = vsel %vm1776, %v1769, -1e+30
  %1778 = vmax.xlane.f32.xlu0 %v1777
  %v1779 = vpop.xlane.xlu0 %1778
  %v1780 = vsub.f32 %v1777, %v1779
  %v1781 = vmul.f32 %v1780, 1.442695
  %v1782 = vpow.pop %v1781
  %1783 = vadd.xlane.f32.xlu0 %v1782
  %v1784 = vpop.xlane.xlu0 %1783
  %v1785 = vlog2.pop %v1784
  %v1786 = vmul.f32 %v1785, 0.6931472
  %v1787 = vsub.f32 %v1780, %v1786
  %1788 = vst [vmem:[%s9] sm:$0xff] %v1787
  // Predicated region
  $region38: #{cnn_cifar_forward.5} parent=0 // pred_check
    _
  $region39: #{cnn_cifar_forward.5} parent=0 // pred_check_branch
    %1790 = sbr.rel (0) target = $region41
  $region40: #{cnn_cifar_forward.5} parent=0 // pred_region
    _
  $region41: #{cnn_cifar_forward.5} parent=0 // pred_fallthru
    _
  // Predicated region
  $region42: #{cnn_cifar_forward.5} parent=0 // pred_check
    _
  $region43: #{cnn_cifar_forward.5} parent=0 // pred_check_branch
    %1792 = sbr.rel (0) target = $region45
  $region44: #{cnn_cifar_forward.5} parent=0 // pred_region
    _
  $region45: #{cnn_cifar_forward.5} parent=0 // pred_fallthru
    _

</llo_original>
